<compile_context>
chip_gen: v7x
topology: tpu7x:2x2x1
jax: 0.10.0
libtpu: 0.0.40
codegen_flags: <defaults>
</compile_context>

<pallas_src>
import functools
import numpy as np

import jax
import jax.numpy as jnp
from jax import lax
from jax.experimental import pallas as pl
from jax.experimental.pallas import tpu as pltpu


# ------------------------------- config -------------------------------------
INPUT_DIM = 32        # encoder hidden size
HIDDEN_DIM = 32       # decoder LSTM hidden size (== GAT nfeat == GAT nclass)
OUTPUT_DIM = 10       # number of labels
INTENT_NUM = 5        # number of intents  -> graph has 6 nodes, padded to 8
GAT_HIDDEN = 16       # decoder_gat_hidden_dim
EMBED_DIM = 8         # embedding_dim (teacher forcing branch)
N_HEADS = 4
ALPHA = 0.2           # LeakyReLU slope
NUM_NODES_PAD = 8     # INTENT_NUM + 1 = 6, padded to sublane multiple 8
LANE = 128            # lane-dense padded output width
B = 2                 # batch
T = 8                 # max sequence length


# ------------------------------ fused kernel ---------------------------------
def agif_fused_kernel(comb_ref, adjt_ref, adj0_ref, mask_ref,          # per tile
                      wih_ref, blstm_ref, whh_ref,                     # LSTM
                      wcat_ref, wa_ref, hint_ref, fint1_ref, fint2r_ref,  # GAT
                      outw_ref, oa1_ref, oa2_ref,                      # out att
                      linw_ref, linb_ref,                              # linear
                      out_ref,
                      *, bt, t_steps, alpha, n_heads, gat_hidden):
    H = whh_ref.shape[0]
    NP = hint_ref.shape[0]
    GH = gat_hidden
    M = bt * t_steps                                          # tokens per tile
    neg_inf = jnp.float32(-9.0e15)

    # ---------------- LSTM (batched recurrence, M = bt) ----------------------
    comb = comb_ref[0]                                        # (M, D+E) time-major
    whh = whh_ref[...]
    gates_x = (jnp.dot(comb, wih_ref[...],
                       preferred_element_type=jnp.float32)
               + blstm_ref[...])                              # (M, 4H) = (M, 128)

    h = jnp.zeros((bt, H), jnp.float32)
    c = jnp.zeros((bt, H), jnp.float32)
    hs = []
    for t in range(t_steps):                                  # T = 8, unrolled
        g = gates_x[t * bt:(t + 1) * bt, :] + jnp.dot(
            h, whh, preferred_element_type=jnp.float32)       # (bt, 4H)
        # gate columns reordered host-side to [i, f, o | g]
        sig = jax.nn.sigmoid(g[:, :3 * H])
        g_cell = jnp.tanh(g[:, 3 * H:])
        c = sig[:, H:2 * H] * c + sig[:, :H] * g_cell
        h = sig[:, 2 * H:3 * H] * jnp.tanh(c)
        hs.append(h)
    lstm_out = jnp.concatenate(hs, axis=0)                    # (M, H) time-major

    # ---------------- multi-head GAT layer ------------------------------------
    # Node 0 of every per-token graph = that token's LSTM hidden; nodes 1..5 =
    # intent embeddings (token independent, projected once host-side); 6,7 pad.
    h0 = jnp.dot(lstm_out, wcat_ref[...],
                 preferred_element_type=jnp.float32)          # (M, nh*GH) node-0 feats
    f0 = jnp.dot(lstm_out, wa_ref[...],
                 preferred_element_type=jnp.float32)          # (M, 2*nh)  node-0 f1|f2

    adjt = adjt_ref[0]                                        # (M, NP, NP)
    adj0 = adj0_ref[0]                                        # (M, NP)
    lane_j = lax.broadcasted_iota(jnp.int32, (1, NP), 1)      # (1, NP)
    node_i = lax.broadcasted_iota(jnp.int32, (1, NP, 1), 1)   # (1, NP, 1)

    x2_parts = []
    for k in range(n_heads):
        # f1 over rows i (node 0 per-token, intent nodes shared): (M, NP, 1)
        f1 = jnp.where(node_i == 0,
                       f0[:, k:k + 1][:, :, None],
                       fint1_ref[:, k:k + 1][None, :, :])
        # f2 over cols j, lane oriented: (M, NP)
        f2 = jnp.where(lane_j == 0,
                       f0[:, n_heads + k:n_heads + k + 1],
                       fint2r_ref[k:k + 1, :])
        e = f1 + f2[:, None, :]                               # (M, NP, NP)
        e = jnp.where(e > 0, e, alpha * e)                    # LeakyReLU
        e = jnp.where(adjt > 0, e, neg_inf)                   # adjacency mask
        mx = jnp.max(e, axis=-1, keepdims=True)
        p = jnp.exp(e - mx)
        attn = p * pl.reciprocal(jnp.sum(p, axis=-1, keepdims=True),
                                 approx=True)                 # softmax(dim=2)
        # apply: shared intent values via MXU matmul (hint row 0 is zero, so
        # the j=0 column only contributes through the explicit h0 term).
        hint_k = hint_ref[:, k * GH:(k + 1) * GH]             # (NP, GH)
        h0_k = h0[:, k * GH:(k + 1) * GH]                     # (M, GH)
        hp = (jnp.dot(attn.reshape(M * NP, NP), hint_k,
                      preferred_element_type=jnp.float32)
              + (attn[:, :, 0:1] * h0_k[:, None, :]).reshape(M * NP, GH))
        # ELU (concat=True head)
        hp = jnp.where(hp > 0, hp, jnp.exp(jnp.minimum(hp, 0.0)) - 1.0)
        x2_parts.append(hp)

    # one K = n_heads*GH = 64 matmul instead of 4 K=16 matmuls + adds
    x2 = jnp.concatenate(x2_parts, axis=-1)                   # (M*NP, 64)
    h2 = jnp.dot(x2, outw_ref[...],
                 preferred_element_type=jnp.float32)          # (M*NP, H)

    # ---------------- out-attention layer: only node 0 is consumed -----------
    h2n = h2.reshape(M, NP, H)
    f1o = jnp.sum(h2n[:, 0, :] * oa1_ref[...], axis=-1, keepdims=True)   # (M,1)
    f2o = jnp.sum(h2n * oa2_ref[...][None], axis=-1)                     # (M,NP)
    e0 = f1o + f2o
    e0 = jnp.where(e0 > 0, e0, alpha * e0)
    e0 = jnp.where(adj0 > 0, e0, neg_inf)
    m0 = jnp.max(e0, axis=-1, keepdims=True)
    p0 = jnp.exp(e0 - m0)
    attn0 = p0 * pl.reciprocal(jnp.sum(p0, axis=-1, keepdims=True),
                               approx=True)                              # (M,NP)
    node0 = jnp.sum(attn0[:, :, None] * h2n, axis=1)                     # (M, H)
    # F.elu(out_att(...)) + residual (input node 0 == LSTM hidden)
    node0 = jnp.where(node0 > 0, node0,
                      jnp.exp(jnp.minimum(node0, 0.0)) - 1.0) + lstm_out

    # ---------------- final linear (lane-dense, 128 lanes) + length mask -----
    logits = (jnp.dot(node0, linw_ref[...],
                      preferred_element_type=jnp.float32)
              + linb_ref[...])                                # (M, 128)
    out_ref[0] = logits * mask_ref[0]                         # full-vreg stores


# ------------------------------- host glue ------------------------------------
def generate_adj_gat(intent_index, batch, num_intent, pad_to,
                     row_normalized=True):
    """AGIFDecoder.generate_adj_gat + D^-1 A row normalization, padded to pad_to."""
    N = num_intent + 1
    adj = np.stack([np.eye(N, dtype=np.float32) for _ in range(batch)])
    intent_idx = [[0] for _ in range(batch)]
    for (bb, it) in intent_index:
        intent_idx[bb].append(it + 1)
    for i in range(batch):
        for j in intent_idx[i]:
            adj[i, j, intent_idx[i]] = 1.0
    if row_normalized:
        rowsum = adj.sum(axis=2)
        r_inv = np.where(rowsum > 0, 1.0 / rowsum, 0.0)
        adj = adj * r_inv[:, :, None]
    pad = pad_to - N
    adj = np.pad(adj, ((0, 0), (0, pad), (0, pad)))
    return jnp.asarray(adj, dtype=jnp.float32)


def init_params(key):
    """Raw parameters in PyTorch layout (gate order i, f, g, o)."""
    ks = jax.random.split(key, 16)
    p = {}
    p['embedding'] = 0.1 * jax.random.normal(ks[0], (OUTPUT_DIM, EMBED_DIM),
                                             dtype=jnp.float32)
    p['init_tensor'] = 0.1 * jax.random.normal(ks[1], (1, EMBED_DIM),
                                               dtype=jnp.float32)
    lstm_in = INPUT_DIM + EMBED_DIM
    p['w_ih'] = 0.1 * jax.random.normal(ks[2], (lstm_in, 4 * HIDDEN_DIM),
                                        dtype=jnp.float32)
    p['w_hh'] = 0.1 * jax.random.normal(ks[3], (HIDDEN_DIM, 4 * HIDDEN_DIM),
                                        dtype=jnp.float32)
    p['b_lstm'] = 0.1 * jax.random.normal(ks[4], (1, 4 * HIDDEN_DIM),
                                          dtype=jnp.float32)   # b_ih + b_hh
    p['gat_W'] = [0.1 * jax.random.normal(ks[5 + i], (HIDDEN_DIM, GAT_HIDDEN),
                                          dtype=jnp.float32)
                  for i in range(N_HEADS)]
    p['gat_a'] = [0.1 * jax.random.normal(ks[9 + i], (2 * GAT_HIDDEN,),
                                          dtype=jnp.float32)
                  for i in range(N_HEADS)]
    p['out_W'] = 0.1 * jax.random.normal(ks[13],
                                         (GAT_HIDDEN * N_HEADS, HIDDEN_DIM),
                                         dtype=jnp.float32)
    p['out_a'] = 0.1 * jax.random.normal(ks[14], (2 * HIDDEN_DIM,),
                                         dtype=jnp.float32)
    k_lw, k_lb = jax.random.split(ks[15], 2)
    p['lin_W'] = 0.1 * jax.random.normal(k_lw, (HIDDEN_DIM, OUTPUT_DIM),
                                         dtype=jnp.float32)
    p['lin_b'] = 0.1 * jax.random.normal(k_lb, (1, OUTPUT_DIM),
                                         dtype=jnp.float32)
    return p


def pack_params(p):
    """One-time host-side repacking for the fused kernel.

    * LSTM gate columns reordered from PyTorch (i,f,g,o) to (i,f,o,g); the same
      permutation is applied to w_ih, w_hh and the (b_ih + b_hh) bias.
    * GAT head weights stacked into one (H, n_heads*GH) matrix; per-head
      attention vectors folded into W: column k of gat_WA = W_k @ a1_k,
      column n_heads+k = W_k @ a2_k.
    * Final Linear zero-padded to 128 lanes (lane-dense stores; wrapper slices
      back to OUTPUT_DIM).
    """
    H = HIDDEN_DIM
    perm = np.concatenate([np.arange(0, 2 * H),          # i, f
                           np.arange(3 * H, 4 * H),      # o
                           np.arange(2 * H, 3 * H)])     # g
    wa1 = jnp.stack([p['gat_W'][k] @ p['gat_a'][k][:GAT_HIDDEN]
                     for k in range(N_HEADS)], axis=1)                # (H, nh)
    wa2 = jnp.stack([p['gat_W'][k] @ p['gat_a'][k][GAT_HIDDEN:]
                     for k in range(N_HEADS)], axis=1)                # (H, nh)
    lin_W_pad = jnp.zeros((H, LANE), jnp.float32).at[:, :OUTPUT_DIM].set(p['lin_W'])
    lin_b_pad = jnp.zeros((1, LANE), jnp.float32).at[:, :OUTPUT_DIM].set(p['lin_b'])
    packed = {
        'embedding': p['embedding'],
        'init_tensor': p['init_tensor'],
        'w_ih': p['w_ih'][:, perm],                       # (D+E, 4H), combined input
        'w_hh': p['w_hh'][:, perm],
        'b_lstm': p['b_lstm'][:, perm],
        'gat_W_cat': jnp.concatenate(p['gat_W'], axis=1),             # (H, nh*GH)
        'gat_WA': jnp.concatenate([wa1, wa2], axis=1),                # (H, 2*nh)
        'out_W': p['out_W'],                                          # (nh*GH, H)
        'out_a1': p['out_a'][:HIDDEN_DIM][None, :],
        'out_a2': p['out_a'][HIDDEN_DIM:][None, :],
        'lin_W_pad': lin_W_pad,                                       # (H, 128)
        'lin_b_pad': lin_b_pad,                                       # (1, 128)
    }
    return packed


def _default_num_batch_tiles(batch):
    """1 tile on single-TC chips (v5e/v6e); 1 tile per TensorCore when the
    core count is discoverable (e.g. 2 on v7x).  Falls back to 1 (correct and
    optimal for single-TC chips) if unknown."""
    try:
        n_tc = int(getattr(jax.devices()[0], "num_cores", 1) or 1)
    except Exception:
        n_tc = 1
    n = max(1, min(n_tc, batch))
    while batch % n:
        n -= 1
    return n


def agif_decoder_forward(packed, inputs, num_batch_tiles=None):
    hidden = inputs['hidden'].astype(jnp.float32)           # (B, T, D)
    seq_lens = inputs['seq_lens'].astype(jnp.int32)         # (B,)
    forced = inputs['force_input']                          # (B, T) int32
    intent_index = inputs['intent_index']                   # python list
    intent_embedding = inputs['intent_embedding'].astype(jnp.float32)

    Bn, Tn, D = hidden.shape
    E = packed['init_tensor'].shape[1]
    H = packed['w_hh'].shape[0]
    NP = NUM_NODES_PAD
    DE = D + E

    num_tiles = num_batch_tiles or _default_num_batch_tiles(Bn)
    if Bn % num_tiles:
        num_tiles = 1
    bt = Bn // num_tiles
    TB = Tn * bt

    # torch.sort / origin_idx round trip skipped: value preserving (all
    # downstream compute is per-sentence independent).
    adj = generate_adj_gat(intent_index, Bn, INTENT_NUM, pad_to=NP)   # (B,NP,NP)

    # Teacher-forcing previous-label tensor (eval-mode dropout = identity).
    forced_emb = packed['embedding'][forced][:, :-1]                  # (B,T-1,E)
    init = jnp.broadcast_to(packed['init_tensor'][None], (Bn, 1, E))
    prev = jnp.concatenate([init, forced_emb], axis=1)                # (B, T, E)

    # Combined LSTM input, time-major per tile (rows = t*bt + b_local).
    comb = jnp.concatenate([hidden, prev], axis=2)                    # (B, T, DE)
    comb_tiles = comb.reshape(num_tiles, bt, Tn, DE).transpose(0, 2, 1, 3)
    comb_tiles = comb_tiles.reshape(num_tiles, TB, DE)

    # Per-token adjacency (broadcast over time), plus its node-0 row.
    adj_r = adj.reshape(num_tiles, bt, NP, NP)
    adjt = jnp.broadcast_to(adj_r[:, None], (num_tiles, Tn, bt, NP, NP))
    adjt = adjt.reshape(num_tiles, TB, NP, NP)
    adj0 = adjt[:, :, 0, :]                                           # (tiles,TB,NP)

    # Length mask, same time-major row order as the tokens.
    mask = (jnp.arange(Tn)[None, :] < seq_lens[:, None]).astype(jnp.float32)
    mask_tiles = mask.reshape(num_tiles, bt, Tn).transpose(0, 2, 1)
    mask_tiles = mask_tiles.reshape(num_tiles, TB, 1)

    # Batch/time-invariant intent-node projections (shared by every token).
    intent_pad = jnp.pad(intent_embedding,
                         ((1, NP - 1 - INTENT_NUM), (0, 0)))          # (NP, H)
    hint = intent_pad @ packed['gat_W_cat']                           # (NP, nh*GH)
    fint = intent_pad @ packed['gat_WA']                              # (NP, 2*nh)
    fint_a1 = fint[:, :N_HEADS]                                       # (NP, nh)
    fint_a2r = fint[:, N_HEADS:].T                                    # (nh, NP)

    kern = functools.partial(agif_fused_kernel, bt=bt, t_steps=Tn,
                             alpha=ALPHA, n_heads=N_HEADS,
                             gat_hidden=GAT_HIDDEN)
    grid_spec = pltpu.PrefetchScalarGridSpec(
        num_scalar_prefetch=0,
        grid=(num_tiles,),
        in_specs=[
            pl.BlockSpec((1, TB, DE), lambda g: (g, 0, 0)),           # comb
            pl.BlockSpec((1, TB, NP, NP), lambda g: (g, 0, 0, 0)),    # adjt
            pl.BlockSpec((1, TB, NP), lambda g: (g, 0, 0)),           # adj0
            pl.BlockSpec((1, TB, 1), lambda g: (g, 0, 0)),            # mask
            pl.BlockSpec((DE, 4 * H), lambda g: (0, 0)),              # w_ih
            pl.BlockSpec((1, 4 * H), lambda g: (0, 0)),               # b_lstm
            pl.BlockSpec((H, 4 * H), lambda g: (0, 0)),               # w_hh
            pl.BlockSpec((H, N_HEADS * GAT_HIDDEN), lambda g: (0, 0)),  # W_cat
            pl.BlockSpec((H, 2 * N_HEADS), lambda g: (0, 0)),         # WA
            pl.BlockSpec((NP, N_HEADS * GAT_HIDDEN), lambda g: (0, 0)),  # hint
            pl.BlockSpec((NP, N_HEADS), lambda g: (0, 0)),            # fint_a1
            pl.BlockSpec((N_HEADS, NP), lambda g: (0, 0)),            # fint_a2r
            pl.BlockSpec((N_HEADS * GAT_HIDDEN, H), lambda g: (0, 0)),  # out_W
            pl.BlockSpec((1, H), lambda g: (0, 0)),                   # out_a1
            pl.BlockSpec((1, H), lambda g: (0, 0)),                   # out_a2
            pl.BlockSpec((H, LANE), lambda g: (0, 0)),                # lin_W_pad
            pl.BlockSpec((1, LANE), lambda g: (0, 0)),                # lin_b_pad
        ],
        out_specs=pl.BlockSpec((1, TB, LANE), lambda g: (g, 0, 0)),
    )
    out = pl.pallas_call(
        kern,
        out_shape=jax.ShapeDtypeStruct((num_tiles, TB, LANE), jnp.float32),
        grid_spec=grid_spec,
        compiler_params=pltpu.CompilerParams(
            dimension_semantics=("parallel",)),
    )(comb_tiles, adjt, adj0, mask_tiles,
      packed['w_ih'], packed['b_lstm'], packed['w_hh'],
      packed['gat_W_cat'], packed['gat_WA'], hint, fint_a1, fint_a2r,
      packed['out_W'], packed['out_a1'], packed['out_a2'],
      packed['lin_W_pad'], packed['lin_b_pad'])

    # Undo the per-tile time-major layout and drop the lane padding.
    out = out.reshape(num_tiles, Tn, bt, LANE).transpose(0, 2, 1, 3)
    out = out.reshape(Bn, Tn, LANE)[..., :OUTPUT_DIM]
    return {'hidden': out}


# --------------------------------- main --------------------------------------
if __name__ == "__main__":
    key = jax.random.PRNGKey(0)
    kp, kh, kf, ke = jax.random.split(key, 4)

    params = init_params(kp)
    packed = pack_params(params)

    hidden = jax.random.normal(kh, (B, T, INPUT_DIM), dtype=jnp.float32)
    seq_lens = jnp.array([5, 8], dtype=jnp.int32)
    force_input = jax.random.randint(kf, (B, T), 0, OUTPUT_DIM, dtype=jnp.int32)
    intent_embedding = jax.random.normal(ke, (INTENT_NUM, HIDDEN_DIM),
                                         dtype=jnp.float32)
    intent_index = [(0, 1), (0, 3), (1, 2)]   # (batch_idx, intent_idx) pairs

    inputs = {
        'hidden': hidden,
        'seq_lens': seq_lens,
        'force_input': force_input,
        'intent_index': intent_index,
        'intent_embedding': intent_embedding,
    }

    out = agif_decoder_forward(packed, inputs)
    jax.block_until_ready(out['hidden'])
    assert out['hidden'].shape == (B, T, OUTPUT_DIM)
    print("KERNEL_OK")
</pallas_src>

<mosaic_0001>
module attributes {stable_mosaic.version = 11 : i64} {
  func.func @agif_fused_kernel(%arg0: i32, %arg1: memref<1x16x40xf32, #tpu.memory_space<vmem>>, %arg2: memref<1x16x8x8xf32, #tpu.memory_space<vmem>>, %arg3: memref<1x16x8xf32, #tpu.memory_space<vmem>>, %arg4: memref<1x16x1xf32, #tpu.memory_space<vmem>>, %arg5: memref<40x128xf32, #tpu.memory_space<vmem>>, %arg6: memref<1x128xf32, #tpu.memory_space<vmem>>, %arg7: memref<32x128xf32, #tpu.memory_space<vmem>>, %arg8: memref<32x64xf32, #tpu.memory_space<vmem>>, %arg9: memref<32x8xf32, #tpu.memory_space<vmem>>, %arg10: memref<8x64xf32, #tpu.memory_space<vmem>>, %arg11: memref<8x4xf32, #tpu.memory_space<vmem>>, %arg12: memref<4x8xf32, #tpu.memory_space<vmem>>, %arg13: memref<64x32xf32, #tpu.memory_space<vmem>>, %arg14: memref<1x32xf32, #tpu.memory_space<vmem>>, %arg15: memref<1x32xf32, #tpu.memory_space<vmem>>, %arg16: memref<32x128xf32, #tpu.memory_space<vmem>>, %arg17: memref<1x128xf32, #tpu.memory_space<vmem>>, %arg18: memref<1x16x128xf32, #tpu.memory_space<vmem>>) attributes {dimension_semantics = [#tpu.dimension_semantics<parallel>], iteration_bounds = array<i64: 1>, scalar_prefetch = 0 : i64, scratch_operands = 0 : i64, tpu.core_type = #tpu.core_type<tc>, window_params = [{transform_indices = @transform_0, window_bounds = array<i64: 1, 16, 40>}, {transform_indices = @transform_1, window_bounds = array<i64: 1, 16, 8, 8>}, {transform_indices = @transform_2, window_bounds = array<i64: 1, 16, 8>}, {transform_indices = @transform_3, window_bounds = array<i64: 1, 16, 1>}, {pipeline_mode = #tpu.pipeline_mode<synchronous>, transform_indices = @transform_4, window_bounds = array<i64: 40, 128>}, {pipeline_mode = #tpu.pipeline_mode<synchronous>, transform_indices = @transform_5, window_bounds = array<i64: 1, 128>}, {pipeline_mode = #tpu.pipeline_mode<synchronous>, transform_indices = @transform_6, window_bounds = array<i64: 32, 128>}, {pipeline_mode = #tpu.pipeline_mode<synchronous>, transform_indices = @transform_7, window_bounds = array<i64: 32, 64>}, {pipeline_mode = #tpu.pipeline_mode<synchronous>, transform_indices = @transform_8, window_bounds = array<i64: 32, 8>}, {pipeline_mode = #tpu.pipeline_mode<synchronous>, transform_indices = @transform_9, window_bounds = array<i64: 8, 64>}, {pipeline_mode = #tpu.pipeline_mode<synchronous>, transform_indices = @transform_10, window_bounds = array<i64: 8, 4>}, {pipeline_mode = #tpu.pipeline_mode<synchronous>, transform_indices = @transform_11, window_bounds = array<i64: 4, 8>}, {pipeline_mode = #tpu.pipeline_mode<synchronous>, transform_indices = @transform_12, window_bounds = array<i64: 64, 32>}, {pipeline_mode = #tpu.pipeline_mode<synchronous>, transform_indices = @transform_13, window_bounds = array<i64: 1, 32>}, {pipeline_mode = #tpu.pipeline_mode<synchronous>, transform_indices = @transform_14, window_bounds = array<i64: 1, 32>}, {pipeline_mode = #tpu.pipeline_mode<synchronous>, transform_indices = @transform_15, window_bounds = array<i64: 32, 128>}, {pipeline_mode = #tpu.pipeline_mode<synchronous>, transform_indices = @transform_16, window_bounds = array<i64: 1, 128>}, {transform_indices = @transform_17, window_bounds = array<i64: 1, 16, 128>}]} {
    %c0 = arith.constant 0 : index
    %c0_0 = arith.constant 0 : index
    %c0_1 = arith.constant 0 : index
    %0 = vector.load %arg1[%c0, %c0_0, %c0_1] : memref<1x16x40xf32, #tpu.memory_space<vmem>>, vector<1x16x40xf32>
    %1 = vector.shape_cast %0 : vector<1x16x40xf32> to vector<16x40xf32>
    %c0_2 = arith.constant 0 : index
    %c0_3 = arith.constant 0 : index
    %2 = vector.load %arg7[%c0_2, %c0_3] : memref<32x128xf32, #tpu.memory_space<vmem>>, vector<32x128xf32>
    %c0_4 = arith.constant 0 : index
    %c0_5 = arith.constant 0 : index
    %3 = vector.load %arg5[%c0_4, %c0_5] : memref<40x128xf32, #tpu.memory_space<vmem>>, vector<40x128xf32>
    %cst = arith.constant dense<0.000000e+00> : vector<16x128xf32>
    %4 = tpu.matmul %1, %3, %cst {dimension_numbers = #tpu.dot_dimension_numbers<[1], [0], [0], [1], [0, 0, 1, 1], [], []>} : vector<16x40xf32>, vector<40x128xf32>, vector<16x128xf32> -> vector<16x128xf32>
    %c0_6 = arith.constant 0 : index
    %c0_7 = arith.constant 0 : index
    %5 = vector.load %arg6[%c0_6, %c0_7] : memref<1x128xf32, #tpu.memory_space<vmem>>, vector<1x128xf32>
    %6 = vector.broadcast %5 : vector<1x128xf32> to vector<16x128xf32>
    %7 = arith.addf %4, %6 : vector<16x128xf32>
    %cst_8 = arith.constant 0.000000e+00 : f32
    %8 = vector.broadcast %cst_8 : f32 to vector<2x32xf32>
    %cst_9 = arith.constant 0.000000e+00 : f32
    %9 = vector.broadcast %cst_9 : f32 to vector<2x32xf32>
    %10 = vector.extract_strided_slice %7 {offsets = [0, 0], sizes = [2, 128], strides = [1, 1]} : vector<16x128xf32> to vector<2x128xf32>
    %cst_10 = arith.constant dense<0.000000e+00> : vector<2x128xf32>
    %11 = tpu.matmul %8, %2, %cst_10 {dimension_numbers = #tpu.dot_dimension_numbers<[1], [0], [0], [1], [0, 0, 1, 1], [], []>} : vector<2x32xf32>, vector<32x128xf32>, vector<2x128xf32> -> vector<2x128xf32>
    %12 = arith.addf %10, %11 : vector<2x128xf32>
    %13 = vector.extract_strided_slice %12 {offsets = [0, 0], sizes = [2, 96], strides = [1, 1]} : vector<2x128xf32> to vector<2x96xf32>
    %14 = arith.negf %13 : vector<2x96xf32>
    %15 = math.exp %14 : vector<2x96xf32>
    %cst_11 = arith.constant 1.000000e+00 : f32
    %16 = vector.broadcast %cst_11 : f32 to vector<2x96xf32>
    %17 = arith.addf %16, %15 : vector<2x96xf32>
    %18 = arith.divf %16, %17 : vector<2x96xf32>
    %19 = vector.extract_strided_slice %12 {offsets = [0, 96], sizes = [2, 32], strides = [1, 1]} : vector<2x128xf32> to vector<2x32xf32>
    %20 = math.tanh %19 : vector<2x32xf32>
    %21 = vector.extract_strided_slice %18 {offsets = [0, 32], sizes = [2, 32], strides = [1, 1]} : vector<2x96xf32> to vector<2x32xf32>
    %22 = arith.mulf %21, %9 : vector<2x32xf32>
    %23 = vector.extract_strided_slice %18 {offsets = [0, 0], sizes = [2, 32], strides = [1, 1]} : vector<2x96xf32> to vector<2x32xf32>
    %24 = arith.mulf %23, %20 : vector<2x32xf32>
    %25 = arith.addf %22, %24 : vector<2x32xf32>
    %26 = vector.extract_strided_slice %18 {offsets = [0, 64], sizes = [2, 32], strides = [1, 1]} : vector<2x96xf32> to vector<2x32xf32>
    %27 = math.tanh %25 : vector<2x32xf32>
    %28 = arith.mulf %26, %27 : vector<2x32xf32>
    %29 = vector.extract_strided_slice %7 {offsets = [2, 0], sizes = [2, 128], strides = [1, 1]} : vector<16x128xf32> to vector<2x128xf32>
    %cst_12 = arith.constant dense<0.000000e+00> : vector<2x128xf32>
    %30 = tpu.matmul %28, %2, %cst_12 {dimension_numbers = #tpu.dot_dimension_numbers<[1], [0], [0], [1], [0, 0, 1, 1], [], []>} : vector<2x32xf32>, vector<32x128xf32>, vector<2x128xf32> -> vector<2x128xf32>
    %31 = arith.addf %29, %30 : vector<2x128xf32>
    %32 = vector.extract_strided_slice %31 {offsets = [0, 0], sizes = [2, 96], strides = [1, 1]} : vector<2x128xf32> to vector<2x96xf32>
    %33 = arith.negf %32 : vector<2x96xf32>
    %34 = math.exp %33 : vector<2x96xf32>
    %cst_13 = arith.constant 1.000000e+00 : f32
    %35 = vector.broadcast %cst_13 : f32 to vector<2x96xf32>
    %36 = arith.addf %35, %34 : vector<2x96xf32>
    %37 = arith.divf %35, %36 : vector<2x96xf32>
    %38 = vector.extract_strided_slice %31 {offsets = [0, 96], sizes = [2, 32], strides = [1, 1]} : vector<2x128xf32> to vector<2x32xf32>
    %39 = math.tanh %38 : vector<2x32xf32>
    %40 = vector.extract_strided_slice %37 {offsets = [0, 32], sizes = [2, 32], strides = [1, 1]} : vector<2x96xf32> to vector<2x32xf32>
    %41 = arith.mulf %40, %25 : vector<2x32xf32>
    %42 = vector.extract_strided_slice %37 {offsets = [0, 0], sizes = [2, 32], strides = [1, 1]} : vector<2x96xf32> to vector<2x32xf32>
    %43 = arith.mulf %42, %39 : vector<2x32xf32>
    %44 = arith.addf %41, %43 : vector<2x32xf32>
    %45 = vector.extract_strided_slice %37 {offsets = [0, 64], sizes = [2, 32], strides = [1, 1]} : vector<2x96xf32> to vector<2x32xf32>
    %46 = math.tanh %44 : vector<2x32xf32>
    %47 = arith.mulf %45, %46 : vector<2x32xf32>
    %48 = vector.extract_strided_slice %7 {offsets = [4, 0], sizes = [2, 128], strides = [1, 1]} : vector<16x128xf32> to vector<2x128xf32>
    %cst_14 = arith.constant dense<0.000000e+00> : vector<2x128xf32>
    %49 = tpu.matmul %47, %2, %cst_14 {dimension_numbers = #tpu.dot_dimension_numbers<[1], [0], [0], [1], [0, 0, 1, 1], [], []>} : vector<2x32xf32>, vector<32x128xf32>, vector<2x128xf32> -> vector<2x128xf32>
    %50 = arith.addf %48, %49 : vector<2x128xf32>
    %51 = vector.extract_strided_slice %50 {offsets = [0, 0], sizes = [2, 96], strides = [1, 1]} : vector<2x128xf32> to vector<2x96xf32>
    %52 = arith.negf %51 : vector<2x96xf32>
    %53 = math.exp %52 : vector<2x96xf32>
    %cst_15 = arith.constant 1.000000e+00 : f32
    %54 = vector.broadcast %cst_15 : f32 to vector<2x96xf32>
    %55 = arith.addf %54, %53 : vector<2x96xf32>
    %56 = arith.divf %54, %55 : vector<2x96xf32>
    %57 = vector.extract_strided_slice %50 {offsets = [0, 96], sizes = [2, 32], strides = [1, 1]} : vector<2x128xf32> to vector<2x32xf32>
    %58 = math.tanh %57 : vector<2x32xf32>
    %59 = vector.extract_strided_slice %56 {offsets = [0, 32], sizes = [2, 32], strides = [1, 1]} : vector<2x96xf32> to vector<2x32xf32>
    %60 = arith.mulf %59, %44 : vector<2x32xf32>
    %61 = vector.extract_strided_slice %56 {offsets = [0, 0], sizes = [2, 32], strides = [1, 1]} : vector<2x96xf32> to vector<2x32xf32>
    %62 = arith.mulf %61, %58 : vector<2x32xf32>
    %63 = arith.addf %60, %62 : vector<2x32xf32>
    %64 = vector.extract_strided_slice %56 {offsets = [0, 64], sizes = [2, 32], strides = [1, 1]} : vector<2x96xf32> to vector<2x32xf32>
    %65 = math.tanh %63 : vector<2x32xf32>
    %66 = arith.mulf %64, %65 : vector<2x32xf32>
    %67 = vector.extract_strided_slice %7 {offsets = [6, 0], sizes = [2, 128], strides = [1, 1]} : vector<16x128xf32> to vector<2x128xf32>
    %cst_16 = arith.constant dense<0.000000e+00> : vector<2x128xf32>
    %68 = tpu.matmul %66, %2, %cst_16 {dimension_numbers = #tpu.dot_dimension_numbers<[1], [0], [0], [1], [0, 0, 1, 1], [], []>} : vector<2x32xf32>, vector<32x128xf32>, vector<2x128xf32> -> vector<2x128xf32>
    %69 = arith.addf %67, %68 : vector<2x128xf32>
    %70 = vector.extract_strided_slice %69 {offsets = [0, 0], sizes = [2, 96], strides = [1, 1]} : vector<2x128xf32> to vector<2x96xf32>
    %71 = arith.negf %70 : vector<2x96xf32>
    %72 = math.exp %71 : vector<2x96xf32>
    %cst_17 = arith.constant 1.000000e+00 : f32
    %73 = vector.broadcast %cst_17 : f32 to vector<2x96xf32>
    %74 = arith.addf %73, %72 : vector<2x96xf32>
    %75 = arith.divf %73, %74 : vector<2x96xf32>
    %76 = vector.extract_strided_slice %69 {offsets = [0, 96], sizes = [2, 32], strides = [1, 1]} : vector<2x128xf32> to vector<2x32xf32>
    %77 = math.tanh %76 : vector<2x32xf32>
    %78 = vector.extract_strided_slice %75 {offsets = [0, 32], sizes = [2, 32], strides = [1, 1]} : vector<2x96xf32> to vector<2x32xf32>
    %79 = arith.mulf %78, %63 : vector<2x32xf32>
    %80 = vector.extract_strided_slice %75 {offsets = [0, 0], sizes = [2, 32], strides = [1, 1]} : vector<2x96xf32> to vector<2x32xf32>
    %81 = arith.mulf %80, %77 : vector<2x32xf32>
    %82 = arith.addf %79, %81 : vector<2x32xf32>
    %83 = vector.extract_strided_slice %75 {offsets = [0, 64], sizes = [2, 32], strides = [1, 1]} : vector<2x96xf32> to vector<2x32xf32>
    %84 = math.tanh %82 : vector<2x32xf32>
    %85 = arith.mulf %83, %84 : vector<2x32xf32>
    %86 = vector.extract_strided_slice %7 {offsets = [8, 0], sizes = [2, 128], strides = [1, 1]} : vector<16x128xf32> to vector<2x128xf32>
    %cst_18 = arith.constant dense<0.000000e+00> : vector<2x128xf32>
    %87 = tpu.matmul %85, %2, %cst_18 {dimension_numbers = #tpu.dot_dimension_numbers<[1], [0], [0], [1], [0, 0, 1, 1], [], []>} : vector<2x32xf32>, vector<32x128xf32>, vector<2x128xf32> -> vector<2x128xf32>
    %88 = arith.addf %86, %87 : vector<2x128xf32>
    %89 = vector.extract_strided_slice %88 {offsets = [0, 0], sizes = [2, 96], strides = [1, 1]} : vector<2x128xf32> to vector<2x96xf32>
    %90 = arith.negf %89 : vector<2x96xf32>
    %91 = math.exp %90 : vector<2x96xf32>
    %cst_19 = arith.constant 1.000000e+00 : f32
    %92 = vector.broadcast %cst_19 : f32 to vector<2x96xf32>
    %93 = arith.addf %92, %91 : vector<2x96xf32>
    %94 = arith.divf %92, %93 : vector<2x96xf32>
    %95 = vector.extract_strided_slice %88 {offsets = [0, 96], sizes = [2, 32], strides = [1, 1]} : vector<2x128xf32> to vector<2x32xf32>
    %96 = math.tanh %95 : vector<2x32xf32>
    %97 = vector.extract_strided_slice %94 {offsets = [0, 32], sizes = [2, 32], strides = [1, 1]} : vector<2x96xf32> to vector<2x32xf32>
    %98 = arith.mulf %97, %82 : vector<2x32xf32>
    %99 = vector.extract_strided_slice %94 {offsets = [0, 0], sizes = [2, 32], strides = [1, 1]} : vector<2x96xf32> to vector<2x32xf32>
    %100 = arith.mulf %99, %96 : vector<2x32xf32>
    %101 = arith.addf %98, %100 : vector<2x32xf32>
    %102 = vector.extract_strided_slice %94 {offsets = [0, 64], sizes = [2, 32], strides = [1, 1]} : vector<2x96xf32> to vector<2x32xf32>
    %103 = math.tanh %101 : vector<2x32xf32>
    %104 = arith.mulf %102, %103 : vector<2x32xf32>
    %105 = vector.extract_strided_slice %7 {offsets = [10, 0], sizes = [2, 128], strides = [1, 1]} : vector<16x128xf32> to vector<2x128xf32>
    %cst_20 = arith.constant dense<0.000000e+00> : vector<2x128xf32>
    %106 = tpu.matmul %104, %2, %cst_20 {dimension_numbers = #tpu.dot_dimension_numbers<[1], [0], [0], [1], [0, 0, 1, 1], [], []>} : vector<2x32xf32>, vector<32x128xf32>, vector<2x128xf32> -> vector<2x128xf32>
    %107 = arith.addf %105, %106 : vector<2x128xf32>
    %108 = vector.extract_strided_slice %107 {offsets = [0, 0], sizes = [2, 96], strides = [1, 1]} : vector<2x128xf32> to vector<2x96xf32>
    %109 = arith.negf %108 : vector<2x96xf32>
    %110 = math.exp %109 : vector<2x96xf32>
    %cst_21 = arith.constant 1.000000e+00 : f32
    %111 = vector.broadcast %cst_21 : f32 to vector<2x96xf32>
    %112 = arith.addf %111, %110 : vector<2x96xf32>
    %113 = arith.divf %111, %112 : vector<2x96xf32>
    %114 = vector.extract_strided_slice %107 {offsets = [0, 96], sizes = [2, 32], strides = [1, 1]} : vector<2x128xf32> to vector<2x32xf32>
    %115 = math.tanh %114 : vector<2x32xf32>
    %116 = vector.extract_strided_slice %113 {offsets = [0, 32], sizes = [2, 32], strides = [1, 1]} : vector<2x96xf32> to vector<2x32xf32>
    %117 = arith.mulf %116, %101 : vector<2x32xf32>
    %118 = vector.extract_strided_slice %113 {offsets = [0, 0], sizes = [2, 32], strides = [1, 1]} : vector<2x96xf32> to vector<2x32xf32>
    %119 = arith.mulf %118, %115 : vector<2x32xf32>
    %120 = arith.addf %117, %119 : vector<2x32xf32>
    %121 = vector.extract_strided_slice %113 {offsets = [0, 64], sizes = [2, 32], strides = [1, 1]} : vector<2x96xf32> to vector<2x32xf32>
    %122 = math.tanh %120 : vector<2x32xf32>
    %123 = arith.mulf %121, %122 : vector<2x32xf32>
    %124 = vector.extract_strided_slice %7 {offsets = [12, 0], sizes = [2, 128], strides = [1, 1]} : vector<16x128xf32> to vector<2x128xf32>
    %cst_22 = arith.constant dense<0.000000e+00> : vector<2x128xf32>
    %125 = tpu.matmul %123, %2, %cst_22 {dimension_numbers = #tpu.dot_dimension_numbers<[1], [0], [0], [1], [0, 0, 1, 1], [], []>} : vector<2x32xf32>, vector<32x128xf32>, vector<2x128xf32> -> vector<2x128xf32>
    %126 = arith.addf %124, %125 : vector<2x128xf32>
    %127 = vector.extract_strided_slice %126 {offsets = [0, 0], sizes = [2, 96], strides = [1, 1]} : vector<2x128xf32> to vector<2x96xf32>
    %128 = arith.negf %127 : vector<2x96xf32>
    %129 = math.exp %128 : vector<2x96xf32>
    %cst_23 = arith.constant 1.000000e+00 : f32
    %130 = vector.broadcast %cst_23 : f32 to vector<2x96xf32>
    %131 = arith.addf %130, %129 : vector<2x96xf32>
    %132 = arith.divf %130, %131 : vector<2x96xf32>
    %133 = vector.extract_strided_slice %126 {offsets = [0, 96], sizes = [2, 32], strides = [1, 1]} : vector<2x128xf32> to vector<2x32xf32>
    %134 = math.tanh %133 : vector<2x32xf32>
    %135 = vector.extract_strided_slice %132 {offsets = [0, 32], sizes = [2, 32], strides = [1, 1]} : vector<2x96xf32> to vector<2x32xf32>
    %136 = arith.mulf %135, %120 : vector<2x32xf32>
    %137 = vector.extract_strided_slice %132 {offsets = [0, 0], sizes = [2, 32], strides = [1, 1]} : vector<2x96xf32> to vector<2x32xf32>
    %138 = arith.mulf %137, %134 : vector<2x32xf32>
    %139 = arith.addf %136, %138 : vector<2x32xf32>
    %140 = vector.extract_strided_slice %132 {offsets = [0, 64], sizes = [2, 32], strides = [1, 1]} : vector<2x96xf32> to vector<2x32xf32>
    %141 = math.tanh %139 : vector<2x32xf32>
    %142 = arith.mulf %140, %141 : vector<2x32xf32>
    %143 = vector.extract_strided_slice %7 {offsets = [14, 0], sizes = [2, 128], strides = [1, 1]} : vector<16x128xf32> to vector<2x128xf32>
    %cst_24 = arith.constant dense<0.000000e+00> : vector<2x128xf32>
    %144 = tpu.matmul %142, %2, %cst_24 {dimension_numbers = #tpu.dot_dimension_numbers<[1], [0], [0], [1], [0, 0, 1, 1], [], []>} : vector<2x32xf32>, vector<32x128xf32>, vector<2x128xf32> -> vector<2x128xf32>
    %145 = arith.addf %143, %144 : vector<2x128xf32>
    %146 = vector.extract_strided_slice %145 {offsets = [0, 0], sizes = [2, 96], strides = [1, 1]} : vector<2x128xf32> to vector<2x96xf32>
    %147 = arith.negf %146 : vector<2x96xf32>
    %148 = math.exp %147 : vector<2x96xf32>
    %cst_25 = arith.constant 1.000000e+00 : f32
    %149 = vector.broadcast %cst_25 : f32 to vector<2x96xf32>
    %150 = arith.addf %149, %148 : vector<2x96xf32>
    %151 = arith.divf %149, %150 : vector<2x96xf32>
    %152 = vector.extract_strided_slice %145 {offsets = [0, 96], sizes = [2, 32], strides = [1, 1]} : vector<2x128xf32> to vector<2x32xf32>
    %153 = math.tanh %152 : vector<2x32xf32>
    %154 = vector.extract_strided_slice %151 {offsets = [0, 32], sizes = [2, 32], strides = [1, 1]} : vector<2x96xf32> to vector<2x32xf32>
    %155 = arith.mulf %154, %139 : vector<2x32xf32>
    %156 = vector.extract_strided_slice %151 {offsets = [0, 0], sizes = [2, 32], strides = [1, 1]} : vector<2x96xf32> to vector<2x32xf32>
    %157 = arith.mulf %156, %153 : vector<2x32xf32>
    %158 = arith.addf %155, %157 : vector<2x32xf32>
    %159 = vector.extract_strided_slice %151 {offsets = [0, 64], sizes = [2, 32], strides = [1, 1]} : vector<2x96xf32> to vector<2x32xf32>
    %160 = math.tanh %158 : vector<2x32xf32>
    %161 = arith.mulf %159, %160 : vector<2x32xf32>
    %162 = tpu.concatenate %28, %47, %66, %85, %104, %123, %142, %161 in 0 : vector<2x32xf32>, vector<2x32xf32>, vector<2x32xf32>, vector<2x32xf32>, vector<2x32xf32>, vector<2x32xf32>, vector<2x32xf32>, vector<2x32xf32> -> vector<16x32xf32>
    %c0_26 = arith.constant 0 : index
    %c0_27 = arith.constant 0 : index
    %163 = vector.load %arg8[%c0_26, %c0_27] : memref<32x64xf32, #tpu.memory_space<vmem>>, vector<32x64xf32>
    %cst_28 = arith.constant dense<0.000000e+00> : vector<16x64xf32>
    %164 = tpu.matmul %162, %163, %cst_28 {dimension_numbers = #tpu.dot_dimension_numbers<[1], [0], [0], [1], [0, 0, 1, 1], [], []>} : vector<16x32xf32>, vector<32x64xf32>, vector<16x64xf32> -> vector<16x64xf32>
    %c0_29 = arith.constant 0 : index
    %c0_30 = arith.constant 0 : index
    %165 = vector.load %arg9[%c0_29, %c0_30] : memref<32x8xf32, #tpu.memory_space<vmem>>, vector<32x8xf32>
    %cst_31 = arith.constant dense<0.000000e+00> : vector<16x8xf32>
    %166 = tpu.matmul %162, %165, %cst_31 {dimension_numbers = #tpu.dot_dimension_numbers<[1], [0], [0], [1], [0, 0, 1, 1], [], []>} : vector<16x32xf32>, vector<32x8xf32>, vector<16x8xf32> -> vector<16x8xf32>
    %c0_32 = arith.constant 0 : index
    %c0_33 = arith.constant 0 : index
    %c0_34 = arith.constant 0 : index
    %c0_35 = arith.constant 0 : index
    %167 = vector.load %arg2[%c0_32, %c0_33, %c0_34, %c0_35] : memref<1x16x8x8xf32, #tpu.memory_space<vmem>>, vector<1x16x8x8xf32>
    %168 = vector.shape_cast %167 : vector<1x16x8x8xf32> to vector<16x8x8xf32>
    %c0_36 = arith.constant 0 : index
    %c0_37 = arith.constant 0 : index
    %c0_38 = arith.constant 0 : index
    %169 = vector.load %arg3[%c0_36, %c0_37, %c0_38] : memref<1x16x8xf32, #tpu.memory_space<vmem>>, vector<1x16x8xf32>
    %170 = vector.shape_cast %169 : vector<1x16x8xf32> to vector<16x8xf32>
    %171 = tpu.iota {dimensions = array<i32: 1>} : vector<1x8xi32>
    %172 = tpu.iota {dimensions = array<i32: 1>} : vector<1x8x1xi32>
    %c0_i32 = arith.constant 0 : i32
    %173 = vector.broadcast %c0_i32 : i32 to vector<1x8x1xi32>
    %174 = arith.cmpi eq, %172, %173 : vector<1x8x1xi32>
    %175 = vector.extract_strided_slice %166 {offsets = [0, 0], sizes = [16, 1], strides = [1, 1]} : vector<16x8xf32> to vector<16x1xf32>
    %176 = vector.shape_cast %175 : vector<16x1xf32> to vector<16x1x1xf32>
    %c0_39 = arith.constant 0 : index
    %c0_40 = arith.constant 0 : index
    %177 = vector.load %arg11[%c0_39, %c0_40] : memref<8x4xf32, #tpu.memory_space<vmem>>, vector<8x1xf32>
    %178 = vector.shape_cast %177 : vector<8x1xf32> to vector<1x8x1xf32>
    %179 = vector.shape_cast %174 : vector<1x8x1xi1> to vector<1x8x1xi1>
    %180 = vector.broadcast %179 : vector<1x8x1xi1> to vector<16x8x1xi1>
    %181 = vector.shape_cast %176 : vector<16x1x1xf32> to vector<16x1x1xf32>
    %182 = vector.broadcast %181 : vector<16x1x1xf32> to vector<16x8x1xf32>
    %183 = vector.shape_cast %178 : vector<1x8x1xf32> to vector<1x8x1xf32>
    %184 = vector.broadcast %183 : vector<1x8x1xf32> to vector<16x8x1xf32>
    %185 = arith.select %180, %182, %184 : vector<16x8x1xi1>, vector<16x8x1xf32>
    %c0_i32_41 = arith.constant 0 : i32
    %186 = vector.broadcast %c0_i32_41 : i32 to vector<1x8xi32>
    %187 = arith.cmpi eq, %171, %186 : vector<1x8xi32>
    %188 = vector.extract_strided_slice %166 {offsets = [0, 4], sizes = [16, 1], strides = [1, 1]} : vector<16x8xf32> to vector<16x1xf32>
    %c0_42 = arith.constant 0 : index
    %c0_43 = arith.constant 0 : index
    %189 = vector.load %arg12[%c0_42, %c0_43] : memref<4x8xf32, #tpu.memory_space<vmem>>, vector<1x8xf32>
    %190 = vector.shape_cast %187 : vector<1x8xi1> to vector<1x8xi1>
    %191 = vector.broadcast %190 : vector<1x8xi1> to vector<16x8xi1>
    %192 = vector.shape_cast %188 : vector<16x1xf32> to vector<16x1xf32>
    %193 = vector.broadcast %192 : vector<16x1xf32> to vector<16x8xf32>
    %194 = vector.shape_cast %189 : vector<1x8xf32> to vector<1x8xf32>
    %195 = vector.broadcast %194 : vector<1x8xf32> to vector<16x8xf32>
    %196 = arith.select %191, %193, %195 : vector<16x8xi1>, vector<16x8xf32>
    %197 = vector.shape_cast %196 : vector<16x8xf32> to vector<16x1x8xf32>
    %198 = vector.broadcast %185 : vector<16x8x1xf32> to vector<16x8x8xf32>
    %199 = vector.broadcast %197 : vector<16x1x8xf32> to vector<16x8x8xf32>
    %200 = arith.addf %198, %199 : vector<16x8x8xf32>
    %cst_44 = arith.constant 0.000000e+00 : f32
    %201 = vector.broadcast %cst_44 : f32 to vector<16x8x8xf32>
    %202 = arith.cmpf ogt, %200, %201 : vector<16x8x8xf32>
    %cst_45 = arith.constant 2.000000e-01 : f32
    %203 = vector.broadcast %cst_45 : f32 to vector<16x8x8xf32>
    %204 = arith.mulf %203, %200 : vector<16x8x8xf32>
    %205 = arith.select %202, %200, %204 : vector<16x8x8xi1>, vector<16x8x8xf32>
    %cst_46 = arith.constant 0.000000e+00 : f32
    %206 = vector.broadcast %cst_46 : f32 to vector<16x8x8xf32>
    %207 = arith.cmpf ogt, %168, %206 : vector<16x8x8xf32>
    %cst_47 = arith.constant -9.000000e+15 : f32
    %208 = vector.broadcast %cst_47 : f32 to vector<16x8x8xf32>
    %209 = arith.select %207, %205, %208 : vector<16x8x8xi1>, vector<16x8x8xf32>
    %cst_48 = arith.constant dense<0xFF800000> : vector<16x8xf32>
    %210 = vector.multi_reduction <maximumf>, %209, %cst_48 [2] : vector<16x8x8xf32> to vector<16x8xf32>
    %211 = vector.shape_cast %210 : vector<16x8xf32> to vector<16x8x1xf32>
    %212 = vector.broadcast %211 : vector<16x8x1xf32> to vector<16x8x8xf32>
    %213 = arith.subf %209, %212 : vector<16x8x8xf32>
    %214 = math.exp %213 : vector<16x8x8xf32>
    %cst_49 = arith.constant dense<0.000000e+00> : vector<16x8xf32>
    %215 = vector.multi_reduction <add>, %214, %cst_49 [2] : vector<16x8x8xf32> to vector<16x8xf32>
    %216 = vector.shape_cast %215 : vector<16x8xf32> to vector<16x8x1xf32>
    %217 = tpu.reciprocal %216 {approx = true} : vector<16x8x1xf32> -> vector<16x8x1xf32>
    %218 = vector.broadcast %217 : vector<16x8x1xf32> to vector<16x8x8xf32>
    %219 = arith.mulf %214, %218 : vector<16x8x8xf32>
    %c0_50 = arith.constant 0 : index
    %c0_51 = arith.constant 0 : index
    %220 = vector.load %arg10[%c0_50, %c0_51] : memref<8x64xf32, #tpu.memory_space<vmem>>, vector<8x16xf32>
    %221 = vector.extract_strided_slice %164 {offsets = [0, 0], sizes = [16, 16], strides = [1, 1]} : vector<16x64xf32> to vector<16x16xf32>
    %222 = vector.shape_cast %219 : vector<16x8x8xf32> to vector<128x8xf32>
    %cst_52 = arith.constant dense<0.000000e+00> : vector<128x16xf32>
    %223 = tpu.matmul %222, %220, %cst_52 {dimension_numbers = #tpu.dot_dimension_numbers<[1], [0], [0], [1], [0, 0, 1, 1], [], []>} : vector<128x8xf32>, vector<8x16xf32>, vector<128x16xf32> -> vector<128x16xf32>
    %224 = vector.extract_strided_slice %219 {offsets = [0, 0, 0], sizes = [16, 8, 1], strides = [1, 1, 1]} : vector<16x8x8xf32> to vector<16x8x1xf32>
    %225 = vector.shape_cast %221 : vector<16x16xf32> to vector<16x1x16xf32>
    %226 = vector.broadcast %224 : vector<16x8x1xf32> to vector<16x8x16xf32>
    %227 = vector.broadcast %225 : vector<16x1x16xf32> to vector<16x8x16xf32>
    %228 = arith.mulf %226, %227 : vector<16x8x16xf32>
    %229 = vector.shape_cast %228 : vector<16x8x16xf32> to vector<128x16xf32>
    %230 = arith.addf %223, %229 : vector<128x16xf32>
    %cst_53 = arith.constant 0.000000e+00 : f32
    %231 = vector.broadcast %cst_53 : f32 to vector<128x16xf32>
    %232 = arith.cmpf ogt, %230, %231 : vector<128x16xf32>
    %cst_54 = arith.constant 0.000000e+00 : f32
    %233 = vector.broadcast %cst_54 : f32 to vector<128x16xf32>
    %234 = arith.minimumf %230, %233 : vector<128x16xf32>
    %235 = math.exp %234 : vector<128x16xf32>
    %cst_55 = arith.constant 1.000000e+00 : f32
    %236 = vector.broadcast %cst_55 : f32 to vector<128x16xf32>
    %237 = arith.subf %235, %236 : vector<128x16xf32>
    %238 = arith.select %232, %230, %237 : vector<128x16xi1>, vector<128x16xf32>
    %c0_i32_56 = arith.constant 0 : i32
    %239 = vector.broadcast %c0_i32_56 : i32 to vector<1x8x1xi32>
    %240 = arith.cmpi eq, %172, %239 : vector<1x8x1xi32>
    %241 = vector.extract_strided_slice %166 {offsets = [0, 1], sizes = [16, 1], strides = [1, 1]} : vector<16x8xf32> to vector<16x1xf32>
    %242 = vector.shape_cast %241 : vector<16x1xf32> to vector<16x1x1xf32>
    %c0_57 = arith.constant 0 : index
    %c1 = arith.constant 1 : index
    %243 = vector.load %arg11[%c0_57, %c1] : memref<8x4xf32, #tpu.memory_space<vmem>>, vector<8x1xf32>
    %244 = vector.shape_cast %243 : vector<8x1xf32> to vector<1x8x1xf32>
    %245 = vector.shape_cast %240 : vector<1x8x1xi1> to vector<1x8x1xi1>
    %246 = vector.broadcast %245 : vector<1x8x1xi1> to vector<16x8x1xi1>
    %247 = vector.shape_cast %242 : vector<16x1x1xf32> to vector<16x1x1xf32>
    %248 = vector.broadcast %247 : vector<16x1x1xf32> to vector<16x8x1xf32>
    %249 = vector.shape_cast %244 : vector<1x8x1xf32> to vector<1x8x1xf32>
    %250 = vector.broadcast %249 : vector<1x8x1xf32> to vector<16x8x1xf32>
    %251 = arith.select %246, %248, %250 : vector<16x8x1xi1>, vector<16x8x1xf32>
    %c0_i32_58 = arith.constant 0 : i32
    %252 = vector.broadcast %c0_i32_58 : i32 to vector<1x8xi32>
    %253 = arith.cmpi eq, %171, %252 : vector<1x8xi32>
    %254 = vector.extract_strided_slice %166 {offsets = [0, 5], sizes = [16, 1], strides = [1, 1]} : vector<16x8xf32> to vector<16x1xf32>
    %c1_59 = arith.constant 1 : index
    %c0_60 = arith.constant 0 : index
    %255 = vector.load %arg12[%c1_59, %c0_60] : memref<4x8xf32, #tpu.memory_space<vmem>>, vector<1x8xf32>
    %256 = vector.shape_cast %253 : vector<1x8xi1> to vector<1x8xi1>
    %257 = vector.broadcast %256 : vector<1x8xi1> to vector<16x8xi1>
    %258 = vector.shape_cast %254 : vector<16x1xf32> to vector<16x1xf32>
    %259 = vector.broadcast %258 : vector<16x1xf32> to vector<16x8xf32>
    %260 = vector.shape_cast %255 : vector<1x8xf32> to vector<1x8xf32>
    %261 = vector.broadcast %260 : vector<1x8xf32> to vector<16x8xf32>
    %262 = arith.select %257, %259, %261 : vector<16x8xi1>, vector<16x8xf32>
    %263 = vector.shape_cast %262 : vector<16x8xf32> to vector<16x1x8xf32>
    %264 = vector.broadcast %251 : vector<16x8x1xf32> to vector<16x8x8xf32>
    %265 = vector.broadcast %263 : vector<16x1x8xf32> to vector<16x8x8xf32>
    %266 = arith.addf %264, %265 : vector<16x8x8xf32>
    %cst_61 = arith.constant 0.000000e+00 : f32
    %267 = vector.broadcast %cst_61 : f32 to vector<16x8x8xf32>
    %268 = arith.cmpf ogt, %266, %267 : vector<16x8x8xf32>
    %cst_62 = arith.constant 2.000000e-01 : f32
    %269 = vector.broadcast %cst_62 : f32 to vector<16x8x8xf32>
    %270 = arith.mulf %269, %266 : vector<16x8x8xf32>
    %271 = arith.select %268, %266, %270 : vector<16x8x8xi1>, vector<16x8x8xf32>
    %cst_63 = arith.constant 0.000000e+00 : f32
    %272 = vector.broadcast %cst_63 : f32 to vector<16x8x8xf32>
    %273 = arith.cmpf ogt, %168, %272 : vector<16x8x8xf32>
    %cst_64 = arith.constant -9.000000e+15 : f32
    %274 = vector.broadcast %cst_64 : f32 to vector<16x8x8xf32>
    %275 = arith.select %273, %271, %274 : vector<16x8x8xi1>, vector<16x8x8xf32>
    %cst_65 = arith.constant dense<0xFF800000> : vector<16x8xf32>
    %276 = vector.multi_reduction <maximumf>, %275, %cst_65 [2] : vector<16x8x8xf32> to vector<16x8xf32>
    %277 = vector.shape_cast %276 : vector<16x8xf32> to vector<16x8x1xf32>
    %278 = vector.broadcast %277 : vector<16x8x1xf32> to vector<16x8x8xf32>
    %279 = arith.subf %275, %278 : vector<16x8x8xf32>
    %280 = math.exp %279 : vector<16x8x8xf32>
    %cst_66 = arith.constant dense<0.000000e+00> : vector<16x8xf32>
    %281 = vector.multi_reduction <add>, %280, %cst_66 [2] : vector<16x8x8xf32> to vector<16x8xf32>
    %282 = vector.shape_cast %281 : vector<16x8xf32> to vector<16x8x1xf32>
    %283 = tpu.reciprocal %282 {approx = true} : vector<16x8x1xf32> -> vector<16x8x1xf32>
    %284 = vector.broadcast %283 : vector<16x8x1xf32> to vector<16x8x8xf32>
    %285 = arith.mulf %280, %284 : vector<16x8x8xf32>
    %c0_67 = arith.constant 0 : index
    %c16 = arith.constant 16 : index
    %286 = vector.load %arg10[%c0_67, %c16] : memref<8x64xf32, #tpu.memory_space<vmem>>, vector<8x16xf32>
    %287 = vector.extract_strided_slice %164 {offsets = [0, 16], sizes = [16, 16], strides = [1, 1]} : vector<16x64xf32> to vector<16x16xf32>
    %288 = vector.shape_cast %285 : vector<16x8x8xf32> to vector<128x8xf32>
    %cst_68 = arith.constant dense<0.000000e+00> : vector<128x16xf32>
    %289 = tpu.matmul %288, %286, %cst_68 {dimension_numbers = #tpu.dot_dimension_numbers<[1], [0], [0], [1], [0, 0, 1, 1], [], []>} : vector<128x8xf32>, vector<8x16xf32>, vector<128x16xf32> -> vector<128x16xf32>
    %290 = vector.extract_strided_slice %285 {offsets = [0, 0, 0], sizes = [16, 8, 1], strides = [1, 1, 1]} : vector<16x8x8xf32> to vector<16x8x1xf32>
    %291 = vector.shape_cast %287 : vector<16x16xf32> to vector<16x1x16xf32>
    %292 = vector.broadcast %290 : vector<16x8x1xf32> to vector<16x8x16xf32>
    %293 = vector.broadcast %291 : vector<16x1x16xf32> to vector<16x8x16xf32>
    %294 = arith.mulf %292, %293 : vector<16x8x16xf32>
    %295 = vector.shape_cast %294 : vector<16x8x16xf32> to vector<128x16xf32>
    %296 = arith.addf %289, %295 : vector<128x16xf32>
    %cst_69 = arith.constant 0.000000e+00 : f32
    %297 = vector.broadcast %cst_69 : f32 to vector<128x16xf32>
    %298 = arith.cmpf ogt, %296, %297 : vector<128x16xf32>
    %cst_70 = arith.constant 0.000000e+00 : f32
    %299 = vector.broadcast %cst_70 : f32 to vector<128x16xf32>
    %300 = arith.minimumf %296, %299 : vector<128x16xf32>
    %301 = math.exp %300 : vector<128x16xf32>
    %cst_71 = arith.constant 1.000000e+00 : f32
    %302 = vector.broadcast %cst_71 : f32 to vector<128x16xf32>
    %303 = arith.subf %301, %302 : vector<128x16xf32>
    %304 = arith.select %298, %296, %303 : vector<128x16xi1>, vector<128x16xf32>
    %c0_i32_72 = arith.constant 0 : i32
    %305 = vector.broadcast %c0_i32_72 : i32 to vector<1x8x1xi32>
    %306 = arith.cmpi eq, %172, %305 : vector<1x8x1xi32>
    %307 = vector.extract_strided_slice %166 {offsets = [0, 2], sizes = [16, 1], strides = [1, 1]} : vector<16x8xf32> to vector<16x1xf32>
    %308 = vector.shape_cast %307 : vector<16x1xf32> to vector<16x1x1xf32>
    %c0_73 = arith.constant 0 : index
    %c2 = arith.constant 2 : index
    %309 = vector.load %arg11[%c0_73, %c2] : memref<8x4xf32, #tpu.memory_space<vmem>>, vector<8x1xf32>
    %310 = vector.shape_cast %309 : vector<8x1xf32> to vector<1x8x1xf32>
    %311 = vector.shape_cast %306 : vector<1x8x1xi1> to vector<1x8x1xi1>
    %312 = vector.broadcast %311 : vector<1x8x1xi1> to vector<16x8x1xi1>
    %313 = vector.shape_cast %308 : vector<16x1x1xf32> to vector<16x1x1xf32>
    %314 = vector.broadcast %313 : vector<16x1x1xf32> to vector<16x8x1xf32>
    %315 = vector.shape_cast %310 : vector<1x8x1xf32> to vector<1x8x1xf32>
    %316 = vector.broadcast %315 : vector<1x8x1xf32> to vector<16x8x1xf32>
    %317 = arith.select %312, %314, %316 : vector<16x8x1xi1>, vector<16x8x1xf32>
    %c0_i32_74 = arith.constant 0 : i32
    %318 = vector.broadcast %c0_i32_74 : i32 to vector<1x8xi32>
    %319 = arith.cmpi eq, %171, %318 : vector<1x8xi32>
    %320 = vector.extract_strided_slice %166 {offsets = [0, 6], sizes = [16, 1], strides = [1, 1]} : vector<16x8xf32> to vector<16x1xf32>
    %c2_75 = arith.constant 2 : index
    %c0_76 = arith.constant 0 : index
    %321 = vector.load %arg12[%c2_75, %c0_76] : memref<4x8xf32, #tpu.memory_space<vmem>>, vector<1x8xf32>
    %322 = vector.shape_cast %319 : vector<1x8xi1> to vector<1x8xi1>
    %323 = vector.broadcast %322 : vector<1x8xi1> to vector<16x8xi1>
    %324 = vector.shape_cast %320 : vector<16x1xf32> to vector<16x1xf32>
    %325 = vector.broadcast %324 : vector<16x1xf32> to vector<16x8xf32>
    %326 = vector.shape_cast %321 : vector<1x8xf32> to vector<1x8xf32>
    %327 = vector.broadcast %326 : vector<1x8xf32> to vector<16x8xf32>
    %328 = arith.select %323, %325, %327 : vector<16x8xi1>, vector<16x8xf32>
    %329 = vector.shape_cast %328 : vector<16x8xf32> to vector<16x1x8xf32>
    %330 = vector.broadcast %317 : vector<16x8x1xf32> to vector<16x8x8xf32>
    %331 = vector.broadcast %329 : vector<16x1x8xf32> to vector<16x8x8xf32>
    %332 = arith.addf %330, %331 : vector<16x8x8xf32>
    %cst_77 = arith.constant 0.000000e+00 : f32
    %333 = vector.broadcast %cst_77 : f32 to vector<16x8x8xf32>
    %334 = arith.cmpf ogt, %332, %333 : vector<16x8x8xf32>
    %cst_78 = arith.constant 2.000000e-01 : f32
    %335 = vector.broadcast %cst_78 : f32 to vector<16x8x8xf32>
    %336 = arith.mulf %335, %332 : vector<16x8x8xf32>
    %337 = arith.select %334, %332, %336 : vector<16x8x8xi1>, vector<16x8x8xf32>
    %cst_79 = arith.constant 0.000000e+00 : f32
    %338 = vector.broadcast %cst_79 : f32 to vector<16x8x8xf32>
    %339 = arith.cmpf ogt, %168, %338 : vector<16x8x8xf32>
    %cst_80 = arith.constant -9.000000e+15 : f32
    %340 = vector.broadcast %cst_80 : f32 to vector<16x8x8xf32>
    %341 = arith.select %339, %337, %340 : vector<16x8x8xi1>, vector<16x8x8xf32>
    %cst_81 = arith.constant dense<0xFF800000> : vector<16x8xf32>
    %342 = vector.multi_reduction <maximumf>, %341, %cst_81 [2] : vector<16x8x8xf32> to vector<16x8xf32>
    %343 = vector.shape_cast %342 : vector<16x8xf32> to vector<16x8x1xf32>
    %344 = vector.broadcast %343 : vector<16x8x1xf32> to vector<16x8x8xf32>
    %345 = arith.subf %341, %344 : vector<16x8x8xf32>
    %346 = math.exp %345 : vector<16x8x8xf32>
    %cst_82 = arith.constant dense<0.000000e+00> : vector<16x8xf32>
    %347 = vector.multi_reduction <add>, %346, %cst_82 [2] : vector<16x8x8xf32> to vector<16x8xf32>
    %348 = vector.shape_cast %347 : vector<16x8xf32> to vector<16x8x1xf32>
    %349 = tpu.reciprocal %348 {approx = true} : vector<16x8x1xf32> -> vector<16x8x1xf32>
    %350 = vector.broadcast %349 : vector<16x8x1xf32> to vector<16x8x8xf32>
    %351 = arith.mulf %346, %350 : vector<16x8x8xf32>
    %c0_83 = arith.constant 0 : index
    %c32 = arith.constant 32 : index
    %352 = vector.load %arg10[%c0_83, %c32] : memref<8x64xf32, #tpu.memory_space<vmem>>, vector<8x16xf32>
    %353 = vector.extract_strided_slice %164 {offsets = [0, 32], sizes = [16, 16], strides = [1, 1]} : vector<16x64xf32> to vector<16x16xf32>
    %354 = vector.shape_cast %351 : vector<16x8x8xf32> to vector<128x8xf32>
    %cst_84 = arith.constant dense<0.000000e+00> : vector<128x16xf32>
    %355 = tpu.matmul %354, %352, %cst_84 {dimension_numbers = #tpu.dot_dimension_numbers<[1], [0], [0], [1], [0, 0, 1, 1], [], []>} : vector<128x8xf32>, vector<8x16xf32>, vector<128x16xf32> -> vector<128x16xf32>
    %356 = vector.extract_strided_slice %351 {offsets = [0, 0, 0], sizes = [16, 8, 1], strides = [1, 1, 1]} : vector<16x8x8xf32> to vector<16x8x1xf32>
    %357 = vector.shape_cast %353 : vector<16x16xf32> to vector<16x1x16xf32>
    %358 = vector.broadcast %356 : vector<16x8x1xf32> to vector<16x8x16xf32>
    %359 = vector.broadcast %357 : vector<16x1x16xf32> to vector<16x8x16xf32>
    %360 = arith.mulf %358, %359 : vector<16x8x16xf32>
    %361 = vector.shape_cast %360 : vector<16x8x16xf32> to vector<128x16xf32>
    %362 = arith.addf %355, %361 : vector<128x16xf32>
    %cst_85 = arith.constant 0.000000e+00 : f32
    %363 = vector.broadcast %cst_85 : f32 to vector<128x16xf32>
    %364 = arith.cmpf ogt, %362, %363 : vector<128x16xf32>
    %cst_86 = arith.constant 0.000000e+00 : f32
    %365 = vector.broadcast %cst_86 : f32 to vector<128x16xf32>
    %366 = arith.minimumf %362, %365 : vector<128x16xf32>
    %367 = math.exp %366 : vector<128x16xf32>
    %cst_87 = arith.constant 1.000000e+00 : f32
    %368 = vector.broadcast %cst_87 : f32 to vector<128x16xf32>
    %369 = arith.subf %367, %368 : vector<128x16xf32>
    %370 = arith.select %364, %362, %369 : vector<128x16xi1>, vector<128x16xf32>
    %c0_i32_88 = arith.constant 0 : i32
    %371 = vector.broadcast %c0_i32_88 : i32 to vector<1x8x1xi32>
    %372 = arith.cmpi eq, %172, %371 : vector<1x8x1xi32>
    %373 = vector.extract_strided_slice %166 {offsets = [0, 3], sizes = [16, 1], strides = [1, 1]} : vector<16x8xf32> to vector<16x1xf32>
    %374 = vector.shape_cast %373 : vector<16x1xf32> to vector<16x1x1xf32>
    %c0_89 = arith.constant 0 : index
    %c3 = arith.constant 3 : index
    %375 = vector.load %arg11[%c0_89, %c3] : memref<8x4xf32, #tpu.memory_space<vmem>>, vector<8x1xf32>
    %376 = vector.shape_cast %375 : vector<8x1xf32> to vector<1x8x1xf32>
    %377 = vector.shape_cast %372 : vector<1x8x1xi1> to vector<1x8x1xi1>
    %378 = vector.broadcast %377 : vector<1x8x1xi1> to vector<16x8x1xi1>
    %379 = vector.shape_cast %374 : vector<16x1x1xf32> to vector<16x1x1xf32>
    %380 = vector.broadcast %379 : vector<16x1x1xf32> to vector<16x8x1xf32>
    %381 = vector.shape_cast %376 : vector<1x8x1xf32> to vector<1x8x1xf32>
    %382 = vector.broadcast %381 : vector<1x8x1xf32> to vector<16x8x1xf32>
    %383 = arith.select %378, %380, %382 : vector<16x8x1xi1>, vector<16x8x1xf32>
    %c0_i32_90 = arith.constant 0 : i32
    %384 = vector.broadcast %c0_i32_90 : i32 to vector<1x8xi32>
    %385 = arith.cmpi eq, %171, %384 : vector<1x8xi32>
    %386 = vector.extract_strided_slice %166 {offsets = [0, 7], sizes = [16, 1], strides = [1, 1]} : vector<16x8xf32> to vector<16x1xf32>
    %c3_91 = arith.constant 3 : index
    %c0_92 = arith.constant 0 : index
    %387 = vector.load %arg12[%c3_91, %c0_92] : memref<4x8xf32, #tpu.memory_space<vmem>>, vector<1x8xf32>
    %388 = vector.shape_cast %385 : vector<1x8xi1> to vector<1x8xi1>
    %389 = vector.broadcast %388 : vector<1x8xi1> to vector<16x8xi1>
    %390 = vector.shape_cast %386 : vector<16x1xf32> to vector<16x1xf32>
    %391 = vector.broadcast %390 : vector<16x1xf32> to vector<16x8xf32>
    %392 = vector.shape_cast %387 : vector<1x8xf32> to vector<1x8xf32>
    %393 = vector.broadcast %392 : vector<1x8xf32> to vector<16x8xf32>
    %394 = arith.select %389, %391, %393 : vector<16x8xi1>, vector<16x8xf32>
    %395 = vector.shape_cast %394 : vector<16x8xf32> to vector<16x1x8xf32>
    %396 = vector.broadcast %383 : vector<16x8x1xf32> to vector<16x8x8xf32>
    %397 = vector.broadcast %395 : vector<16x1x8xf32> to vector<16x8x8xf32>
    %398 = arith.addf %396, %397 : vector<16x8x8xf32>
    %cst_93 = arith.constant 0.000000e+00 : f32
    %399 = vector.broadcast %cst_93 : f32 to vector<16x8x8xf32>
    %400 = arith.cmpf ogt, %398, %399 : vector<16x8x8xf32>
    %cst_94 = arith.constant 2.000000e-01 : f32
    %401 = vector.broadcast %cst_94 : f32 to vector<16x8x8xf32>
    %402 = arith.mulf %401, %398 : vector<16x8x8xf32>
    %403 = arith.select %400, %398, %402 : vector<16x8x8xi1>, vector<16x8x8xf32>
    %cst_95 = arith.constant 0.000000e+00 : f32
    %404 = vector.broadcast %cst_95 : f32 to vector<16x8x8xf32>
    %405 = arith.cmpf ogt, %168, %404 : vector<16x8x8xf32>
    %cst_96 = arith.constant -9.000000e+15 : f32
    %406 = vector.broadcast %cst_96 : f32 to vector<16x8x8xf32>
    %407 = arith.select %405, %403, %406 : vector<16x8x8xi1>, vector<16x8x8xf32>
    %cst_97 = arith.constant dense<0xFF800000> : vector<16x8xf32>
    %408 = vector.multi_reduction <maximumf>, %407, %cst_97 [2] : vector<16x8x8xf32> to vector<16x8xf32>
    %409 = vector.shape_cast %408 : vector<16x8xf32> to vector<16x8x1xf32>
    %410 = vector.broadcast %409 : vector<16x8x1xf32> to vector<16x8x8xf32>
    %411 = arith.subf %407, %410 : vector<16x8x8xf32>
    %412 = math.exp %411 : vector<16x8x8xf32>
    %cst_98 = arith.constant dense<0.000000e+00> : vector<16x8xf32>
    %413 = vector.multi_reduction <add>, %412, %cst_98 [2] : vector<16x8x8xf32> to vector<16x8xf32>
    %414 = vector.shape_cast %413 : vector<16x8xf32> to vector<16x8x1xf32>
    %415 = tpu.reciprocal %414 {approx = true} : vector<16x8x1xf32> -> vector<16x8x1xf32>
    %416 = vector.broadcast %415 : vector<16x8x1xf32> to vector<16x8x8xf32>
    %417 = arith.mulf %412, %416 : vector<16x8x8xf32>
    %c0_99 = arith.constant 0 : index
    %c48 = arith.constant 48 : index
    %418 = vector.load %arg10[%c0_99, %c48] : memref<8x64xf32, #tpu.memory_space<vmem>>, vector<8x16xf32>
    %419 = vector.extract_strided_slice %164 {offsets = [0, 48], sizes = [16, 16], strides = [1, 1]} : vector<16x64xf32> to vector<16x16xf32>
    %420 = vector.shape_cast %417 : vector<16x8x8xf32> to vector<128x8xf32>
    %cst_100 = arith.constant dense<0.000000e+00> : vector<128x16xf32>
    %421 = tpu.matmul %420, %418, %cst_100 {dimension_numbers = #tpu.dot_dimension_numbers<[1], [0], [0], [1], [0, 0, 1, 1], [], []>} : vector<128x8xf32>, vector<8x16xf32>, vector<128x16xf32> -> vector<128x16xf32>
    %422 = vector.extract_strided_slice %417 {offsets = [0, 0, 0], sizes = [16, 8, 1], strides = [1, 1, 1]} : vector<16x8x8xf32> to vector<16x8x1xf32>
    %423 = vector.shape_cast %419 : vector<16x16xf32> to vector<16x1x16xf32>
    %424 = vector.broadcast %422 : vector<16x8x1xf32> to vector<16x8x16xf32>
    %425 = vector.broadcast %423 : vector<16x1x16xf32> to vector<16x8x16xf32>
    %426 = arith.mulf %424, %425 : vector<16x8x16xf32>
    %427 = vector.shape_cast %426 : vector<16x8x16xf32> to vector<128x16xf32>
    %428 = arith.addf %421, %427 : vector<128x16xf32>
    %cst_101 = arith.constant 0.000000e+00 : f32
    %429 = vector.broadcast %cst_101 : f32 to vector<128x16xf32>
    %430 = arith.cmpf ogt, %428, %429 : vector<128x16xf32>
    %cst_102 = arith.constant 0.000000e+00 : f32
    %431 = vector.broadcast %cst_102 : f32 to vector<128x16xf32>
    %432 = arith.minimumf %428, %431 : vector<128x16xf32>
    %433 = math.exp %432 : vector<128x16xf32>
    %cst_103 = arith.constant 1.000000e+00 : f32
    %434 = vector.broadcast %cst_103 : f32 to vector<128x16xf32>
    %435 = arith.subf %433, %434 : vector<128x16xf32>
    %436 = arith.select %430, %428, %435 : vector<128x16xi1>, vector<128x16xf32>
    %437 = tpu.concatenate %238, %304, %370, %436 in 1 : vector<128x16xf32>, vector<128x16xf32>, vector<128x16xf32>, vector<128x16xf32> -> vector<128x64xf32>
    %c0_104 = arith.constant 0 : index
    %c0_105 = arith.constant 0 : index
    %438 = vector.load %arg13[%c0_104, %c0_105] : memref<64x32xf32, #tpu.memory_space<vmem>>, vector<64x32xf32>
    %cst_106 = arith.constant dense<0.000000e+00> : vector<128x32xf32>
    %439 = tpu.matmul %437, %438, %cst_106 {dimension_numbers = #tpu.dot_dimension_numbers<[1], [0], [0], [1], [0, 0, 1, 1], [], []>} : vector<128x64xf32>, vector<64x32xf32>, vector<128x32xf32> -> vector<128x32xf32>
    %440 = vector.shape_cast %439 : vector<128x32xf32> to vector<16x8x32xf32>
    %441 = vector.extract_strided_slice %440 {offsets = [0, 0, 0], sizes = [16, 1, 32], strides = [1, 1, 1]} : vector<16x8x32xf32> to vector<16x1x32xf32>
    %442 = vector.shape_cast %441 : vector<16x1x32xf32> to vector<16x32xf32>
    %c0_107 = arith.constant 0 : index
    %c0_108 = arith.constant 0 : index
    %443 = vector.load %arg14[%c0_107, %c0_108] : memref<1x32xf32, #tpu.memory_space<vmem>>, vector<1x32xf32>
    %444 = vector.broadcast %443 : vector<1x32xf32> to vector<16x32xf32>
    %445 = arith.mulf %442, %444 : vector<16x32xf32>
    %cst_109 = arith.constant dense<0.000000e+00> : vector<16xf32>
    %446 = vector.multi_reduction <add>, %445, %cst_109 [1] : vector<16x32xf32> to vector<16xf32>
    %447 = vector.shape_cast %446 : vector<16xf32> to vector<16x1xf32>
    %c0_110 = arith.constant 0 : index
    %c0_111 = arith.constant 0 : index
    %448 = vector.load %arg15[%c0_110, %c0_111] : memref<1x32xf32, #tpu.memory_space<vmem>>, vector<1x32xf32>
    %449 = vector.shape_cast %448 : vector<1x32xf32> to vector<1x1x32xf32>
    %450 = vector.broadcast %449 : vector<1x1x32xf32> to vector<16x8x32xf32>
    %451 = arith.mulf %440, %450 : vector<16x8x32xf32>
    %cst_112 = arith.constant dense<0.000000e+00> : vector<16x8xf32>
    %452 = vector.multi_reduction <add>, %451, %cst_112 [2] : vector<16x8x32xf32> to vector<16x8xf32>
    %453 = vector.broadcast %447 : vector<16x1xf32> to vector<16x8xf32>
    %454 = arith.addf %453, %452 : vector<16x8xf32>
    %cst_113 = arith.constant 0.000000e+00 : f32
    %455 = vector.broadcast %cst_113 : f32 to vector<16x8xf32>
    %456 = arith.cmpf ogt, %454, %455 : vector<16x8xf32>
    %cst_114 = arith.constant 2.000000e-01 : f32
    %457 = vector.broadcast %cst_114 : f32 to vector<16x8xf32>
    %458 = arith.mulf %457, %454 : vector<16x8xf32>
    %459 = arith.select %456, %454, %458 : vector<16x8xi1>, vector<16x8xf32>
    %cst_115 = arith.constant 0.000000e+00 : f32
    %460 = vector.broadcast %cst_115 : f32 to vector<16x8xf32>
    %461 = arith.cmpf ogt, %170, %460 : vector<16x8xf32>
    %cst_116 = arith.constant -9.000000e+15 : f32
    %462 = vector.broadcast %cst_116 : f32 to vector<16x8xf32>
    %463 = arith.select %461, %459, %462 : vector<16x8xi1>, vector<16x8xf32>
    %cst_117 = arith.constant dense<0xFF800000> : vector<16xf32>
    %464 = vector.multi_reduction <maximumf>, %463, %cst_117 [1] : vector<16x8xf32> to vector<16xf32>
    %465 = vector.shape_cast %464 : vector<16xf32> to vector<16x1xf32>
    %466 = vector.broadcast %465 : vector<16x1xf32> to vector<16x8xf32>
    %467 = arith.subf %463, %466 : vector<16x8xf32>
    %468 = math.exp %467 : vector<16x8xf32>
    %cst_118 = arith.constant dense<0.000000e+00> : vector<16xf32>
    %469 = vector.multi_reduction <add>, %468, %cst_118 [1] : vector<16x8xf32> to vector<16xf32>
    %470 = vector.shape_cast %469 : vector<16xf32> to vector<16x1xf32>
    %471 = tpu.reciprocal %470 {approx = true} : vector<16x1xf32> -> vector<16x1xf32>
    %472 = vector.broadcast %471 : vector<16x1xf32> to vector<16x8xf32>
    %473 = arith.mulf %468, %472 : vector<16x8xf32>
    %474 = vector.shape_cast %473 : vector<16x8xf32> to vector<16x8x1xf32>
    %475 = vector.broadcast %474 : vector<16x8x1xf32> to vector<16x8x32xf32>
    %476 = arith.mulf %475, %440 : vector<16x8x32xf32>
    %cst_119 = arith.constant dense<0.000000e+00> : vector<16x32xf32>
    %477 = vector.multi_reduction <add>, %476, %cst_119 [1] : vector<16x8x32xf32> to vector<16x32xf32>
    %cst_120 = arith.constant 0.000000e+00 : f32
    %478 = vector.broadcast %cst_120 : f32 to vector<16x32xf32>
    %479 = arith.cmpf ogt, %477, %478 : vector<16x32xf32>
    %cst_121 = arith.constant 0.000000e+00 : f32
    %480 = vector.broadcast %cst_121 : f32 to vector<16x32xf32>
    %481 = arith.minimumf %477, %480 : vector<16x32xf32>
    %482 = math.exp %481 : vector<16x32xf32>
    %cst_122 = arith.constant 1.000000e+00 : f32
    %483 = vector.broadcast %cst_122 : f32 to vector<16x32xf32>
    %484 = arith.subf %482, %483 : vector<16x32xf32>
    %485 = arith.select %479, %477, %484 : vector<16x32xi1>, vector<16x32xf32>
    %486 = arith.addf %485, %162 : vector<16x32xf32>
    %c0_123 = arith.constant 0 : index
    %c0_124 = arith.constant 0 : index
    %487 = vector.load %arg16[%c0_123, %c0_124] : memref<32x128xf32, #tpu.memory_space<vmem>>, vector<32x128xf32>
    %cst_125 = arith.constant dense<0.000000e+00> : vector<16x128xf32>
    %488 = tpu.matmul %486, %487, %cst_125 {dimension_numbers = #tpu.dot_dimension_numbers<[1], [0], [0], [1], [0, 0, 1, 1], [], []>} : vector<16x32xf32>, vector<32x128xf32>, vector<16x128xf32> -> vector<16x128xf32>
    %c0_126 = arith.constant 0 : index
    %c0_127 = arith.constant 0 : index
    %489 = vector.load %arg17[%c0_126, %c0_127] : memref<1x128xf32, #tpu.memory_space<vmem>>, vector<1x128xf32>
    %490 = vector.broadcast %489 : vector<1x128xf32> to vector<16x128xf32>
    %491 = arith.addf %488, %490 : vector<16x128xf32>
    %c0_128 = arith.constant 0 : index
    %c0_129 = arith.constant 0 : index
    %c0_130 = arith.constant 0 : index
    %492 = vector.load %arg4[%c0_128, %c0_129, %c0_130] : memref<1x16x1xf32, #tpu.memory_space<vmem>>, vector<1x16x1xf32>
    %493 = vector.shape_cast %492 : vector<1x16x1xf32> to vector<16x1xf32>
    %494 = vector.broadcast %493 : vector<16x1xf32> to vector<16x128xf32>
    %495 = arith.mulf %491, %494 : vector<16x128xf32>
    %c0_131 = arith.constant 0 : index
    %c0_132 = arith.constant 0 : index
    %c0_133 = arith.constant 0 : index
    %496 = vector.load %arg18[%c0_131, %c0_132, %c0_133] : memref<1x16x128xf32, #tpu.memory_space<vmem>>, vector<1x16x128xf32>
    %497 = vector.shape_cast %496 : vector<1x16x128xf32> to vector<16x128xf32>
    %498 = vector.shape_cast %495 : vector<16x128xf32> to vector<1x16x128xf32>
    tpu.vector_store %arg18[%c0_131, %c0_132, %c0_133], %498 {strides = array<i32>} : memref<1x16x128xf32, #tpu.memory_space<vmem>>, vector<1x16x128xf32>,
    return
  }
  func.func @transform_0(%arg0: i32) -> (i32, i32, i32) {
    %c0_i32 = arith.constant 0 : i32
    %c0_i32_0 = arith.constant 0 : i32
    %c0_i32_1 = arith.constant 0 : i32
    return %arg0, %c0_i32, %c0_i32_0 : i32, i32, i32
  }
  func.func @transform_1(%arg0: i32) -> (i32, i32, i32, i32) {
    %c0_i32 = arith.constant 0 : i32
    %c0_i32_0 = arith.constant 0 : i32
    %c0_i32_1 = arith.constant 0 : i32
    %c0_i32_2 = arith.constant 0 : i32
    return %arg0, %c0_i32, %c0_i32_0, %c0_i32_1 : i32, i32, i32, i32
  }
  func.func @transform_2(%arg0: i32) -> (i32, i32, i32) {
    %c0_i32 = arith.constant 0 : i32
    %c0_i32_0 = arith.constant 0 : i32
    %c0_i32_1 = arith.constant 0 : i32
    return %arg0, %c0_i32, %c0_i32_0 : i32, i32, i32
  }
  func.func @transform_3(%arg0: i32) -> (i32, i32, i32) {
    %c0_i32 = arith.constant 0 : i32
    %c0_i32_0 = arith.constant 0 : i32
    %c0_i32_1 = arith.constant 0 : i32
    return %arg0, %c0_i32, %c0_i32_0 : i32, i32, i32
  }
  func.func @transform_4(%arg0: i32) -> (i32, i32) {
    %c0_i32 = arith.constant 0 : i32
    %c0_i32_0 = arith.constant 0 : i32
    %c0_i32_1 = arith.constant 0 : i32
    return %c0_i32, %c0_i32_0 : i32, i32
  }
  func.func @transform_5(%arg0: i32) -> (i32, i32) {
    %c0_i32 = arith.constant 0 : i32
    %c0_i32_0 = arith.constant 0 : i32
    %c0_i32_1 = arith.constant 0 : i32
    return %c0_i32, %c0_i32_0 : i32, i32
  }
  func.func @transform_6(%arg0: i32) -> (i32, i32) {
    %c0_i32 = arith.constant 0 : i32
    %c0_i32_0 = arith.constant 0 : i32
    %c0_i32_1 = arith.constant 0 : i32
    return %c0_i32, %c0_i32_0 : i32, i32
  }
  func.func @transform_7(%arg0: i32) -> (i32, i32) {
    %c0_i32 = arith.constant 0 : i32
    %c0_i32_0 = arith.constant 0 : i32
    %c0_i32_1 = arith.constant 0 : i32
    return %c0_i32, %c0_i32_0 : i32, i32
  }
  func.func @transform_8(%arg0: i32) -> (i32, i32) {
    %c0_i32 = arith.constant 0 : i32
    %c0_i32_0 = arith.constant 0 : i32
    %c0_i32_1 = arith.constant 0 : i32
    return %c0_i32, %c0_i32_0 : i32, i32
  }
  func.func @transform_9(%arg0: i32) -> (i32, i32) {
    %c0_i32 = arith.constant 0 : i32
    %c0_i32_0 = arith.constant 0 : i32
    %c0_i32_1 = arith.constant 0 : i32
    return %c0_i32, %c0_i32_0 : i32, i32
  }
  func.func @transform_10(%arg0: i32) -> (i32, i32) {
    %c0_i32 = arith.constant 0 : i32
    %c0_i32_0 = arith.constant 0 : i32
    %c0_i32_1 = arith.constant 0 : i32
    return %c0_i32, %c0_i32_0 : i32, i32
  }
  func.func @transform_11(%arg0: i32) -> (i32, i32) {
    %c0_i32 = arith.constant 0 : i32
    %c0_i32_0 = arith.constant 0 : i32
    %c0_i32_1 = arith.constant 0 : i32
    return %c0_i32, %c0_i32_0 : i32, i32
  }
  func.func @transform_12(%arg0: i32) -> (i32, i32) {
    %c0_i32 = arith.constant 0 : i32
    %c0_i32_0 = arith.constant 0 : i32
    %c0_i32_1 = arith.constant 0 : i32
    return %c0_i32, %c0_i32_0 : i32, i32
  }
  func.func @transform_13(%arg0: i32) -> (i32, i32) {
    %c0_i32 = arith.constant 0 : i32
    %c0_i32_0 = arith.constant 0 : i32
    %c0_i32_1 = arith.constant 0 : i32
    return %c0_i32, %c0_i32_0 : i32, i32
  }
  func.func @transform_14(%arg0: i32) -> (i32, i32) {
    %c0_i32 = arith.constant 0 : i32
    %c0_i32_0 = arith.constant 0 : i32
    %c0_i32_1 = arith.constant 0 : i32
    return %c0_i32, %c0_i32_0 : i32, i32
  }
  func.func @transform_15(%arg0: i32) -> (i32, i32) {
    %c0_i32 = arith.constant 0 : i32
    %c0_i32_0 = arith.constant 0 : i32
    %c0_i32_1 = arith.constant 0 : i32
    return %c0_i32, %c0_i32_0 : i32, i32
  }
  func.func @transform_16(%arg0: i32) -> (i32, i32) {
    %c0_i32 = arith.constant 0 : i32
    %c0_i32_0 = arith.constant 0 : i32
    %c0_i32_1 = arith.constant 0 : i32
    return %c0_i32, %c0_i32_0 : i32, i32
  }
  func.func @transform_17(%arg0: i32) -> (i32, i32, i32) {
    %c0_i32 = arith.constant 0 : i32
    %c0_i32_0 = arith.constant 0 : i32
    %c0_i32_1 = arith.constant 0 : i32
    return %arg0, %c0_i32, %c0_i32_0 : i32, i32, i32
  }
}

</mosaic_0001>

<llo_original>
// kernel: tpu_custom_call.1
$region0: #{tpu_custom_call.1}
  #allocation0 [shape = 'u32[]', space=smem, size = 0x4, offset = 0x4, fixed_abs, tag = 'smem constant byte address 0x4 - core index']
  #allocation1 [shape = 'u32[144,128]{1,0:T(1,128)}', space=vmem, size = 0x12000, scoped, tag = 'internal scratch']
  %s0 = inlined_call_operand.vmem [shape: f32[1,16,40], index: 0, kind: input, shape index: {}]
  %s1 = inlined_call_operand.vmem [shape: f32[1,16,8,8], index: 1, kind: input, shape index: {}]
  %s2 = inlined_call_operand.vmem [shape: f32[1,16,8], index: 2, kind: input, shape index: {}]
  %s3 = inlined_call_operand.vmem [shape: f32[1,16,1], index: 3, kind: input, shape index: {}]
  %s4 = inlined_call_operand.vmem [shape: f32[40,128], index: 4, kind: input, shape index: {}]
  %s5 = inlined_call_operand.vmem [shape: f32[1,128], index: 5, kind: input, shape index: {}]
  %s6 = inlined_call_operand.vmem [shape: f32[32,128], index: 6, kind: input, shape index: {}]
  %s7 = inlined_call_operand.vmem [shape: f32[32,64], index: 7, kind: input, shape index: {}]
  %s8 = inlined_call_operand.vmem [shape: f32[32,8], index: 8, kind: input, shape index: {}]
  %s9 = inlined_call_operand.vmem [shape: f32[8,64], index: 9, kind: input, shape index: {}]
  %s10 = inlined_call_operand.vmem [shape: f32[8,4], index: 10, kind: input, shape index: {}]
  %s11 = inlined_call_operand.vmem [shape: f32[4,8], index: 11, kind: input, shape index: {}]
  %s12 = inlined_call_operand.vmem [shape: f32[64,32], index: 12, kind: input, shape index: {}]
  %s13 = inlined_call_operand.vmem [shape: f32[1,32], index: 13, kind: input, shape index: {}]
  %s14 = inlined_call_operand.vmem [shape: f32[1,32], index: 14, kind: input, shape index: {}]
  %s15 = inlined_call_operand.vmem [shape: f32[32,128], index: 15, kind: input, shape index: {}]
  %s16 = inlined_call_operand.vmem [shape: f32[1,128], index: 16, kind: input, shape index: {}]
  %s17 = inlined_call_operand.hbm [shape: f32[1,16,128], index: 17, kind: output, shape index: {}]
  %s18 = sld [smem:[#allocation0]]
  $region78: #{tpu_custom_call.1} parent=0
    _
  %s20 = ssub.s32 1, %s18
  %s21 = scalar_select 0, %s20, %s18
  $region1: #{tpu_custom_call.1} parent=0
    #allocation2 [shape = 'u8[8192]{0}', space=vmem, size = 0x2000, scoped, tag = 'output window, operand 0, single buffered']
    #allocation3 [shape = 's32[1]{0}', space=sflag, size = 0x4, scoped, tag = 'scoped memory for tpu_custom_call.1']
    %22 = vsyncpa [#allocation3], 0
    // Predicated region
    $region2: #{tpu_custom_call.1} parent=1 // pred_check
      _
    $region3: #{tpu_custom_call.1} parent=1 // pred_check_branch
      %24 = sbr.rel (0) target = $region5
    $region4: #{tpu_custom_call.1} parent=1 // pred_region
      _
    $region5: #{tpu_custom_call.1} parent=1 // pred_fallthru
      _
    // Predicated region
    $region6: #{tpu_custom_call.1} parent=1 // pred_check
      _
    $region7: #{tpu_custom_call.1} parent=1 // pred_check_branch
      %26 = sbr.rel (0) target = $region9
    $region8: #{tpu_custom_call.1} parent=1 // pred_region
      _
    $region9: #{tpu_custom_call.1} parent=1 // pred_fallthru
      _
    // Predicated region
    $region10: #{tpu_custom_call.1} parent=1 // pred_check
      _
    $region11: #{tpu_custom_call.1} parent=1 // pred_check_branch
      %28 = sbr.rel (0) target = $region13
    $region12: #{tpu_custom_call.1} parent=1 // pred_region
      _
    $region13: #{tpu_custom_call.1} parent=1 // pred_fallthru
      _
    // Predicated region
    $region14: #{tpu_custom_call.1} parent=1 // pred_check
      _
    $region15: #{tpu_custom_call.1} parent=1 // pred_check_branch
      %30 = sbr.rel (0) target = $region17
    $region16: #{tpu_custom_call.1} parent=1 // pred_region
      _
    $region17: #{tpu_custom_call.1} parent=1 // pred_fallthru
      _
    // Predicated region
    $region18: #{tpu_custom_call.1} parent=1 // pred_check
      _
    $region19: #{tpu_custom_call.1} parent=1 // pred_check_branch
      %32 = sbr.rel (0) target = $region21
    $region20: #{tpu_custom_call.1} parent=1 // pred_region
      _
    $region21: #{tpu_custom_call.1} parent=1 // pred_fallthru
      _
    // Predicated region
    $region22: #{tpu_custom_call.1} parent=1 // pred_check
      _
    $region23: #{tpu_custom_call.1} parent=1 // pred_check_branch
      %34 = sbr.rel (0) target = $region25
    $region24: #{tpu_custom_call.1} parent=1 // pred_region
      _
    $region25: #{tpu_custom_call.1} parent=1 // pred_fallthru
      _
    // Predicated region
    $region26: #{tpu_custom_call.1} parent=1 // pred_check
      _
    $region27: #{tpu_custom_call.1} parent=1 // pred_check_branch
      %36 = sbr.rel (0) target = $region29
    $region28: #{tpu_custom_call.1} parent=1 // pred_region
      _
    $region29: #{tpu_custom_call.1} parent=1 // pred_fallthru
      _
    // Predicated region
    $region30: #{tpu_custom_call.1} parent=1 // pred_check
      _
    $region31: #{tpu_custom_call.1} parent=1 // pred_check_branch
      %38 = sbr.rel (0) target = $region33
    $region32: #{tpu_custom_call.1} parent=1 // pred_region
      _
    $region33: #{tpu_custom_call.1} parent=1 // pred_fallthru
      _
    // Predicated region
    $region34: #{tpu_custom_call.1} parent=1 // pred_check
      _
    $region35: #{tpu_custom_call.1} parent=1 // pred_check_branch
      %40 = sbr.rel (0) target = $region37
    $region36: #{tpu_custom_call.1} parent=1 // pred_region
      _
    $region37: #{tpu_custom_call.1} parent=1 // pred_fallthru
      _
    // Predicated region
    $region38: #{tpu_custom_call.1} parent=1 // pred_check
      _
    $region39: #{tpu_custom_call.1} parent=1 // pred_check_branch
      %42 = sbr.rel (0) target = $region41
    $region40: #{tpu_custom_call.1} parent=1 // pred_region
      _
    $region41: #{tpu_custom_call.1} parent=1 // pred_fallthru
      _
    // Predicated region
    $region42: #{tpu_custom_call.1} parent=1 // pred_check
      _
    $region43: #{tpu_custom_call.1} parent=1 // pred_check_branch
      %44 = sbr.rel (0) target = $region45
    $region44: #{tpu_custom_call.1} parent=1 // pred_region
      _
    $region45: #{tpu_custom_call.1} parent=1 // pred_fallthru
      _
    // Predicated region
    $region46: #{tpu_custom_call.1} parent=1 // pred_check
      _
    $region47: #{tpu_custom_call.1} parent=1 // pred_check_branch
      %46 = sbr.rel (0) target = $region49
    $region48: #{tpu_custom_call.1} parent=1 // pred_region
      _
    $region49: #{tpu_custom_call.1} parent=1 // pred_fallthru
      _
    // Predicated region
    $region50: #{tpu_custom_call.1} parent=1 // pred_check
      _
    $region51: #{tpu_custom_call.1} parent=1 // pred_check_branch
      %48 = sbr.rel (0) target = $region53
    $region52: #{tpu_custom_call.1} parent=1 // pred_region
      _
    $region53: #{tpu_custom_call.1} parent=1 // pred_fallthru
      _
    // Predicated region
    $region54: #{tpu_custom_call.1} parent=1 // pred_check
      _
    $region55: #{tpu_custom_call.1} parent=1 // pred_check_branch
      %50 = sbr.rel (0) target = $region57
    $region56: #{tpu_custom_call.1} parent=1 // pred_region
      _
    $region57: #{tpu_custom_call.1} parent=1 // pred_fallthru
      _
    // Predicated region
    $region58: #{tpu_custom_call.1} parent=1 // pred_check
      _
    $region59: #{tpu_custom_call.1} parent=1 // pred_check_branch
      %52 = sbr.rel (0) target = $region61
    $region60: #{tpu_custom_call.1} parent=1 // pred_region
      _
    $region61: #{tpu_custom_call.1} parent=1 // pred_fallthru
      _
    // Predicated region
    $region62: #{tpu_custom_call.1} parent=1 // pred_check
      _
    $region63: #{tpu_custom_call.1} parent=1 // pred_check_branch
      %54 = sbr.rel (0) target = $region65
    $region64: #{tpu_custom_call.1} parent=1 // pred_region
      _
    $region65: #{tpu_custom_call.1} parent=1 // pred_fallthru
      _
    // Predicated region
    $region66: #{tpu_custom_call.1} parent=1 // pred_check
      _
    $region67: #{tpu_custom_call.1} parent=1 // pred_check_branch
      %56 = sbr.rel (0) target = $region69
    $region68: #{tpu_custom_call.1} parent=1 // pred_region
      _
    $region69: #{tpu_custom_call.1} parent=1 // pred_fallthru
      _
    %v57 = vld [vmem:[%s0] sm:$0xff]
    %v58 = vld [vmem:[%s0 + $0x8] sm:$0xff]
    %v59 = vld [vmem:[%s6] sm:$0xff]
    %v60 = vld [vmem:[%s6 + $0x8] sm:$0xff]
    %v61 = vld [vmem:[%s6 + $0x10] sm:$0xff]
    %v62 = vld [vmem:[%s6 + $0x18] sm:$0xff]
    %v63 = vld [vmem:[%s4] sm:$0xff]
    %v64 = vld [vmem:[%s4 + $0x8] sm:$0xff]
    %v65 = vld [vmem:[%s4 + $0x10] sm:$0xff]
    %v66 = vld [vmem:[%s4 + $0x18] sm:$0xff]
    %v67 = vld [vmem:[%s4 + $0x20] sm:$0xff]
    %v68 = vld [vmem:[%s5] sm:$0x1]
    %v70 = vlaneseq
    %v71 = vshrl.u32 %v70, 7
    %v72 = vsub.s32 0, %v71
    %v73 = vrot.slane %v68, %v72
    %vm75 = vcmask 326656
    %v77 = vsel %vm75, %v57, 0
    %v80 = vsel %vm75, %v58, 0
    %82 = vmatprep.subr.mxu0 0.0
    %83 = vmatpush1.msra.mxu0 %v63
    %84 = vmatprep.subr.mxu0 0.0
    %85 = vmatpush1.msra.mxu0 %v64
    %86 = vmatprep.subr.mxu0 0.0
    %87 = vmatpush1.msra.mxu0 %v65
    %88 = vmatprep.subr.mxu0 0.0
    %89 = vmatpush1.msra.mxu0 %v66
    %90 = vmatprep.subr.mxu0 0.0
    %91 = vmatpush1.msra.mxu0 %v67
    %92 = vmatprep.subr.mxu0 0.0
    %93 = vmatpush1.msra.mxu0 0.0
    %94 = vmatprep.subr.mxu0 0.0
    %95 = vmatpush1.msra.mxu0 0.0
    %96 = vmatprep.subr.mxu0 0.0
    %97 = vmatpush1.msra.mxu0 0.0
    %98 = vmatprep.subr.mxu0 0.0
    %99 = vmatpush1.msra.mxu0 0.0
    %100 = vmatprep.subr.mxu0 0.0
    %101 = vmatpush1.msra.mxu0 0.0
    %102 = vmatprep.subr.mxu0 0.0
    %103 = vmatpush1.msra.mxu0 0.0
    %104 = vmatprep.subr.mxu0 0.0
    %105 = vmatpush1.msra.mxu0 0.0
    %106 = vmatprep.subr.mxu0 0.0
    %107 = vmatpush1.msra.mxu0 0.0
    %108 = vmatprep.subr.mxu0 0.0
    %109 = vmatpush1.msra.mxu0 0.0
    %110 = vmatprep.subr.mxu0 0.0
    %111 = vmatpush1.msra.mxu0 0.0
    %112 = vmatprep.subr.mxu0 0.0
    %113 = vmatpush1.msra.mxu0 0.0
    %114 = vmatprep.subr.mxu0 0.0
    %115 = vmatpush1.msra.mxu0 0.0
    %116 = vmatprep.subr.mxu0 0.0
    %117 = vmatpush1.msra.mxu0 0.0
    %118 = vmatprep.subr.mxu0 0.0
    %119 = vmatpush1.msra.mxu0 0.0
    %120 = vmatprep.subr.mxu0 0.0
    %121 = vmatpush1.msra.mxu0 0.0
    %122 = vmatprep.subr.mxu0 0.0
    %123 = vmatpush1.msra.mxu0 0.0
    %124 = vmatprep.subr.mxu0 0.0
    %125 = vmatpush1.msra.mxu0 0.0
    %126 = vmatprep.subr.mxu0 0.0
    %127 = vmatpush1.msra.mxu0 0.0
    %128 = vmatprep.subr.mxu0 0.0
    %129 = vmatpush1.msra.mxu0 0.0
    %130 = vmatprep.subr.mxu0 0.0
    %131 = vmatpush1.msra.mxu0 0.0
    %132 = vmatprep.subr.mxu0 0.0
    %133 = vmatpush1.msra.mxu0 0.0
    %134 = vmatprep.subr.mxu0 0.0
    %135 = vmatpush1.msra.mxu0 0.0
    %136 = vmatprep.subr.mxu0 0.0
    %137 = vmatpush1.msra.mxu0 0.0
    %138 = vmatprep.subr.mxu0 0.0
    %139 = vmatpush1.msra.mxu0 0.0
    %140 = vmatprep.subr.mxu0 0.0
    %141 = vmatpush1.msra.mxu0 0.0
    %142 = vmatprep.subr.mxu0 0.0
    %143 = vmatpush1.msra.mxu0 0.0
    %144 = vmatprep.subr.mxu0 0.0
    %145 = vmatpush1.msra.mxu0 0.0
    %146 = vmatprep.mubr.f32.mxu0 0.0
    %147 = vmatmul.mubr.f32.gmra.mrb[0].mxu0 %v77
    %v148 = vpop.f32.mrb[0].mxu0
    %v149 = vadd.f32 %v73, %v148
    %v150 = vpop.f32.mrb[0].mxu0
    %151 = vmatprep.mubr.f32.mxu0 0.0
    %152 = vmatmul.mubr.f32.gmra.mrb[0].mxu0 %v80
    %v153 = vpop.f32.mrb[0].mxu0
    %v154 = vadd.f32 %v73, %v153
    %v155 = vpop.f32.mrb[0].mxu0
    %156 = vdwg.mxu0
    %vm157 = vcmask 261120
    %v159 = vsel %vm157, 0.0, 0
    %161 = vmatprep.subr.mxu0 0.0
    %162 = vmatpush1.msra.mxu0 %v59
    %163 = vmatprep.subr.mxu0 0.0
    %164 = vmatpush1.msra.mxu0 %v60
    %165 = vmatprep.subr.mxu0 0.0
    %166 = vmatpush1.msra.mxu0 %v61
    %167 = vmatprep.subr.mxu0 0.0
    %168 = vmatpush1.msra.mxu0 %v62
    %169 = vmatprep.subr.mxu0 0.0
    %170 = vmatpush1.msra.mxu0 0.0
    %171 = vmatprep.subr.mxu0 0.0
    %172 = vmatpush1.msra.mxu0 0.0
    %173 = vmatprep.subr.mxu0 0.0
    %174 = vmatpush1.msra.mxu0 0.0
    %175 = vmatprep.subr.mxu0 0.0
    %176 = vmatpush1.msra.mxu0 0.0
    %177 = vmatprep.subr.mxu0 0.0
    %178 = vmatpush1.msra.mxu0 0.0
    %179 = vmatprep.subr.mxu0 0.0
    %180 = vmatpush1.msra.mxu0 0.0
    %181 = vmatprep.subr.mxu0 0.0
    %182 = vmatpush1.msra.mxu0 0.0
    %183 = vmatprep.subr.mxu0 0.0
    %184 = vmatpush1.msra.mxu0 0.0
    %185 = vmatprep.subr.mxu0 0.0
    %186 = vmatpush1.msra.mxu0 0.0
    %187 = vmatprep.subr.mxu0 0.0
    %188 = vmatpush1.msra.mxu0 0.0
    %189 = vmatprep.subr.mxu0 0.0
    %190 = vmatpush1.msra.mxu0 0.0
    %191 = vmatprep.subr.mxu0 0.0
    %192 = vmatpush1.msra.mxu0 0.0
    %193 = vmatprep.subr.mxu0 0.0
    %194 = vmatpush1.msra.mxu0 0.0
    %195 = vmatprep.subr.mxu0 0.0
    %196 = vmatpush1.msra.mxu0 0.0
    %197 = vmatprep.subr.mxu0 0.0
    %198 = vmatpush1.msra.mxu0 0.0
    %199 = vmatprep.subr.mxu0 0.0
    %200 = vmatpush1.msra.mxu0 0.0
    %201 = vmatprep.subr.mxu0 0.0
    %202 = vmatpush1.msra.mxu0 0.0
    %203 = vmatprep.subr.mxu0 0.0
    %204 = vmatpush1.msra.mxu0 0.0
    %205 = vmatprep.subr.mxu0 0.0
    %206 = vmatpush1.msra.mxu0 0.0
    %207 = vmatprep.subr.mxu0 0.0
    %208 = vmatpush1.msra.mxu0 0.0
    %209 = vmatprep.subr.mxu0 0.0
    %210 = vmatpush1.msra.mxu0 0.0
    %211 = vmatprep.subr.mxu0 0.0
    %212 = vmatpush1.msra.mxu0 0.0
    %213 = vmatprep.subr.mxu0 0.0
    %214 = vmatpush1.msra.mxu0 0.0
    %215 = vmatprep.subr.mxu0 0.0
    %216 = vmatpush1.msra.mxu0 0.0
    %217 = vmatprep.subr.mxu0 0.0
    %218 = vmatpush1.msra.mxu0 0.0
    %219 = vmatprep.subr.mxu0 0.0
    %220 = vmatpush1.msra.mxu0 0.0
    %221 = vmatprep.subr.mxu0 0.0
    %222 = vmatpush1.msra.mxu0 0.0
    %223 = vmatprep.subr.mxu0 0.0
    %224 = vmatpush1.msra.mxu0 0.0
    %225 = vmatprep.mubr.f32.mxu0 0.0
    %226 = vmatmul.mubr.f32.gmra.mrb[0].mxu0 %v159
    %v227 = vpop.f32.mrb[0].mxu0
    %v228 = vadd.f32 0.0, %v227
    %v229 = vpop.f32.mrb[0].mxu0
    %230 = vdwg.mxu0
    %v231 = vadd.f32 %v149, %v228
    %v232 = vxor.u32 %v231, 2147483648
    %v233 = vmul.f32 %v232, 1.442695
    %v234 = vpow.pop %v233
    %v235 = vadd.f32 %v234, 1.0
    %v236 = vrcp.pop %v235
    %v237 = vmul.f32 1.0, %v236
    %v238 = vtanh.pop %v231
    %v239 = vmul.f32 %v237, 0.0
    %241 = vrot.lane.b32.xlu0 %v238, 32
    %v242 = vpop.permute.xlu0 %241
    %v244 = vmul.f32 %v237, %v242
    %246 = vrot.lane.b32.xlu0 %v244, 32
    %v247 = vpop.permute.xlu0 %246
    %v249 = vadd.f32 %v239, %v247
    %v250 = vtanh.pop %v249
    %252 = vrot.lane.b32.xlu0 %v250, 32
    %v253 = vpop.permute.xlu0 %252
    %v255 = vmul.f32 %v237, %v253
    %257 = vrot.lane.b32.xlu0 %v255, 64
    %v258 = vpop.permute.xlu0 %257
    %v259 = vsel %vm157, %v258, 0
    %261 = vmatprep.subr.mxu0 0.0
    %262 = vmatpush1.msra.mxu0 %v59
    %263 = vmatprep.subr.mxu0 0.0
    %264 = vmatpush1.msra.mxu0 %v60
    %265 = vmatprep.subr.mxu0 0.0
    %266 = vmatpush1.msra.mxu0 %v61
    %267 = vmatprep.subr.mxu0 0.0
    %268 = vmatpush1.msra.mxu0 %v62
    %269 = vmatprep.subr.mxu0 0.0
    %270 = vmatpush1.msra.mxu0 0.0
    %271 = vmatprep.subr.mxu0 0.0
    %272 = vmatpush1.msra.mxu0 0.0
    %273 = vmatprep.subr.mxu0 0.0
    %274 = vmatpush1.msra.mxu0 0.0
    %275 = vmatprep.subr.mxu0 0.0
    %276 = vmatpush1.msra.mxu0 0.0
    %277 = vmatprep.subr.mxu0 0.0
    %278 = vmatpush1.msra.mxu0 0.0
    %279 = vmatprep.subr.mxu0 0.0
    %280 = vmatpush1.msra.mxu0 0.0
    %281 = vmatprep.subr.mxu0 0.0
    %282 = vmatpush1.msra.mxu0 0.0
    %283 = vmatprep.subr.mxu0 0.0
    %284 = vmatpush1.msra.mxu0 0.0
    %285 = vmatprep.subr.mxu0 0.0
    %286 = vmatpush1.msra.mxu0 0.0
    %287 = vmatprep.subr.mxu0 0.0
    %288 = vmatpush1.msra.mxu0 0.0
    %289 = vmatprep.subr.mxu0 0.0
    %290 = vmatpush1.msra.mxu0 0.0
    %291 = vmatprep.subr.mxu0 0.0
    %292 = vmatpush1.msra.mxu0 0.0
    %293 = vmatprep.subr.mxu0 0.0
    %294 = vmatpush1.msra.mxu0 0.0
    %295 = vmatprep.subr.mxu0 0.0
    %296 = vmatpush1.msra.mxu0 0.0
    %297 = vmatprep.subr.mxu0 0.0
    %298 = vmatpush1.msra.mxu0 0.0
    %299 = vmatprep.subr.mxu0 0.0
    %300 = vmatpush1.msra.mxu0 0.0
    %301 = vmatprep.subr.mxu0 0.0
    %302 = vmatpush1.msra.mxu0 0.0
    %303 = vmatprep.subr.mxu0 0.0
    %304 = vmatpush1.msra.mxu0 0.0
    %305 = vmatprep.subr.mxu0 0.0
    %306 = vmatpush1.msra.mxu0 0.0
    %307 = vmatprep.subr.mxu0 0.0
    %308 = vmatpush1.msra.mxu0 0.0
    %309 = vmatprep.subr.mxu0 0.0
    %310 = vmatpush1.msra.mxu0 0.0
    %311 = vmatprep.subr.mxu0 0.0
    %312 = vmatpush1.msra.mxu0 0.0
    %313 = vmatprep.subr.mxu0 0.0
    %314 = vmatpush1.msra.mxu0 0.0
    %315 = vmatprep.subr.mxu0 0.0
    %316 = vmatpush1.msra.mxu0 0.0
    %317 = vmatprep.subr.mxu0 0.0
    %318 = vmatpush1.msra.mxu0 0.0
    %319 = vmatprep.subr.mxu0 0.0
    %320 = vmatpush1.msra.mxu0 0.0
    %321 = vmatprep.subr.mxu0 0.0
    %322 = vmatpush1.msra.mxu0 0.0
    %323 = vmatprep.subr.mxu0 0.0
    %324 = vmatpush1.msra.mxu0 0.0
    %325 = vmatprep.mubr.f32.mxu0 0.0
    %326 = vmatmul.mubr.f32.gmra.mrb[0].mxu0 %v259
    %v327 = vpop.f32.mrb[0].mxu0
    %v328 = vadd.f32 0.0, %v327
    %v329 = vpop.f32.mrb[0].mxu0
    %330 = vdwg.mxu0
    %v332 = vrot.slane %v328, 6
    %v334 = vadd.f32 %v149, %v332
    %v335 = vxor.u32 %v334, 2147483648
    %v336 = vmul.f32 %v335, 1.442695
    %v337 = vpow.pop %v336
    %v338 = vadd.f32 %v337, 1.0
    %v339 = vrcp.pop %v338
    %v340 = vmul.f32 1.0, %v339
    %v341 = vtanh.pop %v334
    %v343 = vrot.slane %v249, 6
    %v345 = vmul.f32 %v340, %v343
    %347 = vrot.lane.b32.xlu0 %v341, 32
    %v348 = vpop.permute.xlu0 %347
    %v350 = vmul.f32 %v340, %v348
    %352 = vrot.lane.b32.xlu0 %v350, 32
    %v353 = vpop.permute.xlu0 %352
    %v355 = vadd.f32 %v345, %v353
    %v356 = vtanh.pop %v355
    %358 = vrot.lane.b32.xlu0 %v356, 32
    %v359 = vpop.permute.xlu0 %358
    %v361 = vmul.f32 %v340, %v359
    %v363 = vrot.slane %v361, 2
    %364 = vrot.lane.b32.xlu0 %v363, 64
    %v365 = vpop.permute.xlu0 %364
    %v366 = vsel %vm157, %v365, 0
    %368 = vmatprep.subr.mxu0 0.0
    %369 = vmatpush1.msra.mxu0 %v59
    %370 = vmatprep.subr.mxu0 0.0
    %371 = vmatpush1.msra.mxu0 %v60
    %372 = vmatprep.subr.mxu0 0.0
    %373 = vmatpush1.msra.mxu0 %v61
    %374 = vmatprep.subr.mxu0 0.0
    %375 = vmatpush1.msra.mxu0 %v62
    %376 = vmatprep.subr.mxu0 0.0
    %377 = vmatpush1.msra.mxu0 0.0
    %378 = vmatprep.subr.mxu0 0.0
    %379 = vmatpush1.msra.mxu0 0.0
    %380 = vmatprep.subr.mxu0 0.0
    %381 = vmatpush1.msra.mxu0 0.0
    %382 = vmatprep.subr.mxu0 0.0
    %383 = vmatpush1.msra.mxu0 0.0
    %384 = vmatprep.subr.mxu0 0.0
    %385 = vmatpush1.msra.mxu0 0.0
    %386 = vmatprep.subr.mxu0 0.0
    %387 = vmatpush1.msra.mxu0 0.0
    %388 = vmatprep.subr.mxu0 0.0
    %389 = vmatpush1.msra.mxu0 0.0
    %390 = vmatprep.subr.mxu0 0.0
    %391 = vmatpush1.msra.mxu0 0.0
    %392 = vmatprep.subr.mxu0 0.0
    %393 = vmatpush1.msra.mxu0 0.0
    %394 = vmatprep.subr.mxu0 0.0
    %395 = vmatpush1.msra.mxu0 0.0
    %396 = vmatprep.subr.mxu0 0.0
    %397 = vmatpush1.msra.mxu0 0.0
    %398 = vmatprep.subr.mxu0 0.0
    %399 = vmatpush1.msra.mxu0 0.0
    %400 = vmatprep.subr.mxu0 0.0
    %401 = vmatpush1.msra.mxu0 0.0
    %402 = vmatprep.subr.mxu0 0.0
    %403 = vmatpush1.msra.mxu0 0.0
    %404 = vmatprep.subr.mxu0 0.0
    %405 = vmatpush1.msra.mxu0 0.0
    %406 = vmatprep.subr.mxu0 0.0
    %407 = vmatpush1.msra.mxu0 0.0
    %408 = vmatprep.subr.mxu0 0.0
    %409 = vmatpush1.msra.mxu0 0.0
    %410 = vmatprep.subr.mxu0 0.0
    %411 = vmatpush1.msra.mxu0 0.0
    %412 = vmatprep.subr.mxu0 0.0
    %413 = vmatpush1.msra.mxu0 0.0
    %414 = vmatprep.subr.mxu0 0.0
    %415 = vmatpush1.msra.mxu0 0.0
    %416 = vmatprep.subr.mxu0 0.0
    %417 = vmatpush1.msra.mxu0 0.0
    %418 = vmatprep.subr.mxu0 0.0
    %419 = vmatpush1.msra.mxu0 0.0
    %420 = vmatprep.subr.mxu0 0.0
    %421 = vmatpush1.msra.mxu0 0.0
    %422 = vmatprep.subr.mxu0 0.0
    %423 = vmatpush1.msra.mxu0 0.0
    %424 = vmatprep.subr.mxu0 0.0
    %425 = vmatpush1.msra.mxu0 0.0
    %426 = vmatprep.subr.mxu0 0.0
    %427 = vmatpush1.msra.mxu0 0.0
    %428 = vmatprep.subr.mxu0 0.0
    %429 = vmatpush1.msra.mxu0 0.0
    %430 = vmatprep.subr.mxu0 0.0
    %431 = vmatpush1.msra.mxu0 0.0
    %432 = vmatprep.mubr.f32.mxu0 0.0
    %433 = vmatmul.mubr.f32.gmra.mrb[0].mxu0 %v366
    %v434 = vpop.f32.mrb[0].mxu0
    %v435 = vadd.f32 0.0, %v434
    %v436 = vpop.f32.mrb[0].mxu0
    %437 = vdwg.mxu0
    %v439 = vrot.slane %v435, 4
    %v441 = vadd.f32 %v149, %v439
    %v442 = vxor.u32 %v441, 2147483648
    %v443 = vmul.f32 %v442, 1.442695
    %v444 = vpow.pop %v443
    %v445 = vadd.f32 %v444, 1.0
    %v446 = vrcp.pop %v445
    %v447 = vmul.f32 1.0, %v446
    %v448 = vtanh.pop %v441
    %v450 = vrot.slane %v355, 6
    %v452 = vmul.f32 %v447, %v450
    %454 = vrot.lane.b32.xlu0 %v448, 32
    %v455 = vpop.permute.xlu0 %454
    %v457 = vmul.f32 %v447, %v455
    %459 = vrot.lane.b32.xlu0 %v457, 32
    %v460 = vpop.permute.xlu0 %459
    %v462 = vadd.f32 %v452, %v460
    %v463 = vtanh.pop %v462
    %465 = vrot.lane.b32.xlu0 %v463, 32
    %v466 = vpop.permute.xlu0 %465
    %v468 = vmul.f32 %v447, %v466
    %v470 = vrot.slane %v468, 4
    %471 = vrot.lane.b32.xlu0 %v470, 64
    %v472 = vpop.permute.xlu0 %471
    %v473 = vsel %vm157, %v472, 0
    %475 = vmatprep.subr.mxu0 0.0
    %476 = vmatpush1.msra.mxu0 %v59
    %477 = vmatprep.subr.mxu0 0.0
    %478 = vmatpush1.msra.mxu0 %v60
    %479 = vmatprep.subr.mxu0 0.0
    %480 = vmatpush1.msra.mxu0 %v61
    %481 = vmatprep.subr.mxu0 0.0
    %482 = vmatpush1.msra.mxu0 %v62
    %483 = vmatprep.subr.mxu0 0.0
    %484 = vmatpush1.msra.mxu0 0.0
    %485 = vmatprep.subr.mxu0 0.0
    %486 = vmatpush1.msra.mxu0 0.0
    %487 = vmatprep.subr.mxu0 0.0
    %488 = vmatpush1.msra.mxu0 0.0
    %489 = vmatprep.subr.mxu0 0.0
    %490 = vmatpush1.msra.mxu0 0.0
    %491 = vmatprep.subr.mxu0 0.0
    %492 = vmatpush1.msra.mxu0 0.0
    %493 = vmatprep.subr.mxu0 0.0
    %494 = vmatpush1.msra.mxu0 0.0
    %495 = vmatprep.subr.mxu0 0.0
    %496 = vmatpush1.msra.mxu0 0.0
    %497 = vmatprep.subr.mxu0 0.0
    %498 = vmatpush1.msra.mxu0 0.0
    %499 = vmatprep.subr.mxu0 0.0
    %500 = vmatpush1.msra.mxu0 0.0
    %501 = vmatprep.subr.mxu0 0.0
    %502 = vmatpush1.msra.mxu0 0.0
    %503 = vmatprep.subr.mxu0 0.0
    %504 = vmatpush1.msra.mxu0 0.0
    %505 = vmatprep.subr.mxu0 0.0
    %506 = vmatpush1.msra.mxu0 0.0
    %507 = vmatprep.subr.mxu0 0.0
    %508 = vmatpush1.msra.mxu0 0.0
    %509 = vmatprep.subr.mxu0 0.0
    %510 = vmatpush1.msra.mxu0 0.0
    %511 = vmatprep.subr.mxu0 0.0
    %512 = vmatpush1.msra.mxu0 0.0
    %513 = vmatprep.subr.mxu0 0.0
    %514 = vmatpush1.msra.mxu0 0.0
    %515 = vmatprep.subr.mxu0 0.0
    %516 = vmatpush1.msra.mxu0 0.0
    %517 = vmatprep.subr.mxu0 0.0
    %518 = vmatpush1.msra.mxu0 0.0
    %519 = vmatprep.subr.mxu0 0.0
    %520 = vmatpush1.msra.mxu0 0.0
    %521 = vmatprep.subr.mxu0 0.0
    %522 = vmatpush1.msra.mxu0 0.0
    %523 = vmatprep.subr.mxu0 0.0
    %524 = vmatpush1.msra.mxu0 0.0
    %525 = vmatprep.subr.mxu0 0.0
    %526 = vmatpush1.msra.mxu0 0.0
    %527 = vmatprep.subr.mxu0 0.0
    %528 = vmatpush1.msra.mxu0 0.0
    %529 = vmatprep.subr.mxu0 0.0
    %530 = vmatpush1.msra.mxu0 0.0
    %531 = vmatprep.subr.mxu0 0.0
    %532 = vmatpush1.msra.mxu0 0.0
    %533 = vmatprep.subr.mxu0 0.0
    %534 = vmatpush1.msra.mxu0 0.0
    %535 = vmatprep.subr.mxu0 0.0
    %536 = vmatpush1.msra.mxu0 0.0
    %537 = vmatprep.subr.mxu0 0.0
    %538 = vmatpush1.msra.mxu0 0.0
    %539 = vmatprep.mubr.f32.mxu0 0.0
    %540 = vmatmul.mubr.f32.gmra.mrb[0].mxu0 %v473
    %v541 = vpop.f32.mrb[0].mxu0
    %v542 = vadd.f32 0.0, %v541
    %v543 = vpop.f32.mrb[0].mxu0
    %544 = vdwg.mxu0
    %v546 = vrot.slane %v542, 2
    %v548 = vadd.f32 %v149, %v546
    %v549 = vxor.u32 %v548, 2147483648
    %v550 = vmul.f32 %v549, 1.442695
    %v551 = vpow.pop %v550
    %v552 = vadd.f32 %v551, 1.0
    %v553 = vrcp.pop %v552
    %v554 = vmul.f32 1.0, %v553
    %v555 = vtanh.pop %v548
    %v557 = vrot.slane %v462, 6
    %v559 = vmul.f32 %v554, %v557
    %561 = vrot.lane.b32.xlu0 %v555, 32
    %v562 = vpop.permute.xlu0 %561
    %v564 = vmul.f32 %v554, %v562
    %566 = vrot.lane.b32.xlu0 %v564, 32
    %v567 = vpop.permute.xlu0 %566
    %v569 = vadd.f32 %v559, %v567
    %v570 = vtanh.pop %v569
    %572 = vrot.lane.b32.xlu0 %v570, 32
    %v573 = vpop.permute.xlu0 %572
    %v575 = vmul.f32 %v554, %v573
    %v577 = vrot.slane %v575, 6
    %578 = vrot.lane.b32.xlu0 %v577, 64
    %v579 = vpop.permute.xlu0 %578
    %v580 = vsel %vm157, %v579, 0
    %582 = vmatprep.subr.mxu0 0.0
    %583 = vmatpush1.msra.mxu0 %v59
    %584 = vmatprep.subr.mxu0 0.0
    %585 = vmatpush1.msra.mxu0 %v60
    %586 = vmatprep.subr.mxu0 0.0
    %587 = vmatpush1.msra.mxu0 %v61
    %588 = vmatprep.subr.mxu0 0.0
    %589 = vmatpush1.msra.mxu0 %v62
    %590 = vmatprep.subr.mxu0 0.0
    %591 = vmatpush1.msra.mxu0 0.0
    %592 = vmatprep.subr.mxu0 0.0
    %593 = vmatpush1.msra.mxu0 0.0
    %594 = vmatprep.subr.mxu0 0.0
    %595 = vmatpush1.msra.mxu0 0.0
    %596 = vmatprep.subr.mxu0 0.0
    %597 = vmatpush1.msra.mxu0 0.0
    %598 = vmatprep.subr.mxu0 0.0
    %599 = vmatpush1.msra.mxu0 0.0
    %600 = vmatprep.subr.mxu0 0.0
    %601 = vmatpush1.msra.mxu0 0.0
    %602 = vmatprep.subr.mxu0 0.0
    %603 = vmatpush1.msra.mxu0 0.0
    %604 = vmatprep.subr.mxu0 0.0
    %605 = vmatpush1.msra.mxu0 0.0
    %606 = vmatprep.subr.mxu0 0.0
    %607 = vmatpush1.msra.mxu0 0.0
    %608 = vmatprep.subr.mxu0 0.0
    %609 = vmatpush1.msra.mxu0 0.0
    %610 = vmatprep.subr.mxu0 0.0
    %611 = vmatpush1.msra.mxu0 0.0
    %612 = vmatprep.subr.mxu0 0.0
    %613 = vmatpush1.msra.mxu0 0.0
    %614 = vmatprep.subr.mxu0 0.0
    %615 = vmatpush1.msra.mxu0 0.0
    %616 = vmatprep.subr.mxu0 0.0
    %617 = vmatpush1.msra.mxu0 0.0
    %618 = vmatprep.subr.mxu0 0.0
    %619 = vmatpush1.msra.mxu0 0.0
    %620 = vmatprep.subr.mxu0 0.0
    %621 = vmatpush1.msra.mxu0 0.0
    %622 = vmatprep.subr.mxu0 0.0
    %623 = vmatpush1.msra.mxu0 0.0
    %624 = vmatprep.subr.mxu0 0.0
    %625 = vmatpush1.msra.mxu0 0.0
    %626 = vmatprep.subr.mxu0 0.0
    %627 = vmatpush1.msra.mxu0 0.0
    %628 = vmatprep.subr.mxu0 0.0
    %629 = vmatpush1.msra.mxu0 0.0
    %630 = vmatprep.subr.mxu0 0.0
    %631 = vmatpush1.msra.mxu0 0.0
    %632 = vmatprep.subr.mxu0 0.0
    %633 = vmatpush1.msra.mxu0 0.0
    %634 = vmatprep.subr.mxu0 0.0
    %635 = vmatpush1.msra.mxu0 0.0
    %636 = vmatprep.subr.mxu0 0.0
    %637 = vmatpush1.msra.mxu0 0.0
    %638 = vmatprep.subr.mxu0 0.0
    %639 = vmatpush1.msra.mxu0 0.0
    %640 = vmatprep.subr.mxu0 0.0
    %641 = vmatpush1.msra.mxu0 0.0
    %642 = vmatprep.subr.mxu0 0.0
    %643 = vmatpush1.msra.mxu0 0.0
    %644 = vmatprep.subr.mxu0 0.0
    %645 = vmatpush1.msra.mxu0 0.0
    %646 = vmatprep.mubr.f32.mxu0 0.0
    %647 = vmatmul.mubr.f32.gmra.mrb[0].mxu0 %v580
    %v648 = vpop.f32.mrb[0].mxu0
    %v649 = vadd.f32 0.0, %v648
    %v650 = vpop.f32.mrb[0].mxu0
    %651 = vdwg.mxu0
    %v652 = vadd.f32 %v154, %v649
    %v653 = vxor.u32 %v652, 2147483648
    %v654 = vmul.f32 %v653, 1.442695
    %v655 = vpow.pop %v654
    %v656 = vadd.f32 %v655, 1.0
    %v657 = vrcp.pop %v656
    %v658 = vmul.f32 1.0, %v657
    %v659 = vtanh.pop %v652
    %v661 = vrot.slane %v569, 6
    %v663 = vmul.f32 %v658, %v661
    %665 = vrot.lane.b32.xlu0 %v659, 32
    %v666 = vpop.permute.xlu0 %665
    %v668 = vmul.f32 %v658, %v666
    %670 = vrot.lane.b32.xlu0 %v668, 32
    %v671 = vpop.permute.xlu0 %670
    %v673 = vadd.f32 %v663, %v671
    %v674 = vtanh.pop %v673
    %676 = vrot.lane.b32.xlu0 %v674, 32
    %v677 = vpop.permute.xlu0 %676
    %v679 = vmul.f32 %v658, %v677
    %681 = vrot.lane.b32.xlu0 %v679, 64
    %v682 = vpop.permute.xlu0 %681
    %v683 = vsel %vm157, %v682, 0
    %685 = vmatprep.subr.mxu0 0.0
    %686 = vmatpush1.msra.mxu0 %v59
    %687 = vmatprep.subr.mxu0 0.0
    %688 = vmatpush1.msra.mxu0 %v60
    %689 = vmatprep.subr.mxu0 0.0
    %690 = vmatpush1.msra.mxu0 %v61
    %691 = vmatprep.subr.mxu0 0.0
    %692 = vmatpush1.msra.mxu0 %v62
    %693 = vmatprep.subr.mxu0 0.0
    %694 = vmatpush1.msra.mxu0 0.0
    %695 = vmatprep.subr.mxu0 0.0
    %696 = vmatpush1.msra.mxu0 0.0
    %697 = vmatprep.subr.mxu0 0.0
    %698 = vmatpush1.msra.mxu0 0.0
    %699 = vmatprep.subr.mxu0 0.0
    %700 = vmatpush1.msra.mxu0 0.0
    %701 = vmatprep.subr.mxu0 0.0
    %702 = vmatpush1.msra.mxu0 0.0
    %703 = vmatprep.subr.mxu0 0.0
    %704 = vmatpush1.msra.mxu0 0.0
    %705 = vmatprep.subr.mxu0 0.0
    %706 = vmatpush1.msra.mxu0 0.0
    %707 = vmatprep.subr.mxu0 0.0
    %708 = vmatpush1.msra.mxu0 0.0
    %709 = vmatprep.subr.mxu0 0.0
    %710 = vmatpush1.msra.mxu0 0.0
    %711 = vmatprep.subr.mxu0 0.0
    %712 = vmatpush1.msra.mxu0 0.0
    %713 = vmatprep.subr.mxu0 0.0
    %714 = vmatpush1.msra.mxu0 0.0
    %715 = vmatprep.subr.mxu0 0.0
    %716 = vmatpush1.msra.mxu0 0.0
    %717 = vmatprep.subr.mxu0 0.0
    %718 = vmatpush1.msra.mxu0 0.0
    %719 = vmatprep.subr.mxu0 0.0
    %720 = vmatpush1.msra.mxu0 0.0
    %721 = vmatprep.subr.mxu0 0.0
    %722 = vmatpush1.msra.mxu0 0.0
    %723 = vmatprep.subr.mxu0 0.0
    %724 = vmatpush1.msra.mxu0 0.0
    %725 = vmatprep.subr.mxu0 0.0
    %726 = vmatpush1.msra.mxu0 0.0
    %727 = vmatprep.subr.mxu0 0.0
    %728 = vmatpush1.msra.mxu0 0.0
    %729 = vmatprep.subr.mxu0 0.0
    %730 = vmatpush1.msra.mxu0 0.0
    %731 = vmatprep.subr.mxu0 0.0
    %732 = vmatpush1.msra.mxu0 0.0
    %733 = vmatprep.subr.mxu0 0.0
    %734 = vmatpush1.msra.mxu0 0.0
    %735 = vmatprep.subr.mxu0 0.0
    %736 = vmatpush1.msra.mxu0 0.0
    %737 = vmatprep.subr.mxu0 0.0
    %738 = vmatpush1.msra.mxu0 0.0
    %739 = vmatprep.subr.mxu0 0.0
    %740 = vmatpush1.msra.mxu0 0.0
    %741 = vmatprep.subr.mxu0 0.0
    %742 = vmatpush1.msra.mxu0 0.0
    %743 = vmatprep.subr.mxu0 0.0
    %744 = vmatpush1.msra.mxu0 0.0
    %745 = vmatprep.subr.mxu0 0.0
    %746 = vmatpush1.msra.mxu0 0.0
    %747 = vmatprep.subr.mxu0 0.0
    %748 = vmatpush1.msra.mxu0 0.0
    %749 = vmatprep.mubr.f32.mxu0 0.0
    %750 = vmatmul.mubr.f32.gmra.mrb[0].mxu0 %v683
    %v751 = vpop.f32.mrb[0].mxu0
    %v752 = vadd.f32 0.0, %v751
    %v753 = vpop.f32.mrb[0].mxu0
    %754 = vdwg.mxu0
    %v756 = vrot.slane %v752, 6
    %v758 = vadd.f32 %v154, %v756
    %v759 = vxor.u32 %v758, 2147483648
    %v760 = vmul.f32 %v759, 1.442695
    %v761 = vpow.pop %v760
    %v762 = vadd.f32 %v761, 1.0
    %v763 = vrcp.pop %v762
    %v764 = vmul.f32 1.0, %v763
    %v765 = vtanh.pop %v758
    %v767 = vrot.slane %v673, 6
    %v769 = vmul.f32 %v764, %v767
    %771 = vrot.lane.b32.xlu0 %v765, 32
    %v772 = vpop.permute.xlu0 %771
    %v774 = vmul.f32 %v764, %v772
    %776 = vrot.lane.b32.xlu0 %v774, 32
    %v777 = vpop.permute.xlu0 %776
    %v779 = vadd.f32 %v769, %v777
    %v780 = vtanh.pop %v779
    %782 = vrot.lane.b32.xlu0 %v780, 32
    %v783 = vpop.permute.xlu0 %782
    %v785 = vmul.f32 %v764, %v783
    %v787 = vrot.slane %v785, 2
    %788 = vrot.lane.b32.xlu0 %v787, 64
    %v789 = vpop.permute.xlu0 %788
    %v790 = vsel %vm157, %v789, 0
    %792 = vmatprep.subr.mxu0 0.0
    %793 = vmatpush1.msra.mxu0 %v59
    %794 = vmatprep.subr.mxu0 0.0
    %795 = vmatpush1.msra.mxu0 %v60
    %796 = vmatprep.subr.mxu0 0.0
    %797 = vmatpush1.msra.mxu0 %v61
    %798 = vmatprep.subr.mxu0 0.0
    %799 = vmatpush1.msra.mxu0 %v62
    %800 = vmatprep.subr.mxu0 0.0
    %801 = vmatpush1.msra.mxu0 0.0
    %802 = vmatprep.subr.mxu0 0.0
    %803 = vmatpush1.msra.mxu0 0.0
    %804 = vmatprep.subr.mxu0 0.0
    %805 = vmatpush1.msra.mxu0 0.0
    %806 = vmatprep.subr.mxu0 0.0
    %807 = vmatpush1.msra.mxu0 0.0
    %808 = vmatprep.subr.mxu0 0.0
    %809 = vmatpush1.msra.mxu0 0.0
    %810 = vmatprep.subr.mxu0 0.0
    %811 = vmatpush1.msra.mxu0 0.0
    %812 = vmatprep.subr.mxu0 0.0
    %813 = vmatpush1.msra.mxu0 0.0
    %814 = vmatprep.subr.mxu0 0.0
    %815 = vmatpush1.msra.mxu0 0.0
    %816 = vmatprep.subr.mxu0 0.0
    %817 = vmatpush1.msra.mxu0 0.0
    %818 = vmatprep.subr.mxu0 0.0
    %819 = vmatpush1.msra.mxu0 0.0
    %820 = vmatprep.subr.mxu0 0.0
    %821 = vmatpush1.msra.mxu0 0.0
    %822 = vmatprep.subr.mxu0 0.0
    %823 = vmatpush1.msra.mxu0 0.0
    %824 = vmatprep.subr.mxu0 0.0
    %825 = vmatpush1.msra.mxu0 0.0
    %826 = vmatprep.subr.mxu0 0.0
    %827 = vmatpush1.msra.mxu0 0.0
    %828 = vmatprep.subr.mxu0 0.0
    %829 = vmatpush1.msra.mxu0 0.0
    %830 = vmatprep.subr.mxu0 0.0
    %831 = vmatpush1.msra.mxu0 0.0
    %832 = vmatprep.subr.mxu0 0.0
    %833 = vmatpush1.msra.mxu0 0.0
    %834 = vmatprep.subr.mxu0 0.0
    %835 = vmatpush1.msra.mxu0 0.0
    %836 = vmatprep.subr.mxu0 0.0
    %837 = vmatpush1.msra.mxu0 0.0
    %838 = vmatprep.subr.mxu0 0.0
    %839 = vmatpush1.msra.mxu0 0.0
    %840 = vmatprep.subr.mxu0 0.0
    %841 = vmatpush1.msra.mxu0 0.0
    %842 = vmatprep.subr.mxu0 0.0
    %843 = vmatpush1.msra.mxu0 0.0
    %844 = vmatprep.subr.mxu0 0.0
    %845 = vmatpush1.msra.mxu0 0.0
    %846 = vmatprep.subr.mxu0 0.0
    %847 = vmatpush1.msra.mxu0 0.0
    %848 = vmatprep.subr.mxu0 0.0
    %849 = vmatpush1.msra.mxu0 0.0
    %850 = vmatprep.subr.mxu0 0.0
    %851 = vmatpush1.msra.mxu0 0.0
    %852 = vmatprep.subr.mxu0 0.0
    %853 = vmatpush1.msra.mxu0 0.0
    %854 = vmatprep.subr.mxu0 0.0
    %855 = vmatpush1.msra.mxu0 0.0
    %856 = vmatprep.mubr.f32.mxu0 0.0
    %857 = vmatmul.mubr.f32.gmra.mrb[0].mxu0 %v790
    %v858 = vpop.f32.mrb[0].mxu0
    %v859 = vadd.f32 0.0, %v858
    %v860 = vpop.f32.mrb[0].mxu0
    %861 = vdwg.mxu0
    %v863 = vrot.slane %v859, 4
    %v865 = vadd.f32 %v154, %v863
    %v866 = vxor.u32 %v865, 2147483648
    %v867 = vmul.f32 %v866, 1.442695
    %v868 = vpow.pop %v867
    %v869 = vadd.f32 %v868, 1.0
    %v870 = vrcp.pop %v869
    %v871 = vmul.f32 1.0, %v870
    %v872 = vtanh.pop %v865
    %v874 = vrot.slane %v779, 6
    %v876 = vmul.f32 %v871, %v874
    %878 = vrot.lane.b32.xlu0 %v872, 32
    %v879 = vpop.permute.xlu0 %878
    %v881 = vmul.f32 %v871, %v879
    %883 = vrot.lane.b32.xlu0 %v881, 32
    %v884 = vpop.permute.xlu0 %883
    %v886 = vadd.f32 %v876, %v884
    %v887 = vtanh.pop %v886
    %889 = vrot.lane.b32.xlu0 %v887, 32
    %v890 = vpop.permute.xlu0 %889
    %v892 = vmul.f32 %v871, %v890
    %v894 = vrot.slane %v892, 4
    %895 = vrot.lane.b32.xlu0 %v894, 64
    %v896 = vpop.permute.xlu0 %895
    %v897 = vsel %vm157, %v896, 0
    %899 = vmatprep.subr.mxu0 0.0
    %900 = vmatpush1.msra.mxu0 %v59
    %901 = vmatprep.subr.mxu0 0.0
    %902 = vmatpush1.msra.mxu0 %v60
    %903 = vmatprep.subr.mxu0 0.0
    %904 = vmatpush1.msra.mxu0 %v61
    %905 = vmatprep.subr.mxu0 0.0
    %906 = vmatpush1.msra.mxu0 %v62
    %907 = vmatprep.subr.mxu0 0.0
    %908 = vmatpush1.msra.mxu0 0.0
    %909 = vmatprep.subr.mxu0 0.0
    %910 = vmatpush1.msra.mxu0 0.0
    %911 = vmatprep.subr.mxu0 0.0
    %912 = vmatpush1.msra.mxu0 0.0
    %913 = vmatprep.subr.mxu0 0.0
    %914 = vmatpush1.msra.mxu0 0.0
    %915 = vmatprep.subr.mxu0 0.0
    %916 = vmatpush1.msra.mxu0 0.0
    %917 = vmatprep.subr.mxu0 0.0
    %918 = vmatpush1.msra.mxu0 0.0
    %919 = vmatprep.subr.mxu0 0.0
    %920 = vmatpush1.msra.mxu0 0.0
    %921 = vmatprep.subr.mxu0 0.0
    %922 = vmatpush1.msra.mxu0 0.0
    %923 = vmatprep.subr.mxu0 0.0
    %924 = vmatpush1.msra.mxu0 0.0
    %925 = vmatprep.subr.mxu0 0.0
    %926 = vmatpush1.msra.mxu0 0.0
    %927 = vmatprep.subr.mxu0 0.0
    %928 = vmatpush1.msra.mxu0 0.0
    %929 = vmatprep.subr.mxu0 0.0
    %930 = vmatpush1.msra.mxu0 0.0
    %931 = vmatprep.subr.mxu0 0.0
    %932 = vmatpush1.msra.mxu0 0.0
    %933 = vmatprep.subr.mxu0 0.0
    %934 = vmatpush1.msra.mxu0 0.0
    %935 = vmatprep.subr.mxu0 0.0
    %936 = vmatpush1.msra.mxu0 0.0
    %937 = vmatprep.subr.mxu0 0.0
    %938 = vmatpush1.msra.mxu0 0.0
    %939 = vmatprep.subr.mxu0 0.0
    %940 = vmatpush1.msra.mxu0 0.0
    %941 = vmatprep.subr.mxu0 0.0
    %942 = vmatpush1.msra.mxu0 0.0
    %943 = vmatprep.subr.mxu0 0.0
    %944 = vmatpush1.msra.mxu0 0.0
    %945 = vmatprep.subr.mxu0 0.0
    %946 = vmatpush1.msra.mxu0 0.0
    %947 = vmatprep.subr.mxu0 0.0
    %948 = vmatpush1.msra.mxu0 0.0
    %949 = vmatprep.subr.mxu0 0.0
    %950 = vmatpush1.msra.mxu0 0.0
    %951 = vmatprep.subr.mxu0 0.0
    %952 = vmatpush1.msra.mxu0 0.0
    %953 = vmatprep.subr.mxu0 0.0
    %954 = vmatpush1.msra.mxu0 0.0
    %955 = vmatprep.subr.mxu0 0.0
    %956 = vmatpush1.msra.mxu0 0.0
    %957 = vmatprep.subr.mxu0 0.0
    %958 = vmatpush1.msra.mxu0 0.0
    %959 = vmatprep.subr.mxu0 0.0
    %960 = vmatpush1.msra.mxu0 0.0
    %961 = vmatprep.subr.mxu0 0.0
    %962 = vmatpush1.msra.mxu0 0.0
    %963 = vmatprep.mubr.f32.mxu0 0.0
    %964 = vmatmul.mubr.f32.gmra.mrb[0].mxu0 %v897
    %v965 = vpop.f32.mrb[0].mxu0
    %v966 = vadd.f32 0.0, %v965
    %v967 = vpop.f32.mrb[0].mxu0
    %968 = vdwg.mxu0
    %v970 = vrot.slane %v966, 2
    %v972 = vadd.f32 %v154, %v970
    %v973 = vxor.u32 %v972, 2147483648
    %v974 = vmul.f32 %v973, 1.442695
    %v975 = vpow.pop %v974
    %v976 = vadd.f32 %v975, 1.0
    %v977 = vrcp.pop %v976
    %v978 = vmul.f32 1.0, %v977
    %v979 = vtanh.pop %v972
    %v981 = vrot.slane %v886, 6
    %v983 = vmul.f32 %v978, %v981
    %985 = vrot.lane.b32.xlu0 %v979, 32
    %v986 = vpop.permute.xlu0 %985
    %v988 = vmul.f32 %v978, %v986
    %990 = vrot.lane.b32.xlu0 %v988, 32
    %v991 = vpop.permute.xlu0 %990
    %v993 = vadd.f32 %v983, %v991
    %v994 = vtanh.pop %v993
    %996 = vrot.lane.b32.xlu0 %v994, 32
    %v997 = vpop.permute.xlu0 %996
    %v999 = vmul.f32 %v978, %v997
    %vm1000 = vcmask 1041408
    %v1001 = vsel %vm1000, %v255, %v361
    %vm1002 = vcmask 1043456
    %v1003 = vsel %vm1002, %v1001, %v468
    %vm1004 = vcmask 1045504
    %v1005 = vsel %vm1004, %v1003, %v575
    %v1006 = vsel %vm1000, %v679, %v785
    %v1007 = vsel %vm1002, %v1006, %v892
    %v1008 = vsel %vm1004, %v1007, %v999
    %v1009 = vld [vmem:[%s7] sm:$0xff]
    %v1010 = vld [vmem:[%s7 + $0x8] sm:$0xff]
    %v1011 = vld [vmem:[%s7 + $0x10] sm:$0xff]
    %v1012 = vld [vmem:[%s7 + $0x18] sm:$0xff]
    %1015 = vrot.lane.b32.xlu0 %v1005, 64
    %v1016 = vpop.permute.xlu0 %1015
    %1017 = vrot.lane.b32.xlu0 %v1008, 64
    %v1018 = vpop.permute.xlu0 %1017
    %v1019 = vsel %vm157, %v1016, 0
    %v1021 = vsel %vm157, %v1018, 0
    %1023 = vmatprep.subr.mxu0 0.0
    %1024 = vmatpush1.msra.mxu0 %v1009
    %1025 = vmatprep.subr.mxu0 0.0
    %1026 = vmatpush1.msra.mxu0 %v1010
    %1027 = vmatprep.subr.mxu0 0.0
    %1028 = vmatpush1.msra.mxu0 %v1011
    %1029 = vmatprep.subr.mxu0 0.0
    %1030 = vmatpush1.msra.mxu0 %v1012
    %1031 = vmatprep.subr.mxu0 0.0
    %1032 = vmatpush1.msra.mxu0 0.0
    %1033 = vmatprep.subr.mxu0 0.0
    %1034 = vmatpush1.msra.mxu0 0.0
    %1035 = vmatprep.subr.mxu0 0.0
    %1036 = vmatpush1.msra.mxu0 0.0
    %1037 = vmatprep.subr.mxu0 0.0
    %1038 = vmatpush1.msra.mxu0 0.0
    %1039 = vmatprep.subr.mxu0 0.0
    %1040 = vmatpush1.msra.mxu0 0.0
    %1041 = vmatprep.subr.mxu0 0.0
    %1042 = vmatpush1.msra.mxu0 0.0
    %1043 = vmatprep.subr.mxu0 0.0
    %1044 = vmatpush1.msra.mxu0 0.0
    %1045 = vmatprep.subr.mxu0 0.0
    %1046 = vmatpush1.msra.mxu0 0.0
    %1047 = vmatprep.subr.mxu0 0.0
    %1048 = vmatpush1.msra.mxu0 0.0
    %1049 = vmatprep.subr.mxu0 0.0
    %1050 = vmatpush1.msra.mxu0 0.0
    %1051 = vmatprep.subr.mxu0 0.0
    %1052 = vmatpush1.msra.mxu0 0.0
    %1053 = vmatprep.subr.mxu0 0.0
    %1054 = vmatpush1.msra.mxu0 0.0
    %1055 = vmatprep.subr.mxu0 0.0
    %1056 = vmatpush1.msra.mxu0 0.0
    %1057 = vmatprep.subr.mxu0 0.0
    %1058 = vmatpush1.msra.mxu0 0.0
    %1059 = vmatprep.subr.mxu0 0.0
    %1060 = vmatpush1.msra.mxu0 0.0
    %1061 = vmatprep.subr.mxu0 0.0
    %1062 = vmatpush1.msra.mxu0 0.0
    %1063 = vmatprep.subr.mxu0 0.0
    %1064 = vmatpush1.msra.mxu0 0.0
    %1065 = vmatprep.subr.mxu0 0.0
    %1066 = vmatpush1.msra.mxu0 0.0
    %1067 = vmatprep.subr.mxu0 0.0
    %1068 = vmatpush1.msra.mxu0 0.0
    %1069 = vmatprep.subr.mxu0 0.0
    %1070 = vmatpush1.msra.mxu0 0.0
    %1071 = vmatprep.subr.mxu0 0.0
    %1072 = vmatpush1.msra.mxu0 0.0
    %1073 = vmatprep.subr.mxu0 0.0
    %1074 = vmatpush1.msra.mxu0 0.0
    %1075 = vmatprep.subr.mxu0 0.0
    %1076 = vmatpush1.msra.mxu0 0.0
    %1077 = vmatprep.subr.mxu0 0.0
    %1078 = vmatpush1.msra.mxu0 0.0
    %1079 = vmatprep.subr.mxu0 0.0
    %1080 = vmatpush1.msra.mxu0 0.0
    %1081 = vmatprep.subr.mxu0 0.0
    %1082 = vmatpush1.msra.mxu0 0.0
    %1083 = vmatprep.subr.mxu0 0.0
    %1084 = vmatpush1.msra.mxu0 0.0
    %1085 = vmatprep.subr.mxu0 0.0
    %1086 = vmatpush1.msra.mxu0 0.0
    %1087 = vmatprep.mubr.f32.mxu0 0.0
    %1088 = vmatmul.mubr.f32.gmra.mrb[0].mxu0 %v1019
    %v1089 = vpop.f32.mrb[0].mxu0
    %v1090 = vadd.f32 0.0, %v1089
    %v1091 = vpop.f32.mrb[0].mxu0
    %1092 = vmatprep.mubr.f32.mxu0 0.0
    %1093 = vmatmul.mubr.f32.gmra.mrb[0].mxu0 %v1021
    %v1094 = vpop.f32.mrb[0].mxu0
    %v1095 = vadd.f32 0.0, %v1094
    %v1096 = vpop.f32.mrb[0].mxu0
    %1097 = vdwg.mxu0
    %v1098 = vld [vmem:[%s8] sm:$0xff]
    %v1099 = vld [vmem:[%s8 + $0x8] sm:$0xff]
    %v1100 = vld [vmem:[%s8 + $0x10] sm:$0xff]
    %v1101 = vld [vmem:[%s8 + $0x18] sm:$0xff]
    %1102 = vmatprep.subr.mxu0 0.0
    %1103 = vmatpush1.msra.mxu0 %v1098
    %1104 = vmatprep.subr.mxu0 0.0
    %1105 = vmatpush1.msra.mxu0 %v1099
    %1106 = vmatprep.subr.mxu0 0.0
    %1107 = vmatpush1.msra.mxu0 %v1100
    %1108 = vmatprep.subr.mxu0 0.0
    %1109 = vmatpush1.msra.mxu0 %v1101
    %1110 = vmatprep.subr.mxu0 0.0
    %1111 = vmatpush1.msra.mxu0 0.0
    %1112 = vmatprep.subr.mxu0 0.0
    %1113 = vmatpush1.msra.mxu0 0.0
    %1114 = vmatprep.subr.mxu0 0.0
    %1115 = vmatpush1.msra.mxu0 0.0
    %1116 = vmatprep.subr.mxu0 0.0
    %1117 = vmatpush1.msra.mxu0 0.0
    %1118 = vmatprep.subr.mxu0 0.0
    %1119 = vmatpush1.msra.mxu0 0.0
    %1120 = vmatprep.subr.mxu0 0.0
    %1121 = vmatpush1.msra.mxu0 0.0
    %1122 = vmatprep.subr.mxu0 0.0
    %1123 = vmatpush1.msra.mxu0 0.0
    %1124 = vmatprep.subr.mxu0 0.0
    %1125 = vmatpush1.msra.mxu0 0.0
    %1126 = vmatprep.subr.mxu0 0.0
    %1127 = vmatpush1.msra.mxu0 0.0
    %1128 = vmatprep.subr.mxu0 0.0
    %1129 = vmatpush1.msra.mxu0 0.0
    %1130 = vmatprep.subr.mxu0 0.0
    %1131 = vmatpush1.msra.mxu0 0.0
    %1132 = vmatprep.subr.mxu0 0.0
    %1133 = vmatpush1.msra.mxu0 0.0
    %1134 = vmatprep.subr.mxu0 0.0
    %1135 = vmatpush1.msra.mxu0 0.0
    %1136 = vmatprep.subr.mxu0 0.0
    %1137 = vmatpush1.msra.mxu0 0.0
    %1138 = vmatprep.subr.mxu0 0.0
    %1139 = vmatpush1.msra.mxu0 0.0
    %1140 = vmatprep.subr.mxu0 0.0
    %1141 = vmatpush1.msra.mxu0 0.0
    %1142 = vmatprep.subr.mxu0 0.0
    %1143 = vmatpush1.msra.mxu0 0.0
    %1144 = vmatprep.subr.mxu0 0.0
    %1145 = vmatpush1.msra.mxu0 0.0
    %1146 = vmatprep.subr.mxu0 0.0
    %1147 = vmatpush1.msra.mxu0 0.0
    %1148 = vmatprep.subr.mxu0 0.0
    %1149 = vmatpush1.msra.mxu0 0.0
    %1150 = vmatprep.subr.mxu0 0.0
    %1151 = vmatpush1.msra.mxu0 0.0
    %1152 = vmatprep.subr.mxu0 0.0
    %1153 = vmatpush1.msra.mxu0 0.0
    %1154 = vmatprep.subr.mxu0 0.0
    %1155 = vmatpush1.msra.mxu0 0.0
    %1156 = vmatprep.subr.mxu0 0.0
    %1157 = vmatpush1.msra.mxu0 0.0
    %1158 = vmatprep.subr.mxu0 0.0
    %1159 = vmatpush1.msra.mxu0 0.0
    %1160 = vmatprep.subr.mxu0 0.0
    %1161 = vmatpush1.msra.mxu0 0.0
    %1162 = vmatprep.subr.mxu0 0.0
    %1163 = vmatpush1.msra.mxu0 0.0
    %1164 = vmatprep.subr.mxu0 0.0
    %1165 = vmatpush1.msra.mxu0 0.0
    %1166 = vmatprep.mubr.f32.mxu0 0.0
    %1167 = vmatmul.mubr.f32.gmra.mrb[0].mxu0 %v1019
    %v1168 = vpop.f32.mrb[0].mxu0
    %v1169 = vadd.f32 0.0, %v1168
    %v1170 = vpop.f32.mrb[0].mxu0
    %1171 = vmatprep.mubr.f32.mxu0 0.0
    %1172 = vmatmul.mubr.f32.gmra.mrb[0].mxu0 %v1021
    %v1173 = vpop.f32.mrb[0].mxu0
    %v1174 = vadd.f32 0.0, %v1173
    %v1175 = vpop.f32.mrb[0].mxu0
    %1176 = vdwg.mxu0
    %v1177 = vld [vmem:[%s1] sm:$0xff]
    %v1178 = vld [vmem:[%s1 + $0x8] sm:$0xff]
    %v1179 = vld [vmem:[%s1 + $0x10] sm:$0xff]
    %v1180 = vld [vmem:[%s1 + $0x18] sm:$0xff]
    %v1181 = vld [vmem:[%s1 + $0x20] sm:$0xff]
    %v1182 = vld [vmem:[%s1 + $0x28] sm:$0xff]
    %v1183 = vld [vmem:[%s1 + $0x30] sm:$0xff]
    %v1184 = vld [vmem:[%s1 + $0x38] sm:$0xff]
    %v1185 = vld [vmem:[%s1 + $0x40] sm:$0xff]
    %v1186 = vld [vmem:[%s1 + $0x48] sm:$0xff]
    %v1187 = vld [vmem:[%s1 + $0x50] sm:$0xff]
    %v1188 = vld [vmem:[%s1 + $0x58] sm:$0xff]
    %v1189 = vld [vmem:[%s1 + $0x60] sm:$0xff]
    %v1190 = vld [vmem:[%s1 + $0x68] sm:$0xff]
    %v1191 = vld [vmem:[%s1 + $0x70] sm:$0xff]
    %v1192 = vld [vmem:[%s1 + $0x78] sm:$0xff]
    %v1193 = vld [vmem:[%s2] sm:$0xff]
    %v1194 = vld [vmem:[%s2 + $0x8] sm:$0xff]
    %v1195 = vlaneseq
    %v1196 = vand.u32 %v1195, 127
    %v1197 = vlaneseq
    %v1198 = vshrl.u32 %v1197, 7
    %vm1199 = vcmp.eq.s32.totalorder %v1198, 0
    %v1202 = vcombine.high %v1169, %v1169
    %v1204 = vunpack.c.l.s4 1966171168
    %v1205 = vunpack.c.0.s8 %v1204
    %v1206 = vlaneseq
    %v1207 = vshrl.u32 %v1206, 7
    %v1208 = vsub.s32 %v1205, %v1207
    %v1209 = vrot.slane %v1169, %v1208
    %v1211 = vunpack.c.l.s4 1966171168
    %v1212 = vunpack.c.0.s8 %v1211
    %v1213 = vlaneseq
    %v1214 = vshrl.u32 %v1213, 7
    %v1215 = vsub.s32 %v1212, %v1214
    %v1216 = vrot.slane %v1202, %v1215
    %v1217 = vcombine.high %v1209, %v1209
    %v1218 = vcombine.high %v1216, %v1216
    %v1220 = vunpack.c.l.s4 1966171168
    %v1221 = vunpack.c.0.s8 %v1220
    %v1222 = vlaneseq
    %v1223 = vshrl.u32 %v1222, 7
    %v1224 = vsub.s32 %v1221, %v1223
    %v1225 = vrot.slane %v1209, %v1224
    %v1227 = vunpack.c.l.s4 1966171168
    %v1228 = vunpack.c.0.s8 %v1227
    %v1229 = vlaneseq
    %v1230 = vshrl.u32 %v1229, 7
    %v1231 = vsub.s32 %v1228, %v1230
    %v1232 = vrot.slane %v1216, %v1231
    %v1234 = vunpack.c.l.s4 1966171168
    %v1235 = vunpack.c.0.s8 %v1234
    %v1236 = vlaneseq
    %v1237 = vshrl.u32 %v1236, 7
    %v1238 = vsub.s32 %v1235, %v1237
    %v1239 = vrot.slane %v1217, %v1238
    %v1241 = vunpack.c.l.s4 1966171168
    %v1242 = vunpack.c.0.s8 %v1241
    %v1243 = vlaneseq
    %v1244 = vshrl.u32 %v1243, 7
    %v1245 = vsub.s32 %v1242, %v1244
    %v1246 = vrot.slane %v1218, %v1245
    %v1247 = vcombine.high %v1225, %v1225
    %v1248 = vcombine.high %v1232, %v1232
    %v1249 = vcombine.high %v1239, %v1239
    %v1250 = vcombine.high %v1246, %v1246
    %v1251 = vcombine.high %v1174, %v1174
    %v1253 = vunpack.c.l.s4 1966171168
    %v1254 = vunpack.c.0.s8 %v1253
    %v1255 = vlaneseq
    %v1256 = vshrl.u32 %v1255, 7
    %v1257 = vsub.s32 %v1254, %v1256
    %v1258 = vrot.slane %v1174, %v1257
    %v1260 = vunpack.c.l.s4 1966171168
    %v1261 = vunpack.c.0.s8 %v1260
    %v1262 = vlaneseq
    %v1263 = vshrl.u32 %v1262, 7
    %v1264 = vsub.s32 %v1261, %v1263
    %v1265 = vrot.slane %v1251, %v1264
    %v1266 = vcombine.high %v1258, %v1258
    %v1267 = vcombine.high %v1265, %v1265
    %v1269 = vunpack.c.l.s4 1966171168
    %v1270 = vunpack.c.0.s8 %v1269
    %v1271 = vlaneseq
    %v1272 = vshrl.u32 %v1271, 7
    %v1273 = vsub.s32 %v1270, %v1272
    %v1274 = vrot.slane %v1258, %v1273
    %v1276 = vunpack.c.l.s4 1966171168
    %v1277 = vunpack.c.0.s8 %v1276
    %v1278 = vlaneseq
    %v1279 = vshrl.u32 %v1278, 7
    %v1280 = vsub.s32 %v1277, %v1279
    %v1281 = vrot.slane %v1265, %v1280
    %v1283 = vunpack.c.l.s4 1966171168
    %v1284 = vunpack.c.0.s8 %v1283
    %v1285 = vlaneseq
    %v1286 = vshrl.u32 %v1285, 7
    %v1287 = vsub.s32 %v1284, %v1286
    %v1288 = vrot.slane %v1266, %v1287
    %v1290 = vunpack.c.l.s4 1966171168
    %v1291 = vunpack.c.0.s8 %v1290
    %v1292 = vlaneseq
    %v1293 = vshrl.u32 %v1292, 7
    %v1294 = vsub.s32 %v1291, %v1293
    %v1295 = vrot.slane %v1267, %v1294
    %v1296 = vcombine.high %v1274, %v1274
    %v1297 = vcombine.high %v1281, %v1281
    %v1298 = vcombine.high %v1288, %v1288
    %v1299 = vcombine.high %v1295, %v1295
    %v1300 = vld [vmem:[%s10] sm:$0xff]
    %v1301 = vsel %vm1199, 1, 0
    %vm1302 = vcmp.eq.s32.totalorder %v1301, 1
    %v1303 = vlaneseq
    %v1304 = vshrl.u32 %v1303, 7
    %v1305 = vsub.s32 0, %v1304
    %v1306 = vrot.slane %v1225, %v1305
    %v1307 = vlaneseq
    %v1308 = vshrl.u32 %v1307, 7
    %v1309 = vsub.s32 0, %v1308
    %v1310 = vrot.slane %v1239, %v1309
    %v1311 = vlaneseq
    %v1312 = vshrl.u32 %v1311, 7
    %v1313 = vsub.s32 0, %v1312
    %v1314 = vrot.slane %v1247, %v1313
    %v1315 = vlaneseq
    %v1316 = vshrl.u32 %v1315, 7
    %v1317 = vsub.s32 0, %v1316
    %v1318 = vrot.slane %v1249, %v1317
    %v1319 = vlaneseq
    %v1320 = vshrl.u32 %v1319, 7
    %v1321 = vsub.s32 0, %v1320
    %v1322 = vrot.slane %v1232, %v1321
    %v1323 = vlaneseq
    %v1324 = vshrl.u32 %v1323, 7
    %v1325 = vsub.s32 0, %v1324
    %v1326 = vrot.slane %v1246, %v1325
    %v1327 = vlaneseq
    %v1328 = vshrl.u32 %v1327, 7
    %v1329 = vsub.s32 0, %v1328
    %v1330 = vrot.slane %v1248, %v1329
    %v1331 = vlaneseq
    %v1332 = vshrl.u32 %v1331, 7
    %v1333 = vsub.s32 0, %v1332
    %v1334 = vrot.slane %v1250, %v1333
    %v1335 = vlaneseq
    %v1336 = vshrl.u32 %v1335, 7
    %v1337 = vsub.s32 0, %v1336
    %v1338 = vrot.slane %v1274, %v1337
    %v1339 = vlaneseq
    %v1340 = vshrl.u32 %v1339, 7
    %v1341 = vsub.s32 0, %v1340
    %v1342 = vrot.slane %v1288, %v1341
    %v1343 = vlaneseq
    %v1344 = vshrl.u32 %v1343, 7
    %v1345 = vsub.s32 0, %v1344
    %v1346 = vrot.slane %v1296, %v1345
    %v1347 = vlaneseq
    %v1348 = vshrl.u32 %v1347, 7
    %v1349 = vsub.s32 0, %v1348
    %v1350 = vrot.slane %v1298, %v1349
    %v1351 = vlaneseq
    %v1352 = vshrl.u32 %v1351, 7
    %v1353 = vsub.s32 0, %v1352
    %v1354 = vrot.slane %v1281, %v1353
    %v1355 = vlaneseq
    %v1356 = vshrl.u32 %v1355, 7
    %v1357 = vsub.s32 0, %v1356
    %v1358 = vrot.slane %v1295, %v1357
    %v1359 = vlaneseq
    %v1360 = vshrl.u32 %v1359, 7
    %v1361 = vsub.s32 0, %v1360
    %v1362 = vrot.slane %v1297, %v1361
    %v1363 = vlaneseq
    %v1364 = vshrl.u32 %v1363, 7
    %v1365 = vsub.s32 0, %v1364
    %v1366 = vrot.slane %v1299, %v1365
    %v1383 = vsel %vm1302, %v1306, %v1300
    %v1384 = vsel %vm1302, %v1310, %v1300
    %v1385 = vsel %vm1302, %v1314, %v1300
    %v1386 = vsel %vm1302, %v1318, %v1300
    %v1387 = vsel %vm1302, %v1322, %v1300
    %v1388 = vsel %vm1302, %v1326, %v1300
    %v1389 = vsel %vm1302, %v1330, %v1300
    %v1390 = vsel %vm1302, %v1334, %v1300
    %v1391 = vsel %vm1302, %v1338, %v1300
    %v1392 = vsel %vm1302, %v1342, %v1300
    %v1393 = vsel %vm1302, %v1346, %v1300
    %v1394 = vsel %vm1302, %v1350, %v1300
    %v1395 = vsel %vm1302, %v1354, %v1300
    %v1396 = vsel %vm1302, %v1358, %v1300
    %v1397 = vsel %vm1302, %v1362, %v1300
    %v1398 = vsel %vm1302, %v1366, %v1300
    %vm1399 = vcmp.eq.s32.totalorder %v1196, 0
    %v1400 = vld [vmem:[%s11] sm:$0x1]
    %v1401 = vsel %vm1399, 1, 0
    %vm1402 = vcmp.eq.s32.totalorder %v1401, 1
    %1403 = vset.pattern.permute.xlu0 4
    %1404 = vperm.xlu0 %1403, %v1169
    %v1405 = vpop.permute.xlu0 %1404
    %1407 = vset.pattern.permute.xlu0 4
    %1408 = vperm.xlu0 %1407, %v1174
    %v1409 = vpop.permute.xlu0 %1408
    %v1411 = vlaneseq
    %v1412 = vshrl.u32 %v1411, 7
    %v1413 = vsub.s32 0, %v1412
    %v1414 = vrot.slane %v1400, %v1413
    %v1415 = vsel %vm1402, %v1405, %v1414
    %v1416 = vsel %vm1402, %v1409, %v1414
    %v1419 = vcombine.high %v1415, %v1415
    %v1421 = vunpack.c.l.s4 1966171168
    %v1422 = vunpack.c.0.s8 %v1421
    %v1423 = vlaneseq
    %v1424 = vshrl.u32 %v1423, 7
    %v1425 = vsub.s32 %v1422, %v1424
    %v1426 = vrot.slane %v1415, %v1425
    %v1428 = vunpack.c.l.s4 1966171168
    %v1429 = vunpack.c.0.s8 %v1428
    %v1430 = vlaneseq
    %v1431 = vshrl.u32 %v1430, 7
    %v1432 = vsub.s32 %v1429, %v1431
    %v1433 = vrot.slane %v1419, %v1432
    %v1434 = vcombine.high %v1426, %v1426
    %v1435 = vcombine.high %v1433, %v1433
    %v1437 = vunpack.c.l.s4 1966171168
    %v1438 = vunpack.c.0.s8 %v1437
    %v1439 = vlaneseq
    %v1440 = vshrl.u32 %v1439, 7
    %v1441 = vsub.s32 %v1438, %v1440
    %v1442 = vrot.slane %v1426, %v1441
    %v1444 = vunpack.c.l.s4 1966171168
    %v1445 = vunpack.c.0.s8 %v1444
    %v1446 = vlaneseq
    %v1447 = vshrl.u32 %v1446, 7
    %v1448 = vsub.s32 %v1445, %v1447
    %v1449 = vrot.slane %v1433, %v1448
    %v1451 = vunpack.c.l.s4 1966171168
    %v1452 = vunpack.c.0.s8 %v1451
    %v1453 = vlaneseq
    %v1454 = vshrl.u32 %v1453, 7
    %v1455 = vsub.s32 %v1452, %v1454
    %v1456 = vrot.slane %v1434, %v1455
    %v1458 = vunpack.c.l.s4 1966171168
    %v1459 = vunpack.c.0.s8 %v1458
    %v1460 = vlaneseq
    %v1461 = vshrl.u32 %v1460, 7
    %v1462 = vsub.s32 %v1459, %v1461
    %v1463 = vrot.slane %v1435, %v1462
    %v1464 = vcombine.high %v1442, %v1442
    %v1465 = vcombine.high %v1449, %v1449
    %v1466 = vcombine.high %v1456, %v1456
    %v1467 = vcombine.high %v1463, %v1463
    %v1468 = vcombine.high %v1416, %v1416
    %v1470 = vunpack.c.l.s4 1966171168
    %v1471 = vunpack.c.0.s8 %v1470
    %v1472 = vlaneseq
    %v1473 = vshrl.u32 %v1472, 7
    %v1474 = vsub.s32 %v1471, %v1473
    %v1475 = vrot.slane %v1416, %v1474
    %v1477 = vunpack.c.l.s4 1966171168
    %v1478 = vunpack.c.0.s8 %v1477
    %v1479 = vlaneseq
    %v1480 = vshrl.u32 %v1479, 7
    %v1481 = vsub.s32 %v1478, %v1480
    %v1482 = vrot.slane %v1468, %v1481
    %v1483 = vcombine.high %v1475, %v1475
    %v1484 = vcombine.high %v1482, %v1482
    %v1486 = vunpack.c.l.s4 1966171168
    %v1487 = vunpack.c.0.s8 %v1486
    %v1488 = vlaneseq
    %v1489 = vshrl.u32 %v1488, 7
    %v1490 = vsub.s32 %v1487, %v1489
    %v1491 = vrot.slane %v1475, %v1490
    %v1493 = vunpack.c.l.s4 1966171168
    %v1494 = vunpack.c.0.s8 %v1493
    %v1495 = vlaneseq
    %v1496 = vshrl.u32 %v1495, 7
    %v1497 = vsub.s32 %v1494, %v1496
    %v1498 = vrot.slane %v1482, %v1497
    %v1500 = vunpack.c.l.s4 1966171168
    %v1501 = vunpack.c.0.s8 %v1500
    %v1502 = vlaneseq
    %v1503 = vshrl.u32 %v1502, 7
    %v1504 = vsub.s32 %v1501, %v1503
    %v1505 = vrot.slane %v1483, %v1504
    %v1507 = vunpack.c.l.s4 1966171168
    %v1508 = vunpack.c.0.s8 %v1507
    %v1509 = vlaneseq
    %v1510 = vshrl.u32 %v1509, 7
    %v1511 = vsub.s32 %v1508, %v1510
    %v1512 = vrot.slane %v1484, %v1511
    %v1513 = vcombine.high %v1491, %v1491
    %v1514 = vcombine.high %v1498, %v1498
    %v1515 = vcombine.high %v1505, %v1505
    %v1516 = vcombine.high %v1512, %v1512
    %1518 = vset.pattern.permute.xlu0 0
    %1519 = vperm.xlu0 %1518, %v1383
    %v1520 = vpop.permute.xlu0 %1519
    %1523 = vset.pattern.permute.xlu0 0
    %1524 = vperm.xlu0 %1523, %v1384
    %v1525 = vpop.permute.xlu0 %1524
    %1528 = vset.pattern.permute.xlu0 0
    %1529 = vperm.xlu0 %1528, %v1385
    %v1530 = vpop.permute.xlu0 %1529
    %1533 = vset.pattern.permute.xlu0 0
    %1534 = vperm.xlu0 %1533, %v1386
    %v1535 = vpop.permute.xlu0 %1534
    %1538 = vset.pattern.permute.xlu0 0
    %1539 = vperm.xlu0 %1538, %v1387
    %v1540 = vpop.permute.xlu0 %1539
    %1543 = vset.pattern.permute.xlu0 0
    %1544 = vperm.xlu0 %1543, %v1388
    %v1545 = vpop.permute.xlu0 %1544
    %1548 = vset.pattern.permute.xlu0 0
    %1549 = vperm.xlu0 %1548, %v1389
    %v1550 = vpop.permute.xlu0 %1549
    %1553 = vset.pattern.permute.xlu0 0
    %1554 = vperm.xlu0 %1553, %v1390
    %v1555 = vpop.permute.xlu0 %1554
    %1558 = vset.pattern.permute.xlu0 0
    %1559 = vperm.xlu0 %1558, %v1391
    %v1560 = vpop.permute.xlu0 %1559
    %1563 = vset.pattern.permute.xlu0 0
    %1564 = vperm.xlu0 %1563, %v1392
    %v1565 = vpop.permute.xlu0 %1564
    %1568 = vset.pattern.permute.xlu0 0
    %1569 = vperm.xlu0 %1568, %v1393
    %v1570 = vpop.permute.xlu0 %1569
    %1573 = vset.pattern.permute.xlu0 0
    %1574 = vperm.xlu0 %1573, %v1394
    %v1575 = vpop.permute.xlu0 %1574
    %1578 = vset.pattern.permute.xlu0 0
    %1579 = vperm.xlu0 %1578, %v1395
    %v1580 = vpop.permute.xlu0 %1579
    %1583 = vset.pattern.permute.xlu0 0
    %1584 = vperm.xlu0 %1583, %v1396
    %v1585 = vpop.permute.xlu0 %1584
    %1588 = vset.pattern.permute.xlu0 0
    %1589 = vperm.xlu0 %1588, %v1397
    %v1590 = vpop.permute.xlu0 %1589
    %1593 = vset.pattern.permute.xlu0 0
    %1594 = vperm.xlu0 %1593, %v1398
    %v1595 = vpop.permute.xlu0 %1594
    %v1597 = vlaneseq
    %v1598 = vshrl.u32 %v1597, 7
    %v1599 = vsub.s32 0, %v1598
    %v1600 = vrot.slane %v1442, %v1599
    %v1601 = vlaneseq
    %v1602 = vshrl.u32 %v1601, 7
    %v1603 = vsub.s32 0, %v1602
    %v1604 = vrot.slane %v1456, %v1603
    %v1605 = vlaneseq
    %v1606 = vshrl.u32 %v1605, 7
    %v1607 = vsub.s32 0, %v1606
    %v1608 = vrot.slane %v1464, %v1607
    %v1609 = vlaneseq
    %v1610 = vshrl.u32 %v1609, 7
    %v1611 = vsub.s32 0, %v1610
    %v1612 = vrot.slane %v1466, %v1611
    %v1613 = vlaneseq
    %v1614 = vshrl.u32 %v1613, 7
    %v1615 = vsub.s32 0, %v1614
    %v1616 = vrot.slane %v1449, %v1615
    %v1617 = vlaneseq
    %v1618 = vshrl.u32 %v1617, 7
    %v1619 = vsub.s32 0, %v1618
    %v1620 = vrot.slane %v1463, %v1619
    %v1621 = vlaneseq
    %v1622 = vshrl.u32 %v1621, 7
    %v1623 = vsub.s32 0, %v1622
    %v1624 = vrot.slane %v1465, %v1623
    %v1625 = vlaneseq
    %v1626 = vshrl.u32 %v1625, 7
    %v1627 = vsub.s32 0, %v1626
    %v1628 = vrot.slane %v1467, %v1627
    %v1629 = vlaneseq
    %v1630 = vshrl.u32 %v1629, 7
    %v1631 = vsub.s32 0, %v1630
    %v1632 = vrot.slane %v1491, %v1631
    %v1633 = vlaneseq
    %v1634 = vshrl.u32 %v1633, 7
    %v1635 = vsub.s32 0, %v1634
    %v1636 = vrot.slane %v1505, %v1635
    %v1637 = vlaneseq
    %v1638 = vshrl.u32 %v1637, 7
    %v1639 = vsub.s32 0, %v1638
    %v1640 = vrot.slane %v1513, %v1639
    %v1641 = vlaneseq
    %v1642 = vshrl.u32 %v1641, 7
    %v1643 = vsub.s32 0, %v1642
    %v1644 = vrot.slane %v1515, %v1643
    %v1645 = vlaneseq
    %v1646 = vshrl.u32 %v1645, 7
    %v1647 = vsub.s32 0, %v1646
    %v1648 = vrot.slane %v1498, %v1647
    %v1649 = vlaneseq
    %v1650 = vshrl.u32 %v1649, 7
    %v1651 = vsub.s32 0, %v1650
    %v1652 = vrot.slane %v1512, %v1651
    %v1653 = vlaneseq
    %v1654 = vshrl.u32 %v1653, 7
    %v1655 = vsub.s32 0, %v1654
    %v1656 = vrot.slane %v1514, %v1655
    %v1657 = vlaneseq
    %v1658 = vshrl.u32 %v1657, 7
    %v1659 = vsub.s32 0, %v1658
    %v1660 = vrot.slane %v1516, %v1659
    %v1677 = vadd.f32 %v1520, %v1600
    %v1678 = vadd.f32 %v1525, %v1604
    %v1679 = vadd.f32 %v1530, %v1608
    %v1680 = vadd.f32 %v1535, %v1612
    %v1681 = vadd.f32 %v1540, %v1616
    %v1682 = vadd.f32 %v1545, %v1620
    %v1683 = vadd.f32 %v1550, %v1624
    %v1684 = vadd.f32 %v1555, %v1628
    %v1685 = vadd.f32 %v1560, %v1632
    %v1686 = vadd.f32 %v1565, %v1636
    %v1687 = vadd.f32 %v1570, %v1640
    %v1688 = vadd.f32 %v1575, %v1644
    %v1689 = vadd.f32 %v1580, %v1648
    %v1690 = vadd.f32 %v1585, %v1652
    %v1691 = vadd.f32 %v1590, %v1656
    %v1692 = vadd.f32 %v1595, %v1660
    %vm1693 = vcmp.gt.f32.partialorder %v1677, 0.0
    %vm1694 = vcmp.gt.f32.partialorder %v1678, 0.0
    %vm1695 = vcmp.gt.f32.partialorder %v1679, 0.0
    %vm1696 = vcmp.gt.f32.partialorder %v1680, 0.0
    %vm1697 = vcmp.gt.f32.partialorder %v1681, 0.0
    %vm1698 = vcmp.gt.f32.partialorder %v1682, 0.0
    %vm1699 = vcmp.gt.f32.partialorder %v1683, 0.0
    %vm1700 = vcmp.gt.f32.partialorder %v1684, 0.0
    %vm1701 = vcmp.gt.f32.partialorder %v1685, 0.0
    %vm1702 = vcmp.gt.f32.partialorder %v1686, 0.0
    %vm1703 = vcmp.gt.f32.partialorder %v1687, 0.0
    %vm1704 = vcmp.gt.f32.partialorder %v1688, 0.0
    %vm1705 = vcmp.gt.f32.partialorder %v1689, 0.0
    %vm1706 = vcmp.gt.f32.partialorder %v1690, 0.0
    %vm1707 = vcmp.gt.f32.partialorder %v1691, 0.0
    %vm1708 = vcmp.gt.f32.partialorder %v1692, 0.0
    %v1709 = vmul.f32 %v1677, 0.2
    %v1710 = vmul.f32 %v1678, 0.2
    %v1711 = vmul.f32 %v1679, 0.2
    %v1712 = vmul.f32 %v1680, 0.2
    %v1713 = vmul.f32 %v1681, 0.2
    %v1714 = vmul.f32 %v1682, 0.2
    %v1715 = vmul.f32 %v1683, 0.2
    %v1716 = vmul.f32 %v1684, 0.2
    %v1717 = vmul.f32 %v1685, 0.2
    %v1718 = vmul.f32 %v1686, 0.2
    %v1719 = vmul.f32 %v1687, 0.2
    %v1720 = vmul.f32 %v1688, 0.2
    %v1721 = vmul.f32 %v1689, 0.2
    %v1722 = vmul.f32 %v1690, 0.2
    %v1723 = vmul.f32 %v1691, 0.2
    %v1724 = vmul.f32 %v1692, 0.2
    %v1725 = vsel %vm1693, %v1677, %v1709
    %v1726 = vsel %vm1694, %v1678, %v1710
    %v1727 = vsel %vm1695, %v1679, %v1711
    %v1728 = vsel %vm1696, %v1680, %v1712
    %v1729 = vsel %vm1697, %v1681, %v1713
    %v1730 = vsel %vm1698, %v1682, %v1714
    %v1731 = vsel %vm1699, %v1683, %v1715
    %v1732 = vsel %vm1700, %v1684, %v1716
    %v1733 = vsel %vm1701, %v1685, %v1717
    %v1734 = vsel %vm1702, %v1686, %v1718
    %v1735 = vsel %vm1703, %v1687, %v1719
    %v1736 = vsel %vm1704, %v1688, %v1720
    %v1737 = vsel %vm1705, %v1689, %v1721
    %v1738 = vsel %vm1706, %v1690, %v1722
    %v1739 = vsel %vm1707, %v1691, %v1723
    %v1740 = vsel %vm1708, %v1692, %v1724
    %vm1741 = vcmp.gt.f32.partialorder %v1177, 0.0
    %vm1742 = vcmp.gt.f32.partialorder %v1178, 0.0
    %vm1743 = vcmp.gt.f32.partialorder %v1179, 0.0
    %vm1744 = vcmp.gt.f32.partialorder %v1180, 0.0
    %vm1745 = vcmp.gt.f32.partialorder %v1181, 0.0
    %vm1746 = vcmp.gt.f32.partialorder %v1182, 0.0
    %vm1747 = vcmp.gt.f32.partialorder %v1183, 0.0
    %vm1748 = vcmp.gt.f32.partialorder %v1184, 0.0
    %vm1749 = vcmp.gt.f32.partialorder %v1185, 0.0
    %vm1750 = vcmp.gt.f32.partialorder %v1186, 0.0
    %vm1751 = vcmp.gt.f32.partialorder %v1187, 0.0
    %vm1752 = vcmp.gt.f32.partialorder %v1188, 0.0
    %vm1753 = vcmp.gt.f32.partialorder %v1189, 0.0
    %vm1754 = vcmp.gt.f32.partialorder %v1190, 0.0
    %vm1755 = vcmp.gt.f32.partialorder %v1191, 0.0
    %vm1756 = vcmp.gt.f32.partialorder %v1192, 0.0
    %v1757 = vsel %vm1741, %v1725, -9e+15
    %v1758 = vsel %vm1742, %v1726, -9e+15
    %v1759 = vsel %vm1743, %v1727, -9e+15
    %v1760 = vsel %vm1744, %v1728, -9e+15
    %v1761 = vsel %vm1745, %v1729, -9e+15
    %v1762 = vsel %vm1746, %v1730, -9e+15
    %v1763 = vsel %vm1747, %v1731, -9e+15
    %v1764 = vsel %vm1748, %v1732, -9e+15
    %v1765 = vsel %vm1749, %v1733, -9e+15
    %v1766 = vsel %vm1750, %v1734, -9e+15
    %v1767 = vsel %vm1751, %v1735, -9e+15
    %v1768 = vsel %vm1752, %v1736, -9e+15
    %v1769 = vsel %vm1753, %v1737, -9e+15
    %v1770 = vsel %vm1754, %v1738, -9e+15
    %v1771 = vsel %vm1755, %v1739, -9e+15
    %v1772 = vsel %vm1756, %v1740, -9e+15
    %vm1773 = vcmask 64512
    %v1774 = vsel %vm1773, %v1757, -inf
    %1775 = vmax.xlane.f32.xlu0 %v1774
    %v1776 = vpop.xlane.xlu0 %1775
    %v1777 = vsel %vm1773, %v1758, -inf
    %1778 = vmax.xlane.f32.xlu0 %v1777
    %v1779 = vpop.xlane.xlu0 %1778
    %v1780 = vsel %vm1773, %v1759, -inf
    %1781 = vmax.xlane.f32.xlu0 %v1780
    %v1782 = vpop.xlane.xlu0 %1781
    %v1783 = vsel %vm1773, %v1760, -inf
    %1784 = vmax.xlane.f32.xlu0 %v1783
    %v1785 = vpop.xlane.xlu0 %1784
    %v1786 = vsel %vm1773, %v1761, -inf
    %1787 = vmax.xlane.f32.xlu0 %v1786
    %v1788 = vpop.xlane.xlu0 %1787
    %v1789 = vsel %vm1773, %v1762, -inf
    %1790 = vmax.xlane.f32.xlu0 %v1789
    %v1791 = vpop.xlane.xlu0 %1790
    %v1792 = vsel %vm1773, %v1763, -inf
    %1793 = vmax.xlane.f32.xlu0 %v1792
    %v1794 = vpop.xlane.xlu0 %1793
    %v1795 = vsel %vm1773, %v1764, -inf
    %1796 = vmax.xlane.f32.xlu0 %v1795
    %v1797 = vpop.xlane.xlu0 %1796
    %v1798 = vsel %vm1773, %v1765, -inf
    %1799 = vmax.xlane.f32.xlu0 %v1798
    %v1800 = vpop.xlane.xlu0 %1799
    %v1801 = vsel %vm1773, %v1766, -inf
    %1802 = vmax.xlane.f32.xlu0 %v1801
    %v1803 = vpop.xlane.xlu0 %1802
    %v1804 = vsel %vm1773, %v1767, -inf
    %1805 = vmax.xlane.f32.xlu0 %v1804
    %v1806 = vpop.xlane.xlu0 %1805
    %v1807 = vsel %vm1773, %v1768, -inf
    %1808 = vmax.xlane.f32.xlu0 %v1807
    %v1809 = vpop.xlane.xlu0 %1808
    %v1810 = vsel %vm1773, %v1769, -inf
    %1811 = vmax.xlane.f32.xlu0 %v1810
    %v1812 = vpop.xlane.xlu0 %1811
    %v1813 = vsel %vm1773, %v1770, -inf
    %1814 = vmax.xlane.f32.xlu0 %v1813
    %v1815 = vpop.xlane.xlu0 %1814
    %v1816 = vsel %vm1773, %v1771, -inf
    %1817 = vmax.xlane.f32.xlu0 %v1816
    %v1818 = vpop.xlane.xlu0 %1817
    %v1819 = vsel %vm1773, %v1772, -inf
    %1820 = vmax.xlane.f32.xlu0 %v1819
    %v1821 = vpop.xlane.xlu0 %1820
    %v1822 = vsub.f32 %v1757, %v1776
    %v1823 = vsub.f32 %v1758, %v1779
    %v1824 = vsub.f32 %v1759, %v1782
    %v1825 = vsub.f32 %v1760, %v1785
    %v1826 = vsub.f32 %v1761, %v1788
    %v1827 = vsub.f32 %v1762, %v1791
    %v1828 = vsub.f32 %v1763, %v1794
    %v1829 = vsub.f32 %v1764, %v1797
    %v1830 = vsub.f32 %v1765, %v1800
    %v1831 = vsub.f32 %v1766, %v1803
    %v1832 = vsub.f32 %v1767, %v1806
    %v1833 = vsub.f32 %v1768, %v1809
    %v1834 = vsub.f32 %v1769, %v1812
    %v1835 = vsub.f32 %v1770, %v1815
    %v1836 = vsub.f32 %v1771, %v1818
    %v1837 = vsub.f32 %v1772, %v1821
    %v1838 = vmul.f32 %v1822, 1.442695
    %v1839 = vpow.pop %v1838
    %v1840 = vmul.f32 %v1823, 1.442695
    %v1841 = vpow.pop %v1840
    %v1842 = vmul.f32 %v1824, 1.442695
    %v1843 = vpow.pop %v1842
    %v1844 = vmul.f32 %v1825, 1.442695
    %v1845 = vpow.pop %v1844
    %v1846 = vmul.f32 %v1826, 1.442695
    %v1847 = vpow.pop %v1846
    %v1848 = vmul.f32 %v1827, 1.442695
    %v1849 = vpow.pop %v1848
    %v1850 = vmul.f32 %v1828, 1.442695
    %v1851 = vpow.pop %v1850
    %v1852 = vmul.f32 %v1829, 1.442695
    %v1853 = vpow.pop %v1852
    %v1854 = vmul.f32 %v1830, 1.442695
    %v1855 = vpow.pop %v1854
    %v1856 = vmul.f32 %v1831, 1.442695
    %v1857 = vpow.pop %v1856
    %v1858 = vmul.f32 %v1832, 1.442695
    %v1859 = vpow.pop %v1858
    %v1860 = vmul.f32 %v1833, 1.442695
    %v1861 = vpow.pop %v1860
    %v1862 = vmul.f32 %v1834, 1.442695
    %v1863 = vpow.pop %v1862
    %v1864 = vmul.f32 %v1835, 1.442695
    %v1865 = vpow.pop %v1864
    %v1866 = vmul.f32 %v1836, 1.442695
    %v1867 = vpow.pop %v1866
    %v1868 = vmul.f32 %v1837, 1.442695
    %v1869 = vpow.pop %v1868
    %v1870 = vsel %vm1773, %v1839, 0.0
    %1871 = vadd.xlane.f32.xlu0 %v1870
    %v1872 = vpop.xlane.xlu0 %1871
    %v1873 = vsel %vm1773, %v1841, 0.0
    %1874 = vadd.xlane.f32.xlu0 %v1873
    %v1875 = vpop.xlane.xlu0 %1874
    %v1876 = vsel %vm1773, %v1843, 0.0
    %1877 = vadd.xlane.f32.xlu0 %v1876
    %v1878 = vpop.xlane.xlu0 %1877
    %v1879 = vsel %vm1773, %v1845, 0.0
    %1880 = vadd.xlane.f32.xlu0 %v1879
    %v1881 = vpop.xlane.xlu0 %1880
    %v1882 = vsel %vm1773, %v1847, 0.0
    %1883 = vadd.xlane.f32.xlu0 %v1882
    %v1884 = vpop.xlane.xlu0 %1883
    %v1885 = vsel %vm1773, %v1849, 0.0
    %1886 = vadd.xlane.f32.xlu0 %v1885
    %v1887 = vpop.xlane.xlu0 %1886
    %v1888 = vsel %vm1773, %v1851, 0.0
    %1889 = vadd.xlane.f32.xlu0 %v1888
    %v1890 = vpop.xlane.xlu0 %1889
    %v1891 = vsel %vm1773, %v1853, 0.0
    %1892 = vadd.xlane.f32.xlu0 %v1891
    %v1893 = vpop.xlane.xlu0 %1892
    %v1894 = vsel %vm1773, %v1855, 0.0
    %1895 = vadd.xlane.f32.xlu0 %v1894
    %v1896 = vpop.xlane.xlu0 %1895
    %v1897 = vsel %vm1773, %v1857, 0.0
    %1898 = vadd.xlane.f32.xlu0 %v1897
    %v1899 = vpop.xlane.xlu0 %1898
    %v1900 = vsel %vm1773, %v1859, 0.0
    %1901 = vadd.xlane.f32.xlu0 %v1900
    %v1902 = vpop.xlane.xlu0 %1901
    %v1903 = vsel %vm1773, %v1861, 0.0
    %1904 = vadd.xlane.f32.xlu0 %v1903
    %v1905 = vpop.xlane.xlu0 %1904
    %v1906 = vsel %vm1773, %v1863, 0.0
    %1907 = vadd.xlane.f32.xlu0 %v1906
    %v1908 = vpop.xlane.xlu0 %1907
    %v1909 = vsel %vm1773, %v1865, 0.0
    %1910 = vadd.xlane.f32.xlu0 %v1909
    %v1911 = vpop.xlane.xlu0 %1910
    %v1912 = vsel %vm1773, %v1867, 0.0
    %1913 = vadd.xlane.f32.xlu0 %v1912
    %v1914 = vpop.xlane.xlu0 %1913
    %v1915 = vsel %vm1773, %v1869, 0.0
    %1916 = vadd.xlane.f32.xlu0 %v1915
    %v1917 = vpop.xlane.xlu0 %1916
    %v1918 = vrcp.pop %v1872
    %v1919 = vrcp.pop %v1875
    %v1920 = vrcp.pop %v1878
    %v1921 = vrcp.pop %v1881
    %v1922 = vrcp.pop %v1884
    %v1923 = vrcp.pop %v1887
    %v1924 = vrcp.pop %v1890
    %v1925 = vrcp.pop %v1893
    %v1926 = vrcp.pop %v1896
    %v1927 = vrcp.pop %v1899
    %v1928 = vrcp.pop %v1902
    %v1929 = vrcp.pop %v1905
    %v1930 = vrcp.pop %v1908
    %v1931 = vrcp.pop %v1911
    %v1932 = vrcp.pop %v1914
    %v1933 = vrcp.pop %v1917
    %v1934 = vmul.f32 %v1839, %v1918
    %v1935 = vmul.f32 %v1841, %v1919
    %v1936 = vmul.f32 %v1843, %v1920
    %v1937 = vmul.f32 %v1845, %v1921
    %v1938 = vmul.f32 %v1847, %v1922
    %v1939 = vmul.f32 %v1849, %v1923
    %v1940 = vmul.f32 %v1851, %v1924
    %v1941 = vmul.f32 %v1853, %v1925
    %v1942 = vmul.f32 %v1855, %v1926
    %v1943 = vmul.f32 %v1857, %v1927
    %v1944 = vmul.f32 %v1859, %v1928
    %v1945 = vmul.f32 %v1861, %v1929
    %v1946 = vmul.f32 %v1863, %v1930
    %v1947 = vmul.f32 %v1865, %v1931
    %v1948 = vmul.f32 %v1867, %v1932
    %v1949 = vmul.f32 %v1869, %v1933
    %v1950 = vld [vmem:[%s9] sm:$0xff]
    %v1953 = vcombine.high %v1090, %v1090
    %v1955 = vunpack.c.l.s4 1966171168
    %v1956 = vunpack.c.0.s8 %v1955
    %v1957 = vlaneseq
    %v1958 = vshrl.u32 %v1957, 7
    %v1959 = vsub.s32 %v1956, %v1958
    %v1960 = vrot.slane %v1090, %v1959
    %v1962 = vunpack.c.l.s4 1966171168
    %v1963 = vunpack.c.0.s8 %v1962
    %v1964 = vlaneseq
    %v1965 = vshrl.u32 %v1964, 7
    %v1966 = vsub.s32 %v1963, %v1965
    %v1967 = vrot.slane %v1953, %v1966
    %v1968 = vcombine.high %v1960, %v1960
    %v1969 = vcombine.high %v1967, %v1967
    %v1971 = vunpack.c.l.s4 1966171168
    %v1972 = vunpack.c.0.s8 %v1971
    %v1973 = vlaneseq
    %v1974 = vshrl.u32 %v1973, 7
    %v1975 = vsub.s32 %v1972, %v1974
    %v1976 = vrot.slane %v1960, %v1975
    %v1978 = vunpack.c.l.s4 1966171168
    %v1979 = vunpack.c.0.s8 %v1978
    %v1980 = vlaneseq
    %v1981 = vshrl.u32 %v1980, 7
    %v1982 = vsub.s32 %v1979, %v1981
    %v1983 = vrot.slane %v1967, %v1982
    %v1985 = vunpack.c.l.s4 1966171168
    %v1986 = vunpack.c.0.s8 %v1985
    %v1987 = vlaneseq
    %v1988 = vshrl.u32 %v1987, 7
    %v1989 = vsub.s32 %v1986, %v1988
    %v1990 = vrot.slane %v1968, %v1989
    %v1992 = vunpack.c.l.s4 1966171168
    %v1993 = vunpack.c.0.s8 %v1992
    %v1994 = vlaneseq
    %v1995 = vshrl.u32 %v1994, 7
    %v1996 = vsub.s32 %v1993, %v1995
    %v1997 = vrot.slane %v1969, %v1996
    %v1998 = vcombine.high %v1976, %v1976
    %v1999 = vcombine.high %v1983, %v1983
    %v2000 = vcombine.high %v1990, %v1990
    %v2001 = vcombine.high %v1997, %v1997
    %v2002 = vcombine.high %v1095, %v1095
    %v2004 = vunpack.c.l.s4 1966171168
    %v2005 = vunpack.c.0.s8 %v2004
    %v2006 = vlaneseq
    %v2007 = vshrl.u32 %v2006, 7
    %v2008 = vsub.s32 %v2005, %v2007
    %v2009 = vrot.slane %v1095, %v2008
    %v2011 = vunpack.c.l.s4 1966171168
    %v2012 = vunpack.c.0.s8 %v2011
    %v2013 = vlaneseq
    %v2014 = vshrl.u32 %v2013, 7
    %v2015 = vsub.s32 %v2012, %v2014
    %v2016 = vrot.slane %v2002, %v2015
    %v2017 = vcombine.high %v2009, %v2009
    %v2018 = vcombine.high %v2016, %v2016
    %v2020 = vunpack.c.l.s4 1966171168
    %v2021 = vunpack.c.0.s8 %v2020
    %v2022 = vlaneseq
    %v2023 = vshrl.u32 %v2022, 7
    %v2024 = vsub.s32 %v2021, %v2023
    %v2025 = vrot.slane %v2009, %v2024
    %v2027 = vunpack.c.l.s4 1966171168
    %v2028 = vunpack.c.0.s8 %v2027
    %v2029 = vlaneseq
    %v2030 = vshrl.u32 %v2029, 7
    %v2031 = vsub.s32 %v2028, %v2030
    %v2032 = vrot.slane %v2016, %v2031
    %v2034 = vunpack.c.l.s4 1966171168
    %v2035 = vunpack.c.0.s8 %v2034
    %v2036 = vlaneseq
    %v2037 = vshrl.u32 %v2036, 7
    %v2038 = vsub.s32 %v2035, %v2037
    %v2039 = vrot.slane %v2017, %v2038
    %v2041 = vunpack.c.l.s4 1966171168
    %v2042 = vunpack.c.0.s8 %v2041
    %v2043 = vlaneseq
    %v2044 = vshrl.u32 %v2043, 7
    %v2045 = vsub.s32 %v2042, %v2044
    %v2046 = vrot.slane %v2018, %v2045
    %v2047 = vcombine.high %v2025, %v2025
    %v2048 = vcombine.high %v2032, %v2032
    %v2049 = vcombine.high %v2039, %v2039
    %v2050 = vcombine.high %v2046, %v2046
    %2052 = vset.pattern.permute.xlu0 0
    %2053 = vperm.xlu0 %2052, %v1934
    %v2054 = vpop.permute.xlu0 %2053
    %2057 = vset.pattern.permute.xlu0 0
    %2058 = vperm.xlu0 %2057, %v1935
    %v2059 = vpop.permute.xlu0 %2058
    %2062 = vset.pattern.permute.xlu0 0
    %2063 = vperm.xlu0 %2062, %v1936
    %v2064 = vpop.permute.xlu0 %2063
    %2067 = vset.pattern.permute.xlu0 0
    %2068 = vperm.xlu0 %2067, %v1937
    %v2069 = vpop.permute.xlu0 %2068
    %2072 = vset.pattern.permute.xlu0 0
    %2073 = vperm.xlu0 %2072, %v1938
    %v2074 = vpop.permute.xlu0 %2073
    %2077 = vset.pattern.permute.xlu0 0
    %2078 = vperm.xlu0 %2077, %v1939
    %v2079 = vpop.permute.xlu0 %2078
    %2082 = vset.pattern.permute.xlu0 0
    %2083 = vperm.xlu0 %2082, %v1940
    %v2084 = vpop.permute.xlu0 %2083
    %2087 = vset.pattern.permute.xlu0 0
    %2088 = vperm.xlu0 %2087, %v1941
    %v2089 = vpop.permute.xlu0 %2088
    %2092 = vset.pattern.permute.xlu0 0
    %2093 = vperm.xlu0 %2092, %v1942
    %v2094 = vpop.permute.xlu0 %2093
    %2097 = vset.pattern.permute.xlu0 0
    %2098 = vperm.xlu0 %2097, %v1943
    %v2099 = vpop.permute.xlu0 %2098
    %2102 = vset.pattern.permute.xlu0 0
    %2103 = vperm.xlu0 %2102, %v1944
    %v2104 = vpop.permute.xlu0 %2103
    %2107 = vset.pattern.permute.xlu0 0
    %2108 = vperm.xlu0 %2107, %v1945
    %v2109 = vpop.permute.xlu0 %2108
    %2112 = vset.pattern.permute.xlu0 0
    %2113 = vperm.xlu0 %2112, %v1946
    %v2114 = vpop.permute.xlu0 %2113
    %2117 = vset.pattern.permute.xlu0 0
    %2118 = vperm.xlu0 %2117, %v1947
    %v2119 = vpop.permute.xlu0 %2118
    %2122 = vset.pattern.permute.xlu0 0
    %2123 = vperm.xlu0 %2122, %v1948
    %v2124 = vpop.permute.xlu0 %2123
    %2127 = vset.pattern.permute.xlu0 0
    %2128 = vperm.xlu0 %2127, %v1949
    %v2129 = vpop.permute.xlu0 %2128
    %v2131 = vlaneseq
    %v2132 = vshrl.u32 %v2131, 7
    %v2133 = vsub.s32 0, %v2132
    %v2134 = vrot.slane %v1976, %v2133
    %v2135 = vlaneseq
    %v2136 = vshrl.u32 %v2135, 7
    %v2137 = vsub.s32 0, %v2136
    %v2138 = vrot.slane %v1990, %v2137
    %v2139 = vlaneseq
    %v2140 = vshrl.u32 %v2139, 7
    %v2141 = vsub.s32 0, %v2140
    %v2142 = vrot.slane %v1998, %v2141
    %v2143 = vlaneseq
    %v2144 = vshrl.u32 %v2143, 7
    %v2145 = vsub.s32 0, %v2144
    %v2146 = vrot.slane %v2000, %v2145
    %v2147 = vlaneseq
    %v2148 = vshrl.u32 %v2147, 7
    %v2149 = vsub.s32 0, %v2148
    %v2150 = vrot.slane %v1983, %v2149
    %v2151 = vlaneseq
    %v2152 = vshrl.u32 %v2151, 7
    %v2153 = vsub.s32 0, %v2152
    %v2154 = vrot.slane %v1997, %v2153
    %v2155 = vlaneseq
    %v2156 = vshrl.u32 %v2155, 7
    %v2157 = vsub.s32 0, %v2156
    %v2158 = vrot.slane %v1999, %v2157
    %v2159 = vlaneseq
    %v2160 = vshrl.u32 %v2159, 7
    %v2161 = vsub.s32 0, %v2160
    %v2162 = vrot.slane %v2001, %v2161
    %v2163 = vlaneseq
    %v2164 = vshrl.u32 %v2163, 7
    %v2165 = vsub.s32 0, %v2164
    %v2166 = vrot.slane %v2025, %v2165
    %v2167 = vlaneseq
    %v2168 = vshrl.u32 %v2167, 7
    %v2169 = vsub.s32 0, %v2168
    %v2170 = vrot.slane %v2039, %v2169
    %v2171 = vlaneseq
    %v2172 = vshrl.u32 %v2171, 7
    %v2173 = vsub.s32 0, %v2172
    %v2174 = vrot.slane %v2047, %v2173
    %v2175 = vlaneseq
    %v2176 = vshrl.u32 %v2175, 7
    %v2177 = vsub.s32 0, %v2176
    %v2178 = vrot.slane %v2049, %v2177
    %v2179 = vlaneseq
    %v2180 = vshrl.u32 %v2179, 7
    %v2181 = vsub.s32 0, %v2180
    %v2182 = vrot.slane %v2032, %v2181
    %v2183 = vlaneseq
    %v2184 = vshrl.u32 %v2183, 7
    %v2185 = vsub.s32 0, %v2184
    %v2186 = vrot.slane %v2046, %v2185
    %v2187 = vlaneseq
    %v2188 = vshrl.u32 %v2187, 7
    %v2189 = vsub.s32 0, %v2188
    %v2190 = vrot.slane %v2048, %v2189
    %v2191 = vlaneseq
    %v2192 = vshrl.u32 %v2191, 7
    %v2193 = vsub.s32 0, %v2192
    %v2194 = vrot.slane %v2050, %v2193
    %v2211 = vmul.f32 %v2054, %v2134
    %v2212 = vmul.f32 %v2059, %v2138
    %v2213 = vmul.f32 %v2064, %v2142
    %v2214 = vmul.f32 %v2069, %v2146
    %v2215 = vmul.f32 %v2074, %v2150
    %v2216 = vmul.f32 %v2079, %v2154
    %v2217 = vmul.f32 %v2084, %v2158
    %v2218 = vmul.f32 %v2089, %v2162
    %v2219 = vmul.f32 %v2094, %v2166
    %v2220 = vmul.f32 %v2099, %v2170
    %v2221 = vmul.f32 %v2104, %v2174
    %v2222 = vmul.f32 %v2109, %v2178
    %v2223 = vmul.f32 %v2114, %v2182
    %v2224 = vmul.f32 %v2119, %v2186
    %v2225 = vmul.f32 %v2124, %v2190
    %v2226 = vmul.f32 %v2129, %v2194
    %v2227 = vsel %vm1773, %v1934, 0
    %v2229 = vsel %vm1773, %v1935, 0
    %v2231 = vsel %vm1773, %v1936, 0
    %v2233 = vsel %vm1773, %v1937, 0
    %v2235 = vsel %vm1773, %v1938, 0
    %v2237 = vsel %vm1773, %v1939, 0
    %v2239 = vsel %vm1773, %v1940, 0
    %v2241 = vsel %vm1773, %v1941, 0
    %v2243 = vsel %vm1773, %v1942, 0
    %v2245 = vsel %vm1773, %v1943, 0
    %v2247 = vsel %vm1773, %v1944, 0
    %v2249 = vsel %vm1773, %v1945, 0
    %v2251 = vsel %vm1773, %v1946, 0
    %v2253 = vsel %vm1773, %v1947, 0
    %v2255 = vsel %vm1773, %v1948, 0
    %v2257 = vsel %vm1773, %v1949, 0
    %2259 = vmatprep.subr.mxu0 0.0
    %2260 = vmatpush1.msra.mxu0 %v1950
    %2261 = vmatprep.subr.mxu0 0.0
    %2262 = vmatpush1.msra.mxu0 0.0
    %2263 = vmatprep.subr.mxu0 0.0
    %2264 = vmatpush1.msra.mxu0 0.0
    %2265 = vmatprep.subr.mxu0 0.0
    %2266 = vmatpush1.msra.mxu0 0.0
    %2267 = vmatprep.subr.mxu0 0.0
    %2268 = vmatpush1.msra.mxu0 0.0
    %2269 = vmatprep.subr.mxu0 0.0
    %2270 = vmatpush1.msra.mxu0 0.0
    %2271 = vmatprep.subr.mxu0 0.0
    %2272 = vmatpush1.msra.mxu0 0.0
    %2273 = vmatprep.subr.mxu0 0.0
    %2274 = vmatpush1.msra.mxu0 0.0
    %2275 = vmatprep.subr.mxu0 0.0
    %2276 = vmatpush1.msra.mxu0 0.0
    %2277 = vmatprep.subr.mxu0 0.0
    %2278 = vmatpush1.msra.mxu0 0.0
    %2279 = vmatprep.subr.mxu0 0.0
    %2280 = vmatpush1.msra.mxu0 0.0
    %2281 = vmatprep.subr.mxu0 0.0
    %2282 = vmatpush1.msra.mxu0 0.0
    %2283 = vmatprep.subr.mxu0 0.0
    %2284 = vmatpush1.msra.mxu0 0.0
    %2285 = vmatprep.subr.mxu0 0.0
    %2286 = vmatpush1.msra.mxu0 0.0
    %2287 = vmatprep.subr.mxu0 0.0
    %2288 = vmatpush1.msra.mxu0 0.0
    %2289 = vmatprep.subr.mxu0 0.0
    %2290 = vmatpush1.msra.mxu0 0.0
    %2291 = vmatprep.subr.mxu0 0.0
    %2292 = vmatpush1.msra.mxu0 0.0
    %2293 = vmatprep.subr.mxu0 0.0
    %2294 = vmatpush1.msra.mxu0 0.0
    %2295 = vmatprep.subr.mxu0 0.0
    %2296 = vmatpush1.msra.mxu0 0.0
    %2297 = vmatprep.subr.mxu0 0.0
    %2298 = vmatpush1.msra.mxu0 0.0
    %2299 = vmatprep.subr.mxu0 0.0
    %2300 = vmatpush1.msra.mxu0 0.0
    %2301 = vmatprep.subr.mxu0 0.0
    %2302 = vmatpush1.msra.mxu0 0.0
    %2303 = vmatprep.subr.mxu0 0.0
    %2304 = vmatpush1.msra.mxu0 0.0
    %2305 = vmatprep.subr.mxu0 0.0
    %2306 = vmatpush1.msra.mxu0 0.0
    %2307 = vmatprep.subr.mxu0 0.0
    %2308 = vmatpush1.msra.mxu0 0.0
    %2309 = vmatprep.subr.mxu0 0.0
    %2310 = vmatpush1.msra.mxu0 0.0
    %2311 = vmatprep.subr.mxu0 0.0
    %2312 = vmatpush1.msra.mxu0 0.0
    %2313 = vmatprep.subr.mxu0 0.0
    %2314 = vmatpush1.msra.mxu0 0.0
    %2315 = vmatprep.subr.mxu0 0.0
    %2316 = vmatpush1.msra.mxu0 0.0
    %2317 = vmatprep.subr.mxu0 0.0
    %2318 = vmatpush1.msra.mxu0 0.0
    %2319 = vmatprep.subr.mxu0 0.0
    %2320 = vmatpush1.msra.mxu0 0.0
    %2321 = vmatprep.subr.mxu0 0.0
    %2322 = vmatpush1.msra.mxu0 0.0
    %2323 = vmatprep.mubr.f32.mxu0 0.0
    %2324 = vmatmul.mubr.f32.gmra.mrb[0].mxu0 %v2227
    %v2325 = vpop.f32.mrb[0].mxu0
    %v2326 = vadd.f32 %v2211, %v2325
    %v2327 = vpop.f32.mrb[0].mxu0
    %2328 = vmatprep.mubr.f32.mxu0 0.0
    %2329 = vmatmul.mubr.f32.gmra.mrb[0].mxu0 %v2229
    %v2330 = vpop.f32.mrb[0].mxu0
    %v2331 = vadd.f32 %v2212, %v2330
    %v2332 = vpop.f32.mrb[0].mxu0
    %2333 = vmatprep.mubr.f32.mxu0 0.0
    %2334 = vmatmul.mubr.f32.gmra.mrb[0].mxu0 %v2231
    %v2335 = vpop.f32.mrb[0].mxu0
    %v2336 = vadd.f32 %v2213, %v2335
    %v2337 = vpop.f32.mrb[0].mxu0
    %2338 = vmatprep.mubr.f32.mxu0 0.0
    %2339 = vmatmul.mubr.f32.gmra.mrb[0].mxu0 %v2233
    %v2340 = vpop.f32.mrb[0].mxu0
    %v2341 = vadd.f32 %v2214, %v2340
    %v2342 = vpop.f32.mrb[0].mxu0
    %2343 = vmatprep.mubr.f32.mxu0 0.0
    %2344 = vmatmul.mubr.f32.gmra.mrb[0].mxu0 %v2235
    %v2345 = vpop.f32.mrb[0].mxu0
    %v2346 = vadd.f32 %v2215, %v2345
    %v2347 = vpop.f32.mrb[0].mxu0
    %2348 = vmatprep.mubr.f32.mxu0 0.0
    %2349 = vmatmul.mubr.f32.gmra.mrb[0].mxu0 %v2237
    %v2350 = vpop.f32.mrb[0].mxu0
    %v2351 = vadd.f32 %v2216, %v2350
    %v2352 = vpop.f32.mrb[0].mxu0
    %2353 = vmatprep.mubr.f32.mxu0 0.0
    %2354 = vmatmul.mubr.f32.gmra.mrb[0].mxu0 %v2239
    %v2355 = vpop.f32.mrb[0].mxu0
    %v2356 = vadd.f32 %v2217, %v2355
    %v2357 = vpop.f32.mrb[0].mxu0
    %2358 = vmatprep.mubr.f32.mxu0 0.0
    %2359 = vmatmul.mubr.f32.gmra.mrb[0].mxu0 %v2241
    %v2360 = vpop.f32.mrb[0].mxu0
    %v2361 = vadd.f32 %v2218, %v2360
    %v2362 = vpop.f32.mrb[0].mxu0
    %2363 = vmatprep.mubr.f32.mxu0 0.0
    %2364 = vmatmul.mubr.f32.gmra.mrb[0].mxu0 %v2243
    %v2365 = vpop.f32.mrb[0].mxu0
    %v2366 = vadd.f32 %v2219, %v2365
    %v2367 = vpop.f32.mrb[0].mxu0
    %2368 = vmatprep.mubr.f32.mxu0 0.0
    %2369 = vmatmul.mubr.f32.gmra.mrb[0].mxu0 %v2245
    %v2370 = vpop.f32.mrb[0].mxu0
    %v2371 = vadd.f32 %v2220, %v2370
    %v2372 = vpop.f32.mrb[0].mxu0
    %2373 = vmatprep.mubr.f32.mxu0 0.0
    %2374 = vmatmul.mubr.f32.gmra.mrb[0].mxu0 %v2247
    %v2375 = vpop.f32.mrb[0].mxu0
    %v2376 = vadd.f32 %v2221, %v2375
    %v2377 = vpop.f32.mrb[0].mxu0
    %2378 = vmatprep.mubr.f32.mxu0 0.0
    %2379 = vmatmul.mubr.f32.gmra.mrb[0].mxu0 %v2249
    %v2380 = vpop.f32.mrb[0].mxu0
    %v2381 = vadd.f32 %v2222, %v2380
    %v2382 = vpop.f32.mrb[0].mxu0
    %2383 = vmatprep.mubr.f32.mxu0 0.0
    %2384 = vmatmul.mubr.f32.gmra.mrb[0].mxu0 %v2251
    %v2385 = vpop.f32.mrb[0].mxu0
    %v2386 = vadd.f32 %v2223, %v2385
    %v2387 = vpop.f32.mrb[0].mxu0
    %2388 = vmatprep.mubr.f32.mxu0 0.0
    %2389 = vmatmul.mubr.f32.gmra.mrb[0].mxu0 %v2253
    %v2390 = vpop.f32.mrb[0].mxu0
    %v2391 = vadd.f32 %v2224, %v2390
    %v2392 = vpop.f32.mrb[0].mxu0
    %2393 = vmatprep.mubr.f32.mxu0 0.0
    %2394 = vmatmul.mubr.f32.gmra.mrb[0].mxu0 %v2255
    %v2395 = vpop.f32.mrb[0].mxu0
    %v2396 = vadd.f32 %v2225, %v2395
    %v2397 = vpop.f32.mrb[0].mxu0
    %2398 = vmatprep.mubr.f32.mxu0 0.0
    %2399 = vmatmul.mubr.f32.gmra.mrb[0].mxu0 %v2257
    %v2400 = vpop.f32.mrb[0].mxu0
    %v2401 = vadd.f32 %v2226, %v2400
    %v2402 = vpop.f32.mrb[0].mxu0
    %2403 = vdwg.mxu0
    %vm2404 = vcmp.gt.f32.partialorder %v2326, 0.0
    %vm2405 = vcmp.gt.f32.partialorder %v2331, 0.0
    %vm2406 = vcmp.gt.f32.partialorder %v2336, 0.0
    %vm2407 = vcmp.gt.f32.partialorder %v2341, 0.0
    %vm2408 = vcmp.gt.f32.partialorder %v2346, 0.0
    %vm2409 = vcmp.gt.f32.partialorder %v2351, 0.0
    %vm2410 = vcmp.gt.f32.partialorder %v2356, 0.0
    %vm2411 = vcmp.gt.f32.partialorder %v2361, 0.0
    %vm2412 = vcmp.gt.f32.partialorder %v2366, 0.0
    %vm2413 = vcmp.gt.f32.partialorder %v2371, 0.0
    %vm2414 = vcmp.gt.f32.partialorder %v2376, 0.0
    %vm2415 = vcmp.gt.f32.partialorder %v2381, 0.0
    %vm2416 = vcmp.gt.f32.partialorder %v2386, 0.0
    %vm2417 = vcmp.gt.f32.partialorder %v2391, 0.0
    %vm2418 = vcmp.gt.f32.partialorder %v2396, 0.0
    %vm2419 = vcmp.gt.f32.partialorder %v2401, 0.0
    %v2420 = vmin.f32 %v2326, 0.0
    %v2421 = vmin.f32 %v2331, 0.0
    %v2422 = vmin.f32 %v2336, 0.0
    %v2423 = vmin.f32 %v2341, 0.0
    %v2424 = vmin.f32 %v2346, 0.0
    %v2425 = vmin.f32 %v2351, 0.0
    %v2426 = vmin.f32 %v2356, 0.0
    %v2427 = vmin.f32 %v2361, 0.0
    %v2428 = vmin.f32 %v2366, 0.0
    %v2429 = vmin.f32 %v2371, 0.0
    %v2430 = vmin.f32 %v2376, 0.0
    %v2431 = vmin.f32 %v2381, 0.0
    %v2432 = vmin.f32 %v2386, 0.0
    %v2433 = vmin.f32 %v2391, 0.0
    %v2434 = vmin.f32 %v2396, 0.0
    %v2435 = vmin.f32 %v2401, 0.0
    %v2436 = vmul.f32 %v2420, 1.442695
    %v2437 = vpow.pop %v2436
    %v2438 = vmul.f32 %v2421, 1.442695
    %v2439 = vpow.pop %v2438
    %v2440 = vmul.f32 %v2422, 1.442695
    %v2441 = vpow.pop %v2440
    %v2442 = vmul.f32 %v2423, 1.442695
    %v2443 = vpow.pop %v2442
    %v2444 = vmul.f32 %v2424, 1.442695
    %v2445 = vpow.pop %v2444
    %v2446 = vmul.f32 %v2425, 1.442695
    %v2447 = vpow.pop %v2446
    %v2448 = vmul.f32 %v2426, 1.442695
    %v2449 = vpow.pop %v2448
    %v2450 = vmul.f32 %v2427, 1.442695
    %v2451 = vpow.pop %v2450
    %v2452 = vmul.f32 %v2428, 1.442695
    %v2453 = vpow.pop %v2452
    %v2454 = vmul.f32 %v2429, 1.442695
    %v2455 = vpow.pop %v2454
    %v2456 = vmul.f32 %v2430, 1.442695
    %v2457 = vpow.pop %v2456
    %v2458 = vmul.f32 %v2431, 1.442695
    %v2459 = vpow.pop %v2458
    %v2460 = vmul.f32 %v2432, 1.442695
    %v2461 = vpow.pop %v2460
    %v2462 = vmul.f32 %v2433, 1.442695
    %v2463 = vpow.pop %v2462
    %v2464 = vmul.f32 %v2434, 1.442695
    %v2465 = vpow.pop %v2464
    %v2466 = vmul.f32 %v2435, 1.442695
    %v2467 = vpow.pop %v2466
    %v2468 = vsub.f32 %v2437, 1.0
    %v2469 = vsub.f32 %v2439, 1.0
    %v2470 = vsub.f32 %v2441, 1.0
    %v2471 = vsub.f32 %v2443, 1.0
    %v2472 = vsub.f32 %v2445, 1.0
    %v2473 = vsub.f32 %v2447, 1.0
    %v2474 = vsub.f32 %v2449, 1.0
    %v2475 = vsub.f32 %v2451, 1.0
    %v2476 = vsub.f32 %v2453, 1.0
    %v2477 = vsub.f32 %v2455, 1.0
    %v2478 = vsub.f32 %v2457, 1.0
    %v2479 = vsub.f32 %v2459, 1.0
    %v2480 = vsub.f32 %v2461, 1.0
    %v2481 = vsub.f32 %v2463, 1.0
    %v2482 = vsub.f32 %v2465, 1.0
    %v2483 = vsub.f32 %v2467, 1.0
    %v2484 = vsel %vm2404, %v2326, %v2468
    %v2485 = vsel %vm2405, %v2331, %v2469
    %v2486 = vsel %vm2406, %v2336, %v2470
    %v2487 = vsel %vm2407, %v2341, %v2471
    %v2488 = vsel %vm2408, %v2346, %v2472
    %v2489 = vsel %vm2409, %v2351, %v2473
    %v2490 = vsel %vm2410, %v2356, %v2474
    %v2491 = vsel %vm2411, %v2361, %v2475
    %v2492 = vsel %vm2412, %v2366, %v2476
    %v2493 = vsel %vm2413, %v2371, %v2477
    %v2494 = vsel %vm2414, %v2376, %v2478
    %v2495 = vsel %vm2415, %v2381, %v2479
    %v2496 = vsel %vm2416, %v2386, %v2480
    %v2497 = vsel %vm2417, %v2391, %v2481
    %v2498 = vsel %vm2418, %v2396, %v2482
    %v2499 = vsel %vm2419, %v2401, %v2483
    %v2500 = vld [vmem:[%s10] sm:$0xff]
    %v2501 = vsel %vm1302, %v1306, %v2500
    %v2502 = vsel %vm1302, %v1310, %v2500
    %v2503 = vsel %vm1302, %v1314, %v2500
    %v2504 = vsel %vm1302, %v1318, %v2500
    %v2505 = vsel %vm1302, %v1322, %v2500
    %v2506 = vsel %vm1302, %v1326, %v2500
    %v2507 = vsel %vm1302, %v1330, %v2500
    %v2508 = vsel %vm1302, %v1334, %v2500
    %v2509 = vsel %vm1302, %v1338, %v2500
    %v2510 = vsel %vm1302, %v1342, %v2500
    %v2511 = vsel %vm1302, %v1346, %v2500
    %v2512 = vsel %vm1302, %v1350, %v2500
    %v2513 = vsel %vm1302, %v1354, %v2500
    %v2514 = vsel %vm1302, %v1358, %v2500
    %v2515 = vsel %vm1302, %v1362, %v2500
    %v2516 = vsel %vm1302, %v1366, %v2500
    %v2517 = vld [vmem:[%s11 + $0x1] sm:$0x1]
    %2518 = vset.pattern.permute.xlu0 5
    %2519 = vperm.xlu0 %2518, %v1169
    %v2520 = vpop.permute.xlu0 %2519
    %2522 = vset.pattern.permute.xlu0 5
    %2523 = vperm.xlu0 %2522, %v1174
    %v2524 = vpop.permute.xlu0 %2523
    %v2526 = vlaneseq
    %v2527 = vshrl.u32 %v2526, 7
    %v2528 = vsub.s32 0, %v2527
    %v2529 = vrot.slane %v2517, %v2528
    %v2530 = vsel %vm1402, %v2520, %v2529
    %v2531 = vsel %vm1402, %v2524, %v2529
    %v2534 = vcombine.high %v2530, %v2530
    %v2536 = vunpack.c.l.s4 1966171168
    %v2537 = vunpack.c.0.s8 %v2536
    %v2538 = vlaneseq
    %v2539 = vshrl.u32 %v2538, 7
    %v2540 = vsub.s32 %v2537, %v2539
    %v2541 = vrot.slane %v2530, %v2540
    %v2543 = vunpack.c.l.s4 1966171168
    %v2544 = vunpack.c.0.s8 %v2543
    %v2545 = vlaneseq
    %v2546 = vshrl.u32 %v2545, 7
    %v2547 = vsub.s32 %v2544, %v2546
    %v2548 = vrot.slane %v2534, %v2547
    %v2549 = vcombine.high %v2541, %v2541
    %v2550 = vcombine.high %v2548, %v2548
    %v2552 = vunpack.c.l.s4 1966171168
    %v2553 = vunpack.c.0.s8 %v2552
    %v2554 = vlaneseq
    %v2555 = vshrl.u32 %v2554, 7
    %v2556 = vsub.s32 %v2553, %v2555
    %v2557 = vrot.slane %v2541, %v2556
    %v2559 = vunpack.c.l.s4 1966171168
    %v2560 = vunpack.c.0.s8 %v2559
    %v2561 = vlaneseq
    %v2562 = vshrl.u32 %v2561, 7
    %v2563 = vsub.s32 %v2560, %v2562
    %v2564 = vrot.slane %v2548, %v2563
    %v2566 = vunpack.c.l.s4 1966171168
    %v2567 = vunpack.c.0.s8 %v2566
    %v2568 = vlaneseq
    %v2569 = vshrl.u32 %v2568, 7
    %v2570 = vsub.s32 %v2567, %v2569
    %v2571 = vrot.slane %v2549, %v2570
    %v2573 = vunpack.c.l.s4 1966171168
    %v2574 = vunpack.c.0.s8 %v2573
    %v2575 = vlaneseq
    %v2576 = vshrl.u32 %v2575, 7
    %v2577 = vsub.s32 %v2574, %v2576
    %v2578 = vrot.slane %v2550, %v2577
    %v2579 = vcombine.high %v2557, %v2557
    %v2580 = vcombine.high %v2564, %v2564
    %v2581 = vcombine.high %v2571, %v2571
    %v2582 = vcombine.high %v2578, %v2578
    %v2583 = vcombine.high %v2531, %v2531
    %v2585 = vunpack.c.l.s4 1966171168
    %v2586 = vunpack.c.0.s8 %v2585
    %v2587 = vlaneseq
    %v2588 = vshrl.u32 %v2587, 7
    %v2589 = vsub.s32 %v2586, %v2588
    %v2590 = vrot.slane %v2531, %v2589
    %v2592 = vunpack.c.l.s4 1966171168
    %v2593 = vunpack.c.0.s8 %v2592
    %v2594 = vlaneseq
    %v2595 = vshrl.u32 %v2594, 7
    %v2596 = vsub.s32 %v2593, %v2595
    %v2597 = vrot.slane %v2583, %v2596
    %v2598 = vcombine.high %v2590, %v2590
    %v2599 = vcombine.high %v2597, %v2597
    %v2601 = vunpack.c.l.s4 1966171168
    %v2602 = vunpack.c.0.s8 %v2601
    %v2603 = vlaneseq
    %v2604 = vshrl.u32 %v2603, 7
    %v2605 = vsub.s32 %v2602, %v2604
    %v2606 = vrot.slane %v2590, %v2605
    %v2608 = vunpack.c.l.s4 1966171168
    %v2609 = vunpack.c.0.s8 %v2608
    %v2610 = vlaneseq
    %v2611 = vshrl.u32 %v2610, 7
    %v2612 = vsub.s32 %v2609, %v2611
    %v2613 = vrot.slane %v2597, %v2612
    %v2615 = vunpack.c.l.s4 1966171168
    %v2616 = vunpack.c.0.s8 %v2615
    %v2617 = vlaneseq
    %v2618 = vshrl.u32 %v2617, 7
    %v2619 = vsub.s32 %v2616, %v2618
    %v2620 = vrot.slane %v2598, %v2619
    %v2622 = vunpack.c.l.s4 1966171168
    %v2623 = vunpack.c.0.s8 %v2622
    %v2624 = vlaneseq
    %v2625 = vshrl.u32 %v2624, 7
    %v2626 = vsub.s32 %v2623, %v2625
    %v2627 = vrot.slane %v2599, %v2626
    %v2628 = vcombine.high %v2606, %v2606
    %v2629 = vcombine.high %v2613, %v2613
    %v2630 = vcombine.high %v2620, %v2620
    %v2631 = vcombine.high %v2627, %v2627
    %2633 = vset.pattern.permute.xlu0 1
    %2634 = vperm.xlu0 %2633, %v2501
    %v2635 = vpop.permute.xlu0 %2634
    %2638 = vset.pattern.permute.xlu0 1
    %2639 = vperm.xlu0 %2638, %v2502
    %v2640 = vpop.permute.xlu0 %2639
    %2643 = vset.pattern.permute.xlu0 1
    %2644 = vperm.xlu0 %2643, %v2503
    %v2645 = vpop.permute.xlu0 %2644
    %2648 = vset.pattern.permute.xlu0 1
    %2649 = vperm.xlu0 %2648, %v2504
    %v2650 = vpop.permute.xlu0 %2649
    %2653 = vset.pattern.permute.xlu0 1
    %2654 = vperm.xlu0 %2653, %v2505
    %v2655 = vpop.permute.xlu0 %2654
    %2658 = vset.pattern.permute.xlu0 1
    %2659 = vperm.xlu0 %2658, %v2506
    %v2660 = vpop.permute.xlu0 %2659
    %2663 = vset.pattern.permute.xlu0 1
    %2664 = vperm.xlu0 %2663, %v2507
    %v2665 = vpop.permute.xlu0 %2664
    %2668 = vset.pattern.permute.xlu0 1
    %2669 = vperm.xlu0 %2668, %v2508
    %v2670 = vpop.permute.xlu0 %2669
    %2673 = vset.pattern.permute.xlu0 1
    %2674 = vperm.xlu0 %2673, %v2509
    %v2675 = vpop.permute.xlu0 %2674
    %2678 = vset.pattern.permute.xlu0 1
    %2679 = vperm.xlu0 %2678, %v2510
    %v2680 = vpop.permute.xlu0 %2679
    %2683 = vset.pattern.permute.xlu0 1
    %2684 = vperm.xlu0 %2683, %v2511
    %v2685 = vpop.permute.xlu0 %2684
    %2688 = vset.pattern.permute.xlu0 1
    %2689 = vperm.xlu0 %2688, %v2512
    %v2690 = vpop.permute.xlu0 %2689
    %2693 = vset.pattern.permute.xlu0 1
    %2694 = vperm.xlu0 %2693, %v2513
    %v2695 = vpop.permute.xlu0 %2694
    %2698 = vset.pattern.permute.xlu0 1
    %2699 = vperm.xlu0 %2698, %v2514
    %v2700 = vpop.permute.xlu0 %2699
    %2703 = vset.pattern.permute.xlu0 1
    %2704 = vperm.xlu0 %2703, %v2515
    %v2705 = vpop.permute.xlu0 %2704
    %2708 = vset.pattern.permute.xlu0 1
    %2709 = vperm.xlu0 %2708, %v2516
    %v2710 = vpop.permute.xlu0 %2709
    %v2712 = vlaneseq
    %v2713 = vshrl.u32 %v2712, 7
    %v2714 = vsub.s32 0, %v2713
    %v2715 = vrot.slane %v2557, %v2714
    %v2716 = vlaneseq
    %v2717 = vshrl.u32 %v2716, 7
    %v2718 = vsub.s32 0, %v2717
    %v2719 = vrot.slane %v2571, %v2718
    %v2720 = vlaneseq
    %v2721 = vshrl.u32 %v2720, 7
    %v2722 = vsub.s32 0, %v2721
    %v2723 = vrot.slane %v2579, %v2722
    %v2724 = vlaneseq
    %v2725 = vshrl.u32 %v2724, 7
    %v2726 = vsub.s32 0, %v2725
    %v2727 = vrot.slane %v2581, %v2726
    %v2728 = vlaneseq
    %v2729 = vshrl.u32 %v2728, 7
    %v2730 = vsub.s32 0, %v2729
    %v2731 = vrot.slane %v2564, %v2730
    %v2732 = vlaneseq
    %v2733 = vshrl.u32 %v2732, 7
    %v2734 = vsub.s32 0, %v2733
    %v2735 = vrot.slane %v2578, %v2734
    %v2736 = vlaneseq
    %v2737 = vshrl.u32 %v2736, 7
    %v2738 = vsub.s32 0, %v2737
    %v2739 = vrot.slane %v2580, %v2738
    %v2740 = vlaneseq
    %v2741 = vshrl.u32 %v2740, 7
    %v2742 = vsub.s32 0, %v2741
    %v2743 = vrot.slane %v2582, %v2742
    %v2744 = vlaneseq
    %v2745 = vshrl.u32 %v2744, 7
    %v2746 = vsub.s32 0, %v2745
    %v2747 = vrot.slane %v2606, %v2746
    %v2748 = vlaneseq
    %v2749 = vshrl.u32 %v2748, 7
    %v2750 = vsub.s32 0, %v2749
    %v2751 = vrot.slane %v2620, %v2750
    %v2752 = vlaneseq
    %v2753 = vshrl.u32 %v2752, 7
    %v2754 = vsub.s32 0, %v2753
    %v2755 = vrot.slane %v2628, %v2754
    %v2756 = vlaneseq
    %v2757 = vshrl.u32 %v2756, 7
    %v2758 = vsub.s32 0, %v2757
    %v2759 = vrot.slane %v2630, %v2758
    %v2760 = vlaneseq
    %v2761 = vshrl.u32 %v2760, 7
    %v2762 = vsub.s32 0, %v2761
    %v2763 = vrot.slane %v2613, %v2762
    %v2764 = vlaneseq
    %v2765 = vshrl.u32 %v2764, 7
    %v2766 = vsub.s32 0, %v2765
    %v2767 = vrot.slane %v2627, %v2766
    %v2768 = vlaneseq
    %v2769 = vshrl.u32 %v2768, 7
    %v2770 = vsub.s32 0, %v2769
    %v2771 = vrot.slane %v2629, %v2770
    %v2772 = vlaneseq
    %v2773 = vshrl.u32 %v2772, 7
    %v2774 = vsub.s32 0, %v2773
    %v2775 = vrot.slane %v2631, %v2774
    %v2792 = vadd.f32 %v2635, %v2715
    %v2793 = vadd.f32 %v2640, %v2719
    %v2794 = vadd.f32 %v2645, %v2723
    %v2795 = vadd.f32 %v2650, %v2727
    %v2796 = vadd.f32 %v2655, %v2731
    %v2797 = vadd.f32 %v2660, %v2735
    %v2798 = vadd.f32 %v2665, %v2739
    %v2799 = vadd.f32 %v2670, %v2743
    %v2800 = vadd.f32 %v2675, %v2747
    %v2801 = vadd.f32 %v2680, %v2751
    %v2802 = vadd.f32 %v2685, %v2755
    %v2803 = vadd.f32 %v2690, %v2759
    %v2804 = vadd.f32 %v2695, %v2763
    %v2805 = vadd.f32 %v2700, %v2767
    %v2806 = vadd.f32 %v2705, %v2771
    %v2807 = vadd.f32 %v2710, %v2775
    %vm2808 = vcmp.gt.f32.partialorder %v2792, 0.0
    %vm2809 = vcmp.gt.f32.partialorder %v2793, 0.0
    %vm2810 = vcmp.gt.f32.partialorder %v2794, 0.0
    %vm2811 = vcmp.gt.f32.partialorder %v2795, 0.0
    %vm2812 = vcmp.gt.f32.partialorder %v2796, 0.0
    %vm2813 = vcmp.gt.f32.partialorder %v2797, 0.0
    %vm2814 = vcmp.gt.f32.partialorder %v2798, 0.0
    %vm2815 = vcmp.gt.f32.partialorder %v2799, 0.0
    %vm2816 = vcmp.gt.f32.partialorder %v2800, 0.0
    %vm2817 = vcmp.gt.f32.partialorder %v2801, 0.0
    %vm2818 = vcmp.gt.f32.partialorder %v2802, 0.0
    %vm2819 = vcmp.gt.f32.partialorder %v2803, 0.0
    %vm2820 = vcmp.gt.f32.partialorder %v2804, 0.0
    %vm2821 = vcmp.gt.f32.partialorder %v2805, 0.0
    %vm2822 = vcmp.gt.f32.partialorder %v2806, 0.0
    %vm2823 = vcmp.gt.f32.partialorder %v2807, 0.0
    %v2824 = vmul.f32 %v2792, 0.2
    %v2825 = vmul.f32 %v2793, 0.2
    %v2826 = vmul.f32 %v2794, 0.2
    %v2827 = vmul.f32 %v2795, 0.2
    %v2828 = vmul.f32 %v2796, 0.2
    %v2829 = vmul.f32 %v2797, 0.2
    %v2830 = vmul.f32 %v2798, 0.2
    %v2831 = vmul.f32 %v2799, 0.2
    %v2832 = vmul.f32 %v2800, 0.2
    %v2833 = vmul.f32 %v2801, 0.2
    %v2834 = vmul.f32 %v2802, 0.2
    %v2835 = vmul.f32 %v2803, 0.2
    %v2836 = vmul.f32 %v2804, 0.2
    %v2837 = vmul.f32 %v2805, 0.2
    %v2838 = vmul.f32 %v2806, 0.2
    %v2839 = vmul.f32 %v2807, 0.2
    %v2840 = vsel %vm2808, %v2792, %v2824
    %v2841 = vsel %vm2809, %v2793, %v2825
    %v2842 = vsel %vm2810, %v2794, %v2826
    %v2843 = vsel %vm2811, %v2795, %v2827
    %v2844 = vsel %vm2812, %v2796, %v2828
    %v2845 = vsel %vm2813, %v2797, %v2829
    %v2846 = vsel %vm2814, %v2798, %v2830
    %v2847 = vsel %vm2815, %v2799, %v2831
    %v2848 = vsel %vm2816, %v2800, %v2832
    %v2849 = vsel %vm2817, %v2801, %v2833
    %v2850 = vsel %vm2818, %v2802, %v2834
    %v2851 = vsel %vm2819, %v2803, %v2835
    %v2852 = vsel %vm2820, %v2804, %v2836
    %v2853 = vsel %vm2821, %v2805, %v2837
    %v2854 = vsel %vm2822, %v2806, %v2838
    %v2855 = vsel %vm2823, %v2807, %v2839
    %v2856 = vsel %vm1741, %v2840, -9e+15
    %v2857 = vsel %vm1742, %v2841, -9e+15
    %v2858 = vsel %vm1743, %v2842, -9e+15
    %v2859 = vsel %vm1744, %v2843, -9e+15
    %v2860 = vsel %vm1745, %v2844, -9e+15
    %v2861 = vsel %vm1746, %v2845, -9e+15
    %v2862 = vsel %vm1747, %v2846, -9e+15
    %v2863 = vsel %vm1748, %v2847, -9e+15
    %v2864 = vsel %vm1749, %v2848, -9e+15
    %v2865 = vsel %vm1750, %v2849, -9e+15
    %v2866 = vsel %vm1751, %v2850, -9e+15
    %v2867 = vsel %vm1752, %v2851, -9e+15
    %v2868 = vsel %vm1753, %v2852, -9e+15
    %v2869 = vsel %vm1754, %v2853, -9e+15
    %v2870 = vsel %vm1755, %v2854, -9e+15
    %v2871 = vsel %vm1756, %v2855, -9e+15
    %v2872 = vsel %vm1773, %v2856, -inf
    %2873 = vmax.xlane.f32.xlu0 %v2872
    %v2874 = vpop.xlane.xlu0 %2873
    %v2875 = vsel %vm1773, %v2857, -inf
    %2876 = vmax.xlane.f32.xlu0 %v2875
    %v2877 = vpop.xlane.xlu0 %2876
    %v2878 = vsel %vm1773, %v2858, -inf
    %2879 = vmax.xlane.f32.xlu0 %v2878
    %v2880 = vpop.xlane.xlu0 %2879
    %v2881 = vsel %vm1773, %v2859, -inf
    %2882 = vmax.xlane.f32.xlu0 %v2881
    %v2883 = vpop.xlane.xlu0 %2882
    %v2884 = vsel %vm1773, %v2860, -inf
    %2885 = vmax.xlane.f32.xlu0 %v2884
    %v2886 = vpop.xlane.xlu0 %2885
    %v2887 = vsel %vm1773, %v2861, -inf
    %2888 = vmax.xlane.f32.xlu0 %v2887
    %v2889 = vpop.xlane.xlu0 %2888
    %v2890 = vsel %vm1773, %v2862, -inf
    %2891 = vmax.xlane.f32.xlu0 %v2890
    %v2892 = vpop.xlane.xlu0 %2891
    %v2893 = vsel %vm1773, %v2863, -inf
    %2894 = vmax.xlane.f32.xlu0 %v2893
    %v2895 = vpop.xlane.xlu0 %2894
    %v2896 = vsel %vm1773, %v2864, -inf
    %2897 = vmax.xlane.f32.xlu0 %v2896
    %v2898 = vpop.xlane.xlu0 %2897
    %v2899 = vsel %vm1773, %v2865, -inf
    %2900 = vmax.xlane.f32.xlu0 %v2899
    %v2901 = vpop.xlane.xlu0 %2900
    %v2902 = vsel %vm1773, %v2866, -inf
    %2903 = vmax.xlane.f32.xlu0 %v2902
    %v2904 = vpop.xlane.xlu0 %2903
    %v2905 = vsel %vm1773, %v2867, -inf
    %2906 = vmax.xlane.f32.xlu0 %v2905
    %v2907 = vpop.xlane.xlu0 %2906
    %v2908 = vsel %vm1773, %v2868, -inf
    %2909 = vmax.xlane.f32.xlu0 %v2908
    %v2910 = vpop.xlane.xlu0 %2909
    %v2911 = vsel %vm1773, %v2869, -inf
    %2912 = vmax.xlane.f32.xlu0 %v2911
    %v2913 = vpop.xlane.xlu0 %2912
    %v2914 = vsel %vm1773, %v2870, -inf
    %2915 = vmax.xlane.f32.xlu0 %v2914
    %v2916 = vpop.xlane.xlu0 %2915
    %v2917 = vsel %vm1773, %v2871, -inf
    %2918 = vmax.xlane.f32.xlu0 %v2917
    %v2919 = vpop.xlane.xlu0 %2918
    %v2920 = vsub.f32 %v2856, %v2874
    %v2921 = vsub.f32 %v2857, %v2877
    %v2922 = vsub.f32 %v2858, %v2880
    %v2923 = vsub.f32 %v2859, %v2883
    %v2924 = vsub.f32 %v2860, %v2886
    %v2925 = vsub.f32 %v2861, %v2889
    %v2926 = vsub.f32 %v2862, %v2892
    %v2927 = vsub.f32 %v2863, %v2895
    %v2928 = vsub.f32 %v2864, %v2898
    %v2929 = vsub.f32 %v2865, %v2901
    %v2930 = vsub.f32 %v2866, %v2904
    %v2931 = vsub.f32 %v2867, %v2907
    %v2932 = vsub.f32 %v2868, %v2910
    %v2933 = vsub.f32 %v2869, %v2913
    %v2934 = vsub.f32 %v2870, %v2916
    %v2935 = vsub.f32 %v2871, %v2919
    %v2936 = vmul.f32 %v2920, 1.442695
    %v2937 = vpow.pop %v2936
    %v2938 = vmul.f32 %v2921, 1.442695
    %v2939 = vpow.pop %v2938
    %v2940 = vmul.f32 %v2922, 1.442695
    %v2941 = vpow.pop %v2940
    %v2942 = vmul.f32 %v2923, 1.442695
    %v2943 = vpow.pop %v2942
    %v2944 = vmul.f32 %v2924, 1.442695
    %v2945 = vpow.pop %v2944
    %v2946 = vmul.f32 %v2925, 1.442695
    %v2947 = vpow.pop %v2946
    %v2948 = vmul.f32 %v2926, 1.442695
    %v2949 = vpow.pop %v2948
    %v2950 = vmul.f32 %v2927, 1.442695
    %v2951 = vpow.pop %v2950
    %v2952 = vmul.f32 %v2928, 1.442695
    %v2953 = vpow.pop %v2952
    %v2954 = vmul.f32 %v2929, 1.442695
    %v2955 = vpow.pop %v2954
    %v2956 = vmul.f32 %v2930, 1.442695
    %v2957 = vpow.pop %v2956
    %v2958 = vmul.f32 %v2931, 1.442695
    %v2959 = vpow.pop %v2958
    %v2960 = vmul.f32 %v2932, 1.442695
    %v2961 = vpow.pop %v2960
    %v2962 = vmul.f32 %v2933, 1.442695
    %v2963 = vpow.pop %v2962
    %v2964 = vmul.f32 %v2934, 1.442695
    %v2965 = vpow.pop %v2964
    %v2966 = vmul.f32 %v2935, 1.442695
    %v2967 = vpow.pop %v2966
    %v2968 = vsel %vm1773, %v2937, 0.0
    %2969 = vadd.xlane.f32.xlu0 %v2968
    %v2970 = vpop.xlane.xlu0 %2969
    %v2971 = vsel %vm1773, %v2939, 0.0
    %2972 = vadd.xlane.f32.xlu0 %v2971
    %v2973 = vpop.xlane.xlu0 %2972
    %v2974 = vsel %vm1773, %v2941, 0.0
    %2975 = vadd.xlane.f32.xlu0 %v2974
    %v2976 = vpop.xlane.xlu0 %2975
    %v2977 = vsel %vm1773, %v2943, 0.0
    %2978 = vadd.xlane.f32.xlu0 %v2977
    %v2979 = vpop.xlane.xlu0 %2978
    %v2980 = vsel %vm1773, %v2945, 0.0
    %2981 = vadd.xlane.f32.xlu0 %v2980
    %v2982 = vpop.xlane.xlu0 %2981
    %v2983 = vsel %vm1773, %v2947, 0.0
    %2984 = vadd.xlane.f32.xlu0 %v2983
    %v2985 = vpop.xlane.xlu0 %2984
    %v2986 = vsel %vm1773, %v2949, 0.0
    %2987 = vadd.xlane.f32.xlu0 %v2986
    %v2988 = vpop.xlane.xlu0 %2987
    %v2989 = vsel %vm1773, %v2951, 0.0
    %2990 = vadd.xlane.f32.xlu0 %v2989
    %v2991 = vpop.xlane.xlu0 %2990
    %v2992 = vsel %vm1773, %v2953, 0.0
    %2993 = vadd.xlane.f32.xlu0 %v2992
    %v2994 = vpop.xlane.xlu0 %2993
    %v2995 = vsel %vm1773, %v2955, 0.0
    %2996 = vadd.xlane.f32.xlu0 %v2995
    %v2997 = vpop.xlane.xlu0 %2996
    %v2998 = vsel %vm1773, %v2957, 0.0
    %2999 = vadd.xlane.f32.xlu0 %v2998
    %v3000 = vpop.xlane.xlu0 %2999
    %v3001 = vsel %vm1773, %v2959, 0.0
    %3002 = vadd.xlane.f32.xlu0 %v3001
    %v3003 = vpop.xlane.xlu0 %3002
    %v3004 = vsel %vm1773, %v2961, 0.0
    %3005 = vadd.xlane.f32.xlu0 %v3004
    %v3006 = vpop.xlane.xlu0 %3005
    %v3007 = vsel %vm1773, %v2963, 0.0
    %3008 = vadd.xlane.f32.xlu0 %v3007
    %v3009 = vpop.xlane.xlu0 %3008
    %v3010 = vsel %vm1773, %v2965, 0.0
    %3011 = vadd.xlane.f32.xlu0 %v3010
    %v3012 = vpop.xlane.xlu0 %3011
    %v3013 = vsel %vm1773, %v2967, 0.0
    %3014 = vadd.xlane.f32.xlu0 %v3013
    %v3015 = vpop.xlane.xlu0 %3014
    %v3016 = vrcp.pop %v2970
    %v3017 = vrcp.pop %v2973
    %v3018 = vrcp.pop %v2976
    %v3019 = vrcp.pop %v2979
    %v3020 = vrcp.pop %v2982
    %v3021 = vrcp.pop %v2985
    %v3022 = vrcp.pop %v2988
    %v3023 = vrcp.pop %v2991
    %v3024 = vrcp.pop %v2994
    %v3025 = vrcp.pop %v2997
    %v3026 = vrcp.pop %v3000
    %v3027 = vrcp.pop %v3003
    %v3028 = vrcp.pop %v3006
    %v3029 = vrcp.pop %v3009
    %v3030 = vrcp.pop %v3012
    %v3031 = vrcp.pop %v3015
    %v3032 = vmul.f32 %v2937, %v3016
    %v3033 = vmul.f32 %v2939, %v3017
    %v3034 = vmul.f32 %v2941, %v3018
    %v3035 = vmul.f32 %v2943, %v3019
    %v3036 = vmul.f32 %v2945, %v3020
    %v3037 = vmul.f32 %v2947, %v3021
    %v3038 = vmul.f32 %v2949, %v3022
    %v3039 = vmul.f32 %v2951, %v3023
    %v3040 = vmul.f32 %v2953, %v3024
    %v3041 = vmul.f32 %v2955, %v3025
    %v3042 = vmul.f32 %v2957, %v3026
    %v3043 = vmul.f32 %v2959, %v3027
    %v3044 = vmul.f32 %v2961, %v3028
    %v3045 = vmul.f32 %v2963, %v3029
    %v3046 = vmul.f32 %v2965, %v3030
    %v3047 = vmul.f32 %v2967, %v3031
    %v3048 = vld [vmem:[%s9] sm:$0xff]
    %3050 = vset.pattern.permute.xlu0 0
    %3051 = vperm.xlu0 %3050, %v3032
    %v3052 = vpop.permute.xlu0 %3051
    %3055 = vset.pattern.permute.xlu0 0
    %3056 = vperm.xlu0 %3055, %v3033
    %v3057 = vpop.permute.xlu0 %3056
    %3060 = vset.pattern.permute.xlu0 0
    %3061 = vperm.xlu0 %3060, %v3034
    %v3062 = vpop.permute.xlu0 %3061
    %3065 = vset.pattern.permute.xlu0 0
    %3066 = vperm.xlu0 %3065, %v3035
    %v3067 = vpop.permute.xlu0 %3066
    %3070 = vset.pattern.permute.xlu0 0
    %3071 = vperm.xlu0 %3070, %v3036
    %v3072 = vpop.permute.xlu0 %3071
    %3075 = vset.pattern.permute.xlu0 0
    %3076 = vperm.xlu0 %3075, %v3037
    %v3077 = vpop.permute.xlu0 %3076
    %3080 = vset.pattern.permute.xlu0 0
    %3081 = vperm.xlu0 %3080, %v3038
    %v3082 = vpop.permute.xlu0 %3081
    %3085 = vset.pattern.permute.xlu0 0
    %3086 = vperm.xlu0 %3085, %v3039
    %v3087 = vpop.permute.xlu0 %3086
    %3090 = vset.pattern.permute.xlu0 0
    %3091 = vperm.xlu0 %3090, %v3040
    %v3092 = vpop.permute.xlu0 %3091
    %3095 = vset.pattern.permute.xlu0 0
    %3096 = vperm.xlu0 %3095, %v3041
    %v3097 = vpop.permute.xlu0 %3096
    %3100 = vset.pattern.permute.xlu0 0
    %3101 = vperm.xlu0 %3100, %v3042
    %v3102 = vpop.permute.xlu0 %3101
    %3105 = vset.pattern.permute.xlu0 0
    %3106 = vperm.xlu0 %3105, %v3043
    %v3107 = vpop.permute.xlu0 %3106
    %3110 = vset.pattern.permute.xlu0 0
    %3111 = vperm.xlu0 %3110, %v3044
    %v3112 = vpop.permute.xlu0 %3111
    %3115 = vset.pattern.permute.xlu0 0
    %3116 = vperm.xlu0 %3115, %v3045
    %v3117 = vpop.permute.xlu0 %3116
    %3120 = vset.pattern.permute.xlu0 0
    %3121 = vperm.xlu0 %3120, %v3046
    %v3122 = vpop.permute.xlu0 %3121
    %3125 = vset.pattern.permute.xlu0 0
    %3126 = vperm.xlu0 %3125, %v3047
    %v3127 = vpop.permute.xlu0 %3126
    %v3129 = vmul.f32 %v3052, %v2134
    %v3130 = vmul.f32 %v3057, %v2138
    %v3131 = vmul.f32 %v3062, %v2142
    %v3132 = vmul.f32 %v3067, %v2146
    %v3133 = vmul.f32 %v3072, %v2150
    %v3134 = vmul.f32 %v3077, %v2154
    %v3135 = vmul.f32 %v3082, %v2158
    %v3136 = vmul.f32 %v3087, %v2162
    %v3137 = vmul.f32 %v3092, %v2166
    %v3138 = vmul.f32 %v3097, %v2170
    %v3139 = vmul.f32 %v3102, %v2174
    %v3140 = vmul.f32 %v3107, %v2178
    %v3141 = vmul.f32 %v3112, %v2182
    %v3142 = vmul.f32 %v3117, %v2186
    %v3143 = vmul.f32 %v3122, %v2190
    %v3144 = vmul.f32 %v3127, %v2194
    %3146 = vrot.lane.b32.xlu0 %v3048, 112
    %v3147 = vpop.permute.xlu0 %3146
    %3165 = vrot.lane.b32.xlu0 %v3129, 112
    %v3166 = vpop.permute.xlu0 %3165
    %3167 = vrot.lane.b32.xlu0 %v3130, 112
    %v3168 = vpop.permute.xlu0 %3167
    %3169 = vrot.lane.b32.xlu0 %v3131, 112
    %v3170 = vpop.permute.xlu0 %3169
    %3171 = vrot.lane.b32.xlu0 %v3132, 112
    %v3172 = vpop.permute.xlu0 %3171
    %3173 = vrot.lane.b32.xlu0 %v3133, 112
    %v3174 = vpop.permute.xlu0 %3173
    %3175 = vrot.lane.b32.xlu0 %v3134, 112
    %v3176 = vpop.permute.xlu0 %3175
    %3177 = vrot.lane.b32.xlu0 %v3135, 112
    %v3178 = vpop.permute.xlu0 %3177
    %3179 = vrot.lane.b32.xlu0 %v3136, 112
    %v3180 = vpop.permute.xlu0 %3179
    %3181 = vrot.lane.b32.xlu0 %v3137, 112
    %v3182 = vpop.permute.xlu0 %3181
    %3183 = vrot.lane.b32.xlu0 %v3138, 112
    %v3184 = vpop.permute.xlu0 %3183
    %3185 = vrot.lane.b32.xlu0 %v3139, 112
    %v3186 = vpop.permute.xlu0 %3185
    %3187 = vrot.lane.b32.xlu0 %v3140, 112
    %v3188 = vpop.permute.xlu0 %3187
    %3189 = vrot.lane.b32.xlu0 %v3141, 112
    %v3190 = vpop.permute.xlu0 %3189
    %3191 = vrot.lane.b32.xlu0 %v3142, 112
    %v3192 = vpop.permute.xlu0 %3191
    %3193 = vrot.lane.b32.xlu0 %v3143, 112
    %v3194 = vpop.permute.xlu0 %3193
    %3195 = vrot.lane.b32.xlu0 %v3144, 112
    %v3196 = vpop.permute.xlu0 %3195
    %v3213 = vsel %vm1773, %v3032, 0
    %v3215 = vsel %vm1773, %v3033, 0
    %v3217 = vsel %vm1773, %v3034, 0
    %v3219 = vsel %vm1773, %v3035, 0
    %v3221 = vsel %vm1773, %v3036, 0
    %v3223 = vsel %vm1773, %v3037, 0
    %v3225 = vsel %vm1773, %v3038, 0
    %v3227 = vsel %vm1773, %v3039, 0
    %v3229 = vsel %vm1773, %v3040, 0
    %v3231 = vsel %vm1773, %v3041, 0
    %v3233 = vsel %vm1773, %v3042, 0
    %v3235 = vsel %vm1773, %v3043, 0
    %v3237 = vsel %vm1773, %v3044, 0
    %v3239 = vsel %vm1773, %v3045, 0
    %v3241 = vsel %vm1773, %v3046, 0
    %v3243 = vsel %vm1773, %v3047, 0
    %3245 = vmatprep.subr.mxu0 0.0
    %3246 = vmatpush1.msra.mxu0 %v3147
    %3247 = vmatprep.subr.mxu0 0.0
    %3248 = vmatpush1.msra.mxu0 0.0
    %3249 = vmatprep.subr.mxu0 0.0
    %3250 = vmatpush1.msra.mxu0 0.0
    %3251 = vmatprep.subr.mxu0 0.0
    %3252 = vmatpush1.msra.mxu0 0.0
    %3253 = vmatprep.subr.mxu0 0.0
    %3254 = vmatpush1.msra.mxu0 0.0
    %3255 = vmatprep.subr.mxu0 0.0
    %3256 = vmatpush1.msra.mxu0 0.0
    %3257 = vmatprep.subr.mxu0 0.0
    %3258 = vmatpush1.msra.mxu0 0.0
    %3259 = vmatprep.subr.mxu0 0.0
    %3260 = vmatpush1.msra.mxu0 0.0
    %3261 = vmatprep.subr.mxu0 0.0
    %3262 = vmatpush1.msra.mxu0 0.0
    %3263 = vmatprep.subr.mxu0 0.0
    %3264 = vmatpush1.msra.mxu0 0.0
    %3265 = vmatprep.subr.mxu0 0.0
    %3266 = vmatpush1.msra.mxu0 0.0
    %3267 = vmatprep.subr.mxu0 0.0
    %3268 = vmatpush1.msra.mxu0 0.0
    %3269 = vmatprep.subr.mxu0 0.0
    %3270 = vmatpush1.msra.mxu0 0.0
    %3271 = vmatprep.subr.mxu0 0.0
    %3272 = vmatpush1.msra.mxu0 0.0
    %3273 = vmatprep.subr.mxu0 0.0
    %3274 = vmatpush1.msra.mxu0 0.0
    %3275 = vmatprep.subr.mxu0 0.0
    %3276 = vmatpush1.msra.mxu0 0.0
    %3277 = vmatprep.subr.mxu0 0.0
    %3278 = vmatpush1.msra.mxu0 0.0
    %3279 = vmatprep.subr.mxu0 0.0
    %3280 = vmatpush1.msra.mxu0 0.0
    %3281 = vmatprep.subr.mxu0 0.0
    %3282 = vmatpush1.msra.mxu0 0.0
    %3283 = vmatprep.subr.mxu0 0.0
    %3284 = vmatpush1.msra.mxu0 0.0
    %3285 = vmatprep.subr.mxu0 0.0
    %3286 = vmatpush1.msra.mxu0 0.0
    %3287 = vmatprep.subr.mxu0 0.0
    %3288 = vmatpush1.msra.mxu0 0.0
    %3289 = vmatprep.subr.mxu0 0.0
    %3290 = vmatpush1.msra.mxu0 0.0
    %3291 = vmatprep.subr.mxu0 0.0
    %3292 = vmatpush1.msra.mxu0 0.0
    %3293 = vmatprep.subr.mxu0 0.0
    %3294 = vmatpush1.msra.mxu0 0.0
    %3295 = vmatprep.subr.mxu0 0.0
    %3296 = vmatpush1.msra.mxu0 0.0
    %3297 = vmatprep.subr.mxu0 0.0
    %3298 = vmatpush1.msra.mxu0 0.0
    %3299 = vmatprep.subr.mxu0 0.0
    %3300 = vmatpush1.msra.mxu0 0.0
    %3301 = vmatprep.subr.mxu0 0.0
    %3302 = vmatpush1.msra.mxu0 0.0
    %3303 = vmatprep.subr.mxu0 0.0
    %3304 = vmatpush1.msra.mxu0 0.0
    %3305 = vmatprep.subr.mxu0 0.0
    %3306 = vmatpush1.msra.mxu0 0.0
    %3307 = vmatprep.subr.mxu0 0.0
    %3308 = vmatpush1.msra.mxu0 0.0
    %3309 = vmatprep.mubr.f32.mxu0 0.0
    %3310 = vmatmul.mubr.f32.gmra.mrb[0].mxu0 %v3213
    %v3311 = vpop.f32.mrb[0].mxu0
    %v3312 = vadd.f32 %v3166, %v3311
    %v3313 = vpop.f32.mrb[0].mxu0
    %3314 = vmatprep.mubr.f32.mxu0 0.0
    %3315 = vmatmul.mubr.f32.gmra.mrb[0].mxu0 %v3215
    %v3316 = vpop.f32.mrb[0].mxu0
    %v3317 = vadd.f32 %v3168, %v3316
    %v3318 = vpop.f32.mrb[0].mxu0
    %3319 = vmatprep.mubr.f32.mxu0 0.0
    %3320 = vmatmul.mubr.f32.gmra.mrb[0].mxu0 %v3217
    %v3321 = vpop.f32.mrb[0].mxu0
    %v3322 = vadd.f32 %v3170, %v3321
    %v3323 = vpop.f32.mrb[0].mxu0
    %3324 = vmatprep.mubr.f32.mxu0 0.0
    %3325 = vmatmul.mubr.f32.gmra.mrb[0].mxu0 %v3219
    %v3326 = vpop.f32.mrb[0].mxu0
    %v3327 = vadd.f32 %v3172, %v3326
    %v3328 = vpop.f32.mrb[0].mxu0
    %3329 = vmatprep.mubr.f32.mxu0 0.0
    %3330 = vmatmul.mubr.f32.gmra.mrb[0].mxu0 %v3221
    %v3331 = vpop.f32.mrb[0].mxu0
    %v3332 = vadd.f32 %v3174, %v3331
    %v3333 = vpop.f32.mrb[0].mxu0
    %3334 = vmatprep.mubr.f32.mxu0 0.0
    %3335 = vmatmul.mubr.f32.gmra.mrb[0].mxu0 %v3223
    %v3336 = vpop.f32.mrb[0].mxu0
    %v3337 = vadd.f32 %v3176, %v3336
    %v3338 = vpop.f32.mrb[0].mxu0
    %3339 = vmatprep.mubr.f32.mxu0 0.0
    %3340 = vmatmul.mubr.f32.gmra.mrb[0].mxu0 %v3225
    %v3341 = vpop.f32.mrb[0].mxu0
    %v3342 = vadd.f32 %v3178, %v3341
    %v3343 = vpop.f32.mrb[0].mxu0
    %3344 = vmatprep.mubr.f32.mxu0 0.0
    %3345 = vmatmul.mubr.f32.gmra.mrb[0].mxu0 %v3227
    %v3346 = vpop.f32.mrb[0].mxu0
    %v3347 = vadd.f32 %v3180, %v3346
    %v3348 = vpop.f32.mrb[0].mxu0
    %3349 = vmatprep.mubr.f32.mxu0 0.0
    %3350 = vmatmul.mubr.f32.gmra.mrb[0].mxu0 %v3229
    %v3351 = vpop.f32.mrb[0].mxu0
    %v3352 = vadd.f32 %v3182, %v3351
    %v3353 = vpop.f32.mrb[0].mxu0
    %3354 = vmatprep.mubr.f32.mxu0 0.0
    %3355 = vmatmul.mubr.f32.gmra.mrb[0].mxu0 %v3231
    %v3356 = vpop.f32.mrb[0].mxu0
    %v3357 = vadd.f32 %v3184, %v3356
    %v3358 = vpop.f32.mrb[0].mxu0
    %3359 = vmatprep.mubr.f32.mxu0 0.0
    %3360 = vmatmul.mubr.f32.gmra.mrb[0].mxu0 %v3233
    %v3361 = vpop.f32.mrb[0].mxu0
    %v3362 = vadd.f32 %v3186, %v3361
    %v3363 = vpop.f32.mrb[0].mxu0
    %3364 = vmatprep.mubr.f32.mxu0 0.0
    %3365 = vmatmul.mubr.f32.gmra.mrb[0].mxu0 %v3235
    %v3366 = vpop.f32.mrb[0].mxu0
    %v3367 = vadd.f32 %v3188, %v3366
    %v3368 = vpop.f32.mrb[0].mxu0
    %3369 = vmatprep.mubr.f32.mxu0 0.0
    %3370 = vmatmul.mubr.f32.gmra.mrb[0].mxu0 %v3237
    %v3371 = vpop.f32.mrb[0].mxu0
    %v3372 = vadd.f32 %v3190, %v3371
    %v3373 = vpop.f32.mrb[0].mxu0
    %3374 = vmatprep.mubr.f32.mxu0 0.0
    %3375 = vmatmul.mubr.f32.gmra.mrb[0].mxu0 %v3239
    %v3376 = vpop.f32.mrb[0].mxu0
    %v3377 = vadd.f32 %v3192, %v3376
    %v3378 = vpop.f32.mrb[0].mxu0
    %3379 = vmatprep.mubr.f32.mxu0 0.0
    %3380 = vmatmul.mubr.f32.gmra.mrb[0].mxu0 %v3241
    %v3381 = vpop.f32.mrb[0].mxu0
    %v3382 = vadd.f32 %v3194, %v3381
    %v3383 = vpop.f32.mrb[0].mxu0
    %3384 = vmatprep.mubr.f32.mxu0 0.0
    %3385 = vmatmul.mubr.f32.gmra.mrb[0].mxu0 %v3243
    %v3386 = vpop.f32.mrb[0].mxu0
    %v3387 = vadd.f32 %v3196, %v3386
    %v3388 = vpop.f32.mrb[0].mxu0
    %3389 = vdwg.mxu0
    %vm3390 = vcmp.gt.f32.partialorder %v3312, 0.0
    %vm3391 = vcmp.gt.f32.partialorder %v3317, 0.0
    %vm3392 = vcmp.gt.f32.partialorder %v3322, 0.0
    %vm3393 = vcmp.gt.f32.partialorder %v3327, 0.0
    %vm3394 = vcmp.gt.f32.partialorder %v3332, 0.0
    %vm3395 = vcmp.gt.f32.partialorder %v3337, 0.0
    %vm3396 = vcmp.gt.f32.partialorder %v3342, 0.0
    %vm3397 = vcmp.gt.f32.partialorder %v3347, 0.0
    %vm3398 = vcmp.gt.f32.partialorder %v3352, 0.0
    %vm3399 = vcmp.gt.f32.partialorder %v3357, 0.0
    %vm3400 = vcmp.gt.f32.partialorder %v3362, 0.0
    %vm3401 = vcmp.gt.f32.partialorder %v3367, 0.0
    %vm3402 = vcmp.gt.f32.partialorder %v3372, 0.0
    %vm3403 = vcmp.gt.f32.partialorder %v3377, 0.0
    %vm3404 = vcmp.gt.f32.partialorder %v3382, 0.0
    %vm3405 = vcmp.gt.f32.partialorder %v3387, 0.0
    %v3406 = vmin.f32 %v3312, 0.0
    %v3407 = vmin.f32 %v3317, 0.0
    %v3408 = vmin.f32 %v3322, 0.0
    %v3409 = vmin.f32 %v3327, 0.0
    %v3410 = vmin.f32 %v3332, 0.0
    %v3411 = vmin.f32 %v3337, 0.0
    %v3412 = vmin.f32 %v3342, 0.0
    %v3413 = vmin.f32 %v3347, 0.0
    %v3414 = vmin.f32 %v3352, 0.0
    %v3415 = vmin.f32 %v3357, 0.0
    %v3416 = vmin.f32 %v3362, 0.0
    %v3417 = vmin.f32 %v3367, 0.0
    %v3418 = vmin.f32 %v3372, 0.0
    %v3419 = vmin.f32 %v3377, 0.0
    %v3420 = vmin.f32 %v3382, 0.0
    %v3421 = vmin.f32 %v3387, 0.0
    %v3422 = vmul.f32 %v3406, 1.442695
    %v3423 = vpow.pop %v3422
    %v3424 = vmul.f32 %v3407, 1.442695
    %v3425 = vpow.pop %v3424
    %v3426 = vmul.f32 %v3408, 1.442695
    %v3427 = vpow.pop %v3426
    %v3428 = vmul.f32 %v3409, 1.442695
    %v3429 = vpow.pop %v3428
    %v3430 = vmul.f32 %v3410, 1.442695
    %v3431 = vpow.pop %v3430
    %v3432 = vmul.f32 %v3411, 1.442695
    %v3433 = vpow.pop %v3432
    %v3434 = vmul.f32 %v3412, 1.442695
    %v3435 = vpow.pop %v3434
    %v3436 = vmul.f32 %v3413, 1.442695
    %v3437 = vpow.pop %v3436
    %v3438 = vmul.f32 %v3414, 1.442695
    %v3439 = vpow.pop %v3438
    %v3440 = vmul.f32 %v3415, 1.442695
    %v3441 = vpow.pop %v3440
    %v3442 = vmul.f32 %v3416, 1.442695
    %v3443 = vpow.pop %v3442
    %v3444 = vmul.f32 %v3417, 1.442695
    %v3445 = vpow.pop %v3444
    %v3446 = vmul.f32 %v3418, 1.442695
    %v3447 = vpow.pop %v3446
    %v3448 = vmul.f32 %v3419, 1.442695
    %v3449 = vpow.pop %v3448
    %v3450 = vmul.f32 %v3420, 1.442695
    %v3451 = vpow.pop %v3450
    %v3452 = vmul.f32 %v3421, 1.442695
    %v3453 = vpow.pop %v3452
    %v3454 = vsub.f32 %v3423, 1.0
    %v3455 = vsub.f32 %v3425, 1.0
    %v3456 = vsub.f32 %v3427, 1.0
    %v3457 = vsub.f32 %v3429, 1.0
    %v3458 = vsub.f32 %v3431, 1.0
    %v3459 = vsub.f32 %v3433, 1.0
    %v3460 = vsub.f32 %v3435, 1.0
    %v3461 = vsub.f32 %v3437, 1.0
    %v3462 = vsub.f32 %v3439, 1.0
    %v3463 = vsub.f32 %v3441, 1.0
    %v3464 = vsub.f32 %v3443, 1.0
    %v3465 = vsub.f32 %v3445, 1.0
    %v3466 = vsub.f32 %v3447, 1.0
    %v3467 = vsub.f32 %v3449, 1.0
    %v3468 = vsub.f32 %v3451, 1.0
    %v3469 = vsub.f32 %v3453, 1.0
    %v3470 = vsel %vm3390, %v3312, %v3454
    %v3471 = vsel %vm3391, %v3317, %v3455
    %v3472 = vsel %vm3392, %v3322, %v3456
    %v3473 = vsel %vm3393, %v3327, %v3457
    %v3474 = vsel %vm3394, %v3332, %v3458
    %v3475 = vsel %vm3395, %v3337, %v3459
    %v3476 = vsel %vm3396, %v3342, %v3460
    %v3477 = vsel %vm3397, %v3347, %v3461
    %v3478 = vsel %vm3398, %v3352, %v3462
    %v3479 = vsel %vm3399, %v3357, %v3463
    %v3480 = vsel %vm3400, %v3362, %v3464
    %v3481 = vsel %vm3401, %v3367, %v3465
    %v3482 = vsel %vm3402, %v3372, %v3466
    %v3483 = vsel %vm3403, %v3377, %v3467
    %v3484 = vsel %vm3404, %v3382, %v3468
    %v3485 = vsel %vm3405, %v3387, %v3469
    %v3486 = vld [vmem:[%s10] sm:$0xff]
    %v3487 = vsel %vm1302, %v1306, %v3486
    %v3488 = vsel %vm1302, %v1310, %v3486
    %v3489 = vsel %vm1302, %v1314, %v3486
    %v3490 = vsel %vm1302, %v1318, %v3486
    %v3491 = vsel %vm1302, %v1322, %v3486
    %v3492 = vsel %vm1302, %v1326, %v3486
    %v3493 = vsel %vm1302, %v1330, %v3486
    %v3494 = vsel %vm1302, %v1334, %v3486
    %v3495 = vsel %vm1302, %v1338, %v3486
    %v3496 = vsel %vm1302, %v1342, %v3486
    %v3497 = vsel %vm1302, %v1346, %v3486
    %v3498 = vsel %vm1302, %v1350, %v3486
    %v3499 = vsel %vm1302, %v1354, %v3486
    %v3500 = vsel %vm1302, %v1358, %v3486
    %v3501 = vsel %vm1302, %v1362, %v3486
    %v3502 = vsel %vm1302, %v1366, %v3486
    %v3503 = vld [vmem:[%s11 + $0x2] sm:$0x1]
    %3504 = vset.pattern.permute.xlu0 6
    %3505 = vperm.xlu0 %3504, %v1169
    %v3506 = vpop.permute.xlu0 %3505
    %3508 = vset.pattern.permute.xlu0 6
    %3509 = vperm.xlu0 %3508, %v1174
    %v3510 = vpop.permute.xlu0 %3509
    %v3512 = vlaneseq
    %v3513 = vshrl.u32 %v3512, 7
    %v3514 = vsub.s32 0, %v3513
    %v3515 = vrot.slane %v3503, %v3514
    %v3516 = vsel %vm1402, %v3506, %v3515
    %v3517 = vsel %vm1402, %v3510, %v3515
    %v3520 = vcombine.high %v3516, %v3516
    %v3522 = vunpack.c.l.s4 1966171168
    %v3523 = vunpack.c.0.s8 %v3522
    %v3524 = vlaneseq
    %v3525 = vshrl.u32 %v3524, 7
    %v3526 = vsub.s32 %v3523, %v3525
    %v3527 = vrot.slane %v3516, %v3526
    %v3529 = vunpack.c.l.s4 1966171168
    %v3530 = vunpack.c.0.s8 %v3529
    %v3531 = vlaneseq
    %v3532 = vshrl.u32 %v3531, 7
    %v3533 = vsub.s32 %v3530, %v3532
    %v3534 = vrot.slane %v3520, %v3533
    %v3535 = vcombine.high %v3527, %v3527
    %v3536 = vcombine.high %v3534, %v3534
    %v3538 = vunpack.c.l.s4 1966171168
    %v3539 = vunpack.c.0.s8 %v3538
    %v3540 = vlaneseq
    %v3541 = vshrl.u32 %v3540, 7
    %v3542 = vsub.s32 %v3539, %v3541
    %v3543 = vrot.slane %v3527, %v3542
    %v3545 = vunpack.c.l.s4 1966171168
    %v3546 = vunpack.c.0.s8 %v3545
    %v3547 = vlaneseq
    %v3548 = vshrl.u32 %v3547, 7
    %v3549 = vsub.s32 %v3546, %v3548
    %v3550 = vrot.slane %v3534, %v3549
    %v3552 = vunpack.c.l.s4 1966171168
    %v3553 = vunpack.c.0.s8 %v3552
    %v3554 = vlaneseq
    %v3555 = vshrl.u32 %v3554, 7
    %v3556 = vsub.s32 %v3553, %v3555
    %v3557 = vrot.slane %v3535, %v3556
    %v3559 = vunpack.c.l.s4 1966171168
    %v3560 = vunpack.c.0.s8 %v3559
    %v3561 = vlaneseq
    %v3562 = vshrl.u32 %v3561, 7
    %v3563 = vsub.s32 %v3560, %v3562
    %v3564 = vrot.slane %v3536, %v3563
    %v3565 = vcombine.high %v3543, %v3543
    %v3566 = vcombine.high %v3550, %v3550
    %v3567 = vcombine.high %v3557, %v3557
    %v3568 = vcombine.high %v3564, %v3564
    %v3569 = vcombine.high %v3517, %v3517
    %v3571 = vunpack.c.l.s4 1966171168
    %v3572 = vunpack.c.0.s8 %v3571
    %v3573 = vlaneseq
    %v3574 = vshrl.u32 %v3573, 7
    %v3575 = vsub.s32 %v3572, %v3574
    %v3576 = vrot.slane %v3517, %v3575
    %v3578 = vunpack.c.l.s4 1966171168
    %v3579 = vunpack.c.0.s8 %v3578
    %v3580 = vlaneseq
    %v3581 = vshrl.u32 %v3580, 7
    %v3582 = vsub.s32 %v3579, %v3581
    %v3583 = vrot.slane %v3569, %v3582
    %v3584 = vcombine.high %v3576, %v3576
    %v3585 = vcombine.high %v3583, %v3583
    %v3587 = vunpack.c.l.s4 1966171168
    %v3588 = vunpack.c.0.s8 %v3587
    %v3589 = vlaneseq
    %v3590 = vshrl.u32 %v3589, 7
    %v3591 = vsub.s32 %v3588, %v3590
    %v3592 = vrot.slane %v3576, %v3591
    %v3594 = vunpack.c.l.s4 1966171168
    %v3595 = vunpack.c.0.s8 %v3594
    %v3596 = vlaneseq
    %v3597 = vshrl.u32 %v3596, 7
    %v3598 = vsub.s32 %v3595, %v3597
    %v3599 = vrot.slane %v3583, %v3598
    %v3601 = vunpack.c.l.s4 1966171168
    %v3602 = vunpack.c.0.s8 %v3601
    %v3603 = vlaneseq
    %v3604 = vshrl.u32 %v3603, 7
    %v3605 = vsub.s32 %v3602, %v3604
    %v3606 = vrot.slane %v3584, %v3605
    %v3608 = vunpack.c.l.s4 1966171168
    %v3609 = vunpack.c.0.s8 %v3608
    %v3610 = vlaneseq
    %v3611 = vshrl.u32 %v3610, 7
    %v3612 = vsub.s32 %v3609, %v3611
    %v3613 = vrot.slane %v3585, %v3612
    %v3614 = vcombine.high %v3592, %v3592
    %v3615 = vcombine.high %v3599, %v3599
    %v3616 = vcombine.high %v3606, %v3606
    %v3617 = vcombine.high %v3613, %v3613
    %3619 = vset.pattern.permute.xlu0 2
    %3620 = vperm.xlu0 %3619, %v3487
    %v3621 = vpop.permute.xlu0 %3620
    %3624 = vset.pattern.permute.xlu0 2
    %3625 = vperm.xlu0 %3624, %v3488
    %v3626 = vpop.permute.xlu0 %3625
    %3629 = vset.pattern.permute.xlu0 2
    %3630 = vperm.xlu0 %3629, %v3489
    %v3631 = vpop.permute.xlu0 %3630
    %3634 = vset.pattern.permute.xlu0 2
    %3635 = vperm.xlu0 %3634, %v3490
    %v3636 = vpop.permute.xlu0 %3635
    %3639 = vset.pattern.permute.xlu0 2
    %3640 = vperm.xlu0 %3639, %v3491
    %v3641 = vpop.permute.xlu0 %3640
    %3644 = vset.pattern.permute.xlu0 2
    %3645 = vperm.xlu0 %3644, %v3492
    %v3646 = vpop.permute.xlu0 %3645
    %3649 = vset.pattern.permute.xlu0 2
    %3650 = vperm.xlu0 %3649, %v3493
    %v3651 = vpop.permute.xlu0 %3650
    %3654 = vset.pattern.permute.xlu0 2
    %3655 = vperm.xlu0 %3654, %v3494
    %v3656 = vpop.permute.xlu0 %3655
    %3659 = vset.pattern.permute.xlu0 2
    %3660 = vperm.xlu0 %3659, %v3495
    %v3661 = vpop.permute.xlu0 %3660
    %3664 = vset.pattern.permute.xlu0 2
    %3665 = vperm.xlu0 %3664, %v3496
    %v3666 = vpop.permute.xlu0 %3665
    %3669 = vset.pattern.permute.xlu0 2
    %3670 = vperm.xlu0 %3669, %v3497
    %v3671 = vpop.permute.xlu0 %3670
    %3674 = vset.pattern.permute.xlu0 2
    %3675 = vperm.xlu0 %3674, %v3498
    %v3676 = vpop.permute.xlu0 %3675
    %3679 = vset.pattern.permute.xlu0 2
    %3680 = vperm.xlu0 %3679, %v3499
    %v3681 = vpop.permute.xlu0 %3680
    %3684 = vset.pattern.permute.xlu0 2
    %3685 = vperm.xlu0 %3684, %v3500
    %v3686 = vpop.permute.xlu0 %3685
    %3689 = vset.pattern.permute.xlu0 2
    %3690 = vperm.xlu0 %3689, %v3501
    %v3691 = vpop.permute.xlu0 %3690
    %3694 = vset.pattern.permute.xlu0 2
    %3695 = vperm.xlu0 %3694, %v3502
    %v3696 = vpop.permute.xlu0 %3695
    %v3698 = vlaneseq
    %v3699 = vshrl.u32 %v3698, 7
    %v3700 = vsub.s32 0, %v3699
    %v3701 = vrot.slane %v3543, %v3700
    %v3702 = vlaneseq
    %v3703 = vshrl.u32 %v3702, 7
    %v3704 = vsub.s32 0, %v3703
    %v3705 = vrot.slane %v3557, %v3704
    %v3706 = vlaneseq
    %v3707 = vshrl.u32 %v3706, 7
    %v3708 = vsub.s32 0, %v3707
    %v3709 = vrot.slane %v3565, %v3708
    %v3710 = vlaneseq
    %v3711 = vshrl.u32 %v3710, 7
    %v3712 = vsub.s32 0, %v3711
    %v3713 = vrot.slane %v3567, %v3712
    %v3714 = vlaneseq
    %v3715 = vshrl.u32 %v3714, 7
    %v3716 = vsub.s32 0, %v3715
    %v3717 = vrot.slane %v3550, %v3716
    %v3718 = vlaneseq
    %v3719 = vshrl.u32 %v3718, 7
    %v3720 = vsub.s32 0, %v3719
    %v3721 = vrot.slane %v3564, %v3720
    %v3722 = vlaneseq
    %v3723 = vshrl.u32 %v3722, 7
    %v3724 = vsub.s32 0, %v3723
    %v3725 = vrot.slane %v3566, %v3724
    %v3726 = vlaneseq
    %v3727 = vshrl.u32 %v3726, 7
    %v3728 = vsub.s32 0, %v3727
    %v3729 = vrot.slane %v3568, %v3728
    %v3730 = vlaneseq
    %v3731 = vshrl.u32 %v3730, 7
    %v3732 = vsub.s32 0, %v3731
    %v3733 = vrot.slane %v3592, %v3732
    %v3734 = vlaneseq
    %v3735 = vshrl.u32 %v3734, 7
    %v3736 = vsub.s32 0, %v3735
    %v3737 = vrot.slane %v3606, %v3736
    %v3738 = vlaneseq
    %v3739 = vshrl.u32 %v3738, 7
    %v3740 = vsub.s32 0, %v3739
    %v3741 = vrot.slane %v3614, %v3740
    %v3742 = vlaneseq
    %v3743 = vshrl.u32 %v3742, 7
    %v3744 = vsub.s32 0, %v3743
    %v3745 = vrot.slane %v3616, %v3744
    %v3746 = vlaneseq
    %v3747 = vshrl.u32 %v3746, 7
    %v3748 = vsub.s32 0, %v3747
    %v3749 = vrot.slane %v3599, %v3748
    %v3750 = vlaneseq
    %v3751 = vshrl.u32 %v3750, 7
    %v3752 = vsub.s32 0, %v3751
    %v3753 = vrot.slane %v3613, %v3752
    %v3754 = vlaneseq
    %v3755 = vshrl.u32 %v3754, 7
    %v3756 = vsub.s32 0, %v3755
    %v3757 = vrot.slane %v3615, %v3756
    %v3758 = vlaneseq
    %v3759 = vshrl.u32 %v3758, 7
    %v3760 = vsub.s32 0, %v3759
    %v3761 = vrot.slane %v3617, %v3760
    %v3778 = vadd.f32 %v3621, %v3701
    %v3779 = vadd.f32 %v3626, %v3705
    %v3780 = vadd.f32 %v3631, %v3709
    %v3781 = vadd.f32 %v3636, %v3713
    %v3782 = vadd.f32 %v3641, %v3717
    %v3783 = vadd.f32 %v3646, %v3721
    %v3784 = vadd.f32 %v3651, %v3725
    %v3785 = vadd.f32 %v3656, %v3729
    %v3786 = vadd.f32 %v3661, %v3733
    %v3787 = vadd.f32 %v3666, %v3737
    %v3788 = vadd.f32 %v3671, %v3741
    %v3789 = vadd.f32 %v3676, %v3745
    %v3790 = vadd.f32 %v3681, %v3749
    %v3791 = vadd.f32 %v3686, %v3753
    %v3792 = vadd.f32 %v3691, %v3757
    %v3793 = vadd.f32 %v3696, %v3761
    %vm3794 = vcmp.gt.f32.partialorder %v3778, 0.0
    %vm3795 = vcmp.gt.f32.partialorder %v3779, 0.0
    %vm3796 = vcmp.gt.f32.partialorder %v3780, 0.0
    %vm3797 = vcmp.gt.f32.partialorder %v3781, 0.0
    %vm3798 = vcmp.gt.f32.partialorder %v3782, 0.0
    %vm3799 = vcmp.gt.f32.partialorder %v3783, 0.0
    %vm3800 = vcmp.gt.f32.partialorder %v3784, 0.0
    %vm3801 = vcmp.gt.f32.partialorder %v3785, 0.0
    %vm3802 = vcmp.gt.f32.partialorder %v3786, 0.0
    %vm3803 = vcmp.gt.f32.partialorder %v3787, 0.0
    %vm3804 = vcmp.gt.f32.partialorder %v3788, 0.0
    %vm3805 = vcmp.gt.f32.partialorder %v3789, 0.0
    %vm3806 = vcmp.gt.f32.partialorder %v3790, 0.0
    %vm3807 = vcmp.gt.f32.partialorder %v3791, 0.0
    %vm3808 = vcmp.gt.f32.partialorder %v3792, 0.0
    %vm3809 = vcmp.gt.f32.partialorder %v3793, 0.0
    %v3810 = vmul.f32 %v3778, 0.2
    %v3811 = vmul.f32 %v3779, 0.2
    %v3812 = vmul.f32 %v3780, 0.2
    %v3813 = vmul.f32 %v3781, 0.2
    %v3814 = vmul.f32 %v3782, 0.2
    %v3815 = vmul.f32 %v3783, 0.2
    %v3816 = vmul.f32 %v3784, 0.2
    %v3817 = vmul.f32 %v3785, 0.2
    %v3818 = vmul.f32 %v3786, 0.2
    %v3819 = vmul.f32 %v3787, 0.2
    %v3820 = vmul.f32 %v3788, 0.2
    %v3821 = vmul.f32 %v3789, 0.2
    %v3822 = vmul.f32 %v3790, 0.2
    %v3823 = vmul.f32 %v3791, 0.2
    %v3824 = vmul.f32 %v3792, 0.2
    %v3825 = vmul.f32 %v3793, 0.2
    %v3826 = vsel %vm3794, %v3778, %v3810
    %v3827 = vsel %vm3795, %v3779, %v3811
    %v3828 = vsel %vm3796, %v3780, %v3812
    %v3829 = vsel %vm3797, %v3781, %v3813
    %v3830 = vsel %vm3798, %v3782, %v3814
    %v3831 = vsel %vm3799, %v3783, %v3815
    %v3832 = vsel %vm3800, %v3784, %v3816
    %v3833 = vsel %vm3801, %v3785, %v3817
    %v3834 = vsel %vm3802, %v3786, %v3818
    %v3835 = vsel %vm3803, %v3787, %v3819
    %v3836 = vsel %vm3804, %v3788, %v3820
    %v3837 = vsel %vm3805, %v3789, %v3821
    %v3838 = vsel %vm3806, %v3790, %v3822
    %v3839 = vsel %vm3807, %v3791, %v3823
    %v3840 = vsel %vm3808, %v3792, %v3824
    %v3841 = vsel %vm3809, %v3793, %v3825
    %v3842 = vsel %vm1741, %v3826, -9e+15
    %v3843 = vsel %vm1742, %v3827, -9e+15
    %v3844 = vsel %vm1743, %v3828, -9e+15
    %v3845 = vsel %vm1744, %v3829, -9e+15
    %v3846 = vsel %vm1745, %v3830, -9e+15
    %v3847 = vsel %vm1746, %v3831, -9e+15
    %v3848 = vsel %vm1747, %v3832, -9e+15
    %v3849 = vsel %vm1748, %v3833, -9e+15
    %v3850 = vsel %vm1749, %v3834, -9e+15
    %v3851 = vsel %vm1750, %v3835, -9e+15
    %v3852 = vsel %vm1751, %v3836, -9e+15
    %v3853 = vsel %vm1752, %v3837, -9e+15
    %v3854 = vsel %vm1753, %v3838, -9e+15
    %v3855 = vsel %vm1754, %v3839, -9e+15
    %v3856 = vsel %vm1755, %v3840, -9e+15
    %v3857 = vsel %vm1756, %v3841, -9e+15
    %v3858 = vsel %vm1773, %v3842, -inf
    %3859 = vmax.xlane.f32.xlu0 %v3858
    %v3860 = vpop.xlane.xlu0 %3859
    %v3861 = vsel %vm1773, %v3843, -inf
    %3862 = vmax.xlane.f32.xlu0 %v3861
    %v3863 = vpop.xlane.xlu0 %3862
    %v3864 = vsel %vm1773, %v3844, -inf
    %3865 = vmax.xlane.f32.xlu0 %v3864
    %v3866 = vpop.xlane.xlu0 %3865
    %v3867 = vsel %vm1773, %v3845, -inf
    %3868 = vmax.xlane.f32.xlu0 %v3867
    %v3869 = vpop.xlane.xlu0 %3868
    %v3870 = vsel %vm1773, %v3846, -inf
    %3871 = vmax.xlane.f32.xlu0 %v3870
    %v3872 = vpop.xlane.xlu0 %3871
    %v3873 = vsel %vm1773, %v3847, -inf
    %3874 = vmax.xlane.f32.xlu0 %v3873
    %v3875 = vpop.xlane.xlu0 %3874
    %v3876 = vsel %vm1773, %v3848, -inf
    %3877 = vmax.xlane.f32.xlu0 %v3876
    %v3878 = vpop.xlane.xlu0 %3877
    %v3879 = vsel %vm1773, %v3849, -inf
    %3880 = vmax.xlane.f32.xlu0 %v3879
    %v3881 = vpop.xlane.xlu0 %3880
    %v3882 = vsel %vm1773, %v3850, -inf
    %3883 = vmax.xlane.f32.xlu0 %v3882
    %v3884 = vpop.xlane.xlu0 %3883
    %v3885 = vsel %vm1773, %v3851, -inf
    %3886 = vmax.xlane.f32.xlu0 %v3885
    %v3887 = vpop.xlane.xlu0 %3886
    %v3888 = vsel %vm1773, %v3852, -inf
    %3889 = vmax.xlane.f32.xlu0 %v3888
    %v3890 = vpop.xlane.xlu0 %3889
    %v3891 = vsel %vm1773, %v3853, -inf
    %3892 = vmax.xlane.f32.xlu0 %v3891
    %v3893 = vpop.xlane.xlu0 %3892
    %v3894 = vsel %vm1773, %v3854, -inf
    %3895 = vmax.xlane.f32.xlu0 %v3894
    %v3896 = vpop.xlane.xlu0 %3895
    %v3897 = vsel %vm1773, %v3855, -inf
    %3898 = vmax.xlane.f32.xlu0 %v3897
    %v3899 = vpop.xlane.xlu0 %3898
    %v3900 = vsel %vm1773, %v3856, -inf
    %3901 = vmax.xlane.f32.xlu0 %v3900
    %v3902 = vpop.xlane.xlu0 %3901
    %v3903 = vsel %vm1773, %v3857, -inf
    %3904 = vmax.xlane.f32.xlu0 %v3903
    %v3905 = vpop.xlane.xlu0 %3904
    %v3906 = vsub.f32 %v3842, %v3860
    %v3907 = vsub.f32 %v3843, %v3863
    %v3908 = vsub.f32 %v3844, %v3866
    %v3909 = vsub.f32 %v3845, %v3869
    %v3910 = vsub.f32 %v3846, %v3872
    %v3911 = vsub.f32 %v3847, %v3875
    %v3912 = vsub.f32 %v3848, %v3878
    %v3913 = vsub.f32 %v3849, %v3881
    %v3914 = vsub.f32 %v3850, %v3884
    %v3915 = vsub.f32 %v3851, %v3887
    %v3916 = vsub.f32 %v3852, %v3890
    %v3917 = vsub.f32 %v3853, %v3893
    %v3918 = vsub.f32 %v3854, %v3896
    %v3919 = vsub.f32 %v3855, %v3899
    %v3920 = vsub.f32 %v3856, %v3902
    %v3921 = vsub.f32 %v3857, %v3905
    %v3922 = vmul.f32 %v3906, 1.442695
    %v3923 = vpow.pop %v3922
    %v3924 = vmul.f32 %v3907, 1.442695
    %v3925 = vpow.pop %v3924
    %v3926 = vmul.f32 %v3908, 1.442695
    %v3927 = vpow.pop %v3926
    %v3928 = vmul.f32 %v3909, 1.442695
    %v3929 = vpow.pop %v3928
    %v3930 = vmul.f32 %v3910, 1.442695
    %v3931 = vpow.pop %v3930
    %v3932 = vmul.f32 %v3911, 1.442695
    %v3933 = vpow.pop %v3932
    %v3934 = vmul.f32 %v3912, 1.442695
    %v3935 = vpow.pop %v3934
    %v3936 = vmul.f32 %v3913, 1.442695
    %v3937 = vpow.pop %v3936
    %v3938 = vmul.f32 %v3914, 1.442695
    %v3939 = vpow.pop %v3938
    %v3940 = vmul.f32 %v3915, 1.442695
    %v3941 = vpow.pop %v3940
    %v3942 = vmul.f32 %v3916, 1.442695
    %v3943 = vpow.pop %v3942
    %v3944 = vmul.f32 %v3917, 1.442695
    %v3945 = vpow.pop %v3944
    %v3946 = vmul.f32 %v3918, 1.442695
    %v3947 = vpow.pop %v3946
    %v3948 = vmul.f32 %v3919, 1.442695
    %v3949 = vpow.pop %v3948
    %v3950 = vmul.f32 %v3920, 1.442695
    %v3951 = vpow.pop %v3950
    %v3952 = vmul.f32 %v3921, 1.442695
    %v3953 = vpow.pop %v3952
    %v3954 = vsel %vm1773, %v3923, 0.0
    %3955 = vadd.xlane.f32.xlu0 %v3954
    %v3956 = vpop.xlane.xlu0 %3955
    %v3957 = vsel %vm1773, %v3925, 0.0
    %3958 = vadd.xlane.f32.xlu0 %v3957
    %v3959 = vpop.xlane.xlu0 %3958
    %v3960 = vsel %vm1773, %v3927, 0.0
    %3961 = vadd.xlane.f32.xlu0 %v3960
    %v3962 = vpop.xlane.xlu0 %3961
    %v3963 = vsel %vm1773, %v3929, 0.0
    %3964 = vadd.xlane.f32.xlu0 %v3963
    %v3965 = vpop.xlane.xlu0 %3964
    %v3966 = vsel %vm1773, %v3931, 0.0
    %3967 = vadd.xlane.f32.xlu0 %v3966
    %v3968 = vpop.xlane.xlu0 %3967
    %v3969 = vsel %vm1773, %v3933, 0.0
    %3970 = vadd.xlane.f32.xlu0 %v3969
    %v3971 = vpop.xlane.xlu0 %3970
    %v3972 = vsel %vm1773, %v3935, 0.0
    %3973 = vadd.xlane.f32.xlu0 %v3972
    %v3974 = vpop.xlane.xlu0 %3973
    %v3975 = vsel %vm1773, %v3937, 0.0
    %3976 = vadd.xlane.f32.xlu0 %v3975
    %v3977 = vpop.xlane.xlu0 %3976
    %v3978 = vsel %vm1773, %v3939, 0.0
    %3979 = vadd.xlane.f32.xlu0 %v3978
    %v3980 = vpop.xlane.xlu0 %3979
    %v3981 = vsel %vm1773, %v3941, 0.0
    %3982 = vadd.xlane.f32.xlu0 %v3981
    %v3983 = vpop.xlane.xlu0 %3982
    %v3984 = vsel %vm1773, %v3943, 0.0
    %3985 = vadd.xlane.f32.xlu0 %v3984
    %v3986 = vpop.xlane.xlu0 %3985
    %v3987 = vsel %vm1773, %v3945, 0.0
    %3988 = vadd.xlane.f32.xlu0 %v3987
    %v3989 = vpop.xlane.xlu0 %3988
    %v3990 = vsel %vm1773, %v3947, 0.0
    %3991 = vadd.xlane.f32.xlu0 %v3990
    %v3992 = vpop.xlane.xlu0 %3991
    %v3993 = vsel %vm1773, %v3949, 0.0
    %3994 = vadd.xlane.f32.xlu0 %v3993
    %v3995 = vpop.xlane.xlu0 %3994
    %v3996 = vsel %vm1773, %v3951, 0.0
    %3997 = vadd.xlane.f32.xlu0 %v3996
    %v3998 = vpop.xlane.xlu0 %3997
    %v3999 = vsel %vm1773, %v3953, 0.0
    %4000 = vadd.xlane.f32.xlu0 %v3999
    %v4001 = vpop.xlane.xlu0 %4000
    %v4002 = vrcp.pop %v3956
    %v4003 = vrcp.pop %v3959
    %v4004 = vrcp.pop %v3962
    %v4005 = vrcp.pop %v3965
    %v4006 = vrcp.pop %v3968
    %v4007 = vrcp.pop %v3971
    %v4008 = vrcp.pop %v3974
    %v4009 = vrcp.pop %v3977
    %v4010 = vrcp.pop %v3980
    %v4011 = vrcp.pop %v3983
    %v4012 = vrcp.pop %v3986
    %v4013 = vrcp.pop %v3989
    %v4014 = vrcp.pop %v3992
    %v4015 = vrcp.pop %v3995
    %v4016 = vrcp.pop %v3998
    %v4017 = vrcp.pop %v4001
    %v4018 = vmul.f32 %v3923, %v4002
    %v4019 = vmul.f32 %v3925, %v4003
    %v4020 = vmul.f32 %v3927, %v4004
    %v4021 = vmul.f32 %v3929, %v4005
    %v4022 = vmul.f32 %v3931, %v4006
    %v4023 = vmul.f32 %v3933, %v4007
    %v4024 = vmul.f32 %v3935, %v4008
    %v4025 = vmul.f32 %v3937, %v4009
    %v4026 = vmul.f32 %v3939, %v4010
    %v4027 = vmul.f32 %v3941, %v4011
    %v4028 = vmul.f32 %v3943, %v4012
    %v4029 = vmul.f32 %v3945, %v4013
    %v4030 = vmul.f32 %v3947, %v4014
    %v4031 = vmul.f32 %v3949, %v4015
    %v4032 = vmul.f32 %v3951, %v4016
    %v4033 = vmul.f32 %v3953, %v4017
    %v4034 = vld [vmem:[%s9] sm:$0xff]
    %4036 = vset.pattern.permute.xlu0 0
    %4037 = vperm.xlu0 %4036, %v4018
    %v4038 = vpop.permute.xlu0 %4037
    %4041 = vset.pattern.permute.xlu0 0
    %4042 = vperm.xlu0 %4041, %v4019
    %v4043 = vpop.permute.xlu0 %4042
    %4046 = vset.pattern.permute.xlu0 0
    %4047 = vperm.xlu0 %4046, %v4020
    %v4048 = vpop.permute.xlu0 %4047
    %4051 = vset.pattern.permute.xlu0 0
    %4052 = vperm.xlu0 %4051, %v4021
    %v4053 = vpop.permute.xlu0 %4052
    %4056 = vset.pattern.permute.xlu0 0
    %4057 = vperm.xlu0 %4056, %v4022
    %v4058 = vpop.permute.xlu0 %4057
    %4061 = vset.pattern.permute.xlu0 0
    %4062 = vperm.xlu0 %4061, %v4023
    %v4063 = vpop.permute.xlu0 %4062
    %4066 = vset.pattern.permute.xlu0 0
    %4067 = vperm.xlu0 %4066, %v4024
    %v4068 = vpop.permute.xlu0 %4067
    %4071 = vset.pattern.permute.xlu0 0
    %4072 = vperm.xlu0 %4071, %v4025
    %v4073 = vpop.permute.xlu0 %4072
    %4076 = vset.pattern.permute.xlu0 0
    %4077 = vperm.xlu0 %4076, %v4026
    %v4078 = vpop.permute.xlu0 %4077
    %4081 = vset.pattern.permute.xlu0 0
    %4082 = vperm.xlu0 %4081, %v4027
    %v4083 = vpop.permute.xlu0 %4082
    %4086 = vset.pattern.permute.xlu0 0
    %4087 = vperm.xlu0 %4086, %v4028
    %v4088 = vpop.permute.xlu0 %4087
    %4091 = vset.pattern.permute.xlu0 0
    %4092 = vperm.xlu0 %4091, %v4029
    %v4093 = vpop.permute.xlu0 %4092
    %4096 = vset.pattern.permute.xlu0 0
    %4097 = vperm.xlu0 %4096, %v4030
    %v4098 = vpop.permute.xlu0 %4097
    %4101 = vset.pattern.permute.xlu0 0
    %4102 = vperm.xlu0 %4101, %v4031
    %v4103 = vpop.permute.xlu0 %4102
    %4106 = vset.pattern.permute.xlu0 0
    %4107 = vperm.xlu0 %4106, %v4032
    %v4108 = vpop.permute.xlu0 %4107
    %4111 = vset.pattern.permute.xlu0 0
    %4112 = vperm.xlu0 %4111, %v4033
    %v4113 = vpop.permute.xlu0 %4112
    %v4115 = vmul.f32 %v4038, %v2134
    %v4116 = vmul.f32 %v4043, %v2138
    %v4117 = vmul.f32 %v4048, %v2142
    %v4118 = vmul.f32 %v4053, %v2146
    %v4119 = vmul.f32 %v4058, %v2150
    %v4120 = vmul.f32 %v4063, %v2154
    %v4121 = vmul.f32 %v4068, %v2158
    %v4122 = vmul.f32 %v4073, %v2162
    %v4123 = vmul.f32 %v4078, %v2166
    %v4124 = vmul.f32 %v4083, %v2170
    %v4125 = vmul.f32 %v4088, %v2174
    %v4126 = vmul.f32 %v4093, %v2178
    %v4127 = vmul.f32 %v4098, %v2182
    %v4128 = vmul.f32 %v4103, %v2186
    %v4129 = vmul.f32 %v4108, %v2190
    %v4130 = vmul.f32 %v4113, %v2194
    %4132 = vrot.lane.b32.xlu0 %v4034, 96
    %v4133 = vpop.permute.xlu0 %4132
    %4151 = vrot.lane.b32.xlu0 %v4115, 96
    %v4152 = vpop.permute.xlu0 %4151
    %4153 = vrot.lane.b32.xlu0 %v4116, 96
    %v4154 = vpop.permute.xlu0 %4153
    %4155 = vrot.lane.b32.xlu0 %v4117, 96
    %v4156 = vpop.permute.xlu0 %4155
    %4157 = vrot.lane.b32.xlu0 %v4118, 96
    %v4158 = vpop.permute.xlu0 %4157
    %4159 = vrot.lane.b32.xlu0 %v4119, 96
    %v4160 = vpop.permute.xlu0 %4159
    %4161 = vrot.lane.b32.xlu0 %v4120, 96
    %v4162 = vpop.permute.xlu0 %4161
    %4163 = vrot.lane.b32.xlu0 %v4121, 96
    %v4164 = vpop.permute.xlu0 %4163
    %4165 = vrot.lane.b32.xlu0 %v4122, 96
    %v4166 = vpop.permute.xlu0 %4165
    %4167 = vrot.lane.b32.xlu0 %v4123, 96
    %v4168 = vpop.permute.xlu0 %4167
    %4169 = vrot.lane.b32.xlu0 %v4124, 96
    %v4170 = vpop.permute.xlu0 %4169
    %4171 = vrot.lane.b32.xlu0 %v4125, 96
    %v4172 = vpop.permute.xlu0 %4171
    %4173 = vrot.lane.b32.xlu0 %v4126, 96
    %v4174 = vpop.permute.xlu0 %4173
    %4175 = vrot.lane.b32.xlu0 %v4127, 96
    %v4176 = vpop.permute.xlu0 %4175
    %4177 = vrot.lane.b32.xlu0 %v4128, 96
    %v4178 = vpop.permute.xlu0 %4177
    %4179 = vrot.lane.b32.xlu0 %v4129, 96
    %v4180 = vpop.permute.xlu0 %4179
    %4181 = vrot.lane.b32.xlu0 %v4130, 96
    %v4182 = vpop.permute.xlu0 %4181
    %v4199 = vsel %vm1773, %v4018, 0
    %v4201 = vsel %vm1773, %v4019, 0
    %v4203 = vsel %vm1773, %v4020, 0
    %v4205 = vsel %vm1773, %v4021, 0
    %v4207 = vsel %vm1773, %v4022, 0
    %v4209 = vsel %vm1773, %v4023, 0
    %v4211 = vsel %vm1773, %v4024, 0
    %v4213 = vsel %vm1773, %v4025, 0
    %v4215 = vsel %vm1773, %v4026, 0
    %v4217 = vsel %vm1773, %v4027, 0
    %v4219 = vsel %vm1773, %v4028, 0
    %v4221 = vsel %vm1773, %v4029, 0
    %v4223 = vsel %vm1773, %v4030, 0
    %v4225 = vsel %vm1773, %v4031, 0
    %v4227 = vsel %vm1773, %v4032, 0
    %v4229 = vsel %vm1773, %v4033, 0
    %4231 = vmatprep.subr.mxu0 0.0
    %4232 = vmatpush1.msra.mxu0 %v4133
    %4233 = vmatprep.subr.mxu0 0.0
    %4234 = vmatpush1.msra.mxu0 0.0
    %4235 = vmatprep.subr.mxu0 0.0
    %4236 = vmatpush1.msra.mxu0 0.0
    %4237 = vmatprep.subr.mxu0 0.0
    %4238 = vmatpush1.msra.mxu0 0.0
    %4239 = vmatprep.subr.mxu0 0.0
    %4240 = vmatpush1.msra.mxu0 0.0
    %4241 = vmatprep.subr.mxu0 0.0
    %4242 = vmatpush1.msra.mxu0 0.0
    %4243 = vmatprep.subr.mxu0 0.0
    %4244 = vmatpush1.msra.mxu0 0.0
    %4245 = vmatprep.subr.mxu0 0.0
    %4246 = vmatpush1.msra.mxu0 0.0
    %4247 = vmatprep.subr.mxu0 0.0
    %4248 = vmatpush1.msra.mxu0 0.0
    %4249 = vmatprep.subr.mxu0 0.0
    %4250 = vmatpush1.msra.mxu0 0.0
    %4251 = vmatprep.subr.mxu0 0.0
    %4252 = vmatpush1.msra.mxu0 0.0
    %4253 = vmatprep.subr.mxu0 0.0
    %4254 = vmatpush1.msra.mxu0 0.0
    %4255 = vmatprep.subr.mxu0 0.0
    %4256 = vmatpush1.msra.mxu0 0.0
    %4257 = vmatprep.subr.mxu0 0.0
    %4258 = vmatpush1.msra.mxu0 0.0
    %4259 = vmatprep.subr.mxu0 0.0
    %4260 = vmatpush1.msra.mxu0 0.0
    %4261 = vmatprep.subr.mxu0 0.0
    %4262 = vmatpush1.msra.mxu0 0.0
    %4263 = vmatprep.subr.mxu0 0.0
    %4264 = vmatpush1.msra.mxu0 0.0
    %4265 = vmatprep.subr.mxu0 0.0
    %4266 = vmatpush1.msra.mxu0 0.0
    %4267 = vmatprep.subr.mxu0 0.0
    %4268 = vmatpush1.msra.mxu0 0.0
    %4269 = vmatprep.subr.mxu0 0.0
    %4270 = vmatpush1.msra.mxu0 0.0
    %4271 = vmatprep.subr.mxu0 0.0
    %4272 = vmatpush1.msra.mxu0 0.0
    %4273 = vmatprep.subr.mxu0 0.0
    %4274 = vmatpush1.msra.mxu0 0.0
    %4275 = vmatprep.subr.mxu0 0.0
    %4276 = vmatpush1.msra.mxu0 0.0
    %4277 = vmatprep.subr.mxu0 0.0
    %4278 = vmatpush1.msra.mxu0 0.0
    %4279 = vmatprep.subr.mxu0 0.0
    %4280 = vmatpush1.msra.mxu0 0.0
    %4281 = vmatprep.subr.mxu0 0.0
    %4282 = vmatpush1.msra.mxu0 0.0
    %4283 = vmatprep.subr.mxu0 0.0
    %4284 = vmatpush1.msra.mxu0 0.0
    %4285 = vmatprep.subr.mxu0 0.0
    %4286 = vmatpush1.msra.mxu0 0.0
    %4287 = vmatprep.subr.mxu0 0.0
    %4288 = vmatpush1.msra.mxu0 0.0
    %4289 = vmatprep.subr.mxu0 0.0
    %4290 = vmatpush1.msra.mxu0 0.0
    %4291 = vmatprep.subr.mxu0 0.0
    %4292 = vmatpush1.msra.mxu0 0.0
    %4293 = vmatprep.subr.mxu0 0.0
    %4294 = vmatpush1.msra.mxu0 0.0
    %4295 = vmatprep.mubr.f32.mxu0 0.0
    %4296 = vmatmul.mubr.f32.gmra.mrb[0].mxu0 %v4199
    %v4297 = vpop.f32.mrb[0].mxu0
    %v4298 = vadd.f32 %v4152, %v4297
    %v4299 = vpop.f32.mrb[0].mxu0
    %4300 = vmatprep.mubr.f32.mxu0 0.0
    %4301 = vmatmul.mubr.f32.gmra.mrb[0].mxu0 %v4201
    %v4302 = vpop.f32.mrb[0].mxu0
    %v4303 = vadd.f32 %v4154, %v4302
    %v4304 = vpop.f32.mrb[0].mxu0
    %4305 = vmatprep.mubr.f32.mxu0 0.0
    %4306 = vmatmul.mubr.f32.gmra.mrb[0].mxu0 %v4203
    %v4307 = vpop.f32.mrb[0].mxu0
    %v4308 = vadd.f32 %v4156, %v4307
    %v4309 = vpop.f32.mrb[0].mxu0
    %4310 = vmatprep.mubr.f32.mxu0 0.0
    %4311 = vmatmul.mubr.f32.gmra.mrb[0].mxu0 %v4205
    %v4312 = vpop.f32.mrb[0].mxu0
    %v4313 = vadd.f32 %v4158, %v4312
    %v4314 = vpop.f32.mrb[0].mxu0
    %4315 = vmatprep.mubr.f32.mxu0 0.0
    %4316 = vmatmul.mubr.f32.gmra.mrb[0].mxu0 %v4207
    %v4317 = vpop.f32.mrb[0].mxu0
    %v4318 = vadd.f32 %v4160, %v4317
    %v4319 = vpop.f32.mrb[0].mxu0
    %4320 = vmatprep.mubr.f32.mxu0 0.0
    %4321 = vmatmul.mubr.f32.gmra.mrb[0].mxu0 %v4209
    %v4322 = vpop.f32.mrb[0].mxu0
    %v4323 = vadd.f32 %v4162, %v4322
    %v4324 = vpop.f32.mrb[0].mxu0
    %4325 = vmatprep.mubr.f32.mxu0 0.0
    %4326 = vmatmul.mubr.f32.gmra.mrb[0].mxu0 %v4211
    %v4327 = vpop.f32.mrb[0].mxu0
    %v4328 = vadd.f32 %v4164, %v4327
    %v4329 = vpop.f32.mrb[0].mxu0
    %4330 = vmatprep.mubr.f32.mxu0 0.0
    %4331 = vmatmul.mubr.f32.gmra.mrb[0].mxu0 %v4213
    %v4332 = vpop.f32.mrb[0].mxu0
    %v4333 = vadd.f32 %v4166, %v4332
    %v4334 = vpop.f32.mrb[0].mxu0
    %4335 = vmatprep.mubr.f32.mxu0 0.0
    %4336 = vmatmul.mubr.f32.gmra.mrb[0].mxu0 %v4215
    %v4337 = vpop.f32.mrb[0].mxu0
    %v4338 = vadd.f32 %v4168, %v4337
    %v4339 = vpop.f32.mrb[0].mxu0
    %4340 = vmatprep.mubr.f32.mxu0 0.0
    %4341 = vmatmul.mubr.f32.gmra.mrb[0].mxu0 %v4217
    %v4342 = vpop.f32.mrb[0].mxu0
    %v4343 = vadd.f32 %v4170, %v4342
    %v4344 = vpop.f32.mrb[0].mxu0
    %4345 = vmatprep.mubr.f32.mxu0 0.0
    %4346 = vmatmul.mubr.f32.gmra.mrb[0].mxu0 %v4219
    %v4347 = vpop.f32.mrb[0].mxu0
    %v4348 = vadd.f32 %v4172, %v4347
    %v4349 = vpop.f32.mrb[0].mxu0
    %4350 = vmatprep.mubr.f32.mxu0 0.0
    %4351 = vmatmul.mubr.f32.gmra.mrb[0].mxu0 %v4221
    %v4352 = vpop.f32.mrb[0].mxu0
    %v4353 = vadd.f32 %v4174, %v4352
    %v4354 = vpop.f32.mrb[0].mxu0
    %4355 = vmatprep.mubr.f32.mxu0 0.0
    %4356 = vmatmul.mubr.f32.gmra.mrb[0].mxu0 %v4223
    %v4357 = vpop.f32.mrb[0].mxu0
    %v4358 = vadd.f32 %v4176, %v4357
    %v4359 = vpop.f32.mrb[0].mxu0
    %4360 = vmatprep.mubr.f32.mxu0 0.0
    %4361 = vmatmul.mubr.f32.gmra.mrb[0].mxu0 %v4225
    %v4362 = vpop.f32.mrb[0].mxu0
    %v4363 = vadd.f32 %v4178, %v4362
    %v4364 = vpop.f32.mrb[0].mxu0
    %4365 = vmatprep.mubr.f32.mxu0 0.0
    %4366 = vmatmul.mubr.f32.gmra.mrb[0].mxu0 %v4227
    %v4367 = vpop.f32.mrb[0].mxu0
    %v4368 = vadd.f32 %v4180, %v4367
    %v4369 = vpop.f32.mrb[0].mxu0
    %4370 = vmatprep.mubr.f32.mxu0 0.0
    %4371 = vmatmul.mubr.f32.gmra.mrb[0].mxu0 %v4229
    %v4372 = vpop.f32.mrb[0].mxu0
    %v4373 = vadd.f32 %v4182, %v4372
    %v4374 = vpop.f32.mrb[0].mxu0
    %4375 = vdwg.mxu0
    %vm4376 = vcmp.gt.f32.partialorder %v4298, 0.0
    %vm4377 = vcmp.gt.f32.partialorder %v4303, 0.0
    %vm4378 = vcmp.gt.f32.partialorder %v4308, 0.0
    %vm4379 = vcmp.gt.f32.partialorder %v4313, 0.0
    %vm4380 = vcmp.gt.f32.partialorder %v4318, 0.0
    %vm4381 = vcmp.gt.f32.partialorder %v4323, 0.0
    %vm4382 = vcmp.gt.f32.partialorder %v4328, 0.0
    %vm4383 = vcmp.gt.f32.partialorder %v4333, 0.0
    %vm4384 = vcmp.gt.f32.partialorder %v4338, 0.0
    %vm4385 = vcmp.gt.f32.partialorder %v4343, 0.0
    %vm4386 = vcmp.gt.f32.partialorder %v4348, 0.0
    %vm4387 = vcmp.gt.f32.partialorder %v4353, 0.0
    %vm4388 = vcmp.gt.f32.partialorder %v4358, 0.0
    %vm4389 = vcmp.gt.f32.partialorder %v4363, 0.0
    %vm4390 = vcmp.gt.f32.partialorder %v4368, 0.0
    %vm4391 = vcmp.gt.f32.partialorder %v4373, 0.0
    %v4392 = vmin.f32 %v4298, 0.0
    %v4393 = vmin.f32 %v4303, 0.0
    %v4394 = vmin.f32 %v4308, 0.0
    %v4395 = vmin.f32 %v4313, 0.0
    %v4396 = vmin.f32 %v4318, 0.0
    %v4397 = vmin.f32 %v4323, 0.0
    %v4398 = vmin.f32 %v4328, 0.0
    %v4399 = vmin.f32 %v4333, 0.0
    %v4400 = vmin.f32 %v4338, 0.0
    %v4401 = vmin.f32 %v4343, 0.0
    %v4402 = vmin.f32 %v4348, 0.0
    %v4403 = vmin.f32 %v4353, 0.0
    %v4404 = vmin.f32 %v4358, 0.0
    %v4405 = vmin.f32 %v4363, 0.0
    %v4406 = vmin.f32 %v4368, 0.0
    %v4407 = vmin.f32 %v4373, 0.0
    %v4408 = vmul.f32 %v4392, 1.442695
    %v4409 = vpow.pop %v4408
    %v4410 = vmul.f32 %v4393, 1.442695
    %v4411 = vpow.pop %v4410
    %v4412 = vmul.f32 %v4394, 1.442695
    %v4413 = vpow.pop %v4412
    %v4414 = vmul.f32 %v4395, 1.442695
    %v4415 = vpow.pop %v4414
    %v4416 = vmul.f32 %v4396, 1.442695
    %v4417 = vpow.pop %v4416
    %v4418 = vmul.f32 %v4397, 1.442695
    %v4419 = vpow.pop %v4418
    %v4420 = vmul.f32 %v4398, 1.442695
    %v4421 = vpow.pop %v4420
    %v4422 = vmul.f32 %v4399, 1.442695
    %v4423 = vpow.pop %v4422
    %v4424 = vmul.f32 %v4400, 1.442695
    %v4425 = vpow.pop %v4424
    %v4426 = vmul.f32 %v4401, 1.442695
    %v4427 = vpow.pop %v4426
    %v4428 = vmul.f32 %v4402, 1.442695
    %v4429 = vpow.pop %v4428
    %v4430 = vmul.f32 %v4403, 1.442695
    %v4431 = vpow.pop %v4430
    %v4432 = vmul.f32 %v4404, 1.442695
    %v4433 = vpow.pop %v4432
    %v4434 = vmul.f32 %v4405, 1.442695
    %v4435 = vpow.pop %v4434
    %v4436 = vmul.f32 %v4406, 1.442695
    %v4437 = vpow.pop %v4436
    %v4438 = vmul.f32 %v4407, 1.442695
    %v4439 = vpow.pop %v4438
    %v4440 = vsub.f32 %v4409, 1.0
    %v4441 = vsub.f32 %v4411, 1.0
    %v4442 = vsub.f32 %v4413, 1.0
    %v4443 = vsub.f32 %v4415, 1.0
    %v4444 = vsub.f32 %v4417, 1.0
    %v4445 = vsub.f32 %v4419, 1.0
    %v4446 = vsub.f32 %v4421, 1.0
    %v4447 = vsub.f32 %v4423, 1.0
    %v4448 = vsub.f32 %v4425, 1.0
    %v4449 = vsub.f32 %v4427, 1.0
    %v4450 = vsub.f32 %v4429, 1.0
    %v4451 = vsub.f32 %v4431, 1.0
    %v4452 = vsub.f32 %v4433, 1.0
    %v4453 = vsub.f32 %v4435, 1.0
    %v4454 = vsub.f32 %v4437, 1.0
    %v4455 = vsub.f32 %v4439, 1.0
    %v4456 = vsel %vm4376, %v4298, %v4440
    %v4457 = vsel %vm4377, %v4303, %v4441
    %v4458 = vsel %vm4378, %v4308, %v4442
    %v4459 = vsel %vm4379, %v4313, %v4443
    %v4460 = vsel %vm4380, %v4318, %v4444
    %v4461 = vsel %vm4381, %v4323, %v4445
    %v4462 = vsel %vm4382, %v4328, %v4446
    %v4463 = vsel %vm4383, %v4333, %v4447
    %v4464 = vsel %vm4384, %v4338, %v4448
    %v4465 = vsel %vm4385, %v4343, %v4449
    %v4466 = vsel %vm4386, %v4348, %v4450
    %v4467 = vsel %vm4387, %v4353, %v4451
    %v4468 = vsel %vm4388, %v4358, %v4452
    %v4469 = vsel %vm4389, %v4363, %v4453
    %v4470 = vsel %vm4390, %v4368, %v4454
    %v4471 = vsel %vm4391, %v4373, %v4455
    %v4472 = vld [vmem:[%s10] sm:$0xff]
    %v4473 = vsel %vm1302, %v1306, %v4472
    %v4474 = vsel %vm1302, %v1310, %v4472
    %v4475 = vsel %vm1302, %v1314, %v4472
    %v4476 = vsel %vm1302, %v1318, %v4472
    %v4477 = vsel %vm1302, %v1322, %v4472
    %v4478 = vsel %vm1302, %v1326, %v4472
    %v4479 = vsel %vm1302, %v1330, %v4472
    %v4480 = vsel %vm1302, %v1334, %v4472
    %v4481 = vsel %vm1302, %v1338, %v4472
    %v4482 = vsel %vm1302, %v1342, %v4472
    %v4483 = vsel %vm1302, %v1346, %v4472
    %v4484 = vsel %vm1302, %v1350, %v4472
    %v4485 = vsel %vm1302, %v1354, %v4472
    %v4486 = vsel %vm1302, %v1358, %v4472
    %v4487 = vsel %vm1302, %v1362, %v4472
    %v4488 = vsel %vm1302, %v1366, %v4472
    %v4489 = vld [vmem:[%s11 + $0x3] sm:$0x1]
    %4490 = vset.pattern.permute.xlu0 7
    %4491 = vperm.xlu0 %4490, %v1169
    %v4492 = vpop.permute.xlu0 %4491
    %4494 = vset.pattern.permute.xlu0 7
    %4495 = vperm.xlu0 %4494, %v1174
    %v4496 = vpop.permute.xlu0 %4495
    %v4498 = vlaneseq
    %v4499 = vshrl.u32 %v4498, 7
    %v4500 = vsub.s32 0, %v4499
    %v4501 = vrot.slane %v4489, %v4500
    %v4502 = vsel %vm1402, %v4492, %v4501
    %v4503 = vsel %vm1402, %v4496, %v4501
    %v4506 = vcombine.high %v4502, %v4502
    %v4508 = vunpack.c.l.s4 1966171168
    %v4509 = vunpack.c.0.s8 %v4508
    %v4510 = vlaneseq
    %v4511 = vshrl.u32 %v4510, 7
    %v4512 = vsub.s32 %v4509, %v4511
    %v4513 = vrot.slane %v4502, %v4512
    %v4515 = vunpack.c.l.s4 1966171168
    %v4516 = vunpack.c.0.s8 %v4515
    %v4517 = vlaneseq
    %v4518 = vshrl.u32 %v4517, 7
    %v4519 = vsub.s32 %v4516, %v4518
    %v4520 = vrot.slane %v4506, %v4519
    %v4521 = vcombine.high %v4513, %v4513
    %v4522 = vcombine.high %v4520, %v4520
    %v4524 = vunpack.c.l.s4 1966171168
    %v4525 = vunpack.c.0.s8 %v4524
    %v4526 = vlaneseq
    %v4527 = vshrl.u32 %v4526, 7
    %v4528 = vsub.s32 %v4525, %v4527
    %v4529 = vrot.slane %v4513, %v4528
    %v4531 = vunpack.c.l.s4 1966171168
    %v4532 = vunpack.c.0.s8 %v4531
    %v4533 = vlaneseq
    %v4534 = vshrl.u32 %v4533, 7
    %v4535 = vsub.s32 %v4532, %v4534
    %v4536 = vrot.slane %v4520, %v4535
    %v4538 = vunpack.c.l.s4 1966171168
    %v4539 = vunpack.c.0.s8 %v4538
    %v4540 = vlaneseq
    %v4541 = vshrl.u32 %v4540, 7
    %v4542 = vsub.s32 %v4539, %v4541
    %v4543 = vrot.slane %v4521, %v4542
    %v4545 = vunpack.c.l.s4 1966171168
    %v4546 = vunpack.c.0.s8 %v4545
    %v4547 = vlaneseq
    %v4548 = vshrl.u32 %v4547, 7
    %v4549 = vsub.s32 %v4546, %v4548
    %v4550 = vrot.slane %v4522, %v4549
    %v4551 = vcombine.high %v4529, %v4529
    %v4552 = vcombine.high %v4536, %v4536
    %v4553 = vcombine.high %v4543, %v4543
    %v4554 = vcombine.high %v4550, %v4550
    %v4555 = vcombine.high %v4503, %v4503
    %v4557 = vunpack.c.l.s4 1966171168
    %v4558 = vunpack.c.0.s8 %v4557
    %v4559 = vlaneseq
    %v4560 = vshrl.u32 %v4559, 7
    %v4561 = vsub.s32 %v4558, %v4560
    %v4562 = vrot.slane %v4503, %v4561
    %v4564 = vunpack.c.l.s4 1966171168
    %v4565 = vunpack.c.0.s8 %v4564
    %v4566 = vlaneseq
    %v4567 = vshrl.u32 %v4566, 7
    %v4568 = vsub.s32 %v4565, %v4567
    %v4569 = vrot.slane %v4555, %v4568
    %v4570 = vcombine.high %v4562, %v4562
    %v4571 = vcombine.high %v4569, %v4569
    %v4573 = vunpack.c.l.s4 1966171168
    %v4574 = vunpack.c.0.s8 %v4573
    %v4575 = vlaneseq
    %v4576 = vshrl.u32 %v4575, 7
    %v4577 = vsub.s32 %v4574, %v4576
    %v4578 = vrot.slane %v4562, %v4577
    %v4580 = vunpack.c.l.s4 1966171168
    %v4581 = vunpack.c.0.s8 %v4580
    %v4582 = vlaneseq
    %v4583 = vshrl.u32 %v4582, 7
    %v4584 = vsub.s32 %v4581, %v4583
    %v4585 = vrot.slane %v4569, %v4584
    %v4587 = vunpack.c.l.s4 1966171168
    %v4588 = vunpack.c.0.s8 %v4587
    %v4589 = vlaneseq
    %v4590 = vshrl.u32 %v4589, 7
    %v4591 = vsub.s32 %v4588, %v4590
    %v4592 = vrot.slane %v4570, %v4591
    %v4594 = vunpack.c.l.s4 1966171168
    %v4595 = vunpack.c.0.s8 %v4594
    %v4596 = vlaneseq
    %v4597 = vshrl.u32 %v4596, 7
    %v4598 = vsub.s32 %v4595, %v4597
    %v4599 = vrot.slane %v4571, %v4598
    %v4600 = vcombine.high %v4578, %v4578
    %v4601 = vcombine.high %v4585, %v4585
    %v4602 = vcombine.high %v4592, %v4592
    %v4603 = vcombine.high %v4599, %v4599
    %4605 = vset.pattern.permute.xlu0 3
    %4606 = vperm.xlu0 %4605, %v4473
    %v4607 = vpop.permute.xlu0 %4606
    %4610 = vset.pattern.permute.xlu0 3
    %4611 = vperm.xlu0 %4610, %v4474
    %v4612 = vpop.permute.xlu0 %4611
    %4615 = vset.pattern.permute.xlu0 3
    %4616 = vperm.xlu0 %4615, %v4475
    %v4617 = vpop.permute.xlu0 %4616
    %4620 = vset.pattern.permute.xlu0 3
    %4621 = vperm.xlu0 %4620, %v4476
    %v4622 = vpop.permute.xlu0 %4621
    %4625 = vset.pattern.permute.xlu0 3
    %4626 = vperm.xlu0 %4625, %v4477
    %v4627 = vpop.permute.xlu0 %4626
    %4630 = vset.pattern.permute.xlu0 3
    %4631 = vperm.xlu0 %4630, %v4478
    %v4632 = vpop.permute.xlu0 %4631
    %4635 = vset.pattern.permute.xlu0 3
    %4636 = vperm.xlu0 %4635, %v4479
    %v4637 = vpop.permute.xlu0 %4636
    %4640 = vset.pattern.permute.xlu0 3
    %4641 = vperm.xlu0 %4640, %v4480
    %v4642 = vpop.permute.xlu0 %4641
    %4645 = vset.pattern.permute.xlu0 3
    %4646 = vperm.xlu0 %4645, %v4481
    %v4647 = vpop.permute.xlu0 %4646
    %4650 = vset.pattern.permute.xlu0 3
    %4651 = vperm.xlu0 %4650, %v4482
    %v4652 = vpop.permute.xlu0 %4651
    %4655 = vset.pattern.permute.xlu0 3
    %4656 = vperm.xlu0 %4655, %v4483
    %v4657 = vpop.permute.xlu0 %4656
    %4660 = vset.pattern.permute.xlu0 3
    %4661 = vperm.xlu0 %4660, %v4484
    %v4662 = vpop.permute.xlu0 %4661
    %4665 = vset.pattern.permute.xlu0 3
    %4666 = vperm.xlu0 %4665, %v4485
    %v4667 = vpop.permute.xlu0 %4666
    %4670 = vset.pattern.permute.xlu0 3
    %4671 = vperm.xlu0 %4670, %v4486
    %v4672 = vpop.permute.xlu0 %4671
    %4675 = vset.pattern.permute.xlu0 3
    %4676 = vperm.xlu0 %4675, %v4487
    %v4677 = vpop.permute.xlu0 %4676
    %4680 = vset.pattern.permute.xlu0 3
    %4681 = vperm.xlu0 %4680, %v4488
    %v4682 = vpop.permute.xlu0 %4681
    %v4684 = vlaneseq
    %v4685 = vshrl.u32 %v4684, 7
    %v4686 = vsub.s32 0, %v4685
    %v4687 = vrot.slane %v4529, %v4686
    %v4688 = vlaneseq
    %v4689 = vshrl.u32 %v4688, 7
    %v4690 = vsub.s32 0, %v4689
    %v4691 = vrot.slane %v4543, %v4690
    %v4692 = vlaneseq
    %v4693 = vshrl.u32 %v4692, 7
    %v4694 = vsub.s32 0, %v4693
    %v4695 = vrot.slane %v4551, %v4694
    %v4696 = vlaneseq
    %v4697 = vshrl.u32 %v4696, 7
    %v4698 = vsub.s32 0, %v4697
    %v4699 = vrot.slane %v4553, %v4698
    %v4700 = vlaneseq
    %v4701 = vshrl.u32 %v4700, 7
    %v4702 = vsub.s32 0, %v4701
    %v4703 = vrot.slane %v4536, %v4702
    %v4704 = vlaneseq
    %v4705 = vshrl.u32 %v4704, 7
    %v4706 = vsub.s32 0, %v4705
    %v4707 = vrot.slane %v4550, %v4706
    %v4708 = vlaneseq
    %v4709 = vshrl.u32 %v4708, 7
    %v4710 = vsub.s32 0, %v4709
    %v4711 = vrot.slane %v4552, %v4710
    %v4712 = vlaneseq
    %v4713 = vshrl.u32 %v4712, 7
    %v4714 = vsub.s32 0, %v4713
    %v4715 = vrot.slane %v4554, %v4714
    %v4716 = vlaneseq
    %v4717 = vshrl.u32 %v4716, 7
    %v4718 = vsub.s32 0, %v4717
    %v4719 = vrot.slane %v4578, %v4718
    %v4720 = vlaneseq
    %v4721 = vshrl.u32 %v4720, 7
    %v4722 = vsub.s32 0, %v4721
    %v4723 = vrot.slane %v4592, %v4722
    %v4724 = vlaneseq
    %v4725 = vshrl.u32 %v4724, 7
    %v4726 = vsub.s32 0, %v4725
    %v4727 = vrot.slane %v4600, %v4726
    %v4728 = vlaneseq
    %v4729 = vshrl.u32 %v4728, 7
    %v4730 = vsub.s32 0, %v4729
    %v4731 = vrot.slane %v4602, %v4730
    %v4732 = vlaneseq
    %v4733 = vshrl.u32 %v4732, 7
    %v4734 = vsub.s32 0, %v4733
    %v4735 = vrot.slane %v4585, %v4734
    %v4736 = vlaneseq
    %v4737 = vshrl.u32 %v4736, 7
    %v4738 = vsub.s32 0, %v4737
    %v4739 = vrot.slane %v4599, %v4738
    %v4740 = vlaneseq
    %v4741 = vshrl.u32 %v4740, 7
    %v4742 = vsub.s32 0, %v4741
    %v4743 = vrot.slane %v4601, %v4742
    %v4744 = vlaneseq
    %v4745 = vshrl.u32 %v4744, 7
    %v4746 = vsub.s32 0, %v4745
    %v4747 = vrot.slane %v4603, %v4746
    %v4764 = vadd.f32 %v4607, %v4687
    %v4765 = vadd.f32 %v4612, %v4691
    %v4766 = vadd.f32 %v4617, %v4695
    %v4767 = vadd.f32 %v4622, %v4699
    %v4768 = vadd.f32 %v4627, %v4703
    %v4769 = vadd.f32 %v4632, %v4707
    %v4770 = vadd.f32 %v4637, %v4711
    %v4771 = vadd.f32 %v4642, %v4715
    %v4772 = vadd.f32 %v4647, %v4719
    %v4773 = vadd.f32 %v4652, %v4723
    %v4774 = vadd.f32 %v4657, %v4727
    %v4775 = vadd.f32 %v4662, %v4731
    %v4776 = vadd.f32 %v4667, %v4735
    %v4777 = vadd.f32 %v4672, %v4739
    %v4778 = vadd.f32 %v4677, %v4743
    %v4779 = vadd.f32 %v4682, %v4747
    %vm4780 = vcmp.gt.f32.partialorder %v4764, 0.0
    %vm4781 = vcmp.gt.f32.partialorder %v4765, 0.0
    %vm4782 = vcmp.gt.f32.partialorder %v4766, 0.0
    %vm4783 = vcmp.gt.f32.partialorder %v4767, 0.0
    %vm4784 = vcmp.gt.f32.partialorder %v4768, 0.0
    %vm4785 = vcmp.gt.f32.partialorder %v4769, 0.0
    %vm4786 = vcmp.gt.f32.partialorder %v4770, 0.0
    %vm4787 = vcmp.gt.f32.partialorder %v4771, 0.0
    %vm4788 = vcmp.gt.f32.partialorder %v4772, 0.0
    %vm4789 = vcmp.gt.f32.partialorder %v4773, 0.0
    %vm4790 = vcmp.gt.f32.partialorder %v4774, 0.0
    %vm4791 = vcmp.gt.f32.partialorder %v4775, 0.0
    %vm4792 = vcmp.gt.f32.partialorder %v4776, 0.0
    %vm4793 = vcmp.gt.f32.partialorder %v4777, 0.0
    %vm4794 = vcmp.gt.f32.partialorder %v4778, 0.0
    %vm4795 = vcmp.gt.f32.partialorder %v4779, 0.0
    %v4796 = vmul.f32 %v4764, 0.2
    %v4797 = vmul.f32 %v4765, 0.2
    %v4798 = vmul.f32 %v4766, 0.2
    %v4799 = vmul.f32 %v4767, 0.2
    %v4800 = vmul.f32 %v4768, 0.2
    %v4801 = vmul.f32 %v4769, 0.2
    %v4802 = vmul.f32 %v4770, 0.2
    %v4803 = vmul.f32 %v4771, 0.2
    %v4804 = vmul.f32 %v4772, 0.2
    %v4805 = vmul.f32 %v4773, 0.2
    %v4806 = vmul.f32 %v4774, 0.2
    %v4807 = vmul.f32 %v4775, 0.2
    %v4808 = vmul.f32 %v4776, 0.2
    %v4809 = vmul.f32 %v4777, 0.2
    %v4810 = vmul.f32 %v4778, 0.2
    %v4811 = vmul.f32 %v4779, 0.2
    %v4812 = vsel %vm4780, %v4764, %v4796
    %v4813 = vsel %vm4781, %v4765, %v4797
    %v4814 = vsel %vm4782, %v4766, %v4798
    %v4815 = vsel %vm4783, %v4767, %v4799
    %v4816 = vsel %vm4784, %v4768, %v4800
    %v4817 = vsel %vm4785, %v4769, %v4801
    %v4818 = vsel %vm4786, %v4770, %v4802
    %v4819 = vsel %vm4787, %v4771, %v4803
    %v4820 = vsel %vm4788, %v4772, %v4804
    %v4821 = vsel %vm4789, %v4773, %v4805
    %v4822 = vsel %vm4790, %v4774, %v4806
    %v4823 = vsel %vm4791, %v4775, %v4807
    %v4824 = vsel %vm4792, %v4776, %v4808
    %v4825 = vsel %vm4793, %v4777, %v4809
    %v4826 = vsel %vm4794, %v4778, %v4810
    %v4827 = vsel %vm4795, %v4779, %v4811
    %v4828 = vsel %vm1741, %v4812, -9e+15
    %v4829 = vsel %vm1742, %v4813, -9e+15
    %v4830 = vsel %vm1743, %v4814, -9e+15
    %v4831 = vsel %vm1744, %v4815, -9e+15
    %v4832 = vsel %vm1745, %v4816, -9e+15
    %v4833 = vsel %vm1746, %v4817, -9e+15
    %v4834 = vsel %vm1747, %v4818, -9e+15
    %v4835 = vsel %vm1748, %v4819, -9e+15
    %v4836 = vsel %vm1749, %v4820, -9e+15
    %v4837 = vsel %vm1750, %v4821, -9e+15
    %v4838 = vsel %vm1751, %v4822, -9e+15
    %v4839 = vsel %vm1752, %v4823, -9e+15
    %v4840 = vsel %vm1753, %v4824, -9e+15
    %v4841 = vsel %vm1754, %v4825, -9e+15
    %v4842 = vsel %vm1755, %v4826, -9e+15
    %v4843 = vsel %vm1756, %v4827, -9e+15
    %v4844 = vsel %vm1773, %v4828, -inf
    %4845 = vmax.xlane.f32.xlu0 %v4844
    %v4846 = vpop.xlane.xlu0 %4845
    %v4847 = vsel %vm1773, %v4829, -inf
    %4848 = vmax.xlane.f32.xlu0 %v4847
    %v4849 = vpop.xlane.xlu0 %4848
    %v4850 = vsel %vm1773, %v4830, -inf
    %4851 = vmax.xlane.f32.xlu0 %v4850
    %v4852 = vpop.xlane.xlu0 %4851
    %v4853 = vsel %vm1773, %v4831, -inf
    %4854 = vmax.xlane.f32.xlu0 %v4853
    %v4855 = vpop.xlane.xlu0 %4854
    %v4856 = vsel %vm1773, %v4832, -inf
    %4857 = vmax.xlane.f32.xlu0 %v4856
    %v4858 = vpop.xlane.xlu0 %4857
    %v4859 = vsel %vm1773, %v4833, -inf
    %4860 = vmax.xlane.f32.xlu0 %v4859
    %v4861 = vpop.xlane.xlu0 %4860
    %v4862 = vsel %vm1773, %v4834, -inf
    %4863 = vmax.xlane.f32.xlu0 %v4862
    %v4864 = vpop.xlane.xlu0 %4863
    %v4865 = vsel %vm1773, %v4835, -inf
    %4866 = vmax.xlane.f32.xlu0 %v4865
    %v4867 = vpop.xlane.xlu0 %4866
    %v4868 = vsel %vm1773, %v4836, -inf
    %4869 = vmax.xlane.f32.xlu0 %v4868
    %v4870 = vpop.xlane.xlu0 %4869
    %v4871 = vsel %vm1773, %v4837, -inf
    %4872 = vmax.xlane.f32.xlu0 %v4871
    %v4873 = vpop.xlane.xlu0 %4872
    %v4874 = vsel %vm1773, %v4838, -inf
    %4875 = vmax.xlane.f32.xlu0 %v4874
    %v4876 = vpop.xlane.xlu0 %4875
    %v4877 = vsel %vm1773, %v4839, -inf
    %4878 = vmax.xlane.f32.xlu0 %v4877
    %v4879 = vpop.xlane.xlu0 %4878
    %v4880 = vsel %vm1773, %v4840, -inf
    %4881 = vmax.xlane.f32.xlu0 %v4880
    %v4882 = vpop.xlane.xlu0 %4881
    %v4883 = vsel %vm1773, %v4841, -inf
    %4884 = vmax.xlane.f32.xlu0 %v4883
    %v4885 = vpop.xlane.xlu0 %4884
    %v4886 = vsel %vm1773, %v4842, -inf
    %4887 = vmax.xlane.f32.xlu0 %v4886
    %v4888 = vpop.xlane.xlu0 %4887
    %v4889 = vsel %vm1773, %v4843, -inf
    %4890 = vmax.xlane.f32.xlu0 %v4889
    %v4891 = vpop.xlane.xlu0 %4890
    %v4892 = vsub.f32 %v4828, %v4846
    %v4893 = vsub.f32 %v4829, %v4849
    %v4894 = vsub.f32 %v4830, %v4852
    %v4895 = vsub.f32 %v4831, %v4855
    %v4896 = vsub.f32 %v4832, %v4858
    %v4897 = vsub.f32 %v4833, %v4861
    %v4898 = vsub.f32 %v4834, %v4864
    %v4899 = vsub.f32 %v4835, %v4867
    %v4900 = vsub.f32 %v4836, %v4870
    %v4901 = vsub.f32 %v4837, %v4873
    %v4902 = vsub.f32 %v4838, %v4876
    %v4903 = vsub.f32 %v4839, %v4879
    %v4904 = vsub.f32 %v4840, %v4882
    %v4905 = vsub.f32 %v4841, %v4885
    %v4906 = vsub.f32 %v4842, %v4888
    %v4907 = vsub.f32 %v4843, %v4891
    %v4908 = vmul.f32 %v4892, 1.442695
    %v4909 = vpow.pop %v4908
    %v4910 = vmul.f32 %v4893, 1.442695
    %v4911 = vpow.pop %v4910
    %v4912 = vmul.f32 %v4894, 1.442695
    %v4913 = vpow.pop %v4912
    %v4914 = vmul.f32 %v4895, 1.442695
    %v4915 = vpow.pop %v4914
    %v4916 = vmul.f32 %v4896, 1.442695
    %v4917 = vpow.pop %v4916
    %v4918 = vmul.f32 %v4897, 1.442695
    %v4919 = vpow.pop %v4918
    %v4920 = vmul.f32 %v4898, 1.442695
    %v4921 = vpow.pop %v4920
    %v4922 = vmul.f32 %v4899, 1.442695
    %v4923 = vpow.pop %v4922
    %v4924 = vmul.f32 %v4900, 1.442695
    %v4925 = vpow.pop %v4924
    %v4926 = vmul.f32 %v4901, 1.442695
    %v4927 = vpow.pop %v4926
    %v4928 = vmul.f32 %v4902, 1.442695
    %v4929 = vpow.pop %v4928
    %v4930 = vmul.f32 %v4903, 1.442695
    %v4931 = vpow.pop %v4930
    %v4932 = vmul.f32 %v4904, 1.442695
    %v4933 = vpow.pop %v4932
    %v4934 = vmul.f32 %v4905, 1.442695
    %v4935 = vpow.pop %v4934
    %v4936 = vmul.f32 %v4906, 1.442695
    %v4937 = vpow.pop %v4936
    %v4938 = vmul.f32 %v4907, 1.442695
    %v4939 = vpow.pop %v4938
    %v4940 = vsel %vm1773, %v4909, 0.0
    %4941 = vadd.xlane.f32.xlu0 %v4940
    %v4942 = vpop.xlane.xlu0 %4941
    %v4943 = vsel %vm1773, %v4911, 0.0
    %4944 = vadd.xlane.f32.xlu0 %v4943
    %v4945 = vpop.xlane.xlu0 %4944
    %v4946 = vsel %vm1773, %v4913, 0.0
    %4947 = vadd.xlane.f32.xlu0 %v4946
    %v4948 = vpop.xlane.xlu0 %4947
    %v4949 = vsel %vm1773, %v4915, 0.0
    %4950 = vadd.xlane.f32.xlu0 %v4949
    %v4951 = vpop.xlane.xlu0 %4950
    %v4952 = vsel %vm1773, %v4917, 0.0
    %4953 = vadd.xlane.f32.xlu0 %v4952
    %v4954 = vpop.xlane.xlu0 %4953
    %v4955 = vsel %vm1773, %v4919, 0.0
    %4956 = vadd.xlane.f32.xlu0 %v4955
    %v4957 = vpop.xlane.xlu0 %4956
    %v4958 = vsel %vm1773, %v4921, 0.0
    %4959 = vadd.xlane.f32.xlu0 %v4958
    %v4960 = vpop.xlane.xlu0 %4959
    %v4961 = vsel %vm1773, %v4923, 0.0
    %4962 = vadd.xlane.f32.xlu0 %v4961
    %v4963 = vpop.xlane.xlu0 %4962
    %v4964 = vsel %vm1773, %v4925, 0.0
    %4965 = vadd.xlane.f32.xlu0 %v4964
    %v4966 = vpop.xlane.xlu0 %4965
    %v4967 = vsel %vm1773, %v4927, 0.0
    %4968 = vadd.xlane.f32.xlu0 %v4967
    %v4969 = vpop.xlane.xlu0 %4968
    %v4970 = vsel %vm1773, %v4929, 0.0
    %4971 = vadd.xlane.f32.xlu0 %v4970
    %v4972 = vpop.xlane.xlu0 %4971
    %v4973 = vsel %vm1773, %v4931, 0.0
    %4974 = vadd.xlane.f32.xlu0 %v4973
    %v4975 = vpop.xlane.xlu0 %4974
    %v4976 = vsel %vm1773, %v4933, 0.0
    %4977 = vadd.xlane.f32.xlu0 %v4976
    %v4978 = vpop.xlane.xlu0 %4977
    %v4979 = vsel %vm1773, %v4935, 0.0
    %4980 = vadd.xlane.f32.xlu0 %v4979
    %v4981 = vpop.xlane.xlu0 %4980
    %v4982 = vsel %vm1773, %v4937, 0.0
    %4983 = vadd.xlane.f32.xlu0 %v4982
    %v4984 = vpop.xlane.xlu0 %4983
    %v4985 = vsel %vm1773, %v4939, 0.0
    %4986 = vadd.xlane.f32.xlu0 %v4985
    %v4987 = vpop.xlane.xlu0 %4986
    %v4988 = vrcp.pop %v4942
    %v4989 = vrcp.pop %v4945
    %v4990 = vrcp.pop %v4948
    %v4991 = vrcp.pop %v4951
    %v4992 = vrcp.pop %v4954
    %v4993 = vrcp.pop %v4957
    %v4994 = vrcp.pop %v4960
    %v4995 = vrcp.pop %v4963
    %v4996 = vrcp.pop %v4966
    %v4997 = vrcp.pop %v4969
    %v4998 = vrcp.pop %v4972
    %v4999 = vrcp.pop %v4975
    %v5000 = vrcp.pop %v4978
    %v5001 = vrcp.pop %v4981
    %v5002 = vrcp.pop %v4984
    %v5003 = vrcp.pop %v4987
    %v5004 = vmul.f32 %v4909, %v4988
    %v5005 = vmul.f32 %v4911, %v4989
    %v5006 = vmul.f32 %v4913, %v4990
    %v5007 = vmul.f32 %v4915, %v4991
    %v5008 = vmul.f32 %v4917, %v4992
    %v5009 = vmul.f32 %v4919, %v4993
    %v5010 = vmul.f32 %v4921, %v4994
    %v5011 = vmul.f32 %v4923, %v4995
    %v5012 = vmul.f32 %v4925, %v4996
    %v5013 = vmul.f32 %v4927, %v4997
    %v5014 = vmul.f32 %v4929, %v4998
    %v5015 = vmul.f32 %v4931, %v4999
    %v5016 = vmul.f32 %v4933, %v5000
    %v5017 = vmul.f32 %v4935, %v5001
    %v5018 = vmul.f32 %v4937, %v5002
    %v5019 = vmul.f32 %v4939, %v5003
    %v5020 = vld [vmem:[%s9] sm:$0xff]
    %5022 = vset.pattern.permute.xlu0 0
    %5023 = vperm.xlu0 %5022, %v5004
    %v5024 = vpop.permute.xlu0 %5023
    %5027 = vset.pattern.permute.xlu0 0
    %5028 = vperm.xlu0 %5027, %v5005
    %v5029 = vpop.permute.xlu0 %5028
    %5032 = vset.pattern.permute.xlu0 0
    %5033 = vperm.xlu0 %5032, %v5006
    %v5034 = vpop.permute.xlu0 %5033
    %5037 = vset.pattern.permute.xlu0 0
    %5038 = vperm.xlu0 %5037, %v5007
    %v5039 = vpop.permute.xlu0 %5038
    %5042 = vset.pattern.permute.xlu0 0
    %5043 = vperm.xlu0 %5042, %v5008
    %v5044 = vpop.permute.xlu0 %5043
    %5047 = vset.pattern.permute.xlu0 0
    %5048 = vperm.xlu0 %5047, %v5009
    %v5049 = vpop.permute.xlu0 %5048
    %5052 = vset.pattern.permute.xlu0 0
    %5053 = vperm.xlu0 %5052, %v5010
    %v5054 = vpop.permute.xlu0 %5053
    %5057 = vset.pattern.permute.xlu0 0
    %5058 = vperm.xlu0 %5057, %v5011
    %v5059 = vpop.permute.xlu0 %5058
    %5062 = vset.pattern.permute.xlu0 0
    %5063 = vperm.xlu0 %5062, %v5012
    %v5064 = vpop.permute.xlu0 %5063
    %5067 = vset.pattern.permute.xlu0 0
    %5068 = vperm.xlu0 %5067, %v5013
    %v5069 = vpop.permute.xlu0 %5068
    %5072 = vset.pattern.permute.xlu0 0
    %5073 = vperm.xlu0 %5072, %v5014
    %v5074 = vpop.permute.xlu0 %5073
    %5077 = vset.pattern.permute.xlu0 0
    %5078 = vperm.xlu0 %5077, %v5015
    %v5079 = vpop.permute.xlu0 %5078
    %5082 = vset.pattern.permute.xlu0 0
    %5083 = vperm.xlu0 %5082, %v5016
    %v5084 = vpop.permute.xlu0 %5083
    %5087 = vset.pattern.permute.xlu0 0
    %5088 = vperm.xlu0 %5087, %v5017
    %v5089 = vpop.permute.xlu0 %5088
    %5092 = vset.pattern.permute.xlu0 0
    %5093 = vperm.xlu0 %5092, %v5018
    %v5094 = vpop.permute.xlu0 %5093
    %5097 = vset.pattern.permute.xlu0 0
    %5098 = vperm.xlu0 %5097, %v5019
    %v5099 = vpop.permute.xlu0 %5098
    %v5101 = vmul.f32 %v5024, %v2134
    %v5102 = vmul.f32 %v5029, %v2138
    %v5103 = vmul.f32 %v5034, %v2142
    %v5104 = vmul.f32 %v5039, %v2146
    %v5105 = vmul.f32 %v5044, %v2150
    %v5106 = vmul.f32 %v5049, %v2154
    %v5107 = vmul.f32 %v5054, %v2158
    %v5108 = vmul.f32 %v5059, %v2162
    %v5109 = vmul.f32 %v5064, %v2166
    %v5110 = vmul.f32 %v5069, %v2170
    %v5111 = vmul.f32 %v5074, %v2174
    %v5112 = vmul.f32 %v5079, %v2178
    %v5113 = vmul.f32 %v5084, %v2182
    %v5114 = vmul.f32 %v5089, %v2186
    %v5115 = vmul.f32 %v5094, %v2190
    %v5116 = vmul.f32 %v5099, %v2194
    %5118 = vrot.lane.b32.xlu0 %v5020, 80
    %v5119 = vpop.permute.xlu0 %5118
    %5137 = vrot.lane.b32.xlu0 %v5101, 80
    %v5138 = vpop.permute.xlu0 %5137
    %5139 = vrot.lane.b32.xlu0 %v5102, 80
    %v5140 = vpop.permute.xlu0 %5139
    %5141 = vrot.lane.b32.xlu0 %v5103, 80
    %v5142 = vpop.permute.xlu0 %5141
    %5143 = vrot.lane.b32.xlu0 %v5104, 80
    %v5144 = vpop.permute.xlu0 %5143
    %5145 = vrot.lane.b32.xlu0 %v5105, 80
    %v5146 = vpop.permute.xlu0 %5145
    %5147 = vrot.lane.b32.xlu0 %v5106, 80
    %v5148 = vpop.permute.xlu0 %5147
    %5149 = vrot.lane.b32.xlu0 %v5107, 80
    %v5150 = vpop.permute.xlu0 %5149
    %5151 = vrot.lane.b32.xlu0 %v5108, 80
    %v5152 = vpop.permute.xlu0 %5151
    %5153 = vrot.lane.b32.xlu0 %v5109, 80
    %v5154 = vpop.permute.xlu0 %5153
    %5155 = vrot.lane.b32.xlu0 %v5110, 80
    %v5156 = vpop.permute.xlu0 %5155
    %5157 = vrot.lane.b32.xlu0 %v5111, 80
    %v5158 = vpop.permute.xlu0 %5157
    %5159 = vrot.lane.b32.xlu0 %v5112, 80
    %v5160 = vpop.permute.xlu0 %5159
    %5161 = vrot.lane.b32.xlu0 %v5113, 80
    %v5162 = vpop.permute.xlu0 %5161
    %5163 = vrot.lane.b32.xlu0 %v5114, 80
    %v5164 = vpop.permute.xlu0 %5163
    %5165 = vrot.lane.b32.xlu0 %v5115, 80
    %v5166 = vpop.permute.xlu0 %5165
    %5167 = vrot.lane.b32.xlu0 %v5116, 80
    %v5168 = vpop.permute.xlu0 %5167
    %v5185 = vsel %vm1773, %v5004, 0
    %v5187 = vsel %vm1773, %v5005, 0
    %v5189 = vsel %vm1773, %v5006, 0
    %v5191 = vsel %vm1773, %v5007, 0
    %v5193 = vsel %vm1773, %v5008, 0
    %v5195 = vsel %vm1773, %v5009, 0
    %v5197 = vsel %vm1773, %v5010, 0
    %v5199 = vsel %vm1773, %v5011, 0
    %v5201 = vsel %vm1773, %v5012, 0
    %v5203 = vsel %vm1773, %v5013, 0
    %v5205 = vsel %vm1773, %v5014, 0
    %v5207 = vsel %vm1773, %v5015, 0
    %v5209 = vsel %vm1773, %v5016, 0
    %v5211 = vsel %vm1773, %v5017, 0
    %v5213 = vsel %vm1773, %v5018, 0
    %v5215 = vsel %vm1773, %v5019, 0
    %5217 = vmatprep.subr.mxu0 0.0
    %5218 = vmatpush1.msra.mxu0 %v5119
    %5219 = vmatprep.subr.mxu0 0.0
    %5220 = vmatpush1.msra.mxu0 0.0
    %5221 = vmatprep.subr.mxu0 0.0
    %5222 = vmatpush1.msra.mxu0 0.0
    %5223 = vmatprep.subr.mxu0 0.0
    %5224 = vmatpush1.msra.mxu0 0.0
    %5225 = vmatprep.subr.mxu0 0.0
    %5226 = vmatpush1.msra.mxu0 0.0
    %5227 = vmatprep.subr.mxu0 0.0
    %5228 = vmatpush1.msra.mxu0 0.0
    %5229 = vmatprep.subr.mxu0 0.0
    %5230 = vmatpush1.msra.mxu0 0.0
    %5231 = vmatprep.subr.mxu0 0.0
    %5232 = vmatpush1.msra.mxu0 0.0
    %5233 = vmatprep.subr.mxu0 0.0
    %5234 = vmatpush1.msra.mxu0 0.0
    %5235 = vmatprep.subr.mxu0 0.0
    %5236 = vmatpush1.msra.mxu0 0.0
    %5237 = vmatprep.subr.mxu0 0.0
    %5238 = vmatpush1.msra.mxu0 0.0
    %5239 = vmatprep.subr.mxu0 0.0
    %5240 = vmatpush1.msra.mxu0 0.0
    %5241 = vmatprep.subr.mxu0 0.0
    %5242 = vmatpush1.msra.mxu0 0.0
    %5243 = vmatprep.subr.mxu0 0.0
    %5244 = vmatpush1.msra.mxu0 0.0
    %5245 = vmatprep.subr.mxu0 0.0
    %5246 = vmatpush1.msra.mxu0 0.0
    %5247 = vmatprep.subr.mxu0 0.0
    %5248 = vmatpush1.msra.mxu0 0.0
    %5249 = vmatprep.subr.mxu0 0.0
    %5250 = vmatpush1.msra.mxu0 0.0
    %5251 = vmatprep.subr.mxu0 0.0
    %5252 = vmatpush1.msra.mxu0 0.0
    %5253 = vmatprep.subr.mxu0 0.0
    %5254 = vmatpush1.msra.mxu0 0.0
    %5255 = vmatprep.subr.mxu0 0.0
    %5256 = vmatpush1.msra.mxu0 0.0
    %5257 = vmatprep.subr.mxu0 0.0
    %5258 = vmatpush1.msra.mxu0 0.0
    %5259 = vmatprep.subr.mxu0 0.0
    %5260 = vmatpush1.msra.mxu0 0.0
    %5261 = vmatprep.subr.mxu0 0.0
    %5262 = vmatpush1.msra.mxu0 0.0
    %5263 = vmatprep.subr.mxu0 0.0
    %5264 = vmatpush1.msra.mxu0 0.0
    %5265 = vmatprep.subr.mxu0 0.0
    %5266 = vmatpush1.msra.mxu0 0.0
    %5267 = vmatprep.subr.mxu0 0.0
    %5268 = vmatpush1.msra.mxu0 0.0
    %5269 = vmatprep.subr.mxu0 0.0
    %5270 = vmatpush1.msra.mxu0 0.0
    %5271 = vmatprep.subr.mxu0 0.0
    %5272 = vmatpush1.msra.mxu0 0.0
    %5273 = vmatprep.subr.mxu0 0.0
    %5274 = vmatpush1.msra.mxu0 0.0
    %5275 = vmatprep.subr.mxu0 0.0
    %5276 = vmatpush1.msra.mxu0 0.0
    %5277 = vmatprep.subr.mxu0 0.0
    %5278 = vmatpush1.msra.mxu0 0.0
    %5279 = vmatprep.subr.mxu0 0.0
    %5280 = vmatpush1.msra.mxu0 0.0
    %5281 = vmatprep.mubr.f32.mxu0 0.0
    %5282 = vmatmul.mubr.f32.gmra.mrb[0].mxu0 %v5185
    %v5283 = vpop.f32.mrb[0].mxu0
    %v5284 = vadd.f32 %v5138, %v5283
    %v5285 = vpop.f32.mrb[0].mxu0
    %5286 = vmatprep.mubr.f32.mxu0 0.0
    %5287 = vmatmul.mubr.f32.gmra.mrb[0].mxu0 %v5187
    %v5288 = vpop.f32.mrb[0].mxu0
    %v5289 = vadd.f32 %v5140, %v5288
    %v5290 = vpop.f32.mrb[0].mxu0
    %5291 = vmatprep.mubr.f32.mxu0 0.0
    %5292 = vmatmul.mubr.f32.gmra.mrb[0].mxu0 %v5189
    %v5293 = vpop.f32.mrb[0].mxu0
    %v5294 = vadd.f32 %v5142, %v5293
    %v5295 = vpop.f32.mrb[0].mxu0
    %5296 = vmatprep.mubr.f32.mxu0 0.0
    %5297 = vmatmul.mubr.f32.gmra.mrb[0].mxu0 %v5191
    %v5298 = vpop.f32.mrb[0].mxu0
    %v5299 = vadd.f32 %v5144, %v5298
    %v5300 = vpop.f32.mrb[0].mxu0
    %5301 = vmatprep.mubr.f32.mxu0 0.0
    %5302 = vmatmul.mubr.f32.gmra.mrb[0].mxu0 %v5193
    %v5303 = vpop.f32.mrb[0].mxu0
    %v5304 = vadd.f32 %v5146, %v5303
    %v5305 = vpop.f32.mrb[0].mxu0
    %5306 = vmatprep.mubr.f32.mxu0 0.0
    %5307 = vmatmul.mubr.f32.gmra.mrb[0].mxu0 %v5195
    %v5308 = vpop.f32.mrb[0].mxu0
    %v5309 = vadd.f32 %v5148, %v5308
    %v5310 = vpop.f32.mrb[0].mxu0
    %5311 = vmatprep.mubr.f32.mxu0 0.0
    %5312 = vmatmul.mubr.f32.gmra.mrb[0].mxu0 %v5197
    %v5313 = vpop.f32.mrb[0].mxu0
    %v5314 = vadd.f32 %v5150, %v5313
    %v5315 = vpop.f32.mrb[0].mxu0
    %5316 = vmatprep.mubr.f32.mxu0 0.0
    %5317 = vmatmul.mubr.f32.gmra.mrb[0].mxu0 %v5199
    %v5318 = vpop.f32.mrb[0].mxu0
    %v5319 = vadd.f32 %v5152, %v5318
    %v5320 = vpop.f32.mrb[0].mxu0
    %5321 = vmatprep.mubr.f32.mxu0 0.0
    %5322 = vmatmul.mubr.f32.gmra.mrb[0].mxu0 %v5201
    %v5323 = vpop.f32.mrb[0].mxu0
    %v5324 = vadd.f32 %v5154, %v5323
    %v5325 = vpop.f32.mrb[0].mxu0
    %5326 = vmatprep.mubr.f32.mxu0 0.0
    %5327 = vmatmul.mubr.f32.gmra.mrb[0].mxu0 %v5203
    %v5328 = vpop.f32.mrb[0].mxu0
    %v5329 = vadd.f32 %v5156, %v5328
    %v5330 = vpop.f32.mrb[0].mxu0
    %5331 = vmatprep.mubr.f32.mxu0 0.0
    %5332 = vmatmul.mubr.f32.gmra.mrb[0].mxu0 %v5205
    %v5333 = vpop.f32.mrb[0].mxu0
    %v5334 = vadd.f32 %v5158, %v5333
    %v5335 = vpop.f32.mrb[0].mxu0
    %5336 = vmatprep.mubr.f32.mxu0 0.0
    %5337 = vmatmul.mubr.f32.gmra.mrb[0].mxu0 %v5207
    %v5338 = vpop.f32.mrb[0].mxu0
    %v5339 = vadd.f32 %v5160, %v5338
    %v5340 = vpop.f32.mrb[0].mxu0
    %5341 = vmatprep.mubr.f32.mxu0 0.0
    %5342 = vmatmul.mubr.f32.gmra.mrb[0].mxu0 %v5209
    %v5343 = vpop.f32.mrb[0].mxu0
    %v5344 = vadd.f32 %v5162, %v5343
    %v5345 = vpop.f32.mrb[0].mxu0
    %5346 = vmatprep.mubr.f32.mxu0 0.0
    %5347 = vmatmul.mubr.f32.gmra.mrb[0].mxu0 %v5211
    %v5348 = vpop.f32.mrb[0].mxu0
    %v5349 = vadd.f32 %v5164, %v5348
    %v5350 = vpop.f32.mrb[0].mxu0
    %5351 = vmatprep.mubr.f32.mxu0 0.0
    %5352 = vmatmul.mubr.f32.gmra.mrb[0].mxu0 %v5213
    %v5353 = vpop.f32.mrb[0].mxu0
    %v5354 = vadd.f32 %v5166, %v5353
    %v5355 = vpop.f32.mrb[0].mxu0
    %5356 = vmatprep.mubr.f32.mxu0 0.0
    %5357 = vmatmul.mubr.f32.gmra.mrb[0].mxu0 %v5215
    %v5358 = vpop.f32.mrb[0].mxu0
    %v5359 = vadd.f32 %v5168, %v5358
    %v5360 = vpop.f32.mrb[0].mxu0
    %5361 = vdwg.mxu0
    %vm5362 = vcmp.gt.f32.partialorder %v5284, 0.0
    %vm5363 = vcmp.gt.f32.partialorder %v5289, 0.0
    %vm5364 = vcmp.gt.f32.partialorder %v5294, 0.0
    %vm5365 = vcmp.gt.f32.partialorder %v5299, 0.0
    %vm5366 = vcmp.gt.f32.partialorder %v5304, 0.0
    %vm5367 = vcmp.gt.f32.partialorder %v5309, 0.0
    %vm5368 = vcmp.gt.f32.partialorder %v5314, 0.0
    %vm5369 = vcmp.gt.f32.partialorder %v5319, 0.0
    %vm5370 = vcmp.gt.f32.partialorder %v5324, 0.0
    %vm5371 = vcmp.gt.f32.partialorder %v5329, 0.0
    %vm5372 = vcmp.gt.f32.partialorder %v5334, 0.0
    %vm5373 = vcmp.gt.f32.partialorder %v5339, 0.0
    %vm5374 = vcmp.gt.f32.partialorder %v5344, 0.0
    %vm5375 = vcmp.gt.f32.partialorder %v5349, 0.0
    %vm5376 = vcmp.gt.f32.partialorder %v5354, 0.0
    %vm5377 = vcmp.gt.f32.partialorder %v5359, 0.0
    %v5378 = vmin.f32 %v5284, 0.0
    %v5379 = vmin.f32 %v5289, 0.0
    %v5380 = vmin.f32 %v5294, 0.0
    %v5381 = vmin.f32 %v5299, 0.0
    %v5382 = vmin.f32 %v5304, 0.0
    %v5383 = vmin.f32 %v5309, 0.0
    %v5384 = vmin.f32 %v5314, 0.0
    %v5385 = vmin.f32 %v5319, 0.0
    %v5386 = vmin.f32 %v5324, 0.0
    %v5387 = vmin.f32 %v5329, 0.0
    %v5388 = vmin.f32 %v5334, 0.0
    %v5389 = vmin.f32 %v5339, 0.0
    %v5390 = vmin.f32 %v5344, 0.0
    %v5391 = vmin.f32 %v5349, 0.0
    %v5392 = vmin.f32 %v5354, 0.0
    %v5393 = vmin.f32 %v5359, 0.0
    %v5394 = vmul.f32 %v5378, 1.442695
    %v5395 = vpow.pop %v5394
    %v5396 = vmul.f32 %v5379, 1.442695
    %v5397 = vpow.pop %v5396
    %v5398 = vmul.f32 %v5380, 1.442695
    %v5399 = vpow.pop %v5398
    %v5400 = vmul.f32 %v5381, 1.442695
    %v5401 = vpow.pop %v5400
    %v5402 = vmul.f32 %v5382, 1.442695
    %v5403 = vpow.pop %v5402
    %v5404 = vmul.f32 %v5383, 1.442695
    %v5405 = vpow.pop %v5404
    %v5406 = vmul.f32 %v5384, 1.442695
    %v5407 = vpow.pop %v5406
    %v5408 = vmul.f32 %v5385, 1.442695
    %v5409 = vpow.pop %v5408
    %v5410 = vmul.f32 %v5386, 1.442695
    %v5411 = vpow.pop %v5410
    %v5412 = vmul.f32 %v5387, 1.442695
    %v5413 = vpow.pop %v5412
    %v5414 = vmul.f32 %v5388, 1.442695
    %v5415 = vpow.pop %v5414
    %v5416 = vmul.f32 %v5389, 1.442695
    %v5417 = vpow.pop %v5416
    %v5418 = vmul.f32 %v5390, 1.442695
    %v5419 = vpow.pop %v5418
    %v5420 = vmul.f32 %v5391, 1.442695
    %v5421 = vpow.pop %v5420
    %v5422 = vmul.f32 %v5392, 1.442695
    %v5423 = vpow.pop %v5422
    %v5424 = vmul.f32 %v5393, 1.442695
    %v5425 = vpow.pop %v5424
    %v5426 = vsub.f32 %v5395, 1.0
    %v5427 = vsub.f32 %v5397, 1.0
    %v5428 = vsub.f32 %v5399, 1.0
    %v5429 = vsub.f32 %v5401, 1.0
    %v5430 = vsub.f32 %v5403, 1.0
    %v5431 = vsub.f32 %v5405, 1.0
    %v5432 = vsub.f32 %v5407, 1.0
    %v5433 = vsub.f32 %v5409, 1.0
    %v5434 = vsub.f32 %v5411, 1.0
    %v5435 = vsub.f32 %v5413, 1.0
    %v5436 = vsub.f32 %v5415, 1.0
    %v5437 = vsub.f32 %v5417, 1.0
    %v5438 = vsub.f32 %v5419, 1.0
    %v5439 = vsub.f32 %v5421, 1.0
    %v5440 = vsub.f32 %v5423, 1.0
    %v5441 = vsub.f32 %v5425, 1.0
    %v5442 = vsel %vm5362, %v5284, %v5426
    %v5443 = vsel %vm5363, %v5289, %v5427
    %v5444 = vsel %vm5364, %v5294, %v5428
    %v5445 = vsel %vm5365, %v5299, %v5429
    %v5446 = vsel %vm5366, %v5304, %v5430
    %v5447 = vsel %vm5367, %v5309, %v5431
    %v5448 = vsel %vm5368, %v5314, %v5432
    %v5449 = vsel %vm5369, %v5319, %v5433
    %v5450 = vsel %vm5370, %v5324, %v5434
    %v5451 = vsel %vm5371, %v5329, %v5435
    %v5452 = vsel %vm5372, %v5334, %v5436
    %v5453 = vsel %vm5373, %v5339, %v5437
    %v5454 = vsel %vm5374, %v5344, %v5438
    %v5455 = vsel %vm5375, %v5349, %v5439
    %v5456 = vsel %vm5376, %v5354, %v5440
    %v5457 = vsel %vm5377, %v5359, %v5441
    %5474 = vrot.lane.b32.xlu0 %v3470, 16
    %v5475 = vpop.permute.xlu0 %5474
    %5476 = vrot.lane.b32.xlu0 %v3471, 16
    %v5477 = vpop.permute.xlu0 %5476
    %5478 = vrot.lane.b32.xlu0 %v3472, 16
    %v5479 = vpop.permute.xlu0 %5478
    %5480 = vrot.lane.b32.xlu0 %v3473, 16
    %v5481 = vpop.permute.xlu0 %5480
    %5482 = vrot.lane.b32.xlu0 %v3474, 16
    %v5483 = vpop.permute.xlu0 %5482
    %5484 = vrot.lane.b32.xlu0 %v3475, 16
    %v5485 = vpop.permute.xlu0 %5484
    %5486 = vrot.lane.b32.xlu0 %v3476, 16
    %v5487 = vpop.permute.xlu0 %5486
    %5488 = vrot.lane.b32.xlu0 %v3477, 16
    %v5489 = vpop.permute.xlu0 %5488
    %5490 = vrot.lane.b32.xlu0 %v3478, 16
    %v5491 = vpop.permute.xlu0 %5490
    %5492 = vrot.lane.b32.xlu0 %v3479, 16
    %v5493 = vpop.permute.xlu0 %5492
    %5494 = vrot.lane.b32.xlu0 %v3480, 16
    %v5495 = vpop.permute.xlu0 %5494
    %5496 = vrot.lane.b32.xlu0 %v3481, 16
    %v5497 = vpop.permute.xlu0 %5496
    %5498 = vrot.lane.b32.xlu0 %v3482, 16
    %v5499 = vpop.permute.xlu0 %5498
    %5500 = vrot.lane.b32.xlu0 %v3483, 16
    %v5501 = vpop.permute.xlu0 %5500
    %5502 = vrot.lane.b32.xlu0 %v3484, 16
    %v5503 = vpop.permute.xlu0 %5502
    %5504 = vrot.lane.b32.xlu0 %v3485, 16
    %v5505 = vpop.permute.xlu0 %5504
    %5538 = vrot.lane.b32.xlu0 %v4456, 32
    %v5539 = vpop.permute.xlu0 %5538
    %5540 = vrot.lane.b32.xlu0 %v4457, 32
    %v5541 = vpop.permute.xlu0 %5540
    %5542 = vrot.lane.b32.xlu0 %v4458, 32
    %v5543 = vpop.permute.xlu0 %5542
    %5544 = vrot.lane.b32.xlu0 %v4459, 32
    %v5545 = vpop.permute.xlu0 %5544
    %5546 = vrot.lane.b32.xlu0 %v4460, 32
    %v5547 = vpop.permute.xlu0 %5546
    %5548 = vrot.lane.b32.xlu0 %v4461, 32
    %v5549 = vpop.permute.xlu0 %5548
    %5550 = vrot.lane.b32.xlu0 %v4462, 32
    %v5551 = vpop.permute.xlu0 %5550
    %5552 = vrot.lane.b32.xlu0 %v4463, 32
    %v5553 = vpop.permute.xlu0 %5552
    %5554 = vrot.lane.b32.xlu0 %v4464, 32
    %v5555 = vpop.permute.xlu0 %5554
    %5556 = vrot.lane.b32.xlu0 %v4465, 32
    %v5557 = vpop.permute.xlu0 %5556
    %5558 = vrot.lane.b32.xlu0 %v4466, 32
    %v5559 = vpop.permute.xlu0 %5558
    %5560 = vrot.lane.b32.xlu0 %v4467, 32
    %v5561 = vpop.permute.xlu0 %5560
    %5562 = vrot.lane.b32.xlu0 %v4468, 32
    %v5563 = vpop.permute.xlu0 %5562
    %5564 = vrot.lane.b32.xlu0 %v4469, 32
    %v5565 = vpop.permute.xlu0 %5564
    %5566 = vrot.lane.b32.xlu0 %v4470, 32
    %v5567 = vpop.permute.xlu0 %5566
    %5568 = vrot.lane.b32.xlu0 %v4471, 32
    %v5569 = vpop.permute.xlu0 %5568
    %5602 = vrot.lane.b32.xlu0 %v5442, 48
    %v5603 = vpop.permute.xlu0 %5602
    %5604 = vrot.lane.b32.xlu0 %v5443, 48
    %v5605 = vpop.permute.xlu0 %5604
    %5606 = vrot.lane.b32.xlu0 %v5444, 48
    %v5607 = vpop.permute.xlu0 %5606
    %5608 = vrot.lane.b32.xlu0 %v5445, 48
    %v5609 = vpop.permute.xlu0 %5608
    %5610 = vrot.lane.b32.xlu0 %v5446, 48
    %v5611 = vpop.permute.xlu0 %5610
    %5612 = vrot.lane.b32.xlu0 %v5447, 48
    %v5613 = vpop.permute.xlu0 %5612
    %5614 = vrot.lane.b32.xlu0 %v5448, 48
    %v5615 = vpop.permute.xlu0 %5614
    %5616 = vrot.lane.b32.xlu0 %v5449, 48
    %v5617 = vpop.permute.xlu0 %5616
    %5618 = vrot.lane.b32.xlu0 %v5450, 48
    %v5619 = vpop.permute.xlu0 %5618
    %5620 = vrot.lane.b32.xlu0 %v5451, 48
    %v5621 = vpop.permute.xlu0 %5620
    %5622 = vrot.lane.b32.xlu0 %v5452, 48
    %v5623 = vpop.permute.xlu0 %5622
    %5624 = vrot.lane.b32.xlu0 %v5453, 48
    %v5625 = vpop.permute.xlu0 %5624
    %5626 = vrot.lane.b32.xlu0 %v5454, 48
    %v5627 = vpop.permute.xlu0 %5626
    %5628 = vrot.lane.b32.xlu0 %v5455, 48
    %v5629 = vpop.permute.xlu0 %5628
    %5630 = vrot.lane.b32.xlu0 %v5456, 48
    %v5631 = vpop.permute.xlu0 %5630
    %5632 = vrot.lane.b32.xlu0 %v5457, 48
    %v5633 = vpop.permute.xlu0 %5632
    %vm5650 = vcmask 130048
    %v5651 = vsel %vm5650, %v2484, %v5475
    %v5652 = vsel %vm5650, %v2485, %v5477
    %v5653 = vsel %vm5650, %v2486, %v5479
    %v5654 = vsel %vm5650, %v2487, %v5481
    %v5655 = vsel %vm5650, %v2488, %v5483
    %v5656 = vsel %vm5650, %v2489, %v5485
    %v5657 = vsel %vm5650, %v2490, %v5487
    %v5658 = vsel %vm5650, %v2491, %v5489
    %v5659 = vsel %vm5650, %v2492, %v5491
    %v5660 = vsel %vm5650, %v2493, %v5493
    %v5661 = vsel %vm5650, %v2494, %v5495
    %v5662 = vsel %vm5650, %v2495, %v5497
    %v5663 = vsel %vm5650, %v2496, %v5499
    %v5664 = vsel %vm5650, %v2497, %v5501
    %v5665 = vsel %vm5650, %v2498, %v5503
    %v5666 = vsel %vm5650, %v2499, %v5505
    %v5667 = vsel %vm157, %v5651, %v5539
    %v5668 = vsel %vm157, %v5652, %v5541
    %v5669 = vsel %vm157, %v5653, %v5543
    %v5670 = vsel %vm157, %v5654, %v5545
    %v5671 = vsel %vm157, %v5655, %v5547
    %v5672 = vsel %vm157, %v5656, %v5549
    %v5673 = vsel %vm157, %v5657, %v5551
    %v5674 = vsel %vm157, %v5658, %v5553
    %v5675 = vsel %vm157, %v5659, %v5555
    %v5676 = vsel %vm157, %v5660, %v5557
    %v5677 = vsel %vm157, %v5661, %v5559
    %v5678 = vsel %vm157, %v5662, %v5561
    %v5679 = vsel %vm157, %v5663, %v5563
    %v5680 = vsel %vm157, %v5664, %v5565
    %v5681 = vsel %vm157, %v5665, %v5567
    %v5682 = vsel %vm157, %v5666, %v5569
    %vm5683 = vcmask 392192
    %v5684 = vsel %vm5683, %v5667, %v5603
    %v5685 = vsel %vm5683, %v5668, %v5605
    %v5686 = vsel %vm5683, %v5669, %v5607
    %v5687 = vsel %vm5683, %v5670, %v5609
    %v5688 = vsel %vm5683, %v5671, %v5611
    %v5689 = vsel %vm5683, %v5672, %v5613
    %v5690 = vsel %vm5683, %v5673, %v5615
    %v5691 = vsel %vm5683, %v5674, %v5617
    %v5692 = vsel %vm5683, %v5675, %v5619
    %v5693 = vsel %vm5683, %v5676, %v5621
    %v5694 = vsel %vm5683, %v5677, %v5623
    %v5695 = vsel %vm5683, %v5678, %v5625
    %v5696 = vsel %vm5683, %v5679, %v5627
    %v5697 = vsel %vm5683, %v5680, %v5629
    %v5698 = vsel %vm5683, %v5681, %v5631
    %v5699 = vsel %vm5683, %v5682, %v5633
    %v5700 = vld [vmem:[%s12] sm:$0xff]
    %v5701 = vld [vmem:[%s12 + $0x8] sm:$0xff]
    %v5702 = vld [vmem:[%s12 + $0x10] sm:$0xff]
    %v5703 = vld [vmem:[%s12 + $0x18] sm:$0xff]
    %v5704 = vld [vmem:[%s12 + $0x20] sm:$0xff]
    %v5705 = vld [vmem:[%s12 + $0x28] sm:$0xff]
    %v5706 = vld [vmem:[%s12 + $0x30] sm:$0xff]
    %v5707 = vld [vmem:[%s12 + $0x38] sm:$0xff]
    %vm5708 = vcmask 523264
    %v5710 = vsel %vm5708, %v5684, 0
    %v5713 = vsel %vm5708, %v5685, 0
    %v5716 = vsel %vm5708, %v5686, 0
    %v5719 = vsel %vm5708, %v5687, 0
    %v5722 = vsel %vm5708, %v5688, 0
    %v5725 = vsel %vm5708, %v5689, 0
    %v5728 = vsel %vm5708, %v5690, 0
    %v5731 = vsel %vm5708, %v5691, 0
    %v5734 = vsel %vm5708, %v5692, 0
    %v5737 = vsel %vm5708, %v5693, 0
    %v5740 = vsel %vm5708, %v5694, 0
    %v5743 = vsel %vm5708, %v5695, 0
    %v5746 = vsel %vm5708, %v5696, 0
    %v5749 = vsel %vm5708, %v5697, 0
    %v5752 = vsel %vm5708, %v5698, 0
    %v5755 = vsel %vm5708, %v5699, 0
    %5757 = vmatprep.subr.mxu0 0.0
    %5758 = vmatpush1.msra.mxu0 %v5700
    %5759 = vmatprep.subr.mxu0 0.0
    %5760 = vmatpush1.msra.mxu0 %v5701
    %5761 = vmatprep.subr.mxu0 0.0
    %5762 = vmatpush1.msra.mxu0 %v5702
    %5763 = vmatprep.subr.mxu0 0.0
    %5764 = vmatpush1.msra.mxu0 %v5703
    %5765 = vmatprep.subr.mxu0 0.0
    %5766 = vmatpush1.msra.mxu0 %v5704
    %5767 = vmatprep.subr.mxu0 0.0
    %5768 = vmatpush1.msra.mxu0 %v5705
    %5769 = vmatprep.subr.mxu0 0.0
    %5770 = vmatpush1.msra.mxu0 %v5706
    %5771 = vmatprep.subr.mxu0 0.0
    %5772 = vmatpush1.msra.mxu0 %v5707
    %5773 = vmatprep.subr.mxu0 0.0
    %5774 = vmatpush1.msra.mxu0 0.0
    %5775 = vmatprep.subr.mxu0 0.0
    %5776 = vmatpush1.msra.mxu0 0.0
    %5777 = vmatprep.subr.mxu0 0.0
    %5778 = vmatpush1.msra.mxu0 0.0
    %5779 = vmatprep.subr.mxu0 0.0
    %5780 = vmatpush1.msra.mxu0 0.0
    %5781 = vmatprep.subr.mxu0 0.0
    %5782 = vmatpush1.msra.mxu0 0.0
    %5783 = vmatprep.subr.mxu0 0.0
    %5784 = vmatpush1.msra.mxu0 0.0
    %5785 = vmatprep.subr.mxu0 0.0
    %5786 = vmatpush1.msra.mxu0 0.0
    %5787 = vmatprep.subr.mxu0 0.0
    %5788 = vmatpush1.msra.mxu0 0.0
    %5789 = vmatprep.subr.mxu0 0.0
    %5790 = vmatpush1.msra.mxu0 0.0
    %5791 = vmatprep.subr.mxu0 0.0
    %5792 = vmatpush1.msra.mxu0 0.0
    %5793 = vmatprep.subr.mxu0 0.0
    %5794 = vmatpush1.msra.mxu0 0.0
    %5795 = vmatprep.subr.mxu0 0.0
    %5796 = vmatpush1.msra.mxu0 0.0
    %5797 = vmatprep.subr.mxu0 0.0
    %5798 = vmatpush1.msra.mxu0 0.0
    %5799 = vmatprep.subr.mxu0 0.0
    %5800 = vmatpush1.msra.mxu0 0.0
    %5801 = vmatprep.subr.mxu0 0.0
    %5802 = vmatpush1.msra.mxu0 0.0
    %5803 = vmatprep.subr.mxu0 0.0
    %5804 = vmatpush1.msra.mxu0 0.0
    %5805 = vmatprep.subr.mxu0 0.0
    %5806 = vmatpush1.msra.mxu0 0.0
    %5807 = vmatprep.subr.mxu0 0.0
    %5808 = vmatpush1.msra.mxu0 0.0
    %5809 = vmatprep.subr.mxu0 0.0
    %5810 = vmatpush1.msra.mxu0 0.0
    %5811 = vmatprep.subr.mxu0 0.0
    %5812 = vmatpush1.msra.mxu0 0.0
    %5813 = vmatprep.subr.mxu0 0.0
    %5814 = vmatpush1.msra.mxu0 0.0
    %5815 = vmatprep.subr.mxu0 0.0
    %5816 = vmatpush1.msra.mxu0 0.0
    %5817 = vmatprep.subr.mxu0 0.0
    %5818 = vmatpush1.msra.mxu0 0.0
    %5819 = vmatprep.subr.mxu0 0.0
    %5820 = vmatpush1.msra.mxu0 0.0
    %5821 = vmatprep.mubr.f32.mxu0 0.0
    %5822 = vmatmul.mubr.f32.gmra.mrb[0].mxu0 %v5710
    %v5823 = vpop.f32.mrb[0].mxu0
    %v5824 = vadd.f32 0.0, %v5823
    %v5825 = vpop.f32.mrb[0].mxu0
    %5826 = vmatprep.mubr.f32.mxu0 0.0
    %5827 = vmatmul.mubr.f32.gmra.mrb[0].mxu0 %v5713
    %v5828 = vpop.f32.mrb[0].mxu0
    %v5829 = vadd.f32 0.0, %v5828
    %v5830 = vpop.f32.mrb[0].mxu0
    %5831 = vmatprep.mubr.f32.mxu0 0.0
    %5832 = vmatmul.mubr.f32.gmra.mrb[0].mxu0 %v5716
    %v5833 = vpop.f32.mrb[0].mxu0
    %v5834 = vadd.f32 0.0, %v5833
    %v5835 = vpop.f32.mrb[0].mxu0
    %5836 = vmatprep.mubr.f32.mxu0 0.0
    %5837 = vmatmul.mubr.f32.gmra.mrb[0].mxu0 %v5719
    %v5838 = vpop.f32.mrb[0].mxu0
    %v5839 = vadd.f32 0.0, %v5838
    %v5840 = vpop.f32.mrb[0].mxu0
    %5841 = vmatprep.mubr.f32.mxu0 0.0
    %5842 = vmatmul.mubr.f32.gmra.mrb[0].mxu0 %v5722
    %v5843 = vpop.f32.mrb[0].mxu0
    %v5844 = vadd.f32 0.0, %v5843
    %v5845 = vpop.f32.mrb[0].mxu0
    %5846 = vmatprep.mubr.f32.mxu0 0.0
    %5847 = vmatmul.mubr.f32.gmra.mrb[0].mxu0 %v5725
    %v5848 = vpop.f32.mrb[0].mxu0
    %v5849 = vadd.f32 0.0, %v5848
    %v5850 = vpop.f32.mrb[0].mxu0
    %5851 = vmatprep.mubr.f32.mxu0 0.0
    %5852 = vmatmul.mubr.f32.gmra.mrb[0].mxu0 %v5728
    %v5853 = vpop.f32.mrb[0].mxu0
    %v5854 = vadd.f32 0.0, %v5853
    %v5855 = vpop.f32.mrb[0].mxu0
    %5856 = vmatprep.mubr.f32.mxu0 0.0
    %5857 = vmatmul.mubr.f32.gmra.mrb[0].mxu0 %v5731
    %v5858 = vpop.f32.mrb[0].mxu0
    %v5859 = vadd.f32 0.0, %v5858
    %v5860 = vpop.f32.mrb[0].mxu0
    %5861 = vmatprep.mubr.f32.mxu0 0.0
    %5862 = vmatmul.mubr.f32.gmra.mrb[0].mxu0 %v5734
    %v5863 = vpop.f32.mrb[0].mxu0
    %v5864 = vadd.f32 0.0, %v5863
    %v5865 = vpop.f32.mrb[0].mxu0
    %5866 = vmatprep.mubr.f32.mxu0 0.0
    %5867 = vmatmul.mubr.f32.gmra.mrb[0].mxu0 %v5737
    %v5868 = vpop.f32.mrb[0].mxu0
    %v5869 = vadd.f32 0.0, %v5868
    %v5870 = vpop.f32.mrb[0].mxu0
    %5871 = vmatprep.mubr.f32.mxu0 0.0
    %5872 = vmatmul.mubr.f32.gmra.mrb[0].mxu0 %v5740
    %v5873 = vpop.f32.mrb[0].mxu0
    %v5874 = vadd.f32 0.0, %v5873
    %v5875 = vpop.f32.mrb[0].mxu0
    %5876 = vmatprep.mubr.f32.mxu0 0.0
    %5877 = vmatmul.mubr.f32.gmra.mrb[0].mxu0 %v5743
    %v5878 = vpop.f32.mrb[0].mxu0
    %v5879 = vadd.f32 0.0, %v5878
    %v5880 = vpop.f32.mrb[0].mxu0
    %5881 = vmatprep.mubr.f32.mxu0 0.0
    %5882 = vmatmul.mubr.f32.gmra.mrb[0].mxu0 %v5746
    %v5883 = vpop.f32.mrb[0].mxu0
    %v5884 = vadd.f32 0.0, %v5883
    %v5885 = vpop.f32.mrb[0].mxu0
    %5886 = vmatprep.mubr.f32.mxu0 0.0
    %5887 = vmatmul.mubr.f32.gmra.mrb[0].mxu0 %v5749
    %v5888 = vpop.f32.mrb[0].mxu0
    %v5889 = vadd.f32 0.0, %v5888
    %v5890 = vpop.f32.mrb[0].mxu0
    %5891 = vmatprep.mubr.f32.mxu0 0.0
    %5892 = vmatmul.mubr.f32.gmra.mrb[0].mxu0 %v5752
    %v5893 = vpop.f32.mrb[0].mxu0
    %v5894 = vadd.f32 0.0, %v5893
    %v5895 = vpop.f32.mrb[0].mxu0
    %5896 = vmatprep.mubr.f32.mxu0 0.0
    %5897 = vmatmul.mubr.f32.gmra.mrb[0].mxu0 %v5755
    %v5898 = vpop.f32.mrb[0].mxu0
    %v5899 = vadd.f32 0.0, %v5898
    %v5900 = vpop.f32.mrb[0].mxu0
    %5901 = vdwg.mxu0
    %v5902 = vld [vmem:[%s13] sm:$0x1]
    %v5904 = vlaneseq
    %v5905 = vshrl.u32 %v5904, 7
    %v5906 = vsub.s32 0, %v5905
    %v5907 = vrot.slane %v5902, %v5906
    %v5909 = vmul.f32 %v5824, %v5907
    %v5910 = vmul.f32 %v5829, %v5907
    %v5911 = vmul.f32 %v5834, %v5907
    %v5912 = vmul.f32 %v5839, %v5907
    %v5913 = vmul.f32 %v5844, %v5907
    %v5914 = vmul.f32 %v5849, %v5907
    %v5915 = vmul.f32 %v5854, %v5907
    %v5916 = vmul.f32 %v5859, %v5907
    %v5917 = vmul.f32 %v5864, %v5907
    %v5918 = vmul.f32 %v5869, %v5907
    %v5919 = vmul.f32 %v5874, %v5907
    %v5920 = vmul.f32 %v5879, %v5907
    %v5921 = vmul.f32 %v5884, %v5907
    %v5922 = vmul.f32 %v5889, %v5907
    %v5923 = vmul.f32 %v5894, %v5907
    %v5924 = vmul.f32 %v5899, %v5907
    %v5941 = vrot.slane %v5910, 7
    %vm5942 = vcmask 1041409
    %v5943 = vsel %vm5942, %v5941, %v5909
    %v5944 = vrot.slane %v5911, 6
    %vm5945 = vcmask 1042434
    %v5946 = vsel %vm5945, %v5944, %v5943
    %v5947 = vrot.slane %v5912, 5
    %vm5948 = vcmask 1043459
    %v5949 = vsel %vm5948, %v5947, %v5946
    %v5950 = vrot.slane %v5913, 4
    %vm5951 = vcmask 1044484
    %v5952 = vsel %vm5951, %v5950, %v5949
    %v5953 = vrot.slane %v5914, 3
    %vm5954 = vcmask 1045509
    %v5955 = vsel %vm5954, %v5953, %v5952
    %v5956 = vrot.slane %v5915, 2
    %vm5957 = vcmask 1046534
    %v5958 = vsel %vm5957, %v5956, %v5955
    %v5959 = vrot.slane %v5916, 1
    %vm5960 = vcmask 1047559
    %v5961 = vsel %vm5960, %v5959, %v5958
    %v5962 = vrot.slane %v5918, 7
    %v5963 = vsel %vm5942, %v5962, %v5917
    %v5964 = vrot.slane %v5919, 6
    %v5965 = vsel %vm5945, %v5964, %v5963
    %v5966 = vrot.slane %v5920, 5
    %v5967 = vsel %vm5948, %v5966, %v5965
    %v5968 = vrot.slane %v5921, 4
    %v5969 = vsel %vm5951, %v5968, %v5967
    %v5970 = vrot.slane %v5922, 3
    %v5971 = vsel %vm5954, %v5970, %v5969
    %v5972 = vrot.slane %v5923, 2
    %v5973 = vsel %vm5957, %v5972, %v5971
    %v5974 = vrot.slane %v5924, 1
    %v5975 = vsel %vm5960, %v5974, %v5973
    %v5978 = vsel %vm157, %v5961, 0.0
    %5979 = vadd.xlane.f32.xlu0 %v5978
    %v5980 = vpop.xlane.xlu0 %5979
    %v5981 = vsel %vm157, %v5975, 0.0
    %5982 = vadd.xlane.f32.xlu0 %v5981
    %v5983 = vpop.xlane.xlu0 %5982
    %v5984 = vld [vmem:[%s14] sm:$0x1]
    %v5986 = vlaneseq
    %v5987 = vshrl.u32 %v5986, 7
    %v5988 = vsub.s32 0, %v5987
    %v5989 = vrot.slane %v5984, %v5988
    %v5991 = vmul.f32 %v5824, %v5989
    %v5992 = vmul.f32 %v5829, %v5989
    %v5993 = vmul.f32 %v5834, %v5989
    %v5994 = vmul.f32 %v5839, %v5989
    %v5995 = vmul.f32 %v5844, %v5989
    %v5996 = vmul.f32 %v5849, %v5989
    %v5997 = vmul.f32 %v5854, %v5989
    %v5998 = vmul.f32 %v5859, %v5989
    %v5999 = vmul.f32 %v5864, %v5989
    %v6000 = vmul.f32 %v5869, %v5989
    %v6001 = vmul.f32 %v5874, %v5989
    %v6002 = vmul.f32 %v5879, %v5989
    %v6003 = vmul.f32 %v5884, %v5989
    %v6004 = vmul.f32 %v5889, %v5989
    %v6005 = vmul.f32 %v5894, %v5989
    %v6006 = vmul.f32 %v5899, %v5989
    %v6007 = vsel %vm157, %v5991, 0.0
    %6008 = vadd.xlane.f32.xlu0 %v6007
    %v6009 = vpop.xlane.xlu0 %6008
    %v6010 = vsel %vm157, %v5992, 0.0
    %6011 = vadd.xlane.f32.xlu0 %v6010
    %v6012 = vpop.xlane.xlu0 %6011
    %v6013 = vsel %vm157, %v5993, 0.0
    %6014 = vadd.xlane.f32.xlu0 %v6013
    %v6015 = vpop.xlane.xlu0 %6014
    %v6016 = vsel %vm157, %v5994, 0.0
    %6017 = vadd.xlane.f32.xlu0 %v6016
    %v6018 = vpop.xlane.xlu0 %6017
    %v6019 = vsel %vm157, %v5995, 0.0
    %6020 = vadd.xlane.f32.xlu0 %v6019
    %v6021 = vpop.xlane.xlu0 %6020
    %v6022 = vsel %vm157, %v5996, 0.0
    %6023 = vadd.xlane.f32.xlu0 %v6022
    %v6024 = vpop.xlane.xlu0 %6023
    %v6025 = vsel %vm157, %v5997, 0.0
    %6026 = vadd.xlane.f32.xlu0 %v6025
    %v6027 = vpop.xlane.xlu0 %6026
    %v6028 = vsel %vm157, %v5998, 0.0
    %6029 = vadd.xlane.f32.xlu0 %v6028
    %v6030 = vpop.xlane.xlu0 %6029
    %v6031 = vsel %vm157, %v5999, 0.0
    %6032 = vadd.xlane.f32.xlu0 %v6031
    %v6033 = vpop.xlane.xlu0 %6032
    %v6034 = vsel %vm157, %v6000, 0.0
    %6035 = vadd.xlane.f32.xlu0 %v6034
    %v6036 = vpop.xlane.xlu0 %6035
    %v6037 = vsel %vm157, %v6001, 0.0
    %6038 = vadd.xlane.f32.xlu0 %v6037
    %v6039 = vpop.xlane.xlu0 %6038
    %v6040 = vsel %vm157, %v6002, 0.0
    %6041 = vadd.xlane.f32.xlu0 %v6040
    %v6042 = vpop.xlane.xlu0 %6041
    %v6043 = vsel %vm157, %v6003, 0.0
    %6044 = vadd.xlane.f32.xlu0 %v6043
    %v6045 = vpop.xlane.xlu0 %6044
    %v6046 = vsel %vm157, %v6004, 0.0
    %6047 = vadd.xlane.f32.xlu0 %v6046
    %v6048 = vpop.xlane.xlu0 %6047
    %v6049 = vsel %vm157, %v6005, 0.0
    %6050 = vadd.xlane.f32.xlu0 %v6049
    %v6051 = vpop.xlane.xlu0 %6050
    %v6052 = vsel %vm157, %v6006, 0.0
    %6053 = vadd.xlane.f32.xlu0 %v6052
    %v6054 = vpop.xlane.xlu0 %6053
    %v6071 = vlaneseq
    %v6072 = vshrl.u32 %v6071, 7
    %v6073 = vsub.s32 %v1196, %v6072
    %v6074 = vrot.slane %v6009, %v6073
    %v6075 = vlaneseq
    %v6076 = vshrl.u32 %v6075, 7
    %v6077 = vsub.s32 %v1196, %v6076
    %v6078 = vrot.slane %v6012, %v6077
    %v6079 = vlaneseq
    %v6080 = vshrl.u32 %v6079, 7
    %v6081 = vsub.s32 %v1196, %v6080
    %v6082 = vrot.slane %v6015, %v6081
    %v6083 = vlaneseq
    %v6084 = vshrl.u32 %v6083, 7
    %v6085 = vsub.s32 %v1196, %v6084
    %v6086 = vrot.slane %v6018, %v6085
    %v6087 = vlaneseq
    %v6088 = vshrl.u32 %v6087, 7
    %v6089 = vsub.s32 %v1196, %v6088
    %v6090 = vrot.slane %v6021, %v6089
    %v6091 = vlaneseq
    %v6092 = vshrl.u32 %v6091, 7
    %v6093 = vsub.s32 %v1196, %v6092
    %v6094 = vrot.slane %v6024, %v6093
    %v6095 = vlaneseq
    %v6096 = vshrl.u32 %v6095, 7
    %v6097 = vsub.s32 %v1196, %v6096
    %v6098 = vrot.slane %v6027, %v6097
    %v6099 = vlaneseq
    %v6100 = vshrl.u32 %v6099, 7
    %v6101 = vsub.s32 %v1196, %v6100
    %v6102 = vrot.slane %v6030, %v6101
    %v6103 = vlaneseq
    %v6104 = vshrl.u32 %v6103, 7
    %v6105 = vsub.s32 %v1196, %v6104
    %v6106 = vrot.slane %v6033, %v6105
    %v6107 = vlaneseq
    %v6108 = vshrl.u32 %v6107, 7
    %v6109 = vsub.s32 %v1196, %v6108
    %v6110 = vrot.slane %v6036, %v6109
    %v6111 = vlaneseq
    %v6112 = vshrl.u32 %v6111, 7
    %v6113 = vsub.s32 %v1196, %v6112
    %v6114 = vrot.slane %v6039, %v6113
    %v6115 = vlaneseq
    %v6116 = vshrl.u32 %v6115, 7
    %v6117 = vsub.s32 %v1196, %v6116
    %v6118 = vrot.slane %v6042, %v6117
    %v6119 = vlaneseq
    %v6120 = vshrl.u32 %v6119, 7
    %v6121 = vsub.s32 %v1196, %v6120
    %v6122 = vrot.slane %v6045, %v6121
    %v6123 = vlaneseq
    %v6124 = vshrl.u32 %v6123, 7
    %v6125 = vsub.s32 %v1196, %v6124
    %v6126 = vrot.slane %v6048, %v6125
    %v6127 = vlaneseq
    %v6128 = vshrl.u32 %v6127, 7
    %v6129 = vsub.s32 %v1196, %v6128
    %v6130 = vrot.slane %v6051, %v6129
    %v6131 = vlaneseq
    %v6132 = vshrl.u32 %v6131, 7
    %v6133 = vsub.s32 %v1196, %v6132
    %v6134 = vrot.slane %v6054, %v6133
    %v6135 = vsel %vm5942, %v6078, %v6074
    %v6136 = vsel %vm5945, %v6082, %v6135
    %v6137 = vsel %vm5948, %v6086, %v6136
    %v6138 = vsel %vm5951, %v6090, %v6137
    %v6139 = vsel %vm5954, %v6094, %v6138
    %v6140 = vsel %vm5957, %v6098, %v6139
    %v6141 = vsel %vm5960, %v6102, %v6140
    %v6142 = vsel %vm5942, %v6110, %v6106
    %v6143 = vsel %vm5945, %v6114, %v6142
    %v6144 = vsel %vm5948, %v6118, %v6143
    %v6145 = vsel %vm5951, %v6122, %v6144
    %v6146 = vsel %vm5954, %v6126, %v6145
    %v6147 = vsel %vm5957, %v6130, %v6146
    %v6148 = vsel %vm5960, %v6134, %v6147
    %v6151 = vadd.f32 %v5980, %v6141
    %v6152 = vadd.f32 %v5983, %v6148
    %vm6153 = vcmp.gt.f32.partialorder %v6151, 0.0
    %vm6154 = vcmp.gt.f32.partialorder %v6152, 0.0
    %v6155 = vmul.f32 %v6151, 0.2
    %v6156 = vmul.f32 %v6152, 0.2
    %v6157 = vsel %vm6153, %v6151, %v6155
    %v6158 = vsel %vm6154, %v6152, %v6156
    %vm6159 = vcmp.gt.f32.partialorder %v1193, 0.0
    %vm6160 = vcmp.gt.f32.partialorder %v1194, 0.0
    %v6161 = vsel %vm6159, %v6157, -9e+15
    %v6162 = vsel %vm6160, %v6158, -9e+15
    %v6163 = vsel %vm1773, %v6161, -inf
    %6164 = vmax.xlane.f32.xlu0 %v6163
    %v6165 = vpop.xlane.xlu0 %6164
    %v6166 = vsel %vm1773, %v6162, -inf
    %6167 = vmax.xlane.f32.xlu0 %v6166
    %v6168 = vpop.xlane.xlu0 %6167
    %v6169 = vsub.f32 %v6161, %v6165
    %v6170 = vsub.f32 %v6162, %v6168
    %v6171 = vmul.f32 %v6169, 1.442695
    %v6172 = vpow.pop %v6171
    %v6173 = vmul.f32 %v6170, 1.442695
    %v6174 = vpow.pop %v6173
    %v6175 = vsel %vm1773, %v6172, 0.0
    %6176 = vadd.xlane.f32.xlu0 %v6175
    %v6177 = vpop.xlane.xlu0 %6176
    %v6178 = vsel %vm1773, %v6174, 0.0
    %6179 = vadd.xlane.f32.xlu0 %v6178
    %v6180 = vpop.xlane.xlu0 %6179
    %v6181 = vrcp.pop %v6177
    %v6182 = vrcp.pop %v6180
    %v6183 = vmul.f32 %v6172, %v6181
    %v6184 = vmul.f32 %v6174, %v6182
    %v6185 = vlaneseq
    %v6186 = vshrl.u32 %v6185, 7
    %v6187 = vsub.s32 0, %v6186
    %v6188 = vrot.slane %v6183, %v6187
    %6190 = vbcast.lane.b32.xlu0 %v6188, 256
    %v6191 = vpop.permute.xlu0 %6190
    %v6192 = vlaneseq
    %v6193 = vshrl.u32 %v6192, 7
    %v6194 = vsub.s32 1, %v6193
    %v6195 = vrot.slane %v6183, %v6194
    %6197 = vbcast.lane.b32.xlu0 %v6195, 256
    %v6198 = vpop.permute.xlu0 %6197
    %v6199 = vlaneseq
    %v6200 = vshrl.u32 %v6199, 7
    %v6201 = vsub.s32 2, %v6200
    %v6202 = vrot.slane %v6183, %v6201
    %6204 = vbcast.lane.b32.xlu0 %v6202, 256
    %v6205 = vpop.permute.xlu0 %6204
    %v6206 = vlaneseq
    %v6207 = vshrl.u32 %v6206, 7
    %v6208 = vsub.s32 3, %v6207
    %v6209 = vrot.slane %v6183, %v6208
    %6211 = vbcast.lane.b32.xlu0 %v6209, 256
    %v6212 = vpop.permute.xlu0 %6211
    %v6213 = vlaneseq
    %v6214 = vshrl.u32 %v6213, 7
    %v6215 = vsub.s32 4, %v6214
    %v6216 = vrot.slane %v6183, %v6215
    %6218 = vbcast.lane.b32.xlu0 %v6216, 256
    %v6219 = vpop.permute.xlu0 %6218
    %v6220 = vlaneseq
    %v6221 = vshrl.u32 %v6220, 7
    %v6222 = vsub.s32 5, %v6221
    %v6223 = vrot.slane %v6183, %v6222
    %6225 = vbcast.lane.b32.xlu0 %v6223, 256
    %v6226 = vpop.permute.xlu0 %6225
    %v6227 = vlaneseq
    %v6228 = vshrl.u32 %v6227, 7
    %v6229 = vsub.s32 6, %v6228
    %v6230 = vrot.slane %v6183, %v6229
    %6232 = vbcast.lane.b32.xlu0 %v6230, 256
    %v6233 = vpop.permute.xlu0 %6232
    %v6234 = vlaneseq
    %v6235 = vshrl.u32 %v6234, 7
    %v6236 = vsub.s32 7, %v6235
    %v6237 = vrot.slane %v6183, %v6236
    %6239 = vbcast.lane.b32.xlu0 %v6237, 256
    %v6240 = vpop.permute.xlu0 %6239
    %v6241 = vlaneseq
    %v6242 = vshrl.u32 %v6241, 7
    %v6243 = vsub.s32 0, %v6242
    %v6244 = vrot.slane %v6184, %v6243
    %6246 = vbcast.lane.b32.xlu0 %v6244, 256
    %v6247 = vpop.permute.xlu0 %6246
    %v6248 = vlaneseq
    %v6249 = vshrl.u32 %v6248, 7
    %v6250 = vsub.s32 1, %v6249
    %v6251 = vrot.slane %v6184, %v6250
    %6253 = vbcast.lane.b32.xlu0 %v6251, 256
    %v6254 = vpop.permute.xlu0 %6253
    %v6255 = vlaneseq
    %v6256 = vshrl.u32 %v6255, 7
    %v6257 = vsub.s32 2, %v6256
    %v6258 = vrot.slane %v6184, %v6257
    %6260 = vbcast.lane.b32.xlu0 %v6258, 256
    %v6261 = vpop.permute.xlu0 %6260
    %v6262 = vlaneseq
    %v6263 = vshrl.u32 %v6262, 7
    %v6264 = vsub.s32 3, %v6263
    %v6265 = vrot.slane %v6184, %v6264
    %6267 = vbcast.lane.b32.xlu0 %v6265, 256
    %v6268 = vpop.permute.xlu0 %6267
    %v6269 = vlaneseq
    %v6270 = vshrl.u32 %v6269, 7
    %v6271 = vsub.s32 4, %v6270
    %v6272 = vrot.slane %v6184, %v6271
    %6274 = vbcast.lane.b32.xlu0 %v6272, 256
    %v6275 = vpop.permute.xlu0 %6274
    %v6276 = vlaneseq
    %v6277 = vshrl.u32 %v6276, 7
    %v6278 = vsub.s32 5, %v6277
    %v6279 = vrot.slane %v6184, %v6278
    %6281 = vbcast.lane.b32.xlu0 %v6279, 256
    %v6282 = vpop.permute.xlu0 %6281
    %v6283 = vlaneseq
    %v6284 = vshrl.u32 %v6283, 7
    %v6285 = vsub.s32 6, %v6284
    %v6286 = vrot.slane %v6184, %v6285
    %6288 = vbcast.lane.b32.xlu0 %v6286, 256
    %v6289 = vpop.permute.xlu0 %6288
    %v6290 = vlaneseq
    %v6291 = vshrl.u32 %v6290, 7
    %v6292 = vsub.s32 7, %v6291
    %v6293 = vrot.slane %v6184, %v6292
    %6295 = vbcast.lane.b32.xlu0 %v6293, 256
    %v6296 = vpop.permute.xlu0 %6295
    %v6297 = vmul.f32 %v6191, %v5824
    %v6298 = vmul.f32 %v6198, %v5829
    %v6299 = vmul.f32 %v6205, %v5834
    %v6300 = vmul.f32 %v6212, %v5839
    %v6301 = vmul.f32 %v6219, %v5844
    %v6302 = vmul.f32 %v6226, %v5849
    %v6303 = vmul.f32 %v6233, %v5854
    %v6304 = vmul.f32 %v6240, %v5859
    %v6305 = vmul.f32 %v6247, %v5864
    %v6306 = vmul.f32 %v6254, %v5869
    %v6307 = vmul.f32 %v6261, %v5874
    %v6308 = vmul.f32 %v6268, %v5879
    %v6309 = vmul.f32 %v6275, %v5884
    %v6310 = vmul.f32 %v6282, %v5889
    %v6311 = vmul.f32 %v6289, %v5894
    %v6312 = vmul.f32 %v6296, %v5899
    %v6313 = vsel %vm157, %v6297, 0.0
    %v6314 = vrot.slane %v6313, 4
    %v6315 = vadd.f32 %v6313, %v6314
    %v6316 = vrot.slane %v6315, 2
    %v6317 = vadd.f32 %v6315, %v6316
    %v6318 = vrot.slane %v6317, 1
    %v6319 = vadd.f32 %v6317, %v6318
    %v6320 = vsel %vm157, %v6298, 0.0
    %v6321 = vrot.slane %v6320, 4
    %v6322 = vadd.f32 %v6320, %v6321
    %v6323 = vrot.slane %v6322, 2
    %v6324 = vadd.f32 %v6322, %v6323
    %v6325 = vrot.slane %v6324, 1
    %v6326 = vadd.f32 %v6324, %v6325
    %v6327 = vsel %vm157, %v6299, 0.0
    %v6328 = vrot.slane %v6327, 4
    %v6329 = vadd.f32 %v6327, %v6328
    %v6330 = vrot.slane %v6329, 2
    %v6331 = vadd.f32 %v6329, %v6330
    %v6332 = vrot.slane %v6331, 1
    %v6333 = vadd.f32 %v6331, %v6332
    %v6334 = vsel %vm157, %v6300, 0.0
    %v6335 = vrot.slane %v6334, 4
    %v6336 = vadd.f32 %v6334, %v6335
    %v6337 = vrot.slane %v6336, 2
    %v6338 = vadd.f32 %v6336, %v6337
    %v6339 = vrot.slane %v6338, 1
    %v6340 = vadd.f32 %v6338, %v6339
    %v6341 = vsel %vm157, %v6301, 0.0
    %v6342 = vrot.slane %v6341, 4
    %v6343 = vadd.f32 %v6341, %v6342
    %v6344 = vrot.slane %v6343, 2
    %v6345 = vadd.f32 %v6343, %v6344
    %v6346 = vrot.slane %v6345, 1
    %v6347 = vadd.f32 %v6345, %v6346
    %v6348 = vsel %vm157, %v6302, 0.0
    %v6349 = vrot.slane %v6348, 4
    %v6350 = vadd.f32 %v6348, %v6349
    %v6351 = vrot.slane %v6350, 2
    %v6352 = vadd.f32 %v6350, %v6351
    %v6353 = vrot.slane %v6352, 1
    %v6354 = vadd.f32 %v6352, %v6353
    %v6355 = vsel %vm157, %v6303, 0.0
    %v6356 = vrot.slane %v6355, 4
    %v6357 = vadd.f32 %v6355, %v6356
    %v6358 = vrot.slane %v6357, 2
    %v6359 = vadd.f32 %v6357, %v6358
    %v6360 = vrot.slane %v6359, 1
    %v6361 = vadd.f32 %v6359, %v6360
    %v6362 = vsel %vm157, %v6304, 0.0
    %v6363 = vrot.slane %v6362, 4
    %v6364 = vadd.f32 %v6362, %v6363
    %v6365 = vrot.slane %v6364, 2
    %v6366 = vadd.f32 %v6364, %v6365
    %v6367 = vrot.slane %v6366, 1
    %v6368 = vadd.f32 %v6366, %v6367
    %v6369 = vsel %vm157, %v6305, 0.0
    %v6370 = vrot.slane %v6369, 4
    %v6371 = vadd.f32 %v6369, %v6370
    %v6372 = vrot.slane %v6371, 2
    %v6373 = vadd.f32 %v6371, %v6372
    %v6374 = vrot.slane %v6373, 1
    %v6375 = vadd.f32 %v6373, %v6374
    %v6376 = vsel %vm157, %v6306, 0.0
    %v6377 = vrot.slane %v6376, 4
    %v6378 = vadd.f32 %v6376, %v6377
    %v6379 = vrot.slane %v6378, 2
    %v6380 = vadd.f32 %v6378, %v6379
    %v6381 = vrot.slane %v6380, 1
    %v6382 = vadd.f32 %v6380, %v6381
    %v6383 = vsel %vm157, %v6307, 0.0
    %v6384 = vrot.slane %v6383, 4
    %v6385 = vadd.f32 %v6383, %v6384
    %v6386 = vrot.slane %v6385, 2
    %v6387 = vadd.f32 %v6385, %v6386
    %v6388 = vrot.slane %v6387, 1
    %v6389 = vadd.f32 %v6387, %v6388
    %v6390 = vsel %vm157, %v6308, 0.0
    %v6391 = vrot.slane %v6390, 4
    %v6392 = vadd.f32 %v6390, %v6391
    %v6393 = vrot.slane %v6392, 2
    %v6394 = vadd.f32 %v6392, %v6393
    %v6395 = vrot.slane %v6394, 1
    %v6396 = vadd.f32 %v6394, %v6395
    %v6397 = vsel %vm157, %v6309, 0.0
    %v6398 = vrot.slane %v6397, 4
    %v6399 = vadd.f32 %v6397, %v6398
    %v6400 = vrot.slane %v6399, 2
    %v6401 = vadd.f32 %v6399, %v6400
    %v6402 = vrot.slane %v6401, 1
    %v6403 = vadd.f32 %v6401, %v6402
    %v6404 = vsel %vm157, %v6310, 0.0
    %v6405 = vrot.slane %v6404, 4
    %v6406 = vadd.f32 %v6404, %v6405
    %v6407 = vrot.slane %v6406, 2
    %v6408 = vadd.f32 %v6406, %v6407
    %v6409 = vrot.slane %v6408, 1
    %v6410 = vadd.f32 %v6408, %v6409
    %v6411 = vsel %vm157, %v6311, 0.0
    %v6412 = vrot.slane %v6411, 4
    %v6413 = vadd.f32 %v6411, %v6412
    %v6414 = vrot.slane %v6413, 2
    %v6415 = vadd.f32 %v6413, %v6414
    %v6416 = vrot.slane %v6415, 1
    %v6417 = vadd.f32 %v6415, %v6416
    %v6418 = vsel %vm157, %v6312, 0.0
    %v6419 = vrot.slane %v6418, 4
    %v6420 = vadd.f32 %v6418, %v6419
    %v6421 = vrot.slane %v6420, 2
    %v6422 = vadd.f32 %v6420, %v6421
    %v6423 = vrot.slane %v6422, 1
    %v6424 = vadd.f32 %v6422, %v6423
    %vm6425 = vcmp.gt.f32.partialorder %v6319, 0.0
    %vm6426 = vcmp.gt.f32.partialorder %v6326, 0.0
    %vm6427 = vcmp.gt.f32.partialorder %v6333, 0.0
    %vm6428 = vcmp.gt.f32.partialorder %v6340, 0.0
    %vm6429 = vcmp.gt.f32.partialorder %v6347, 0.0
    %vm6430 = vcmp.gt.f32.partialorder %v6354, 0.0
    %vm6431 = vcmp.gt.f32.partialorder %v6361, 0.0
    %vm6432 = vcmp.gt.f32.partialorder %v6368, 0.0
    %vm6433 = vcmp.gt.f32.partialorder %v6375, 0.0
    %vm6434 = vcmp.gt.f32.partialorder %v6382, 0.0
    %vm6435 = vcmp.gt.f32.partialorder %v6389, 0.0
    %vm6436 = vcmp.gt.f32.partialorder %v6396, 0.0
    %vm6437 = vcmp.gt.f32.partialorder %v6403, 0.0
    %vm6438 = vcmp.gt.f32.partialorder %v6410, 0.0
    %vm6439 = vcmp.gt.f32.partialorder %v6417, 0.0
    %vm6440 = vcmp.gt.f32.partialorder %v6424, 0.0
    %v6441 = vmin.f32 %v6319, 0.0
    %v6442 = vmin.f32 %v6326, 0.0
    %v6443 = vmin.f32 %v6333, 0.0
    %v6444 = vmin.f32 %v6340, 0.0
    %v6445 = vmin.f32 %v6347, 0.0
    %v6446 = vmin.f32 %v6354, 0.0
    %v6447 = vmin.f32 %v6361, 0.0
    %v6448 = vmin.f32 %v6368, 0.0
    %v6449 = vmin.f32 %v6375, 0.0
    %v6450 = vmin.f32 %v6382, 0.0
    %v6451 = vmin.f32 %v6389, 0.0
    %v6452 = vmin.f32 %v6396, 0.0
    %v6453 = vmin.f32 %v6403, 0.0
    %v6454 = vmin.f32 %v6410, 0.0
    %v6455 = vmin.f32 %v6417, 0.0
    %v6456 = vmin.f32 %v6424, 0.0
    %v6457 = vmul.f32 %v6441, 1.442695
    %v6458 = vpow.pop %v6457
    %v6459 = vmul.f32 %v6442, 1.442695
    %v6460 = vpow.pop %v6459
    %v6461 = vmul.f32 %v6443, 1.442695
    %v6462 = vpow.pop %v6461
    %v6463 = vmul.f32 %v6444, 1.442695
    %v6464 = vpow.pop %v6463
    %v6465 = vmul.f32 %v6445, 1.442695
    %v6466 = vpow.pop %v6465
    %v6467 = vmul.f32 %v6446, 1.442695
    %v6468 = vpow.pop %v6467
    %v6469 = vmul.f32 %v6447, 1.442695
    %v6470 = vpow.pop %v6469
    %v6471 = vmul.f32 %v6448, 1.442695
    %v6472 = vpow.pop %v6471
    %v6473 = vmul.f32 %v6449, 1.442695
    %v6474 = vpow.pop %v6473
    %v6475 = vmul.f32 %v6450, 1.442695
    %v6476 = vpow.pop %v6475
    %v6477 = vmul.f32 %v6451, 1.442695
    %v6478 = vpow.pop %v6477
    %v6479 = vmul.f32 %v6452, 1.442695
    %v6480 = vpow.pop %v6479
    %v6481 = vmul.f32 %v6453, 1.442695
    %v6482 = vpow.pop %v6481
    %v6483 = vmul.f32 %v6454, 1.442695
    %v6484 = vpow.pop %v6483
    %v6485 = vmul.f32 %v6455, 1.442695
    %v6486 = vpow.pop %v6485
    %v6487 = vmul.f32 %v6456, 1.442695
    %v6488 = vpow.pop %v6487
    %v6489 = vsub.f32 %v6458, 1.0
    %v6490 = vsub.f32 %v6460, 1.0
    %v6491 = vsub.f32 %v6462, 1.0
    %v6492 = vsub.f32 %v6464, 1.0
    %v6493 = vsub.f32 %v6466, 1.0
    %v6494 = vsub.f32 %v6468, 1.0
    %v6495 = vsub.f32 %v6470, 1.0
    %v6496 = vsub.f32 %v6472, 1.0
    %v6497 = vsub.f32 %v6474, 1.0
    %v6498 = vsub.f32 %v6476, 1.0
    %v6499 = vsub.f32 %v6478, 1.0
    %v6500 = vsub.f32 %v6480, 1.0
    %v6501 = vsub.f32 %v6482, 1.0
    %v6502 = vsub.f32 %v6484, 1.0
    %v6503 = vsub.f32 %v6486, 1.0
    %v6504 = vsub.f32 %v6488, 1.0
    %v6505 = vsel %vm6425, %v6319, %v6489
    %v6506 = vsel %vm6426, %v6326, %v6490
    %v6507 = vsel %vm6427, %v6333, %v6491
    %v6508 = vsel %vm6428, %v6340, %v6492
    %v6509 = vsel %vm6429, %v6347, %v6493
    %v6510 = vsel %vm6430, %v6354, %v6494
    %v6511 = vsel %vm6431, %v6361, %v6495
    %v6512 = vsel %vm6432, %v6368, %v6496
    %v6513 = vsel %vm6433, %v6375, %v6497
    %v6514 = vsel %vm6434, %v6382, %v6498
    %v6515 = vsel %vm6435, %v6389, %v6499
    %v6516 = vsel %vm6436, %v6396, %v6500
    %v6517 = vsel %vm6437, %v6403, %v6501
    %v6518 = vsel %vm6438, %v6410, %v6502
    %v6519 = vsel %vm6439, %v6417, %v6503
    %v6520 = vsel %vm6440, %v6424, %v6504
    %v6521 = vrot.slane %v1005, 1
    %v6522 = vrot.slane %v1005, 2
    %v6523 = vrot.slane %v1005, 3
    %v6524 = vrot.slane %v1005, 4
    %v6525 = vrot.slane %v1005, 5
    %v6526 = vrot.slane %v1005, 6
    %v6527 = vrot.slane %v1005, 7
    %v6528 = vrot.slane %v1008, 1
    %v6529 = vrot.slane %v1008, 2
    %v6530 = vrot.slane %v1008, 3
    %v6531 = vrot.slane %v1008, 4
    %v6532 = vrot.slane %v1008, 5
    %v6533 = vrot.slane %v1008, 6
    %v6534 = vrot.slane %v1008, 7
    %6535 = vrot.lane.b32.xlu0 %v6521, 64
    %v6536 = vpop.permute.xlu0 %6535
    %6537 = vrot.lane.b32.xlu0 %v6522, 64
    %v6538 = vpop.permute.xlu0 %6537
    %6539 = vrot.lane.b32.xlu0 %v6523, 64
    %v6540 = vpop.permute.xlu0 %6539
    %6541 = vrot.lane.b32.xlu0 %v6524, 64
    %v6542 = vpop.permute.xlu0 %6541
    %6543 = vrot.lane.b32.xlu0 %v6525, 64
    %v6544 = vpop.permute.xlu0 %6543
    %6545 = vrot.lane.b32.xlu0 %v6526, 64
    %v6546 = vpop.permute.xlu0 %6545
    %6547 = vrot.lane.b32.xlu0 %v6527, 64
    %v6548 = vpop.permute.xlu0 %6547
    %6549 = vrot.lane.b32.xlu0 %v6528, 64
    %v6550 = vpop.permute.xlu0 %6549
    %6551 = vrot.lane.b32.xlu0 %v6529, 64
    %v6552 = vpop.permute.xlu0 %6551
    %6553 = vrot.lane.b32.xlu0 %v6530, 64
    %v6554 = vpop.permute.xlu0 %6553
    %6555 = vrot.lane.b32.xlu0 %v6531, 64
    %v6556 = vpop.permute.xlu0 %6555
    %6557 = vrot.lane.b32.xlu0 %v6532, 64
    %v6558 = vpop.permute.xlu0 %6557
    %6559 = vrot.lane.b32.xlu0 %v6533, 64
    %v6560 = vpop.permute.xlu0 %6559
    %6561 = vrot.lane.b32.xlu0 %v6534, 64
    %v6562 = vpop.permute.xlu0 %6561
    %v6579 = vadd.f32 %v6505, %v1016
    %v6580 = vadd.f32 %v6506, %v6536
    %v6581 = vadd.f32 %v6507, %v6538
    %v6582 = vadd.f32 %v6508, %v6540
    %v6583 = vadd.f32 %v6509, %v6542
    %v6584 = vadd.f32 %v6510, %v6544
    %v6585 = vadd.f32 %v6511, %v6546
    %v6586 = vadd.f32 %v6512, %v6548
    %v6587 = vadd.f32 %v6513, %v1018
    %v6588 = vadd.f32 %v6514, %v6550
    %v6589 = vadd.f32 %v6515, %v6552
    %v6590 = vadd.f32 %v6516, %v6554
    %v6591 = vadd.f32 %v6517, %v6556
    %v6592 = vadd.f32 %v6518, %v6558
    %v6593 = vadd.f32 %v6519, %v6560
    %v6594 = vadd.f32 %v6520, %v6562
    %v6595 = vld [vmem:[%s15] sm:$0xff]
    %v6596 = vld [vmem:[%s15 + $0x8] sm:$0xff]
    %v6597 = vld [vmem:[%s15 + $0x10] sm:$0xff]
    %v6598 = vld [vmem:[%s15 + $0x18] sm:$0xff]
    %v6599 = vld [vmem:[%s16] sm:$0x1]
    %v6601 = vlaneseq
    %v6602 = vshrl.u32 %v6601, 7
    %v6603 = vsub.s32 0, %v6602
    %v6604 = vrot.slane %v6599, %v6603
    %v6622 = vrot.slane %v6580, 7
    %v6623 = vsel %vm5942, %v6622, %v6579
    %v6624 = vrot.slane %v6581, 6
    %v6625 = vsel %vm5945, %v6624, %v6623
    %v6626 = vrot.slane %v6582, 5
    %v6627 = vsel %vm5948, %v6626, %v6625
    %v6628 = vrot.slane %v6583, 4
    %v6629 = vsel %vm5951, %v6628, %v6627
    %v6630 = vrot.slane %v6584, 3
    %v6631 = vsel %vm5954, %v6630, %v6629
    %v6632 = vrot.slane %v6585, 2
    %v6633 = vsel %vm5957, %v6632, %v6631
    %v6634 = vrot.slane %v6586, 1
    %v6635 = vsel %vm5960, %v6634, %v6633
    %v6636 = vrot.slane %v6588, 7
    %v6637 = vsel %vm5942, %v6636, %v6587
    %v6638 = vrot.slane %v6589, 6
    %v6639 = vsel %vm5945, %v6638, %v6637
    %v6640 = vrot.slane %v6590, 5
    %v6641 = vsel %vm5948, %v6640, %v6639
    %v6642 = vrot.slane %v6591, 4
    %v6643 = vsel %vm5951, %v6642, %v6641
    %v6644 = vrot.slane %v6592, 3
    %v6645 = vsel %vm5954, %v6644, %v6643
    %v6646 = vrot.slane %v6593, 2
    %v6647 = vsel %vm5957, %v6646, %v6645
    %v6648 = vrot.slane %v6594, 1
    %v6649 = vsel %vm5960, %v6648, %v6647
    %v6650 = vsel %vm157, %v6635, 0
    %v6652 = vsel %vm157, %v6649, 0
    %6654 = vmatprep.subr.mxu0 0.0
    %6655 = vmatpush1.msra.mxu0 %v6595
    %6656 = vmatprep.subr.mxu0 0.0
    %6657 = vmatpush1.msra.mxu0 %v6596
    %6658 = vmatprep.subr.mxu0 0.0
    %6659 = vmatpush1.msra.mxu0 %v6597
    %6660 = vmatprep.subr.mxu0 0.0
    %6661 = vmatpush1.msra.mxu0 %v6598
    %6662 = vmatprep.subr.mxu0 0.0
    %6663 = vmatpush1.msra.mxu0 0.0
    %6664 = vmatprep.subr.mxu0 0.0
    %6665 = vmatpush1.msra.mxu0 0.0
    %6666 = vmatprep.subr.mxu0 0.0
    %6667 = vmatpush1.msra.mxu0 0.0
    %6668 = vmatprep.subr.mxu0 0.0
    %6669 = vmatpush1.msra.mxu0 0.0
    %6670 = vmatprep.subr.mxu0 0.0
    %6671 = vmatpush1.msra.mxu0 0.0
    %6672 = vmatprep.subr.mxu0 0.0
    %6673 = vmatpush1.msra.mxu0 0.0
    %6674 = vmatprep.subr.mxu0 0.0
    %6675 = vmatpush1.msra.mxu0 0.0
    %6676 = vmatprep.subr.mxu0 0.0
    %6677 = vmatpush1.msra.mxu0 0.0
    %6678 = vmatprep.subr.mxu0 0.0
    %6679 = vmatpush1.msra.mxu0 0.0
    %6680 = vmatprep.subr.mxu0 0.0
    %6681 = vmatpush1.msra.mxu0 0.0
    %6682 = vmatprep.subr.mxu0 0.0
    %6683 = vmatpush1.msra.mxu0 0.0
    %6684 = vmatprep.subr.mxu0 0.0
    %6685 = vmatpush1.msra.mxu0 0.0
    %6686 = vmatprep.subr.mxu0 0.0
    %6687 = vmatpush1.msra.mxu0 0.0
    %6688 = vmatprep.subr.mxu0 0.0
    %6689 = vmatpush1.msra.mxu0 0.0
    %6690 = vmatprep.subr.mxu0 0.0
    %6691 = vmatpush1.msra.mxu0 0.0
    %6692 = vmatprep.subr.mxu0 0.0
    %6693 = vmatpush1.msra.mxu0 0.0
    %6694 = vmatprep.subr.mxu0 0.0
    %6695 = vmatpush1.msra.mxu0 0.0
    %6696 = vmatprep.subr.mxu0 0.0
    %6697 = vmatpush1.msra.mxu0 0.0
    %6698 = vmatprep.subr.mxu0 0.0
    %6699 = vmatpush1.msra.mxu0 0.0
    %6700 = vmatprep.subr.mxu0 0.0
    %6701 = vmatpush1.msra.mxu0 0.0
    %6702 = vmatprep.subr.mxu0 0.0
    %6703 = vmatpush1.msra.mxu0 0.0
    %6704 = vmatprep.subr.mxu0 0.0
    %6705 = vmatpush1.msra.mxu0 0.0
    %6706 = vmatprep.subr.mxu0 0.0
    %6707 = vmatpush1.msra.mxu0 0.0
    %6708 = vmatprep.subr.mxu0 0.0
    %6709 = vmatpush1.msra.mxu0 0.0
    %6710 = vmatprep.subr.mxu0 0.0
    %6711 = vmatpush1.msra.mxu0 0.0
    %6712 = vmatprep.subr.mxu0 0.0
    %6713 = vmatpush1.msra.mxu0 0.0
    %6714 = vmatprep.subr.mxu0 0.0
    %6715 = vmatpush1.msra.mxu0 0.0
    %6716 = vmatprep.subr.mxu0 0.0
    %6717 = vmatpush1.msra.mxu0 0.0
    %6718 = vmatprep.mubr.f32.mxu0 0.0
    %6719 = vmatmul.mubr.f32.gmra.mrb[0].mxu0 %v6650
    %v6720 = vpop.f32.mrb[0].mxu0
    %v6721 = vadd.f32 %v6604, %v6720
    %v6722 = vpop.f32.mrb[0].mxu0
    %6723 = vmatprep.mubr.f32.mxu0 0.0
    %6724 = vmatmul.mubr.f32.gmra.mrb[0].mxu0 %v6652
    %v6725 = vpop.f32.mrb[0].mxu0
    %v6726 = vadd.f32 %v6604, %v6725
    %v6727 = vpop.f32.mrb[0].mxu0
    %6728 = vdwg.mxu0
    %v6729 = vld [vmem:[%s3] sm:$0xff]
    %v6730 = vld [vmem:[%s3 + $0x8] sm:$0xff]
    %6732 = vset.pattern.permute.xlu0 0
    %6733 = vperm.xlu0 %6732, %v6729
    %v6734 = vpop.permute.xlu0 %6733
    %6737 = vset.pattern.permute.xlu0 0
    %6738 = vperm.xlu0 %6737, %v6730
    %v6739 = vpop.permute.xlu0 %6738
    %v6741 = vmul.f32 %v6721, %v6734
    %v6742 = vmul.f32 %v6726, %v6739
    %6743 = vst [vmem:[#allocation2] sm:$0xff] %v6741
    %6744 = vst [vmem:[#allocation2 + $0x8] sm:$0xff] %v6742
    // Predicated region
    $region70: #{tpu_custom_call.1} parent=1 // pred_check
      _
    $region71: #{tpu_custom_call.1} parent=1 // pred_check_branch
      %6746 = sbr.rel (0) target = $region73
    $region72: #{tpu_custom_call.1} parent=1 // pred_region
      %s6748 = ssub.s32 256, 256
      %6749 = vsyncadd [#allocation3], %s6748
      %s6750 = sshll.u32 [#allocation2], 4
      %s6751 = int_to_ptr.vmem [resolvable:$true] %s6750
      %6756 = dma.vmem_to_hbm [thread:$0]  %s6751, 256, %s17, [#allocation3], 128, 128, 8
    $region73: #{tpu_custom_call.1} parent=1 // pred_fallthru
      _
    // Predicated region
    $region74: #{tpu_custom_call.1} parent=1 // pred_check
      _
    $region75: #{tpu_custom_call.1} parent=1 // pred_check_branch
      %6758 = sbr.rel (0) target = $region77
    $region76: #{tpu_custom_call.1} parent=1 // pred_region
      %6759 = dma.done [#allocation3], 256
    $region77: #{tpu_custom_call.1} parent=1 // pred_fallthru
      _
    %6760 = vsyncpa [#allocation3], 1

</llo_original>
